<compile_context>
chip_gen: v5e
topology: v5e:2x2
jax: 0.10.0
libtpu: 0.0.40
codegen_flags: <defaults>
</compile_context>

<pallas_src>
import functools

import numpy as np

import jax
import jax.numpy as jnp
from jax.experimental import pallas as pl
from jax.experimental.pallas import tpu as pltpu


# ----------------------------------------------------------------------------
# Constant 0/1 "spatial" matrices (built at trace time; tiny).
# Activations are row-major flattened (pixels, channels); nearest-2x upsample and
# 3x3 zero-padding become plain matmuls on the MXU in that layout.
# ----------------------------------------------------------------------------
def _spatial_matrices(H, W, Hp, Wp):
    Ho, Wo = 2 * H, 2 * W
    up_pad = np.zeros((Hp * Wp, H * W), np.float32)   # upsample 2x, then zero-pad by 1 (+ alignment cols)
    pad = np.zeros((Hp * Wp, Ho * Wo), np.float32)    # zero-pad by 1 (+ alignment cols)
    up = np.zeros((Ho * Wo, H * W), np.float32)       # plain nearest 2x upsample (bypass path)
    for r in range(Ho):
        for c in range(Wo):
            dst_pad = (r + 1) * Wp + (c + 1)
            src_lo = (r // 2) * W + (c // 2)
            up_pad[dst_pad, src_lo] = 1.0
            pad[dst_pad, r * Wo + c] = 1.0
            up[r * Wo + c, src_lo] = 1.0
    return jnp.asarray(up_pad), jnp.asarray(up), jnp.asarray(pad)


# ----------------------------------------------------------------------------
# The fused kernel
# ----------------------------------------------------------------------------
def _make_resblock_kernel(B, H, W, Cin, Cout, Hp, Wp):
    Ho, Wo = 2 * H, 2 * W
    No = Ho * Wo
    Npix = H * W
    eps = 1e-5

    def kernel(x_ref, up_pad_ref, up_ref, pad_ref,
               w1_ref, b1_ref, g1_ref, be1_ref,
               w2_ref, b2_ref, g2_ref, be2_ref,
               o_ref):
        x = x_ref[...]                                   # (B, Npix, Cin)
        xf = x.reshape(B * Npix, Cin)                    # collapse leading dims (lane dim untouched)

        # ---- BatchNorm1: training-mode batch stats over (N, H, W), single pass ----
        n1 = float(B * Npix)
        s1 = jnp.sum(xf, axis=0, keepdims=True)          # (1, Cin)
        q1 = jnp.sum(xf * xf, axis=0, keepdims=True)
        mean1 = s1 / n1
        var1 = q1 / n1 - mean1 * mean1
        scale1 = g1_ref[...] * jax.lax.rsqrt(var1 + eps)
        shift1 = be1_ref[...] - mean1 * scale1

        up_pad = up_pad_ref[...]                         # (Hp*Wp, Npix)
        up = up_ref[...]                                 # (No, Npix)
        pad = pad_ref[...]                               # (Hp*Wp, No)
        w1 = w1_ref[...]                                 # (9*Cin, Cout)
        w2 = w2_ref[...]                                 # (9*Cout, Cout)
        b1 = b1_ref[...]                                 # (1, Cout)
        b2 = b2_ref[...]

        def conv3x3(padded_flat, w, bias, cin):
            # padded_flat: (Hp*Wp, cin) zero-padded image, row-major over (Hp, Wp).
            p3 = padded_flat.reshape(Hp, Wp, cin)        # Wp is a multiple of 8 -> aligned split
            cols = jnp.concatenate(
                [p3[kh:kh + Ho, kw:kw + Wo, :].reshape(No, cin)
                 for kh in range(3) for kw in range(3)],
                axis=1)                                  # (No, 9*cin) im2col, one wide-K dot
            return jnp.dot(cols, w, preferred_element_type=jnp.float32) + bias

        # ---- phase 1: BN1 -> ReLU -> upsample -> conv1; accumulate BN2 stats ----
        h1 = []
        s2 = jnp.zeros((1, Cout), jnp.float32)
        q2 = jnp.zeros((1, Cout), jnp.float32)
        for bidx in range(B):
            y = jnp.maximum(x[bidx] * scale1 + shift1, 0.0)                 # (Npix, Cin)
            u = jnp.dot(up_pad, y, preferred_element_type=jnp.float32)      # upsample+pad (MXU)
            h = conv3x3(u, w1, b1, Cin)                                     # (No, Cout)
            h1.append(h)
            s2 = s2 + jnp.sum(h, axis=0, keepdims=True)
            q2 = q2 + jnp.sum(h * h, axis=0, keepdims=True)

        # ---- BatchNorm2 statistics (whole batch) ----
        n2 = float(B * No)
        mean2 = s2 / n2
        var2 = q2 / n2 - mean2 * mean2
        scale2 = g2_ref[...] * jax.lax.rsqrt(var2 + eps)
        shift2 = be2_ref[...] - mean2 * scale2

        # ---- phase 2: BN2 -> ReLU -> conv2 -> + bypass upsample(x) ----
        for bidx in range(B):
            y = jnp.maximum(h1[bidx] * scale2 + shift2, 0.0)                # (No, Cout)
            p = jnp.dot(pad, y, preferred_element_type=jnp.float32)         # zero-pad (MXU)
            o = conv3x3(p, w2, b2, Cout)                                    # (No, Cout)
            byp = jnp.dot(up, x[bidx], preferred_element_type=jnp.float32)  # bypass upsample
            o_ref[bidx] = (o + byp).astype(o_ref.dtype)

    return kernel


# ----------------------------------------------------------------------------
# Wrapper
# ----------------------------------------------------------------------------
def resblock_generator_forward(x, params, *, stride=2):
    """x: (B, Cin, H, W) NCHW float32.  Returns (B, Cout, 2H, 2W)."""
    # The reference model path always upsamples by 2; with stride==1 the bypass would
    # shape-mismatch in PyTorch as well, so only the stride != 1 (upsampling) block is supported.
    assert stride != 1, "ResBlockGenerator is only well-defined with stride != 1"
    B, Cin, H, W = x.shape
    Cout = params["w1"].shape[0]
    assert params["w1"].shape[1] == Cin
    assert Cin == Cout, "residual add requires in_channels == out_channels"

    Ho, Wo = 2 * H, 2 * W
    Hp = Ho + 2
    Wp = ((Wo + 2 + 7) // 8) * 8          # pad width up to a sublane multiple (extra cols stay zero)

    # Lane-dense flattened activations: (B, H*W, C), channels last.
    x_flat = jnp.transpose(x, (0, 2, 3, 1)).reshape(B, H * W, Cin)

    up_pad, up, pad = _spatial_matrices(H, W, Hp, Wp)

    # PyTorch (Cout, Cin, kh, kw) -> im2col weight matrix (kh, kw, Cin)-major rows.
    w1 = jnp.transpose(params["w1"], (2, 3, 1, 0)).reshape(9 * Cin, Cout)
    w2 = jnp.transpose(params["w2"], (2, 3, 1, 0)).reshape(9 * Cout, Cout)
    b1 = params["b1"].reshape(1, Cout)
    b2 = params["b2"].reshape(1, Cout)
    g1 = params["gamma1"].reshape(1, Cin)
    be1 = params["beta1"].reshape(1, Cin)
    g2 = params["gamma2"].reshape(1, Cout)
    be2 = params["beta2"].reshape(1, Cout)

    kernel = _make_resblock_kernel(B, H, W, Cin, Cout, Hp, Wp)
    out_flat = pl.pallas_call(
        kernel,
        out_shape=jax.ShapeDtypeStruct((B, Ho * Wo, Cout), jnp.float32),
        compiler_params=pltpu.CompilerParams(vmem_limit_bytes=32 * 1024 * 1024),
    )(x_flat, up_pad, up, pad, w1, b1, g1, be1, w2, b2, g2, be2)

    return out_flat.reshape(B, Ho, Wo, Cout).transpose(0, 3, 1, 2)


# ----------------------------------------------------------------------------
# Parameters (PyTorch-style init: xavier_uniform(gain=1) conv weights, default bias,
# BatchNorm gamma=1 / beta=0)
# ----------------------------------------------------------------------------
def make_params(key, in_channels, out_channels):
    k = jax.random.split(key, 4)

    def xavier_uniform(kk, shape):
        fan_out = shape[0] * shape[2] * shape[3]
        fan_in = shape[1] * shape[2] * shape[3]
        bound = (6.0 / (fan_in + fan_out)) ** 0.5
        return jax.random.uniform(kk, shape, jnp.float32, -bound, bound)

    def conv_bias(kk, cin, cout):
        bound = 1.0 / (cin * 9) ** 0.5
        return jax.random.uniform(kk, (cout,), jnp.float32, -bound, bound)

    return {
        "w1": xavier_uniform(k[0], (out_channels, in_channels, 3, 3)),
        "b1": conv_bias(k[1], in_channels, out_channels),
        "w2": xavier_uniform(k[2], (out_channels, out_channels, 3, 3)),
        "b2": conv_bias(k[3], out_channels, out_channels),
        "gamma1": jnp.ones((in_channels,), jnp.float32),
        "beta1": jnp.zeros((in_channels,), jnp.float32),
        "gamma2": jnp.ones((out_channels,), jnp.float32),
        "beta2": jnp.zeros((out_channels,), jnp.float32),
    }


# ----------------------------------------------------------------------------
# Pure-JAX reference (for an in-script correctness check)
# ----------------------------------------------------------------------------
def _reference_forward(x, params):
    eps = 1e-5

    def bn(h, gamma, beta):
        mean = jnp.mean(h, axis=(0, 2, 3), keepdims=True)
        var = jnp.mean(jnp.square(h - mean), axis=(0, 2, 3), keepdims=True)
        return ((h - mean) * jax.lax.rsqrt(var + eps) * gamma.reshape(1, -1, 1, 1)
                + beta.reshape(1, -1, 1, 1))

    def up2(h):
        return jnp.repeat(jnp.repeat(h, 2, axis=2), 2, axis=3)

    def conv(h, w, b):
        y = jax.lax.conv_general_dilated(
            h, w, (1, 1), ((1, 1), (1, 1)),
            dimension_numbers=("NCHW", "OIHW", "NCHW"),
            precision=jax.lax.Precision.HIGHEST)
        return y + b.reshape(1, -1, 1, 1)

    h = jax.nn.relu(bn(x, params["gamma1"], params["beta1"]))
    h = up2(h)
    h = conv(h, params["w1"], params["b1"])
    h = jax.nn.relu(bn(h, params["gamma2"], params["beta2"]))
    h = conv(h, params["w2"], params["b2"])
    return h + up2(x)


# ----------------------------------------------------------------------------
if __name__ == "__main__":
    # SNGAN-generator resblock: 8x8 -> 16x16, in_channels == out_channels == 128 (lane-dense).
    B, C, H, W = 2, 128, 8, 8

    key = jax.random.PRNGKey(0)
    pkey, xkey = jax.random.split(key)
    params = make_params(pkey, C, C)
    x = jax.random.normal(xkey, (B, C, H, W), jnp.float32)

    fwd = jax.jit(functools.partial(resblock_generator_forward, stride=2))
    out = jax.block_until_ready(fwd(x, params))

    assert out.shape == (B, C, 2 * H, 2 * W), out.shape
    assert bool(jnp.all(jnp.isfinite(out)))

    ref = jax.block_until_ready(jax.jit(_reference_forward)(x, params))
    assert bool(jnp.allclose(out, ref, rtol=1e-2, atol=1e-2)), \
        float(jnp.max(jnp.abs(out - ref)))

    print("KERNEL_OK")
</pallas_src>

<mosaic_0001>
module attributes {stable_mosaic.version = 11 : i64} {
  func.func @kernel(%arg0: memref<2x64x128xf32, #tpu.memory_space<vmem>>, %arg1: memref<432x64xf32, #tpu.memory_space<vmem>>, %arg2: memref<256x64xf32, #tpu.memory_space<vmem>>, %arg3: memref<432x256xf32, #tpu.memory_space<vmem>>, %arg4: memref<1152x128xf32, #tpu.memory_space<vmem>>, %arg5: memref<1x128xf32, #tpu.memory_space<vmem>>, %arg6: memref<1x128xf32, #tpu.memory_space<vmem>>, %arg7: memref<1x128xf32, #tpu.memory_space<vmem>>, %arg8: memref<1152x128xf32, #tpu.memory_space<vmem>>, %arg9: memref<1x128xf32, #tpu.memory_space<vmem>>, %arg10: memref<1x128xf32, #tpu.memory_space<vmem>>, %arg11: memref<1x128xf32, #tpu.memory_space<vmem>>, %arg12: memref<2x256x128xf32, #tpu.memory_space<vmem>>) attributes {dimension_semantics = [], scalar_prefetch = 0 : i64, scratch_operands = 0 : i64, tpu.core_type = #tpu.core_type<tc>} {
    %c0 = arith.constant 0 : index
    %c0_0 = arith.constant 0 : index
    %c0_1 = arith.constant 0 : index
    %0 = vector.load %arg0[%c0, %c0_0, %c0_1] : memref<2x64x128xf32, #tpu.memory_space<vmem>>, vector<2x64x128xf32>
    %1 = vector.shape_cast %0 : vector<2x64x128xf32> to vector<128x128xf32>
    %cst = arith.constant dense<0.000000e+00> : vector<128xf32>
    %2 = vector.multi_reduction <add>, %1, %cst [0] : vector<128x128xf32> to vector<128xf32>
    %3 = vector.shape_cast %2 : vector<128xf32> to vector<1x128xf32>
    %4 = arith.mulf %1, %1 : vector<128x128xf32>
    %cst_2 = arith.constant dense<0.000000e+00> : vector<128xf32>
    %5 = vector.multi_reduction <add>, %4, %cst_2 [0] : vector<128x128xf32> to vector<128xf32>
    %6 = vector.shape_cast %5 : vector<128xf32> to vector<1x128xf32>
    %cst_3 = arith.constant 1.280000e+02 : f32
    %7 = vector.broadcast %cst_3 : f32 to vector<1x128xf32>
    %8 = arith.divf %3, %7 : vector<1x128xf32>
    %cst_4 = arith.constant 1.280000e+02 : f32
    %9 = vector.broadcast %cst_4 : f32 to vector<1x128xf32>
    %10 = arith.divf %6, %9 : vector<1x128xf32>
    %11 = arith.mulf %8, %8 : vector<1x128xf32>
    %12 = arith.subf %10, %11 : vector<1x128xf32>
    %c0_5 = arith.constant 0 : index
    %c0_6 = arith.constant 0 : index
    %13 = vector.load %arg6[%c0_5, %c0_6] : memref<1x128xf32, #tpu.memory_space<vmem>>, vector<1x128xf32>
    %cst_7 = arith.constant 9.99999974E-6 : f32
    %14 = vector.broadcast %cst_7 : f32 to vector<1x128xf32>
    %15 = arith.addf %12, %14 : vector<1x128xf32>
    %16 = math.rsqrt %15 : vector<1x128xf32>
    %17 = arith.mulf %13, %16 : vector<1x128xf32>
    %c0_8 = arith.constant 0 : index
    %c0_9 = arith.constant 0 : index
    %18 = vector.load %arg7[%c0_8, %c0_9] : memref<1x128xf32, #tpu.memory_space<vmem>>, vector<1x128xf32>
    %19 = arith.mulf %8, %17 : vector<1x128xf32>
    %20 = arith.subf %18, %19 : vector<1x128xf32>
    %c0_10 = arith.constant 0 : index
    %c0_11 = arith.constant 0 : index
    %21 = vector.load %arg1[%c0_10, %c0_11] : memref<432x64xf32, #tpu.memory_space<vmem>>, vector<432x64xf32>
    %c0_12 = arith.constant 0 : index
    %c0_13 = arith.constant 0 : index
    %22 = vector.load %arg2[%c0_12, %c0_13] : memref<256x64xf32, #tpu.memory_space<vmem>>, vector<256x64xf32>
    %c0_14 = arith.constant 0 : index
    %c0_15 = arith.constant 0 : index
    %23 = vector.load %arg3[%c0_14, %c0_15] : memref<432x256xf32, #tpu.memory_space<vmem>>, vector<432x256xf32>
    %c0_16 = arith.constant 0 : index
    %c0_17 = arith.constant 0 : index
    %24 = vector.load %arg4[%c0_16, %c0_17] : memref<1152x128xf32, #tpu.memory_space<vmem>>, vector<1152x128xf32>
    %c0_18 = arith.constant 0 : index
    %c0_19 = arith.constant 0 : index
    %25 = vector.load %arg8[%c0_18, %c0_19] : memref<1152x128xf32, #tpu.memory_space<vmem>>, vector<1152x128xf32>
    %c0_20 = arith.constant 0 : index
    %c0_21 = arith.constant 0 : index
    %26 = vector.load %arg5[%c0_20, %c0_21] : memref<1x128xf32, #tpu.memory_space<vmem>>, vector<1x128xf32>
    %c0_22 = arith.constant 0 : index
    %c0_23 = arith.constant 0 : index
    %27 = vector.load %arg9[%c0_22, %c0_23] : memref<1x128xf32, #tpu.memory_space<vmem>>, vector<1x128xf32>
    %cst_24 = arith.constant 0.000000e+00 : f32
    %28 = vector.broadcast %cst_24 : f32 to vector<1x128xf32>
    %cst_25 = arith.constant 0.000000e+00 : f32
    %29 = vector.broadcast %cst_25 : f32 to vector<1x128xf32>
    %30 = vector.extract_strided_slice %0 {offsets = [0, 0, 0], sizes = [1, 64, 128], strides = [1, 1, 1]} : vector<2x64x128xf32> to vector<1x64x128xf32>
    %31 = vector.shape_cast %30 : vector<1x64x128xf32> to vector<64x128xf32>
    %32 = vector.broadcast %17 : vector<1x128xf32> to vector<64x128xf32>
    %33 = arith.mulf %31, %32 : vector<64x128xf32>
    %34 = vector.broadcast %20 : vector<1x128xf32> to vector<64x128xf32>
    %35 = arith.addf %33, %34 : vector<64x128xf32>
    %cst_26 = arith.constant 0.000000e+00 : f32
    %36 = vector.broadcast %cst_26 : f32 to vector<64x128xf32>
    %37 = arith.maximumf %35, %36 : vector<64x128xf32>
    %cst_27 = arith.constant dense<0.000000e+00> : vector<432x128xf32>
    %38 = tpu.matmul %21, %37, %cst_27 {dimension_numbers = #tpu.dot_dimension_numbers<[1], [0], [0], [1], [0, 0, 1, 1], [], []>} : vector<432x64xf32>, vector<64x128xf32>, vector<432x128xf32> -> vector<432x128xf32>
    %39 = vector.shape_cast %38 : vector<432x128xf32> to vector<18x24x128xf32>
    %40 = vector.extract_strided_slice %39 {offsets = [0, 0, 0], sizes = [16, 16, 128], strides = [1, 1, 1]} : vector<18x24x128xf32> to vector<16x16x128xf32>
    %41 = vector.shape_cast %40 : vector<16x16x128xf32> to vector<256x128xf32>
    %42 = vector.extract_strided_slice %39 {offsets = [0, 1, 0], sizes = [16, 16, 128], strides = [1, 1, 1]} : vector<18x24x128xf32> to vector<16x16x128xf32>
    %43 = vector.shape_cast %42 : vector<16x16x128xf32> to vector<256x128xf32>
    %44 = vector.extract_strided_slice %39 {offsets = [0, 2, 0], sizes = [16, 16, 128], strides = [1, 1, 1]} : vector<18x24x128xf32> to vector<16x16x128xf32>
    %45 = vector.shape_cast %44 : vector<16x16x128xf32> to vector<256x128xf32>
    %46 = vector.extract_strided_slice %39 {offsets = [1, 0, 0], sizes = [16, 16, 128], strides = [1, 1, 1]} : vector<18x24x128xf32> to vector<16x16x128xf32>
    %47 = vector.shape_cast %46 : vector<16x16x128xf32> to vector<256x128xf32>
    %48 = vector.extract_strided_slice %39 {offsets = [1, 1, 0], sizes = [16, 16, 128], strides = [1, 1, 1]} : vector<18x24x128xf32> to vector<16x16x128xf32>
    %49 = vector.shape_cast %48 : vector<16x16x128xf32> to vector<256x128xf32>
    %50 = vector.extract_strided_slice %39 {offsets = [1, 2, 0], sizes = [16, 16, 128], strides = [1, 1, 1]} : vector<18x24x128xf32> to vector<16x16x128xf32>
    %51 = vector.shape_cast %50 : vector<16x16x128xf32> to vector<256x128xf32>
    %52 = vector.extract_strided_slice %39 {offsets = [2, 0, 0], sizes = [16, 16, 128], strides = [1, 1, 1]} : vector<18x24x128xf32> to vector<16x16x128xf32>
    %53 = vector.shape_cast %52 : vector<16x16x128xf32> to vector<256x128xf32>
    %54 = vector.extract_strided_slice %39 {offsets = [2, 1, 0], sizes = [16, 16, 128], strides = [1, 1, 1]} : vector<18x24x128xf32> to vector<16x16x128xf32>
    %55 = vector.shape_cast %54 : vector<16x16x128xf32> to vector<256x128xf32>
    %56 = vector.extract_strided_slice %39 {offsets = [2, 2, 0], sizes = [16, 16, 128], strides = [1, 1, 1]} : vector<18x24x128xf32> to vector<16x16x128xf32>
    %57 = vector.shape_cast %56 : vector<16x16x128xf32> to vector<256x128xf32>
    %58 = tpu.concatenate %41, %43, %45, %47, %49, %51, %53, %55, %57 in 1 : vector<256x128xf32>, vector<256x128xf32>, vector<256x128xf32>, vector<256x128xf32>, vector<256x128xf32>, vector<256x128xf32>, vector<256x128xf32>, vector<256x128xf32>, vector<256x128xf32> -> vector<256x1152xf32>
    %cst_28 = arith.constant dense<0.000000e+00> : vector<256x128xf32>
    %59 = tpu.matmul %58, %24, %cst_28 {dimension_numbers = #tpu.dot_dimension_numbers<[1], [0], [0], [1], [0, 0, 1, 1], [], []>} : vector<256x1152xf32>, vector<1152x128xf32>, vector<256x128xf32> -> vector<256x128xf32>
    %60 = vector.broadcast %26 : vector<1x128xf32> to vector<256x128xf32>
    %61 = arith.addf %59, %60 : vector<256x128xf32>
    %cst_29 = arith.constant dense<0.000000e+00> : vector<128xf32>
    %62 = vector.multi_reduction <add>, %61, %cst_29 [0] : vector<256x128xf32> to vector<128xf32>
    %63 = vector.shape_cast %62 : vector<128xf32> to vector<1x128xf32>
    %64 = arith.addf %28, %63 : vector<1x128xf32>
    %65 = arith.mulf %61, %61 : vector<256x128xf32>
    %cst_30 = arith.constant dense<0.000000e+00> : vector<128xf32>
    %66 = vector.multi_reduction <add>, %65, %cst_30 [0] : vector<256x128xf32> to vector<128xf32>
    %67 = vector.shape_cast %66 : vector<128xf32> to vector<1x128xf32>
    %68 = arith.addf %29, %67 : vector<1x128xf32>
    %69 = vector.extract_strided_slice %0 {offsets = [1, 0, 0], sizes = [1, 64, 128], strides = [1, 1, 1]} : vector<2x64x128xf32> to vector<1x64x128xf32>
    %70 = vector.shape_cast %69 : vector<1x64x128xf32> to vector<64x128xf32>
    %71 = vector.broadcast %17 : vector<1x128xf32> to vector<64x128xf32>
    %72 = arith.mulf %70, %71 : vector<64x128xf32>
    %73 = vector.broadcast %20 : vector<1x128xf32> to vector<64x128xf32>
    %74 = arith.addf %72, %73 : vector<64x128xf32>
    %cst_31 = arith.constant 0.000000e+00 : f32
    %75 = vector.broadcast %cst_31 : f32 to vector<64x128xf32>
    %76 = arith.maximumf %74, %75 : vector<64x128xf32>
    %cst_32 = arith.constant dense<0.000000e+00> : vector<432x128xf32>
    %77 = tpu.matmul %21, %76, %cst_32 {dimension_numbers = #tpu.dot_dimension_numbers<[1], [0], [0], [1], [0, 0, 1, 1], [], []>} : vector<432x64xf32>, vector<64x128xf32>, vector<432x128xf32> -> vector<432x128xf32>
    %78 = vector.shape_cast %77 : vector<432x128xf32> to vector<18x24x128xf32>
    %79 = vector.extract_strided_slice %78 {offsets = [0, 0, 0], sizes = [16, 16, 128], strides = [1, 1, 1]} : vector<18x24x128xf32> to vector<16x16x128xf32>
    %80 = vector.shape_cast %79 : vector<16x16x128xf32> to vector<256x128xf32>
    %81 = vector.extract_strided_slice %78 {offsets = [0, 1, 0], sizes = [16, 16, 128], strides = [1, 1, 1]} : vector<18x24x128xf32> to vector<16x16x128xf32>
    %82 = vector.shape_cast %81 : vector<16x16x128xf32> to vector<256x128xf32>
    %83 = vector.extract_strided_slice %78 {offsets = [0, 2, 0], sizes = [16, 16, 128], strides = [1, 1, 1]} : vector<18x24x128xf32> to vector<16x16x128xf32>
    %84 = vector.shape_cast %83 : vector<16x16x128xf32> to vector<256x128xf32>
    %85 = vector.extract_strided_slice %78 {offsets = [1, 0, 0], sizes = [16, 16, 128], strides = [1, 1, 1]} : vector<18x24x128xf32> to vector<16x16x128xf32>
    %86 = vector.shape_cast %85 : vector<16x16x128xf32> to vector<256x128xf32>
    %87 = vector.extract_strided_slice %78 {offsets = [1, 1, 0], sizes = [16, 16, 128], strides = [1, 1, 1]} : vector<18x24x128xf32> to vector<16x16x128xf32>
    %88 = vector.shape_cast %87 : vector<16x16x128xf32> to vector<256x128xf32>
    %89 = vector.extract_strided_slice %78 {offsets = [1, 2, 0], sizes = [16, 16, 128], strides = [1, 1, 1]} : vector<18x24x128xf32> to vector<16x16x128xf32>
    %90 = vector.shape_cast %89 : vector<16x16x128xf32> to vector<256x128xf32>
    %91 = vector.extract_strided_slice %78 {offsets = [2, 0, 0], sizes = [16, 16, 128], strides = [1, 1, 1]} : vector<18x24x128xf32> to vector<16x16x128xf32>
    %92 = vector.shape_cast %91 : vector<16x16x128xf32> to vector<256x128xf32>
    %93 = vector.extract_strided_slice %78 {offsets = [2, 1, 0], sizes = [16, 16, 128], strides = [1, 1, 1]} : vector<18x24x128xf32> to vector<16x16x128xf32>
    %94 = vector.shape_cast %93 : vector<16x16x128xf32> to vector<256x128xf32>
    %95 = vector.extract_strided_slice %78 {offsets = [2, 2, 0], sizes = [16, 16, 128], strides = [1, 1, 1]} : vector<18x24x128xf32> to vector<16x16x128xf32>
    %96 = vector.shape_cast %95 : vector<16x16x128xf32> to vector<256x128xf32>
    %97 = tpu.concatenate %80, %82, %84, %86, %88, %90, %92, %94, %96 in 1 : vector<256x128xf32>, vector<256x128xf32>, vector<256x128xf32>, vector<256x128xf32>, vector<256x128xf32>, vector<256x128xf32>, vector<256x128xf32>, vector<256x128xf32>, vector<256x128xf32> -> vector<256x1152xf32>
    %cst_33 = arith.constant dense<0.000000e+00> : vector<256x128xf32>
    %98 = tpu.matmul %97, %24, %cst_33 {dimension_numbers = #tpu.dot_dimension_numbers<[1], [0], [0], [1], [0, 0, 1, 1], [], []>} : vector<256x1152xf32>, vector<1152x128xf32>, vector<256x128xf32> -> vector<256x128xf32>
    %99 = vector.broadcast %26 : vector<1x128xf32> to vector<256x128xf32>
    %100 = arith.addf %98, %99 : vector<256x128xf32>
    %cst_34 = arith.constant dense<0.000000e+00> : vector<128xf32>
    %101 = vector.multi_reduction <add>, %100, %cst_34 [0] : vector<256x128xf32> to vector<128xf32>
    %102 = vector.shape_cast %101 : vector<128xf32> to vector<1x128xf32>
    %103 = arith.addf %64, %102 : vector<1x128xf32>
    %104 = arith.mulf %100, %100 : vector<256x128xf32>
    %cst_35 = arith.constant dense<0.000000e+00> : vector<128xf32>
    %105 = vector.multi_reduction <add>, %104, %cst_35 [0] : vector<256x128xf32> to vector<128xf32>
    %106 = vector.shape_cast %105 : vector<128xf32> to vector<1x128xf32>
    %107 = arith.addf %68, %106 : vector<1x128xf32>
    %cst_36 = arith.constant 5.120000e+02 : f32
    %108 = vector.broadcast %cst_36 : f32 to vector<1x128xf32>
    %109 = arith.divf %103, %108 : vector<1x128xf32>
    %cst_37 = arith.constant 5.120000e+02 : f32
    %110 = vector.broadcast %cst_37 : f32 to vector<1x128xf32>
    %111 = arith.divf %107, %110 : vector<1x128xf32>
    %112 = arith.mulf %109, %109 : vector<1x128xf32>
    %113 = arith.subf %111, %112 : vector<1x128xf32>
    %c0_38 = arith.constant 0 : index
    %c0_39 = arith.constant 0 : index
    %114 = vector.load %arg10[%c0_38, %c0_39] : memref<1x128xf32, #tpu.memory_space<vmem>>, vector<1x128xf32>
    %cst_40 = arith.constant 9.99999974E-6 : f32
    %115 = vector.broadcast %cst_40 : f32 to vector<1x128xf32>
    %116 = arith.addf %113, %115 : vector<1x128xf32>
    %117 = math.rsqrt %116 : vector<1x128xf32>
    %118 = arith.mulf %114, %117 : vector<1x128xf32>
    %c0_41 = arith.constant 0 : index
    %c0_42 = arith.constant 0 : index
    %119 = vector.load %arg11[%c0_41, %c0_42] : memref<1x128xf32, #tpu.memory_space<vmem>>, vector<1x128xf32>
    %120 = arith.mulf %109, %118 : vector<1x128xf32>
    %121 = arith.subf %119, %120 : vector<1x128xf32>
    %122 = vector.broadcast %118 : vector<1x128xf32> to vector<256x128xf32>
    %123 = arith.mulf %61, %122 : vector<256x128xf32>
    %124 = vector.broadcast %121 : vector<1x128xf32> to vector<256x128xf32>
    %125 = arith.addf %123, %124 : vector<256x128xf32>
    %cst_43 = arith.constant 0.000000e+00 : f32
    %126 = vector.broadcast %cst_43 : f32 to vector<256x128xf32>
    %127 = arith.maximumf %125, %126 : vector<256x128xf32>
    %cst_44 = arith.constant dense<0.000000e+00> : vector<432x128xf32>
    %128 = tpu.matmul %23, %127, %cst_44 {dimension_numbers = #tpu.dot_dimension_numbers<[1], [0], [0], [1], [0, 0, 1, 1], [], []>} : vector<432x256xf32>, vector<256x128xf32>, vector<432x128xf32> -> vector<432x128xf32>
    %129 = vector.shape_cast %128 : vector<432x128xf32> to vector<18x24x128xf32>
    %130 = vector.extract_strided_slice %129 {offsets = [0, 0, 0], sizes = [16, 16, 128], strides = [1, 1, 1]} : vector<18x24x128xf32> to vector<16x16x128xf32>
    %131 = vector.shape_cast %130 : vector<16x16x128xf32> to vector<256x128xf32>
    %132 = vector.extract_strided_slice %129 {offsets = [0, 1, 0], sizes = [16, 16, 128], strides = [1, 1, 1]} : vector<18x24x128xf32> to vector<16x16x128xf32>
    %133 = vector.shape_cast %132 : vector<16x16x128xf32> to vector<256x128xf32>
    %134 = vector.extract_strided_slice %129 {offsets = [0, 2, 0], sizes = [16, 16, 128], strides = [1, 1, 1]} : vector<18x24x128xf32> to vector<16x16x128xf32>
    %135 = vector.shape_cast %134 : vector<16x16x128xf32> to vector<256x128xf32>
    %136 = vector.extract_strided_slice %129 {offsets = [1, 0, 0], sizes = [16, 16, 128], strides = [1, 1, 1]} : vector<18x24x128xf32> to vector<16x16x128xf32>
    %137 = vector.shape_cast %136 : vector<16x16x128xf32> to vector<256x128xf32>
    %138 = vector.extract_strided_slice %129 {offsets = [1, 1, 0], sizes = [16, 16, 128], strides = [1, 1, 1]} : vector<18x24x128xf32> to vector<16x16x128xf32>
    %139 = vector.shape_cast %138 : vector<16x16x128xf32> to vector<256x128xf32>
    %140 = vector.extract_strided_slice %129 {offsets = [1, 2, 0], sizes = [16, 16, 128], strides = [1, 1, 1]} : vector<18x24x128xf32> to vector<16x16x128xf32>
    %141 = vector.shape_cast %140 : vector<16x16x128xf32> to vector<256x128xf32>
    %142 = vector.extract_strided_slice %129 {offsets = [2, 0, 0], sizes = [16, 16, 128], strides = [1, 1, 1]} : vector<18x24x128xf32> to vector<16x16x128xf32>
    %143 = vector.shape_cast %142 : vector<16x16x128xf32> to vector<256x128xf32>
    %144 = vector.extract_strided_slice %129 {offsets = [2, 1, 0], sizes = [16, 16, 128], strides = [1, 1, 1]} : vector<18x24x128xf32> to vector<16x16x128xf32>
    %145 = vector.shape_cast %144 : vector<16x16x128xf32> to vector<256x128xf32>
    %146 = vector.extract_strided_slice %129 {offsets = [2, 2, 0], sizes = [16, 16, 128], strides = [1, 1, 1]} : vector<18x24x128xf32> to vector<16x16x128xf32>
    %147 = vector.shape_cast %146 : vector<16x16x128xf32> to vector<256x128xf32>
    %148 = tpu.concatenate %131, %133, %135, %137, %139, %141, %143, %145, %147 in 1 : vector<256x128xf32>, vector<256x128xf32>, vector<256x128xf32>, vector<256x128xf32>, vector<256x128xf32>, vector<256x128xf32>, vector<256x128xf32>, vector<256x128xf32>, vector<256x128xf32> -> vector<256x1152xf32>
    %cst_45 = arith.constant dense<0.000000e+00> : vector<256x128xf32>
    %149 = tpu.matmul %148, %25, %cst_45 {dimension_numbers = #tpu.dot_dimension_numbers<[1], [0], [0], [1], [0, 0, 1, 1], [], []>} : vector<256x1152xf32>, vector<1152x128xf32>, vector<256x128xf32> -> vector<256x128xf32>
    %150 = vector.broadcast %27 : vector<1x128xf32> to vector<256x128xf32>
    %151 = arith.addf %149, %150 : vector<256x128xf32>
    %152 = vector.extract_strided_slice %0 {offsets = [0, 0, 0], sizes = [1, 64, 128], strides = [1, 1, 1]} : vector<2x64x128xf32> to vector<1x64x128xf32>
    %153 = vector.shape_cast %152 : vector<1x64x128xf32> to vector<64x128xf32>
    %cst_46 = arith.constant dense<0.000000e+00> : vector<256x128xf32>
    %154 = tpu.matmul %22, %153, %cst_46 {dimension_numbers = #tpu.dot_dimension_numbers<[1], [0], [0], [1], [0, 0, 1, 1], [], []>} : vector<256x64xf32>, vector<64x128xf32>, vector<256x128xf32> -> vector<256x128xf32>
    %155 = arith.addf %151, %154 : vector<256x128xf32>
    %c0_47 = arith.constant 0 : index
    %c0_48 = arith.constant 0 : index
    %c0_49 = arith.constant 0 : index
    %156 = vector.load %arg12[%c0_47, %c0_48, %c0_49] : memref<2x256x128xf32, #tpu.memory_space<vmem>>, vector<1x256x128xf32>
    %157 = vector.shape_cast %156 : vector<1x256x128xf32> to vector<256x128xf32>
    %158 = vector.shape_cast %155 : vector<256x128xf32> to vector<1x256x128xf32>
    tpu.vector_store %arg12[%c0_47, %c0_48, %c0_49], %158 {strides = array<i32>} : memref<2x256x128xf32, #tpu.memory_space<vmem>>, vector<1x256x128xf32>,
    %159 = vector.broadcast %118 : vector<1x128xf32> to vector<256x128xf32>
    %160 = arith.mulf %100, %159 : vector<256x128xf32>
    %161 = vector.broadcast %121 : vector<1x128xf32> to vector<256x128xf32>
    %162 = arith.addf %160, %161 : vector<256x128xf32>
    %cst_50 = arith.constant 0.000000e+00 : f32
    %163 = vector.broadcast %cst_50 : f32 to vector<256x128xf32>
    %164 = arith.maximumf %162, %163 : vector<256x128xf32>
    %cst_51 = arith.constant dense<0.000000e+00> : vector<432x128xf32>
    %165 = tpu.matmul %23, %164, %cst_51 {dimension_numbers = #tpu.dot_dimension_numbers<[1], [0], [0], [1], [0, 0, 1, 1], [], []>} : vector<432x256xf32>, vector<256x128xf32>, vector<432x128xf32> -> vector<432x128xf32>
    %166 = vector.shape_cast %165 : vector<432x128xf32> to vector<18x24x128xf32>
    %167 = vector.extract_strided_slice %166 {offsets = [0, 0, 0], sizes = [16, 16, 128], strides = [1, 1, 1]} : vector<18x24x128xf32> to vector<16x16x128xf32>
    %168 = vector.shape_cast %167 : vector<16x16x128xf32> to vector<256x128xf32>
    %169 = vector.extract_strided_slice %166 {offsets = [0, 1, 0], sizes = [16, 16, 128], strides = [1, 1, 1]} : vector<18x24x128xf32> to vector<16x16x128xf32>
    %170 = vector.shape_cast %169 : vector<16x16x128xf32> to vector<256x128xf32>
    %171 = vector.extract_strided_slice %166 {offsets = [0, 2, 0], sizes = [16, 16, 128], strides = [1, 1, 1]} : vector<18x24x128xf32> to vector<16x16x128xf32>
    %172 = vector.shape_cast %171 : vector<16x16x128xf32> to vector<256x128xf32>
    %173 = vector.extract_strided_slice %166 {offsets = [1, 0, 0], sizes = [16, 16, 128], strides = [1, 1, 1]} : vector<18x24x128xf32> to vector<16x16x128xf32>
    %174 = vector.shape_cast %173 : vector<16x16x128xf32> to vector<256x128xf32>
    %175 = vector.extract_strided_slice %166 {offsets = [1, 1, 0], sizes = [16, 16, 128], strides = [1, 1, 1]} : vector<18x24x128xf32> to vector<16x16x128xf32>
    %176 = vector.shape_cast %175 : vector<16x16x128xf32> to vector<256x128xf32>
    %177 = vector.extract_strided_slice %166 {offsets = [1, 2, 0], sizes = [16, 16, 128], strides = [1, 1, 1]} : vector<18x24x128xf32> to vector<16x16x128xf32>
    %178 = vector.shape_cast %177 : vector<16x16x128xf32> to vector<256x128xf32>
    %179 = vector.extract_strided_slice %166 {offsets = [2, 0, 0], sizes = [16, 16, 128], strides = [1, 1, 1]} : vector<18x24x128xf32> to vector<16x16x128xf32>
    %180 = vector.shape_cast %179 : vector<16x16x128xf32> to vector<256x128xf32>
    %181 = vector.extract_strided_slice %166 {offsets = [2, 1, 0], sizes = [16, 16, 128], strides = [1, 1, 1]} : vector<18x24x128xf32> to vector<16x16x128xf32>
    %182 = vector.shape_cast %181 : vector<16x16x128xf32> to vector<256x128xf32>
    %183 = vector.extract_strided_slice %166 {offsets = [2, 2, 0], sizes = [16, 16, 128], strides = [1, 1, 1]} : vector<18x24x128xf32> to vector<16x16x128xf32>
    %184 = vector.shape_cast %183 : vector<16x16x128xf32> to vector<256x128xf32>
    %185 = tpu.concatenate %168, %170, %172, %174, %176, %178, %180, %182, %184 in 1 : vector<256x128xf32>, vector<256x128xf32>, vector<256x128xf32>, vector<256x128xf32>, vector<256x128xf32>, vector<256x128xf32>, vector<256x128xf32>, vector<256x128xf32>, vector<256x128xf32> -> vector<256x1152xf32>
    %cst_52 = arith.constant dense<0.000000e+00> : vector<256x128xf32>
    %186 = tpu.matmul %185, %25, %cst_52 {dimension_numbers = #tpu.dot_dimension_numbers<[1], [0], [0], [1], [0, 0, 1, 1], [], []>} : vector<256x1152xf32>, vector<1152x128xf32>, vector<256x128xf32> -> vector<256x128xf32>
    %187 = vector.broadcast %27 : vector<1x128xf32> to vector<256x128xf32>
    %188 = arith.addf %186, %187 : vector<256x128xf32>
    %189 = vector.extract_strided_slice %0 {offsets = [1, 0, 0], sizes = [1, 64, 128], strides = [1, 1, 1]} : vector<2x64x128xf32> to vector<1x64x128xf32>
    %190 = vector.shape_cast %189 : vector<1x64x128xf32> to vector<64x128xf32>
    %cst_53 = arith.constant dense<0.000000e+00> : vector<256x128xf32>
    %191 = tpu.matmul %22, %190, %cst_53 {dimension_numbers = #tpu.dot_dimension_numbers<[1], [0], [0], [1], [0, 0, 1, 1], [], []>} : vector<256x64xf32>, vector<64x128xf32>, vector<256x128xf32> -> vector<256x128xf32>
    %192 = arith.addf %188, %191 : vector<256x128xf32>
    %c1 = arith.constant 1 : index
    %c0_54 = arith.constant 0 : index
    %c0_55 = arith.constant 0 : index
    %193 = vector.load %arg12[%c1, %c0_54, %c0_55] : memref<2x256x128xf32, #tpu.memory_space<vmem>>, vector<1x256x128xf32>
    %194 = vector.shape_cast %193 : vector<1x256x128xf32> to vector<256x128xf32>
    %195 = vector.shape_cast %192 : vector<256x128xf32> to vector<1x256x128xf32>
    tpu.vector_store %arg12[%c1, %c0_54, %c0_55], %195 {strides = array<i32>} : memref<2x256x128xf32, #tpu.memory_space<vmem>>, vector<1x256x128xf32>,
    return
  }
}

</mosaic_0001>

<llo_original>
// kernel: resblock_generator_forward.1
$region0: #{resblock_generator_forward.1}
  #allocation0 [shape = 'u32[]', space=smem, size = 0x4, offset = 0x4, fixed_abs, tag = 'smem constant byte address 0x4 - core index']
  #allocation1 [shape = 'u32[72,128]{1,0:T(1,128)}', space=vmem, size = 0x9000, scoped, tag = 'internal scratch']
  %s0 = inlined_call_operand.vmem [shape: f32[2,64,128], index: 0, kind: input, shape index: {}]
  %s1 = inlined_call_operand.vmem [shape: f32[432,64], index: 1, kind: input, shape index: {}]
  %s2 = inlined_call_operand.vmem [shape: f32[256,64], index: 2, kind: input, shape index: {}]
  %s3 = inlined_call_operand.vmem [shape: f32[432,256], index: 3, kind: input, shape index: {}]
  %s4 = inlined_call_operand.vmem [shape: f32[1152,128], index: 4, kind: input, shape index: {}]
  %s5 = inlined_call_operand.vmem [shape: f32[1,128], index: 5, kind: input, shape index: {}]
  %s6 = inlined_call_operand.vmem [shape: f32[1,128], index: 6, kind: input, shape index: {}]
  %s7 = inlined_call_operand.vmem [shape: f32[1,128], index: 7, kind: input, shape index: {}]
  %s8 = inlined_call_operand.vmem [shape: f32[1152,128], index: 8, kind: input, shape index: {}]
  %s9 = inlined_call_operand.vmem [shape: f32[1,128], index: 9, kind: input, shape index: {}]
  %s10 = inlined_call_operand.vmem [shape: f32[1,128], index: 10, kind: input, shape index: {}]
  %s11 = inlined_call_operand.vmem [shape: f32[1,128], index: 11, kind: input, shape index: {}]
  %s12 = inlined_call_operand.hbm [shape: f32[2,256,128], index: 12, kind: output, shape index: {}]
  %s13 = sld [smem:[#allocation0]]
  $region58: #{resblock_generator_forward.1} parent=0
    _
  %s15 = ssub.s32 1, %s13
  %s16 = scalar_select 0, %s15, %s13
  $region1: #{resblock_generator_forward.1} parent=0
    #allocation2 [shape = 'u8[262144]{0}', space=vmem, size = 0x40000, scoped, tag = 'output window, operand 0, single buffered']
    #allocation3 [shape = 's32[1]{0}', space=sflag, size = 0x4, scoped, tag = 'scoped memory for resblock_generator_forward.1']
    %17 = vsyncpa [#allocation3], 0
    // Predicated region
    $region2: #{resblock_generator_forward.1} parent=1 // pred_check
      _
    $region3: #{resblock_generator_forward.1} parent=1 // pred_check_branch
      %19 = sbr.rel (0) target = $region5
    $region4: #{resblock_generator_forward.1} parent=1 // pred_region
      _
    $region5: #{resblock_generator_forward.1} parent=1 // pred_fallthru
      _
    // Predicated region
    $region6: #{resblock_generator_forward.1} parent=1 // pred_check
      _
    $region7: #{resblock_generator_forward.1} parent=1 // pred_check_branch
      %21 = sbr.rel (0) target = $region9
    $region8: #{resblock_generator_forward.1} parent=1 // pred_region
      _
    $region9: #{resblock_generator_forward.1} parent=1 // pred_fallthru
      _
    // Predicated region
    $region10: #{resblock_generator_forward.1} parent=1 // pred_check
      _
    $region11: #{resblock_generator_forward.1} parent=1 // pred_check_branch
      %23 = sbr.rel (0) target = $region13
    $region12: #{resblock_generator_forward.1} parent=1 // pred_region
      _
    $region13: #{resblock_generator_forward.1} parent=1 // pred_fallthru
      _
    // Predicated region
    $region14: #{resblock_generator_forward.1} parent=1 // pred_check
      _
    $region15: #{resblock_generator_forward.1} parent=1 // pred_check_branch
      %25 = sbr.rel (0) target = $region17
    $region16: #{resblock_generator_forward.1} parent=1 // pred_region
      _
    $region17: #{resblock_generator_forward.1} parent=1 // pred_fallthru
      _
    // Predicated region
    $region18: #{resblock_generator_forward.1} parent=1 // pred_check
      _
    $region19: #{resblock_generator_forward.1} parent=1 // pred_check_branch
      %27 = sbr.rel (0) target = $region21
    $region20: #{resblock_generator_forward.1} parent=1 // pred_region
      _
    $region21: #{resblock_generator_forward.1} parent=1 // pred_fallthru
      _
    // Predicated region
    $region22: #{resblock_generator_forward.1} parent=1 // pred_check
      _
    $region23: #{resblock_generator_forward.1} parent=1 // pred_check_branch
      %29 = sbr.rel (0) target = $region25
    $region24: #{resblock_generator_forward.1} parent=1 // pred_region
      _
    $region25: #{resblock_generator_forward.1} parent=1 // pred_fallthru
      _
    // Predicated region
    $region26: #{resblock_generator_forward.1} parent=1 // pred_check
      _
    $region27: #{resblock_generator_forward.1} parent=1 // pred_check_branch
      %31 = sbr.rel (0) target = $region29
    $region28: #{resblock_generator_forward.1} parent=1 // pred_region
      _
    $region29: #{resblock_generator_forward.1} parent=1 // pred_fallthru
      _
    // Predicated region
    $region30: #{resblock_generator_forward.1} parent=1 // pred_check
      _
    $region31: #{resblock_generator_forward.1} parent=1 // pred_check_branch
      %33 = sbr.rel (0) target = $region33
    $region32: #{resblock_generator_forward.1} parent=1 // pred_region
      _
    $region33: #{resblock_generator_forward.1} parent=1 // pred_fallthru
      _
    // Predicated region
    $region34: #{resblock_generator_forward.1} parent=1 // pred_check
      _
    $region35: #{resblock_generator_forward.1} parent=1 // pred_check_branch
      %35 = sbr.rel (0) target = $region37
    $region36: #{resblock_generator_forward.1} parent=1 // pred_region
      _
    $region37: #{resblock_generator_forward.1} parent=1 // pred_fallthru
      _
    // Predicated region
    $region38: #{resblock_generator_forward.1} parent=1 // pred_check
      _
    $region39: #{resblock_generator_forward.1} parent=1 // pred_check_branch
      %37 = sbr.rel (0) target = $region41
    $region40: #{resblock_generator_forward.1} parent=1 // pred_region
      _
    $region41: #{resblock_generator_forward.1} parent=1 // pred_fallthru
      _
    // Predicated region
    $region42: #{resblock_generator_forward.1} parent=1 // pred_check
      _
    $region43: #{resblock_generator_forward.1} parent=1 // pred_check_branch
      %39 = sbr.rel (0) target = $region45
    $region44: #{resblock_generator_forward.1} parent=1 // pred_region
      _
    $region45: #{resblock_generator_forward.1} parent=1 // pred_fallthru
      _
    // Predicated region
    $region46: #{resblock_generator_forward.1} parent=1 // pred_check
      _
    $region47: #{resblock_generator_forward.1} parent=1 // pred_check_branch
      %41 = sbr.rel (0) target = $region49
    $region48: #{resblock_generator_forward.1} parent=1 // pred_region
      _
    $region49: #{resblock_generator_forward.1} parent=1 // pred_fallthru
      _
    %v42 = vld [vmem:[%s0] sm:$0xff]
    %v43 = vld [vmem:[%s0 + $0x8] sm:$0xff]
    %v44 = vld [vmem:[%s0 + $0x10] sm:$0xff]
    %v45 = vld [vmem:[%s0 + $0x18] sm:$0xff]
    %v46 = vld [vmem:[%s0 + $0x20] sm:$0xff]
    %v47 = vld [vmem:[%s0 + $0x28] sm:$0xff]
    %v48 = vld [vmem:[%s0 + $0x30] sm:$0xff]
    %v49 = vld [vmem:[%s0 + $0x38] sm:$0xff]
    %v50 = vld [vmem:[%s0 + $0x40] sm:$0xff]
    %v51 = vld [vmem:[%s0 + $0x48] sm:$0xff]
    %v52 = vld [vmem:[%s0 + $0x50] sm:$0xff]
    %v53 = vld [vmem:[%s0 + $0x58] sm:$0xff]
    %v54 = vld [vmem:[%s0 + $0x60] sm:$0xff]
    %v55 = vld [vmem:[%s0 + $0x68] sm:$0xff]
    %v56 = vld [vmem:[%s0 + $0x70] sm:$0xff]
    %v57 = vld [vmem:[%s0 + $0x78] sm:$0xff]
    %v58 = vadd.f32 %v42, %v43
    %v59 = vadd.f32 %v58, %v44
    %v60 = vadd.f32 %v59, %v45
    %v61 = vadd.f32 %v60, %v46
    %v62 = vadd.f32 %v61, %v47
    %v63 = vadd.f32 %v62, %v48
    %v64 = vadd.f32 %v63, %v49
    %v65 = vadd.f32 %v64, %v50
    %v66 = vadd.f32 %v65, %v51
    %v67 = vadd.f32 %v66, %v52
    %v68 = vadd.f32 %v67, %v53
    %v69 = vadd.f32 %v68, %v54
    %v70 = vadd.f32 %v69, %v55
    %v71 = vadd.f32 %v70, %v56
    %v72 = vadd.f32 %v71, %v57
    %v73 = vrot.slane %v72, 4
    %v74 = vadd.f32 %v72, %v73
    %v75 = vrot.slane %v74, 2
    %v76 = vadd.f32 %v74, %v75
    %v77 = vrot.slane %v76, 1
    %v78 = vadd.f32 %v76, %v77
    %v79 = vmul.f32 %v42, %v42
    %v80 = vmul.f32 %v43, %v43
    %v81 = vmul.f32 %v44, %v44
    %v82 = vmul.f32 %v45, %v45
    %v83 = vmul.f32 %v46, %v46
    %v84 = vmul.f32 %v47, %v47
    %v85 = vmul.f32 %v48, %v48
    %v86 = vmul.f32 %v49, %v49
    %v87 = vmul.f32 %v50, %v50
    %v88 = vmul.f32 %v51, %v51
    %v89 = vmul.f32 %v52, %v52
    %v90 = vmul.f32 %v53, %v53
    %v91 = vmul.f32 %v54, %v54
    %v92 = vmul.f32 %v55, %v55
    %v93 = vmul.f32 %v56, %v56
    %v94 = vmul.f32 %v57, %v57
    %v95 = vadd.f32 %v79, %v80
    %v96 = vadd.f32 %v95, %v81
    %v97 = vadd.f32 %v96, %v82
    %v98 = vadd.f32 %v97, %v83
    %v99 = vadd.f32 %v98, %v84
    %v100 = vadd.f32 %v99, %v85
    %v101 = vadd.f32 %v100, %v86
    %v102 = vadd.f32 %v101, %v87
    %v103 = vadd.f32 %v102, %v88
    %v104 = vadd.f32 %v103, %v89
    %v105 = vadd.f32 %v104, %v90
    %v106 = vadd.f32 %v105, %v91
    %v107 = vadd.f32 %v106, %v92
    %v108 = vadd.f32 %v107, %v93
    %v109 = vadd.f32 %v108, %v94
    %v110 = vrot.slane %v109, 4
    %v111 = vadd.f32 %v109, %v110
    %v112 = vrot.slane %v111, 2
    %v113 = vadd.f32 %v111, %v112
    %v114 = vrot.slane %v113, 1
    %v115 = vadd.f32 %v113, %v114
    %v116 = vrcp.pop 128.0
    %v117 = vmul.f32 128.0, %v116
    %v118 = vsub.f32 1.0, %v117
    %v119 = vmul.f32 %v116, %v118
    %v120 = vadd.f32 %v116, %v119
    %vm121 = vweird.f32 %v116
    %v122 = vsel %vm121, %v116, %v120
    %v123 = vmul.f32 %v78, %v122
    %v124 = vmul.f32 %v115, %v122
    %v125 = vmul.f32 %v123, %v123
    %v126 = vsub.f32 %v124, %v125
    %v127 = vld [vmem:[%s6] sm:$0x1]
    %v128 = vadd.f32 %v126, 1e-05
    %v129 = vrsqrt.pop %v128
    %v130 = vmul.f32 %v129, %v128
    %v131 = vmul.f32 %v130, %v129
    %v132 = vmul.f32 0.5, %v131
    %v133 = vsub.f32 1.5, %v132
    %v134 = vmul.f32 %v129, %v133
    %vm135 = vweird.f32 %v128
    %vm136 = vweird.f32 %v129
    %vm137 = vmor %vm135, %vm136
    %v138 = vsel %vm137, %v129, %v134
    %v139 = vmul.f32 %v127, %v138
    %v140 = vld [vmem:[%s7] sm:$0x1]
    %v141 = vmul.f32 %v123, %v139
    %v142 = vsub.f32 %v140, %v141
    %v143 = vld [vmem:[%s1] sm:$0xff]
    %v144 = vld [vmem:[%s1 + $0x8] sm:$0xff]
    %v145 = vld [vmem:[%s1 + $0x10] sm:$0xff]
    %v146 = vld [vmem:[%s1 + $0x18] sm:$0xff]
    %v147 = vld [vmem:[%s1 + $0x20] sm:$0xff]
    %v148 = vld [vmem:[%s1 + $0x28] sm:$0xff]
    %v149 = vld [vmem:[%s1 + $0x30] sm:$0xff]
    %v150 = vld [vmem:[%s1 + $0x38] sm:$0xff]
    %v151 = vld [vmem:[%s1 + $0x40] sm:$0xff]
    %v152 = vld [vmem:[%s1 + $0x48] sm:$0xff]
    %v153 = vld [vmem:[%s1 + $0x50] sm:$0xff]
    %v154 = vld [vmem:[%s1 + $0x58] sm:$0xff]
    %v155 = vld [vmem:[%s1 + $0x60] sm:$0xff]
    %v156 = vld [vmem:[%s1 + $0x68] sm:$0xff]
    %v157 = vld [vmem:[%s1 + $0x70] sm:$0xff]
    %v158 = vld [vmem:[%s1 + $0x78] sm:$0xff]
    %v159 = vld [vmem:[%s1 + $0x80] sm:$0xff]
    %v160 = vld [vmem:[%s1 + $0x88] sm:$0xff]
    %v161 = vld [vmem:[%s1 + $0x90] sm:$0xff]
    %v162 = vld [vmem:[%s1 + $0x98] sm:$0xff]
    %v163 = vld [vmem:[%s1 + $0xa0] sm:$0xff]
    %v164 = vld [vmem:[%s1 + $0xa8] sm:$0xff]
    %v165 = vld [vmem:[%s1 + $0xb0] sm:$0xff]
    %v166 = vld [vmem:[%s1 + $0xb8] sm:$0xff]
    %v167 = vld [vmem:[%s1 + $0xc0] sm:$0xff]
    %v168 = vld [vmem:[%s1 + $0xc8] sm:$0xff]
    %v169 = vld [vmem:[%s1 + $0xd0] sm:$0xff]
    %v170 = vld [vmem:[%s1 + $0xd8] sm:$0xff]
    %v171 = vld [vmem:[%s1 + $0xe0] sm:$0xff]
    %v172 = vld [vmem:[%s1 + $0xe8] sm:$0xff]
    %v173 = vld [vmem:[%s1 + $0xf0] sm:$0xff]
    %v174 = vld [vmem:[%s1 + $0xf8] sm:$0xff]
    %v175 = vld [vmem:[%s1 + $0x100] sm:$0xff]
    %v176 = vld [vmem:[%s1 + $0x108] sm:$0xff]
    %v177 = vld [vmem:[%s1 + $0x110] sm:$0xff]
    %v178 = vld [vmem:[%s1 + $0x118] sm:$0xff]
    %v179 = vld [vmem:[%s1 + $0x120] sm:$0xff]
    %v180 = vld [vmem:[%s1 + $0x128] sm:$0xff]
    %v181 = vld [vmem:[%s1 + $0x130] sm:$0xff]
    %v182 = vld [vmem:[%s1 + $0x138] sm:$0xff]
    %v183 = vld [vmem:[%s1 + $0x140] sm:$0xff]
    %v184 = vld [vmem:[%s1 + $0x148] sm:$0xff]
    %v185 = vld [vmem:[%s1 + $0x150] sm:$0xff]
    %v186 = vld [vmem:[%s1 + $0x158] sm:$0xff]
    %v187 = vld [vmem:[%s1 + $0x160] sm:$0xff]
    %v188 = vld [vmem:[%s1 + $0x168] sm:$0xff]
    %v189 = vld [vmem:[%s1 + $0x170] sm:$0xff]
    %v190 = vld [vmem:[%s1 + $0x178] sm:$0xff]
    %v191 = vld [vmem:[%s1 + $0x180] sm:$0xff]
    %v192 = vld [vmem:[%s1 + $0x188] sm:$0xff]
    %v193 = vld [vmem:[%s1 + $0x190] sm:$0xff]
    %v194 = vld [vmem:[%s1 + $0x198] sm:$0xff]
    %v195 = vld [vmem:[%s1 + $0x1a0] sm:$0xff]
    %v196 = vld [vmem:[%s1 + $0x1a8] sm:$0xff]
    %v197 = vld [vmem:[%s2] sm:$0xff]
    %v198 = vld [vmem:[%s2 + $0x8] sm:$0xff]
    %v199 = vld [vmem:[%s2 + $0x10] sm:$0xff]
    %v200 = vld [vmem:[%s2 + $0x18] sm:$0xff]
    %v201 = vld [vmem:[%s2 + $0x20] sm:$0xff]
    %v202 = vld [vmem:[%s2 + $0x28] sm:$0xff]
    %v203 = vld [vmem:[%s2 + $0x30] sm:$0xff]
    %v204 = vld [vmem:[%s2 + $0x38] sm:$0xff]
    %v205 = vld [vmem:[%s2 + $0x40] sm:$0xff]
    %v206 = vld [vmem:[%s2 + $0x48] sm:$0xff]
    %v207 = vld [vmem:[%s2 + $0x50] sm:$0xff]
    %v208 = vld [vmem:[%s2 + $0x58] sm:$0xff]
    %v209 = vld [vmem:[%s2 + $0x60] sm:$0xff]
    %v210 = vld [vmem:[%s2 + $0x68] sm:$0xff]
    %v211 = vld [vmem:[%s2 + $0x70] sm:$0xff]
    %v212 = vld [vmem:[%s2 + $0x78] sm:$0xff]
    %v213 = vld [vmem:[%s2 + $0x80] sm:$0xff]
    %v214 = vld [vmem:[%s2 + $0x88] sm:$0xff]
    %v215 = vld [vmem:[%s2 + $0x90] sm:$0xff]
    %v216 = vld [vmem:[%s2 + $0x98] sm:$0xff]
    %v217 = vld [vmem:[%s2 + $0xa0] sm:$0xff]
    %v218 = vld [vmem:[%s2 + $0xa8] sm:$0xff]
    %v219 = vld [vmem:[%s2 + $0xb0] sm:$0xff]
    %v220 = vld [vmem:[%s2 + $0xb8] sm:$0xff]
    %v221 = vld [vmem:[%s2 + $0xc0] sm:$0xff]
    %v222 = vld [vmem:[%s2 + $0xc8] sm:$0xff]
    %v223 = vld [vmem:[%s2 + $0xd0] sm:$0xff]
    %v224 = vld [vmem:[%s2 + $0xd8] sm:$0xff]
    %v225 = vld [vmem:[%s2 + $0xe0] sm:$0xff]
    %v226 = vld [vmem:[%s2 + $0xe8] sm:$0xff]
    %v227 = vld [vmem:[%s2 + $0xf0] sm:$0xff]
    %v228 = vld [vmem:[%s2 + $0xf8] sm:$0xff]
    %v229 = vld [vmem:[%s3] sm:$0xff]
    %v230 = vld [vmem:[%s3 + $0x8] sm:$0xff]
    %v231 = vld [vmem:[%s3 + $0x10] sm:$0xff]
    %v232 = vld [vmem:[%s3 + $0x18] sm:$0xff]
    %v233 = vld [vmem:[%s3 + $0x20] sm:$0xff]
    %v234 = vld [vmem:[%s3 + $0x28] sm:$0xff]
    %v235 = vld [vmem:[%s3 + $0x30] sm:$0xff]
    %v236 = vld [vmem:[%s3 + $0x38] sm:$0xff]
    %v237 = vld [vmem:[%s3 + $0x40] sm:$0xff]
    %v238 = vld [vmem:[%s3 + $0x48] sm:$0xff]
    %v239 = vld [vmem:[%s3 + $0x50] sm:$0xff]
    %v240 = vld [vmem:[%s3 + $0x58] sm:$0xff]
    %v241 = vld [vmem:[%s3 + $0x60] sm:$0xff]
    %v242 = vld [vmem:[%s3 + $0x68] sm:$0xff]
    %v243 = vld [vmem:[%s3 + $0x70] sm:$0xff]
    %v244 = vld [vmem:[%s3 + $0x78] sm:$0xff]
    %v245 = vld [vmem:[%s3 + $0x80] sm:$0xff]
    %v246 = vld [vmem:[%s3 + $0x88] sm:$0xff]
    %v247 = vld [vmem:[%s3 + $0x90] sm:$0xff]
    %v248 = vld [vmem:[%s3 + $0x98] sm:$0xff]
    %v249 = vld [vmem:[%s3 + $0xa0] sm:$0xff]
    %v250 = vld [vmem:[%s3 + $0xa8] sm:$0xff]
    %v251 = vld [vmem:[%s3 + $0xb0] sm:$0xff]
    %v252 = vld [vmem:[%s3 + $0xb8] sm:$0xff]
    %v253 = vld [vmem:[%s3 + $0xc0] sm:$0xff]
    %v254 = vld [vmem:[%s3 + $0xc8] sm:$0xff]
    %v255 = vld [vmem:[%s3 + $0xd0] sm:$0xff]
    %v256 = vld [vmem:[%s3 + $0xd8] sm:$0xff]
    %v257 = vld [vmem:[%s3 + $0xe0] sm:$0xff]
    %v258 = vld [vmem:[%s3 + $0xe8] sm:$0xff]
    %v259 = vld [vmem:[%s3 + $0xf0] sm:$0xff]
    %v260 = vld [vmem:[%s3 + $0xf8] sm:$0xff]
    %v261 = vld [vmem:[%s3 + $0x100] sm:$0xff]
    %v262 = vld [vmem:[%s3 + $0x108] sm:$0xff]
    %v263 = vld [vmem:[%s3 + $0x110] sm:$0xff]
    %v264 = vld [vmem:[%s3 + $0x118] sm:$0xff]
    %v265 = vld [vmem:[%s3 + $0x120] sm:$0xff]
    %v266 = vld [vmem:[%s3 + $0x128] sm:$0xff]
    %v267 = vld [vmem:[%s3 + $0x130] sm:$0xff]
    %v268 = vld [vmem:[%s3 + $0x138] sm:$0xff]
    %v269 = vld [vmem:[%s3 + $0x140] sm:$0xff]
    %v270 = vld [vmem:[%s3 + $0x148] sm:$0xff]
    %v271 = vld [vmem:[%s3 + $0x150] sm:$0xff]
    %v272 = vld [vmem:[%s3 + $0x158] sm:$0xff]
    %v273 = vld [vmem:[%s3 + $0x160] sm:$0xff]
    %v274 = vld [vmem:[%s3 + $0x168] sm:$0xff]
    %v275 = vld [vmem:[%s3 + $0x170] sm:$0xff]
    %v276 = vld [vmem:[%s3 + $0x178] sm:$0xff]
    %v277 = vld [vmem:[%s3 + $0x180] sm:$0xff]
    %v278 = vld [vmem:[%s3 + $0x188] sm:$0xff]
    %v279 = vld [vmem:[%s3 + $0x190] sm:$0xff]
    %v280 = vld [vmem:[%s3 + $0x198] sm:$0xff]
    %v281 = vld [vmem:[%s3 + $0x1a0] sm:$0xff]
    %v282 = vld [vmem:[%s3 + $0x1a8] sm:$0xff]
    %v283 = vld [vmem:[%s3 + $0x1b0] sm:$0xff]
    %v284 = vld [vmem:[%s3 + $0x1b8] sm:$0xff]
    %v285 = vld [vmem:[%s3 + $0x1c0] sm:$0xff]
    %v286 = vld [vmem:[%s3 + $0x1c8] sm:$0xff]
    %v287 = vld [vmem:[%s3 + $0x1d0] sm:$0xff]
    %v288 = vld [vmem:[%s3 + $0x1d8] sm:$0xff]
    %v289 = vld [vmem:[%s3 + $0x1e0] sm:$0xff]
    %v290 = vld [vmem:[%s3 + $0x1e8] sm:$0xff]
    %v291 = vld [vmem:[%s3 + $0x1f0] sm:$0xff]
    %v292 = vld [vmem:[%s3 + $0x1f8] sm:$0xff]
    %v293 = vld [vmem:[%s3 + $0x200] sm:$0xff]
    %v294 = vld [vmem:[%s3 + $0x208] sm:$0xff]
    %v295 = vld [vmem:[%s3 + $0x210] sm:$0xff]
    %v296 = vld [vmem:[%s3 + $0x218] sm:$0xff]
    %v297 = vld [vmem:[%s3 + $0x220] sm:$0xff]
    %v298 = vld [vmem:[%s3 + $0x228] sm:$0xff]
    %v299 = vld [vmem:[%s3 + $0x230] sm:$0xff]
    %v300 = vld [vmem:[%s3 + $0x238] sm:$0xff]
    %v301 = vld [vmem:[%s3 + $0x240] sm:$0xff]
    %v302 = vld [vmem:[%s3 + $0x248] sm:$0xff]
    %v303 = vld [vmem:[%s3 + $0x250] sm:$0xff]
    %v304 = vld [vmem:[%s3 + $0x258] sm:$0xff]
    %v305 = vld [vmem:[%s3 + $0x260] sm:$0xff]
    %v306 = vld [vmem:[%s3 + $0x268] sm:$0xff]
    %v307 = vld [vmem:[%s3 + $0x270] sm:$0xff]
    %v308 = vld [vmem:[%s3 + $0x278] sm:$0xff]
    %v309 = vld [vmem:[%s3 + $0x280] sm:$0xff]
    %v310 = vld [vmem:[%s3 + $0x288] sm:$0xff]
    %v311 = vld [vmem:[%s3 + $0x290] sm:$0xff]
    %v312 = vld [vmem:[%s3 + $0x298] sm:$0xff]
    %v313 = vld [vmem:[%s3 + $0x2a0] sm:$0xff]
    %v314 = vld [vmem:[%s3 + $0x2a8] sm:$0xff]
    %v315 = vld [vmem:[%s3 + $0x2b0] sm:$0xff]
    %v316 = vld [vmem:[%s3 + $0x2b8] sm:$0xff]
    %v317 = vld [vmem:[%s3 + $0x2c0] sm:$0xff]
    %v318 = vld [vmem:[%s3 + $0x2c8] sm:$0xff]
    %v319 = vld [vmem:[%s3 + $0x2d0] sm:$0xff]
    %v320 = vld [vmem:[%s3 + $0x2d8] sm:$0xff]
    %v321 = vld [vmem:[%s3 + $0x2e0] sm:$0xff]
    %v322 = vld [vmem:[%s3 + $0x2e8] sm:$0xff]
    %v323 = vld [vmem:[%s3 + $0x2f0] sm:$0xff]
    %v324 = vld [vmem:[%s3 + $0x2f8] sm:$0xff]
    %v325 = vld [vmem:[%s3 + $0x300] sm:$0xff]
    %v326 = vld [vmem:[%s3 + $0x308] sm:$0xff]
    %v327 = vld [vmem:[%s3 + $0x310] sm:$0xff]
    %v328 = vld [vmem:[%s3 + $0x318] sm:$0xff]
    %v329 = vld [vmem:[%s3 + $0x320] sm:$0xff]
    %v330 = vld [vmem:[%s3 + $0x328] sm:$0xff]
    %v331 = vld [vmem:[%s3 + $0x330] sm:$0xff]
    %v332 = vld [vmem:[%s3 + $0x338] sm:$0xff]
    %v333 = vld [vmem:[%s3 + $0x340] sm:$0xff]
    %v334 = vld [vmem:[%s3 + $0x348] sm:$0xff]
    %v335 = vld [vmem:[%s3 + $0x350] sm:$0xff]
    %v336 = vld [vmem:[%s3 + $0x358] sm:$0xff]
    %v337 = vld [vmem:[%s4] sm:$0xff]
    %v338 = vld [vmem:[%s4 + $0x8] sm:$0xff]
    %v339 = vld [vmem:[%s4 + $0x10] sm:$0xff]
    %v340 = vld [vmem:[%s4 + $0x18] sm:$0xff]
    %v341 = vld [vmem:[%s4 + $0x20] sm:$0xff]
    %v342 = vld [vmem:[%s4 + $0x28] sm:$0xff]
    %v343 = vld [vmem:[%s4 + $0x30] sm:$0xff]
    %v344 = vld [vmem:[%s4 + $0x38] sm:$0xff]
    %v345 = vld [vmem:[%s4 + $0x40] sm:$0xff]
    %v346 = vld [vmem:[%s4 + $0x48] sm:$0xff]
    %v347 = vld [vmem:[%s4 + $0x50] sm:$0xff]
    %v348 = vld [vmem:[%s4 + $0x58] sm:$0xff]
    %v349 = vld [vmem:[%s4 + $0x60] sm:$0xff]
    %v350 = vld [vmem:[%s4 + $0x68] sm:$0xff]
    %v351 = vld [vmem:[%s4 + $0x70] sm:$0xff]
    %v352 = vld [vmem:[%s4 + $0x78] sm:$0xff]
    %v353 = vld [vmem:[%s4 + $0x80] sm:$0xff]
    %v354 = vld [vmem:[%s4 + $0x88] sm:$0xff]
    %v355 = vld [vmem:[%s4 + $0x90] sm:$0xff]
    %v356 = vld [vmem:[%s4 + $0x98] sm:$0xff]
    %v357 = vld [vmem:[%s4 + $0xa0] sm:$0xff]
    %v358 = vld [vmem:[%s4 + $0xa8] sm:$0xff]
    %v359 = vld [vmem:[%s4 + $0xb0] sm:$0xff]
    %v360 = vld [vmem:[%s4 + $0xb8] sm:$0xff]
    %v361 = vld [vmem:[%s4 + $0xc0] sm:$0xff]
    %v362 = vld [vmem:[%s4 + $0xc8] sm:$0xff]
    %v363 = vld [vmem:[%s4 + $0xd0] sm:$0xff]
    %v364 = vld [vmem:[%s4 + $0xd8] sm:$0xff]
    %v365 = vld [vmem:[%s4 + $0xe0] sm:$0xff]
    %v366 = vld [vmem:[%s4 + $0xe8] sm:$0xff]
    %v367 = vld [vmem:[%s4 + $0xf0] sm:$0xff]
    %v368 = vld [vmem:[%s4 + $0xf8] sm:$0xff]
    %v369 = vld [vmem:[%s4 + $0x100] sm:$0xff]
    %v370 = vld [vmem:[%s4 + $0x108] sm:$0xff]
    %v371 = vld [vmem:[%s4 + $0x110] sm:$0xff]
    %v372 = vld [vmem:[%s4 + $0x118] sm:$0xff]
    %v373 = vld [vmem:[%s4 + $0x120] sm:$0xff]
    %v374 = vld [vmem:[%s4 + $0x128] sm:$0xff]
    %v375 = vld [vmem:[%s4 + $0x130] sm:$0xff]
    %v376 = vld [vmem:[%s4 + $0x138] sm:$0xff]
    %v377 = vld [vmem:[%s4 + $0x140] sm:$0xff]
    %v378 = vld [vmem:[%s4 + $0x148] sm:$0xff]
    %v379 = vld [vmem:[%s4 + $0x150] sm:$0xff]
    %v380 = vld [vmem:[%s4 + $0x158] sm:$0xff]
    %v381 = vld [vmem:[%s4 + $0x160] sm:$0xff]
    %v382 = vld [vmem:[%s4 + $0x168] sm:$0xff]
    %v383 = vld [vmem:[%s4 + $0x170] sm:$0xff]
    %v384 = vld [vmem:[%s4 + $0x178] sm:$0xff]
    %v385 = vld [vmem:[%s4 + $0x180] sm:$0xff]
    %v386 = vld [vmem:[%s4 + $0x188] sm:$0xff]
    %v387 = vld [vmem:[%s4 + $0x190] sm:$0xff]
    %v388 = vld [vmem:[%s4 + $0x198] sm:$0xff]
    %v389 = vld [vmem:[%s4 + $0x1a0] sm:$0xff]
    %v390 = vld [vmem:[%s4 + $0x1a8] sm:$0xff]
    %v391 = vld [vmem:[%s4 + $0x1b0] sm:$0xff]
    %v392 = vld [vmem:[%s4 + $0x1b8] sm:$0xff]
    %v393 = vld [vmem:[%s4 + $0x1c0] sm:$0xff]
    %v394 = vld [vmem:[%s4 + $0x1c8] sm:$0xff]
    %v395 = vld [vmem:[%s4 + $0x1d0] sm:$0xff]
    %v396 = vld [vmem:[%s4 + $0x1d8] sm:$0xff]
    %v397 = vld [vmem:[%s4 + $0x1e0] sm:$0xff]
    %v398 = vld [vmem:[%s4 + $0x1e8] sm:$0xff]
    %v399 = vld [vmem:[%s4 + $0x1f0] sm:$0xff]
    %v400 = vld [vmem:[%s4 + $0x1f8] sm:$0xff]
    %v401 = vld [vmem:[%s4 + $0x200] sm:$0xff]
    %v402 = vld [vmem:[%s4 + $0x208] sm:$0xff]
    %v403 = vld [vmem:[%s4 + $0x210] sm:$0xff]
    %v404 = vld [vmem:[%s4 + $0x218] sm:$0xff]
    %v405 = vld [vmem:[%s4 + $0x220] sm:$0xff]
    %v406 = vld [vmem:[%s4 + $0x228] sm:$0xff]
    %v407 = vld [vmem:[%s4 + $0x230] sm:$0xff]
    %v408 = vld [vmem:[%s4 + $0x238] sm:$0xff]
    %v409 = vld [vmem:[%s4 + $0x240] sm:$0xff]
    %v410 = vld [vmem:[%s4 + $0x248] sm:$0xff]
    %v411 = vld [vmem:[%s4 + $0x250] sm:$0xff]
    %v412 = vld [vmem:[%s4 + $0x258] sm:$0xff]
    %v413 = vld [vmem:[%s4 + $0x260] sm:$0xff]
    %v414 = vld [vmem:[%s4 + $0x268] sm:$0xff]
    %v415 = vld [vmem:[%s4 + $0x270] sm:$0xff]
    %v416 = vld [vmem:[%s4 + $0x278] sm:$0xff]
    %v417 = vld [vmem:[%s4 + $0x280] sm:$0xff]
    %v418 = vld [vmem:[%s4 + $0x288] sm:$0xff]
    %v419 = vld [vmem:[%s4 + $0x290] sm:$0xff]
    %v420 = vld [vmem:[%s4 + $0x298] sm:$0xff]
    %v421 = vld [vmem:[%s4 + $0x2a0] sm:$0xff]
    %v422 = vld [vmem:[%s4 + $0x2a8] sm:$0xff]
    %v423 = vld [vmem:[%s4 + $0x2b0] sm:$0xff]
    %v424 = vld [vmem:[%s4 + $0x2b8] sm:$0xff]
    %v425 = vld [vmem:[%s4 + $0x2c0] sm:$0xff]
    %v426 = vld [vmem:[%s4 + $0x2c8] sm:$0xff]
    %v427 = vld [vmem:[%s4 + $0x2d0] sm:$0xff]
    %v428 = vld [vmem:[%s4 + $0x2d8] sm:$0xff]
    %v429 = vld [vmem:[%s4 + $0x2e0] sm:$0xff]
    %v430 = vld [vmem:[%s4 + $0x2e8] sm:$0xff]
    %v431 = vld [vmem:[%s4 + $0x2f0] sm:$0xff]
    %v432 = vld [vmem:[%s4 + $0x2f8] sm:$0xff]
    %v433 = vld [vmem:[%s4 + $0x300] sm:$0xff]
    %v434 = vld [vmem:[%s4 + $0x308] sm:$0xff]
    %v435 = vld [vmem:[%s4 + $0x310] sm:$0xff]
    %v436 = vld [vmem:[%s4 + $0x318] sm:$0xff]
    %v437 = vld [vmem:[%s4 + $0x320] sm:$0xff]
    %v438 = vld [vmem:[%s4 + $0x328] sm:$0xff]
    %v439 = vld [vmem:[%s4 + $0x330] sm:$0xff]
    %v440 = vld [vmem:[%s4 + $0x338] sm:$0xff]
    %v441 = vld [vmem:[%s4 + $0x340] sm:$0xff]
    %v442 = vld [vmem:[%s4 + $0x348] sm:$0xff]
    %v443 = vld [vmem:[%s4 + $0x350] sm:$0xff]
    %v444 = vld [vmem:[%s4 + $0x358] sm:$0xff]
    %v445 = vld [vmem:[%s4 + $0x360] sm:$0xff]
    %v446 = vld [vmem:[%s4 + $0x368] sm:$0xff]
    %v447 = vld [vmem:[%s4 + $0x370] sm:$0xff]
    %v448 = vld [vmem:[%s4 + $0x378] sm:$0xff]
    %v449 = vld [vmem:[%s4 + $0x380] sm:$0xff]
    %v450 = vld [vmem:[%s4 + $0x388] sm:$0xff]
    %v451 = vld [vmem:[%s4 + $0x390] sm:$0xff]
    %v452 = vld [vmem:[%s4 + $0x398] sm:$0xff]
    %v453 = vld [vmem:[%s4 + $0x3a0] sm:$0xff]
    %v454 = vld [vmem:[%s4 + $0x3a8] sm:$0xff]
    %v455 = vld [vmem:[%s4 + $0x3b0] sm:$0xff]
    %v456 = vld [vmem:[%s4 + $0x3b8] sm:$0xff]
    %v457 = vld [vmem:[%s4 + $0x3c0] sm:$0xff]
    %v458 = vld [vmem:[%s4 + $0x3c8] sm:$0xff]
    %v459 = vld [vmem:[%s4 + $0x3d0] sm:$0xff]
    %v460 = vld [vmem:[%s4 + $0x3d8] sm:$0xff]
    %v461 = vld [vmem:[%s4 + $0x3e0] sm:$0xff]
    %v462 = vld [vmem:[%s4 + $0x3e8] sm:$0xff]
    %v463 = vld [vmem:[%s4 + $0x3f0] sm:$0xff]
    %v464 = vld [vmem:[%s4 + $0x3f8] sm:$0xff]
    %v465 = vld [vmem:[%s4 + $0x400] sm:$0xff]
    %v466 = vld [vmem:[%s4 + $0x408] sm:$0xff]
    %v467 = vld [vmem:[%s4 + $0x410] sm:$0xff]
    %v468 = vld [vmem:[%s4 + $0x418] sm:$0xff]
    %v469 = vld [vmem:[%s4 + $0x420] sm:$0xff]
    %v470 = vld [vmem:[%s4 + $0x428] sm:$0xff]
    %v471 = vld [vmem:[%s4 + $0x430] sm:$0xff]
    %v472 = vld [vmem:[%s4 + $0x438] sm:$0xff]
    %v473 = vld [vmem:[%s4 + $0x440] sm:$0xff]
    %v474 = vld [vmem:[%s4 + $0x448] sm:$0xff]
    %v475 = vld [vmem:[%s4 + $0x450] sm:$0xff]
    %v476 = vld [vmem:[%s4 + $0x458] sm:$0xff]
    %v477 = vld [vmem:[%s4 + $0x460] sm:$0xff]
    %v478 = vld [vmem:[%s4 + $0x468] sm:$0xff]
    %v479 = vld [vmem:[%s4 + $0x470] sm:$0xff]
    %v480 = vld [vmem:[%s4 + $0x478] sm:$0xff]
    %v481 = vld [vmem:[%s8] sm:$0xff]
    %v482 = vld [vmem:[%s8 + $0x8] sm:$0xff]
    %v483 = vld [vmem:[%s8 + $0x10] sm:$0xff]
    %v484 = vld [vmem:[%s8 + $0x18] sm:$0xff]
    %v485 = vld [vmem:[%s8 + $0x20] sm:$0xff]
    %v486 = vld [vmem:[%s8 + $0x28] sm:$0xff]
    %v487 = vld [vmem:[%s8 + $0x30] sm:$0xff]
    %v488 = vld [vmem:[%s8 + $0x38] sm:$0xff]
    %v489 = vld [vmem:[%s8 + $0x40] sm:$0xff]
    %v490 = vld [vmem:[%s8 + $0x48] sm:$0xff]
    %v491 = vld [vmem:[%s8 + $0x50] sm:$0xff]
    %v492 = vld [vmem:[%s8 + $0x58] sm:$0xff]
    %v493 = vld [vmem:[%s8 + $0x60] sm:$0xff]
    %v494 = vld [vmem:[%s8 + $0x68] sm:$0xff]
    %v495 = vld [vmem:[%s8 + $0x70] sm:$0xff]
    %v496 = vld [vmem:[%s8 + $0x78] sm:$0xff]
    %v497 = vld [vmem:[%s8 + $0x80] sm:$0xff]
    %v498 = vld [vmem:[%s8 + $0x88] sm:$0xff]
    %v499 = vld [vmem:[%s8 + $0x90] sm:$0xff]
    %v500 = vld [vmem:[%s8 + $0x98] sm:$0xff]
    %v501 = vld [vmem:[%s8 + $0xa0] sm:$0xff]
    %v502 = vld [vmem:[%s8 + $0xa8] sm:$0xff]
    %v503 = vld [vmem:[%s8 + $0xb0] sm:$0xff]
    %v504 = vld [vmem:[%s8 + $0xb8] sm:$0xff]
    %v505 = vld [vmem:[%s8 + $0xc0] sm:$0xff]
    %v506 = vld [vmem:[%s8 + $0xc8] sm:$0xff]
    %v507 = vld [vmem:[%s8 + $0xd0] sm:$0xff]
    %v508 = vld [vmem:[%s8 + $0xd8] sm:$0xff]
    %v509 = vld [vmem:[%s8 + $0xe0] sm:$0xff]
    %v510 = vld [vmem:[%s8 + $0xe8] sm:$0xff]
    %v511 = vld [vmem:[%s8 + $0xf0] sm:$0xff]
    %v512 = vld [vmem:[%s8 + $0xf8] sm:$0xff]
    %v513 = vld [vmem:[%s8 + $0x100] sm:$0xff]
    %v514 = vld [vmem:[%s8 + $0x108] sm:$0xff]
    %v515 = vld [vmem:[%s8 + $0x110] sm:$0xff]
    %v516 = vld [vmem:[%s8 + $0x118] sm:$0xff]
    %v517 = vld [vmem:[%s8 + $0x120] sm:$0xff]
    %v518 = vld [vmem:[%s8 + $0x128] sm:$0xff]
    %v519 = vld [vmem:[%s8 + $0x130] sm:$0xff]
    %v520 = vld [vmem:[%s8 + $0x138] sm:$0xff]
    %v521 = vld [vmem:[%s8 + $0x140] sm:$0xff]
    %v522 = vld [vmem:[%s8 + $0x148] sm:$0xff]
    %v523 = vld [vmem:[%s8 + $0x150] sm:$0xff]
    %v524 = vld [vmem:[%s8 + $0x158] sm:$0xff]
    %v525 = vld [vmem:[%s8 + $0x160] sm:$0xff]
    %v526 = vld [vmem:[%s8 + $0x168] sm:$0xff]
    %v527 = vld [vmem:[%s8 + $0x170] sm:$0xff]
    %v528 = vld [vmem:[%s8 + $0x178] sm:$0xff]
    %v529 = vld [vmem:[%s8 + $0x180] sm:$0xff]
    %v530 = vld [vmem:[%s8 + $0x188] sm:$0xff]
    %v531 = vld [vmem:[%s8 + $0x190] sm:$0xff]
    %v532 = vld [vmem:[%s8 + $0x198] sm:$0xff]
    %v533 = vld [vmem:[%s8 + $0x1a0] sm:$0xff]
    %v534 = vld [vmem:[%s8 + $0x1a8] sm:$0xff]
    %v535 = vld [vmem:[%s8 + $0x1b0] sm:$0xff]
    %v536 = vld [vmem:[%s8 + $0x1b8] sm:$0xff]
    %v537 = vld [vmem:[%s8 + $0x1c0] sm:$0xff]
    %v538 = vld [vmem:[%s8 + $0x1c8] sm:$0xff]
    %v539 = vld [vmem:[%s8 + $0x1d0] sm:$0xff]
    %v540 = vld [vmem:[%s8 + $0x1d8] sm:$0xff]
    %v541 = vld [vmem:[%s8 + $0x1e0] sm:$0xff]
    %v542 = vld [vmem:[%s8 + $0x1e8] sm:$0xff]
    %v543 = vld [vmem:[%s8 + $0x1f0] sm:$0xff]
    %v544 = vld [vmem:[%s8 + $0x1f8] sm:$0xff]
    %v545 = vld [vmem:[%s8 + $0x200] sm:$0xff]
    %v546 = vld [vmem:[%s8 + $0x208] sm:$0xff]
    %v547 = vld [vmem:[%s8 + $0x210] sm:$0xff]
    %v548 = vld [vmem:[%s8 + $0x218] sm:$0xff]
    %v549 = vld [vmem:[%s8 + $0x220] sm:$0xff]
    %v550 = vld [vmem:[%s8 + $0x228] sm:$0xff]
    %v551 = vld [vmem:[%s8 + $0x230] sm:$0xff]
    %v552 = vld [vmem:[%s8 + $0x238] sm:$0xff]
    %v553 = vld [vmem:[%s8 + $0x240] sm:$0xff]
    %v554 = vld [vmem:[%s8 + $0x248] sm:$0xff]
    %v555 = vld [vmem:[%s8 + $0x250] sm:$0xff]
    %v556 = vld [vmem:[%s8 + $0x258] sm:$0xff]
    %v557 = vld [vmem:[%s8 + $0x260] sm:$0xff]
    %v558 = vld [vmem:[%s8 + $0x268] sm:$0xff]
    %v559 = vld [vmem:[%s8 + $0x270] sm:$0xff]
    %v560 = vld [vmem:[%s8 + $0x278] sm:$0xff]
    %v561 = vld [vmem:[%s8 + $0x280] sm:$0xff]
    %v562 = vld [vmem:[%s8 + $0x288] sm:$0xff]
    %v563 = vld [vmem:[%s8 + $0x290] sm:$0xff]
    %v564 = vld [vmem:[%s8 + $0x298] sm:$0xff]
    %v565 = vld [vmem:[%s8 + $0x2a0] sm:$0xff]
    %v566 = vld [vmem:[%s8 + $0x2a8] sm:$0xff]
    %v567 = vld [vmem:[%s8 + $0x2b0] sm:$0xff]
    %v568 = vld [vmem:[%s8 + $0x2b8] sm:$0xff]
    %v569 = vld [vmem:[%s8 + $0x2c0] sm:$0xff]
    %v570 = vld [vmem:[%s8 + $0x2c8] sm:$0xff]
    %v571 = vld [vmem:[%s8 + $0x2d0] sm:$0xff]
    %v572 = vld [vmem:[%s8 + $0x2d8] sm:$0xff]
    %v573 = vld [vmem:[%s8 + $0x2e0] sm:$0xff]
    %v574 = vld [vmem:[%s8 + $0x2e8] sm:$0xff]
    %v575 = vld [vmem:[%s8 + $0x2f0] sm:$0xff]
    %v576 = vld [vmem:[%s8 + $0x2f8] sm:$0xff]
    %v577 = vld [vmem:[%s8 + $0x300] sm:$0xff]
    %v578 = vld [vmem:[%s8 + $0x308] sm:$0xff]
    %v579 = vld [vmem:[%s8 + $0x310] sm:$0xff]
    %v580 = vld [vmem:[%s8 + $0x318] sm:$0xff]
    %v581 = vld [vmem:[%s8 + $0x320] sm:$0xff]
    %v582 = vld [vmem:[%s8 + $0x328] sm:$0xff]
    %v583 = vld [vmem:[%s8 + $0x330] sm:$0xff]
    %v584 = vld [vmem:[%s8 + $0x338] sm:$0xff]
    %v585 = vld [vmem:[%s8 + $0x340] sm:$0xff]
    %v586 = vld [vmem:[%s8 + $0x348] sm:$0xff]
    %v587 = vld [vmem:[%s8 + $0x350] sm:$0xff]
    %v588 = vld [vmem:[%s8 + $0x358] sm:$0xff]
    %v589 = vld [vmem:[%s8 + $0x360] sm:$0xff]
    %v590 = vld [vmem:[%s8 + $0x368] sm:$0xff]
    %v591 = vld [vmem:[%s8 + $0x370] sm:$0xff]
    %v592 = vld [vmem:[%s8 + $0x378] sm:$0xff]
    %v593 = vld [vmem:[%s8 + $0x380] sm:$0xff]
    %v594 = vld [vmem:[%s8 + $0x388] sm:$0xff]
    %v595 = vld [vmem:[%s8 + $0x390] sm:$0xff]
    %v596 = vld [vmem:[%s8 + $0x398] sm:$0xff]
    %v597 = vld [vmem:[%s8 + $0x3a0] sm:$0xff]
    %v598 = vld [vmem:[%s8 + $0x3a8] sm:$0xff]
    %v599 = vld [vmem:[%s8 + $0x3b0] sm:$0xff]
    %v600 = vld [vmem:[%s8 + $0x3b8] sm:$0xff]
    %v601 = vld [vmem:[%s8 + $0x3c0] sm:$0xff]
    %v602 = vld [vmem:[%s8 + $0x3c8] sm:$0xff]
    %v603 = vld [vmem:[%s8 + $0x3d0] sm:$0xff]
    %v604 = vld [vmem:[%s8 + $0x3d8] sm:$0xff]
    %v605 = vld [vmem:[%s8 + $0x3e0] sm:$0xff]
    %v606 = vld [vmem:[%s8 + $0x3e8] sm:$0xff]
    %v607 = vld [vmem:[%s8 + $0x3f0] sm:$0xff]
    %v608 = vld [vmem:[%s8 + $0x3f8] sm:$0xff]
    %v609 = vld [vmem:[%s8 + $0x400] sm:$0xff]
    %v610 = vld [vmem:[%s8 + $0x408] sm:$0xff]
    %v611 = vld [vmem:[%s8 + $0x410] sm:$0xff]
    %v612 = vld [vmem:[%s8 + $0x418] sm:$0xff]
    %v613 = vld [vmem:[%s8 + $0x420] sm:$0xff]
    %v614 = vld [vmem:[%s8 + $0x428] sm:$0xff]
    %v615 = vld [vmem:[%s8 + $0x430] sm:$0xff]
    %v616 = vld [vmem:[%s8 + $0x438] sm:$0xff]
    %v617 = vld [vmem:[%s8 + $0x440] sm:$0xff]
    %v618 = vld [vmem:[%s8 + $0x448] sm:$0xff]
    %v619 = vld [vmem:[%s8 + $0x450] sm:$0xff]
    %v620 = vld [vmem:[%s8 + $0x458] sm:$0xff]
    %v621 = vld [vmem:[%s8 + $0x460] sm:$0xff]
    %v622 = vld [vmem:[%s8 + $0x468] sm:$0xff]
    %v623 = vld [vmem:[%s8 + $0x470] sm:$0xff]
    %v624 = vld [vmem:[%s8 + $0x478] sm:$0xff]
    %v625 = vld [vmem:[%s5] sm:$0x1]
    %v626 = vld [vmem:[%s9] sm:$0x1]
    %v628 = vperm.slane %v139, 0
    %v630 = vmul.f32 %v42, %v628
    %v631 = vmul.f32 %v43, %v628
    %v632 = vmul.f32 %v44, %v628
    %v633 = vmul.f32 %v45, %v628
    %v634 = vmul.f32 %v46, %v628
    %v635 = vmul.f32 %v47, %v628
    %v636 = vmul.f32 %v48, %v628
    %v637 = vmul.f32 %v49, %v628
    %v639 = vperm.slane %v142, 0
    %v641 = vadd.f32 %v630, %v639
    %v642 = vadd.f32 %v631, %v639
    %v643 = vadd.f32 %v632, %v639
    %v644 = vadd.f32 %v633, %v639
    %v645 = vadd.f32 %v634, %v639
    %v646 = vadd.f32 %v635, %v639
    %v647 = vadd.f32 %v636, %v639
    %v648 = vadd.f32 %v637, %v639
    %v649 = vmax.f32 %v641, 0.0
    %v650 = vmax.f32 %v642, 0.0
    %v651 = vmax.f32 %v643, 0.0
    %v652 = vmax.f32 %v644, 0.0
    %v653 = vmax.f32 %v645, 0.0
    %v654 = vmax.f32 %v646, 0.0
    %v655 = vmax.f32 %v647, 0.0
    %v656 = vmax.f32 %v648, 0.0
    %vm657 = vcmask 523264
    %v659 = vsel %vm657, %v143, 0
    %v662 = vsel %vm657, %v144, 0
    %v665 = vsel %vm657, %v145, 0
    %v668 = vsel %vm657, %v146, 0
    %v671 = vsel %vm657, %v147, 0
    %v674 = vsel %vm657, %v148, 0
    %v677 = vsel %vm657, %v149, 0
    %v680 = vsel %vm657, %v150, 0
    %v683 = vsel %vm657, %v151, 0
    %v686 = vsel %vm657, %v152, 0
    %v689 = vsel %vm657, %v153, 0
    %v692 = vsel %vm657, %v154, 0
    %v695 = vsel %vm657, %v155, 0
    %v698 = vsel %vm657, %v156, 0
    %v701 = vsel %vm657, %v157, 0
    %v704 = vsel %vm657, %v158, 0
    %v707 = vsel %vm657, %v159, 0
    %v710 = vsel %vm657, %v160, 0
    %v713 = vsel %vm657, %v161, 0
    %v716 = vsel %vm657, %v162, 0
    %v719 = vsel %vm657, %v163, 0
    %v722 = vsel %vm657, %v164, 0
    %v725 = vsel %vm657, %v165, 0
    %v728 = vsel %vm657, %v166, 0
    %v731 = vsel %vm657, %v167, 0
    %v734 = vsel %vm657, %v168, 0
    %v737 = vsel %vm657, %v169, 0
    %v740 = vsel %vm657, %v170, 0
    %v743 = vsel %vm657, %v171, 0
    %v746 = vsel %vm657, %v172, 0
    %v749 = vsel %vm657, %v173, 0
    %v752 = vsel %vm657, %v174, 0
    %v755 = vsel %vm657, %v175, 0
    %v758 = vsel %vm657, %v176, 0
    %v761 = vsel %vm657, %v177, 0
    %v764 = vsel %vm657, %v178, 0
    %v767 = vsel %vm657, %v179, 0
    %v770 = vsel %vm657, %v180, 0
    %v773 = vsel %vm657, %v181, 0
    %v776 = vsel %vm657, %v182, 0
    %v779 = vsel %vm657, %v183, 0
    %v782 = vsel %vm657, %v184, 0
    %v785 = vsel %vm657, %v185, 0
    %v788 = vsel %vm657, %v186, 0
    %v791 = vsel %vm657, %v187, 0
    %v794 = vsel %vm657, %v188, 0
    %v797 = vsel %vm657, %v189, 0
    %v800 = vsel %vm657, %v190, 0
    %v803 = vsel %vm657, %v191, 0
    %v806 = vsel %vm657, %v192, 0
    %v809 = vsel %vm657, %v193, 0
    %v812 = vsel %vm657, %v194, 0
    %v815 = vsel %vm657, %v195, 0
    %v818 = vsel %vm657, %v196, 0
    %820 = vmatpush.msra.mxu0 0.0
    %821 = vmatpush.msra.mxu0 0.0
    %822 = vmatpush.msra.mxu0 0.0
    %823 = vmatpush.msra.mxu0 0.0
    %824 = vmatpush.msra.mxu0 0.0
    %825 = vmatpush.msra.mxu0 0.0
    %826 = vmatpush.msra.mxu0 0.0
    %827 = vmatpush.msra.mxu0 0.0
    %828 = vmatpush.msra.mxu0 %v656
    %829 = vmatpush.msra.mxu0 %v655
    %830 = vmatpush.msra.mxu0 %v654
    %831 = vmatpush.msra.mxu0 %v653
    %832 = vmatpush.msra.mxu0 %v652
    %833 = vmatpush.msra.mxu0 %v651
    %834 = vmatpush.msra.mxu0 %v650
    %835 = vmatpush.msra.mxu0 %v649
    %836 = vmatmul.f32.gmra.mxu0 %v659
    %v837 = vpop.f32.mrf.mxu0
    %v838 = vadd.f32 0.0, %v837
    %839 = vmatmul.f32.gmra.mxu0 %v662
    %v840 = vpop.f32.mrf.mxu0
    %v841 = vadd.f32 0.0, %v840
    %842 = vmatmul.f32.gmra.mxu0 %v665
    %v843 = vpop.f32.mrf.mxu0
    %v844 = vadd.f32 0.0, %v843
    %845 = vmatmul.f32.gmra.mxu0 %v668
    %v846 = vpop.f32.mrf.mxu0
    %v847 = vadd.f32 0.0, %v846
    %848 = vmatmul.f32.gmra.mxu0 %v671
    %v849 = vpop.f32.mrf.mxu0
    %v850 = vadd.f32 0.0, %v849
    %851 = vmatmul.f32.gmra.mxu0 %v674
    %v852 = vpop.f32.mrf.mxu0
    %v853 = vadd.f32 0.0, %v852
    %854 = vmatmul.f32.gmra.mxu0 %v677
    %v855 = vpop.f32.mrf.mxu0
    %v856 = vadd.f32 0.0, %v855
    %857 = vmatmul.f32.gmra.mxu0 %v680
    %v858 = vpop.f32.mrf.mxu0
    %v859 = vadd.f32 0.0, %v858
    %860 = vmatmul.f32.gmra.mxu0 %v683
    %v861 = vpop.f32.mrf.mxu0
    %v862 = vadd.f32 0.0, %v861
    %863 = vmatmul.f32.gmra.mxu0 %v686
    %v864 = vpop.f32.mrf.mxu0
    %v865 = vadd.f32 0.0, %v864
    %866 = vmatmul.f32.gmra.mxu0 %v689
    %v867 = vpop.f32.mrf.mxu0
    %v868 = vadd.f32 0.0, %v867
    %869 = vmatmul.f32.gmra.mxu0 %v692
    %v870 = vpop.f32.mrf.mxu0
    %v871 = vadd.f32 0.0, %v870
    %872 = vmatmul.f32.gmra.mxu0 %v695
    %v873 = vpop.f32.mrf.mxu0
    %v874 = vadd.f32 0.0, %v873
    %875 = vmatmul.f32.gmra.mxu0 %v698
    %v876 = vpop.f32.mrf.mxu0
    %v877 = vadd.f32 0.0, %v876
    %878 = vmatmul.f32.gmra.mxu0 %v701
    %v879 = vpop.f32.mrf.mxu0
    %v880 = vadd.f32 0.0, %v879
    %881 = vmatmul.f32.gmra.mxu0 %v704
    %v882 = vpop.f32.mrf.mxu0
    %v883 = vadd.f32 0.0, %v882
    %884 = vmatmul.f32.gmra.mxu0 %v707
    %v885 = vpop.f32.mrf.mxu0
    %v886 = vadd.f32 0.0, %v885
    %887 = vmatmul.f32.gmra.mxu0 %v710
    %v888 = vpop.f32.mrf.mxu0
    %v889 = vadd.f32 0.0, %v888
    %890 = vmatmul.f32.gmra.mxu0 %v713
    %v891 = vpop.f32.mrf.mxu0
    %v892 = vadd.f32 0.0, %v891
    %893 = vmatmul.f32.gmra.mxu0 %v716
    %v894 = vpop.f32.mrf.mxu0
    %v895 = vadd.f32 0.0, %v894
    %896 = vmatmul.f32.gmra.mxu0 %v719
    %v897 = vpop.f32.mrf.mxu0
    %v898 = vadd.f32 0.0, %v897
    %899 = vmatmul.f32.gmra.mxu0 %v722
    %v900 = vpop.f32.mrf.mxu0
    %v901 = vadd.f32 0.0, %v900
    %902 = vmatmul.f32.gmra.mxu0 %v725
    %v903 = vpop.f32.mrf.mxu0
    %v904 = vadd.f32 0.0, %v903
    %905 = vmatmul.f32.gmra.mxu0 %v728
    %v906 = vpop.f32.mrf.mxu0
    %v907 = vadd.f32 0.0, %v906
    %908 = vmatmul.f32.gmra.mxu0 %v731
    %v909 = vpop.f32.mrf.mxu0
    %v910 = vadd.f32 0.0, %v909
    %911 = vmatmul.f32.gmra.mxu0 %v734
    %v912 = vpop.f32.mrf.mxu0
    %v913 = vadd.f32 0.0, %v912
    %914 = vmatmul.f32.gmra.mxu0 %v737
    %v915 = vpop.f32.mrf.mxu0
    %v916 = vadd.f32 0.0, %v915
    %917 = vmatmul.f32.gmra.mxu0 %v740
    %v918 = vpop.f32.mrf.mxu0
    %v919 = vadd.f32 0.0, %v918
    %920 = vmatmul.f32.gmra.mxu0 %v743
    %v921 = vpop.f32.mrf.mxu0
    %v922 = vadd.f32 0.0, %v921
    %923 = vmatmul.f32.gmra.mxu0 %v746
    %v924 = vpop.f32.mrf.mxu0
    %v925 = vadd.f32 0.0, %v924
    %926 = vmatmul.f32.gmra.mxu0 %v749
    %v927 = vpop.f32.mrf.mxu0
    %v928 = vadd.f32 0.0, %v927
    %929 = vmatmul.f32.gmra.mxu0 %v752
    %v930 = vpop.f32.mrf.mxu0
    %v931 = vadd.f32 0.0, %v930
    %932 = vmatmul.f32.gmra.mxu0 %v755
    %v933 = vpop.f32.mrf.mxu0
    %v934 = vadd.f32 0.0, %v933
    %935 = vmatmul.f32.gmra.mxu0 %v758
    %v936 = vpop.f32.mrf.mxu0
    %v937 = vadd.f32 0.0, %v936
    %938 = vmatmul.f32.gmra.mxu0 %v761
    %v939 = vpop.f32.mrf.mxu0
    %v940 = vadd.f32 0.0, %v939
    %941 = vmatmul.f32.gmra.mxu0 %v764
    %v942 = vpop.f32.mrf.mxu0
    %v943 = vadd.f32 0.0, %v942
    %944 = vmatmul.f32.gmra.mxu0 %v767
    %v945 = vpop.f32.mrf.mxu0
    %v946 = vadd.f32 0.0, %v945
    %947 = vmatmul.f32.gmra.mxu0 %v770
    %v948 = vpop.f32.mrf.mxu0
    %v949 = vadd.f32 0.0, %v948
    %950 = vmatmul.f32.gmra.mxu0 %v773
    %v951 = vpop.f32.mrf.mxu0
    %v952 = vadd.f32 0.0, %v951
    %953 = vmatmul.f32.gmra.mxu0 %v776
    %v954 = vpop.f32.mrf.mxu0
    %v955 = vadd.f32 0.0, %v954
    %956 = vmatmul.f32.gmra.mxu0 %v779
    %v957 = vpop.f32.mrf.mxu0
    %v958 = vadd.f32 0.0, %v957
    %959 = vmatmul.f32.gmra.mxu0 %v782
    %v960 = vpop.f32.mrf.mxu0
    %v961 = vadd.f32 0.0, %v960
    %962 = vmatmul.f32.gmra.mxu0 %v785
    %v963 = vpop.f32.mrf.mxu0
    %v964 = vadd.f32 0.0, %v963
    %965 = vmatmul.f32.gmra.mxu0 %v788
    %v966 = vpop.f32.mrf.mxu0
    %v967 = vadd.f32 0.0, %v966
    %968 = vmatmul.f32.gmra.mxu0 %v791
    %v969 = vpop.f32.mrf.mxu0
    %v970 = vadd.f32 0.0, %v969
    %971 = vmatmul.f32.gmra.mxu0 %v794
    %v972 = vpop.f32.mrf.mxu0
    %v973 = vadd.f32 0.0, %v972
    %974 = vmatmul.f32.gmra.mxu0 %v797
    %v975 = vpop.f32.mrf.mxu0
    %v976 = vadd.f32 0.0, %v975
    %977 = vmatmul.f32.gmra.mxu0 %v800
    %v978 = vpop.f32.mrf.mxu0
    %v979 = vadd.f32 0.0, %v978
    %980 = vmatmul.f32.gmra.mxu0 %v803
    %v981 = vpop.f32.mrf.mxu0
    %v982 = vadd.f32 0.0, %v981
    %983 = vmatmul.f32.gmra.mxu0 %v806
    %v984 = vpop.f32.mrf.mxu0
    %v985 = vadd.f32 0.0, %v984
    %986 = vmatmul.f32.gmra.mxu0 %v809
    %v987 = vpop.f32.mrf.mxu0
    %v988 = vadd.f32 0.0, %v987
    %989 = vmatmul.f32.gmra.mxu0 %v812
    %v990 = vpop.f32.mrf.mxu0
    %v991 = vadd.f32 0.0, %v990
    %992 = vmatmul.f32.gmra.mxu0 %v815
    %v993 = vpop.f32.mrf.mxu0
    %v994 = vadd.f32 0.0, %v993
    %995 = vmatmul.f32.gmra.mxu0 %v818
    %v996 = vpop.f32.mrf.mxu0
    %v997 = vadd.f32 0.0, %v996
    %998 = vdwg.mxu0
    %vm1047 = vcmask 1046528
    %v1048 = vrot.slane %v838, 1
    %v1049 = vrot.slane %v841, 1
    %v1050 = vsel %vm1047, %v1048, %v1049
    %v1051 = vrot.slane %v844, 1
    %v1052 = vsel %vm1047, %v1049, %v1051
    %v1053 = vrot.slane %v847, 1
    %v1054 = vrot.slane %v850, 1
    %v1055 = vsel %vm1047, %v1053, %v1054
    %v1056 = vrot.slane %v853, 1
    %v1057 = vsel %vm1047, %v1054, %v1056
    %v1058 = vrot.slane %v856, 1
    %v1059 = vrot.slane %v859, 1
    %v1060 = vsel %vm1047, %v1058, %v1059
    %v1061 = vrot.slane %v862, 1
    %v1062 = vsel %vm1047, %v1059, %v1061
    %v1063 = vrot.slane %v865, 1
    %v1064 = vrot.slane %v868, 1
    %v1065 = vsel %vm1047, %v1063, %v1064
    %v1066 = vrot.slane %v871, 1
    %v1067 = vsel %vm1047, %v1064, %v1066
    %v1068 = vrot.slane %v874, 1
    %v1069 = vrot.slane %v877, 1
    %v1070 = vsel %vm1047, %v1068, %v1069
    %v1071 = vrot.slane %v880, 1
    %v1072 = vsel %vm1047, %v1069, %v1071
    %v1073 = vrot.slane %v883, 1
    %v1074 = vrot.slane %v886, 1
    %v1075 = vsel %vm1047, %v1073, %v1074
    %v1076 = vrot.slane %v889, 1
    %v1077 = vsel %vm1047, %v1074, %v1076
    %v1078 = vrot.slane %v892, 1
    %v1079 = vrot.slane %v895, 1
    %v1080 = vsel %vm1047, %v1078, %v1079
    %v1081 = vrot.slane %v898, 1
    %v1082 = vsel %vm1047, %v1079, %v1081
    %v1083 = vrot.slane %v901, 1
    %v1084 = vrot.slane %v904, 1
    %v1085 = vsel %vm1047, %v1083, %v1084
    %v1086 = vrot.slane %v907, 1
    %v1087 = vsel %vm1047, %v1084, %v1086
    %v1088 = vrot.slane %v910, 1
    %v1089 = vrot.slane %v913, 1
    %v1090 = vsel %vm1047, %v1088, %v1089
    %v1091 = vrot.slane %v916, 1
    %v1092 = vsel %vm1047, %v1089, %v1091
    %v1093 = vrot.slane %v919, 1
    %v1094 = vrot.slane %v922, 1
    %v1095 = vsel %vm1047, %v1093, %v1094
    %v1096 = vrot.slane %v925, 1
    %v1097 = vsel %vm1047, %v1094, %v1096
    %v1098 = vrot.slane %v928, 1
    %v1099 = vrot.slane %v931, 1
    %v1100 = vsel %vm1047, %v1098, %v1099
    %v1101 = vrot.slane %v934, 1
    %v1102 = vsel %vm1047, %v1099, %v1101
    %v1103 = vrot.slane %v937, 1
    %v1104 = vrot.slane %v940, 1
    %v1105 = vsel %vm1047, %v1103, %v1104
    %v1106 = vrot.slane %v943, 1
    %v1107 = vsel %vm1047, %v1104, %v1106
    %v1108 = vrot.slane %v946, 1
    %v1109 = vrot.slane %v949, 1
    %v1110 = vsel %vm1047, %v1108, %v1109
    %v1111 = vrot.slane %v952, 1
    %v1112 = vsel %vm1047, %v1109, %v1111
    %v1113 = vrot.slane %v955, 1
    %v1114 = vrot.slane %v958, 1
    %v1115 = vsel %vm1047, %v1113, %v1114
    %v1116 = vrot.slane %v961, 1
    %v1117 = vsel %vm1047, %v1114, %v1116
    %v1118 = vrot.slane %v964, 1
    %v1119 = vrot.slane %v967, 1
    %v1120 = vsel %vm1047, %v1118, %v1119
    %v1121 = vrot.slane %v970, 1
    %v1122 = vsel %vm1047, %v1119, %v1121
    %v1123 = vrot.slane %v973, 1
    %v1124 = vrot.slane %v976, 1
    %v1125 = vsel %vm1047, %v1123, %v1124
    %v1126 = vrot.slane %v979, 1
    %v1127 = vsel %vm1047, %v1124, %v1126
    %vm1160 = vcmask 1045504
    %v1161 = vrot.slane %v838, 2
    %v1162 = vrot.slane %v841, 2
    %v1163 = vsel %vm1160, %v1161, %v1162
    %v1164 = vrot.slane %v844, 2
    %v1165 = vsel %vm1160, %v1162, %v1164
    %v1166 = vrot.slane %v847, 2
    %v1167 = vrot.slane %v850, 2
    %v1168 = vsel %vm1160, %v1166, %v1167
    %v1169 = vrot.slane %v853, 2
    %v1170 = vsel %vm1160, %v1167, %v1169
    %v1171 = vrot.slane %v856, 2
    %v1172 = vrot.slane %v859, 2
    %v1173 = vsel %vm1160, %v1171, %v1172
    %v1174 = vrot.slane %v862, 2
    %v1175 = vsel %vm1160, %v1172, %v1174
    %v1176 = vrot.slane %v865, 2
    %v1177 = vrot.slane %v868, 2
    %v1178 = vsel %vm1160, %v1176, %v1177
    %v1179 = vrot.slane %v871, 2
    %v1180 = vsel %vm1160, %v1177, %v1179
    %v1181 = vrot.slane %v874, 2
    %v1182 = vrot.slane %v877, 2
    %v1183 = vsel %vm1160, %v1181, %v1182
    %v1184 = vrot.slane %v880, 2
    %v1185 = vsel %vm1160, %v1182, %v1184
    %v1186 = vrot.slane %v883, 2
    %v1187 = vrot.slane %v886, 2
    %v1188 = vsel %vm1160, %v1186, %v1187
    %v1189 = vrot.slane %v889, 2
    %v1190 = vsel %vm1160, %v1187, %v1189
    %v1191 = vrot.slane %v892, 2
    %v1192 = vrot.slane %v895, 2
    %v1193 = vsel %vm1160, %v1191, %v1192
    %v1194 = vrot.slane %v898, 2
    %v1195 = vsel %vm1160, %v1192, %v1194
    %v1196 = vrot.slane %v901, 2
    %v1197 = vrot.slane %v904, 2
    %v1198 = vsel %vm1160, %v1196, %v1197
    %v1199 = vrot.slane %v907, 2
    %v1200 = vsel %vm1160, %v1197, %v1199
    %v1201 = vrot.slane %v910, 2
    %v1202 = vrot.slane %v913, 2
    %v1203 = vsel %vm1160, %v1201, %v1202
    %v1204 = vrot.slane %v916, 2
    %v1205 = vsel %vm1160, %v1202, %v1204
    %v1206 = vrot.slane %v919, 2
    %v1207 = vrot.slane %v922, 2
    %v1208 = vsel %vm1160, %v1206, %v1207
    %v1209 = vrot.slane %v925, 2
    %v1210 = vsel %vm1160, %v1207, %v1209
    %v1211 = vrot.slane %v928, 2
    %v1212 = vrot.slane %v931, 2
    %v1213 = vsel %vm1160, %v1211, %v1212
    %v1214 = vrot.slane %v934, 2
    %v1215 = vsel %vm1160, %v1212, %v1214
    %v1216 = vrot.slane %v937, 2
    %v1217 = vrot.slane %v940, 2
    %v1218 = vsel %vm1160, %v1216, %v1217
    %v1219 = vrot.slane %v943, 2
    %v1220 = vsel %vm1160, %v1217, %v1219
    %v1221 = vrot.slane %v946, 2
    %v1222 = vrot.slane %v949, 2
    %v1223 = vsel %vm1160, %v1221, %v1222
    %v1224 = vrot.slane %v952, 2
    %v1225 = vsel %vm1160, %v1222, %v1224
    %v1226 = vrot.slane %v955, 2
    %v1227 = vrot.slane %v958, 2
    %v1228 = vsel %vm1160, %v1226, %v1227
    %v1229 = vrot.slane %v961, 2
    %v1230 = vsel %vm1160, %v1227, %v1229
    %v1231 = vrot.slane %v964, 2
    %v1232 = vrot.slane %v967, 2
    %v1233 = vsel %vm1160, %v1231, %v1232
    %v1234 = vrot.slane %v970, 2
    %v1235 = vsel %vm1160, %v1232, %v1234
    %v1236 = vrot.slane %v973, 2
    %v1237 = vrot.slane %v976, 2
    %v1238 = vsel %vm1160, %v1236, %v1237
    %v1239 = vrot.slane %v979, 2
    %v1240 = vsel %vm1160, %v1237, %v1239
    %v1276 = vrot.slane %v982, 1
    %v1277 = vrot.slane %v985, 1
    %v1278 = vsel %vm1047, %v1276, %v1277
    %v1279 = vrot.slane %v988, 1
    %v1280 = vsel %vm1047, %v1277, %v1279
    %v1283 = vrot.slane %v982, 2
    %v1284 = vrot.slane %v985, 2
    %v1285 = vsel %vm1160, %v1283, %v1284
    %v1286 = vrot.slane %v988, 2
    %v1287 = vsel %vm1160, %v1284, %v1286
    %v1293 = vrot.slane %v991, 1
    %v1294 = vrot.slane %v994, 1
    %v1295 = vsel %vm1047, %v1293, %v1294
    %v1296 = vrot.slane %v997, 1
    %v1297 = vsel %vm1047, %v1294, %v1296
    %v1300 = vrot.slane %v991, 2
    %v1301 = vrot.slane %v994, 2
    %v1302 = vsel %vm1160, %v1300, %v1301
    %v1303 = vrot.slane %v997, 2
    %v1304 = vsel %vm1160, %v1301, %v1303
    %v1308 = vperm.slane %v625, 0
    %1310 = vmatpush.msra.mxu0 %v352
    %1311 = vmatpush.msra.mxu0 %v351
    %1312 = vmatpush.msra.mxu0 %v350
    %1313 = vmatpush.msra.mxu0 %v349
    %1314 = vmatpush.msra.mxu0 %v348
    %1315 = vmatpush.msra.mxu0 %v347
    %1316 = vmatpush.msra.mxu0 %v346
    %1317 = vmatpush.msra.mxu0 %v345
    %1318 = vmatpush.msra.mxu0 %v344
    %1319 = vmatpush.msra.mxu0 %v343
    %1320 = vmatpush.msra.mxu0 %v342
    %1321 = vmatpush.msra.mxu0 %v341
    %1322 = vmatpush.msra.mxu0 %v340
    %1323 = vmatpush.msra.mxu0 %v339
    %1324 = vmatpush.msra.mxu0 %v338
    %1325 = vmatpush.msra.mxu0 %v337
    %1326 = vmatmul.f32.gmra.mxu0 %v838
    %v1327 = vpop.f32.mrf.mxu0
    %v1328 = vadd.f32 %v1308, %v1327
    %1329 = vmatmul.f32.gmra.mxu0 %v841
    %v1330 = vpop.f32.mrf.mxu0
    %v1331 = vadd.f32 %v1308, %v1330
    %1332 = vmatmul.f32.gmra.mxu0 %v847
    %v1333 = vpop.f32.mrf.mxu0
    %v1334 = vadd.f32 %v1308, %v1333
    %1335 = vmatmul.f32.gmra.mxu0 %v850
    %v1336 = vpop.f32.mrf.mxu0
    %v1337 = vadd.f32 %v1308, %v1336
    %1338 = vmatmul.f32.gmra.mxu0 %v856
    %v1339 = vpop.f32.mrf.mxu0
    %v1340 = vadd.f32 %v1308, %v1339
    %1341 = vmatmul.f32.gmra.mxu0 %v859
    %v1342 = vpop.f32.mrf.mxu0
    %v1343 = vadd.f32 %v1308, %v1342
    %1344 = vmatmul.f32.gmra.mxu0 %v865
    %v1345 = vpop.f32.mrf.mxu0
    %v1346 = vadd.f32 %v1308, %v1345
    %1347 = vmatmul.f32.gmra.mxu0 %v868
    %v1348 = vpop.f32.mrf.mxu0
    %v1349 = vadd.f32 %v1308, %v1348
    %1350 = vmatmul.f32.gmra.mxu0 %v874
    %v1351 = vpop.f32.mrf.mxu0
    %v1352 = vadd.f32 %v1308, %v1351
    %1353 = vmatmul.f32.gmra.mxu0 %v877
    %v1354 = vpop.f32.mrf.mxu0
    %v1355 = vadd.f32 %v1308, %v1354
    %1356 = vmatmul.f32.gmra.mxu0 %v883
    %v1357 = vpop.f32.mrf.mxu0
    %v1358 = vadd.f32 %v1308, %v1357
    %1359 = vmatmul.f32.gmra.mxu0 %v886
    %v1360 = vpop.f32.mrf.mxu0
    %v1361 = vadd.f32 %v1308, %v1360
    %1362 = vmatmul.f32.gmra.mxu0 %v892
    %v1363 = vpop.f32.mrf.mxu0
    %v1364 = vadd.f32 %v1308, %v1363
    %1365 = vmatmul.f32.gmra.mxu0 %v895
    %v1366 = vpop.f32.mrf.mxu0
    %v1367 = vadd.f32 %v1308, %v1366
    %1368 = vmatmul.f32.gmra.mxu0 %v901
    %v1369 = vpop.f32.mrf.mxu0
    %v1370 = vadd.f32 %v1308, %v1369
    %1371 = vmatmul.f32.gmra.mxu0 %v904
    %v1372 = vpop.f32.mrf.mxu0
    %v1373 = vadd.f32 %v1308, %v1372
    %1374 = vmatmul.f32.gmra.mxu0 %v910
    %v1375 = vpop.f32.mrf.mxu0
    %v1376 = vadd.f32 %v1308, %v1375
    %1377 = vmatmul.f32.gmra.mxu0 %v913
    %v1378 = vpop.f32.mrf.mxu0
    %v1379 = vadd.f32 %v1308, %v1378
    %1380 = vmatmul.f32.gmra.mxu0 %v919
    %v1381 = vpop.f32.mrf.mxu0
    %v1382 = vadd.f32 %v1308, %v1381
    %1383 = vmatmul.f32.gmra.mxu0 %v922
    %v1384 = vpop.f32.mrf.mxu0
    %v1385 = vadd.f32 %v1308, %v1384
    %1386 = vmatmul.f32.gmra.mxu0 %v928
    %v1387 = vpop.f32.mrf.mxu0
    %v1388 = vadd.f32 %v1308, %v1387
    %1389 = vmatmul.f32.gmra.mxu0 %v931
    %v1390 = vpop.f32.mrf.mxu0
    %v1391 = vadd.f32 %v1308, %v1390
    %1392 = vmatmul.f32.gmra.mxu0 %v937
    %v1393 = vpop.f32.mrf.mxu0
    %v1394 = vadd.f32 %v1308, %v1393
    %1395 = vmatmul.f32.gmra.mxu0 %v940
    %v1396 = vpop.f32.mrf.mxu0
    %v1397 = vadd.f32 %v1308, %v1396
    %1398 = vmatmul.f32.gmra.mxu0 %v946
    %v1399 = vpop.f32.mrf.mxu0
    %v1400 = vadd.f32 %v1308, %v1399
    %1401 = vmatmul.f32.gmra.mxu0 %v949
    %v1402 = vpop.f32.mrf.mxu0
    %v1403 = vadd.f32 %v1308, %v1402
    %1404 = vmatmul.f32.gmra.mxu0 %v955
    %v1405 = vpop.f32.mrf.mxu0
    %v1406 = vadd.f32 %v1308, %v1405
    %1407 = vmatmul.f32.gmra.mxu0 %v958
    %v1408 = vpop.f32.mrf.mxu0
    %v1409 = vadd.f32 %v1308, %v1408
    %1410 = vmatmul.f32.gmra.mxu0 %v964
    %v1411 = vpop.f32.mrf.mxu0
    %v1412 = vadd.f32 %v1308, %v1411
    %1413 = vmatmul.f32.gmra.mxu0 %v967
    %v1414 = vpop.f32.mrf.mxu0
    %v1415 = vadd.f32 %v1308, %v1414
    %1416 = vmatmul.f32.gmra.mxu0 %v973
    %v1417 = vpop.f32.mrf.mxu0
    %v1418 = vadd.f32 %v1308, %v1417
    %1419 = vmatmul.f32.gmra.mxu0 %v976
    %v1420 = vpop.f32.mrf.mxu0
    %v1421 = vadd.f32 %v1308, %v1420
    %1422 = vdwg.mxu0
    %1423 = vmatpush.msra.mxu0 %v368
    %1424 = vmatpush.msra.mxu0 %v367
    %1425 = vmatpush.msra.mxu0 %v366
    %1426 = vmatpush.msra.mxu0 %v365
    %1427 = vmatpush.msra.mxu0 %v364
    %1428 = vmatpush.msra.mxu0 %v363
    %1429 = vmatpush.msra.mxu0 %v362
    %1430 = vmatpush.msra.mxu0 %v361
    %1431 = vmatpush.msra.mxu0 %v360
    %1432 = vmatpush.msra.mxu0 %v359
    %1433 = vmatpush.msra.mxu0 %v358
    %1434 = vmatpush.msra.mxu0 %v357
    %1435 = vmatpush.msra.mxu0 %v356
    %1436 = vmatpush.msra.mxu0 %v355
    %1437 = vmatpush.msra.mxu0 %v354
    %1438 = vmatpush.msra.mxu0 %v353
    %1439 = vmatmul.f32.gmra.mxu0 %v1050
    %v1440 = vpop.f32.mrf.mxu0
    %v1441 = vadd.f32 %v1328, %v1440
    %1442 = vmatmul.f32.gmra.mxu0 %v1052
    %v1443 = vpop.f32.mrf.mxu0
    %v1444 = vadd.f32 %v1331, %v1443
    %1445 = vmatmul.f32.gmra.mxu0 %v1055
    %v1446 = vpop.f32.mrf.mxu0
    %v1447 = vadd.f32 %v1334, %v1446
    %1448 = vmatmul.f32.gmra.mxu0 %v1057
    %v1449 = vpop.f32.mrf.mxu0
    %v1450 = vadd.f32 %v1337, %v1449
    %1451 = vmatmul.f32.gmra.mxu0 %v1060
    %v1452 = vpop.f32.mrf.mxu0
    %v1453 = vadd.f32 %v1340, %v1452
    %1454 = vmatmul.f32.gmra.mxu0 %v1062
    %v1455 = vpop.f32.mrf.mxu0
    %v1456 = vadd.f32 %v1343, %v1455
    %1457 = vmatmul.f32.gmra.mxu0 %v1065
    %v1458 = vpop.f32.mrf.mxu0
    %v1459 = vadd.f32 %v1346, %v1458
    %1460 = vmatmul.f32.gmra.mxu0 %v1067
    %v1461 = vpop.f32.mrf.mxu0
    %v1462 = vadd.f32 %v1349, %v1461
    %1463 = vmatmul.f32.gmra.mxu0 %v1070
    %v1464 = vpop.f32.mrf.mxu0
    %v1465 = vadd.f32 %v1352, %v1464
    %1466 = vmatmul.f32.gmra.mxu0 %v1072
    %v1467 = vpop.f32.mrf.mxu0
    %v1468 = vadd.f32 %v1355, %v1467
    %1469 = vmatmul.f32.gmra.mxu0 %v1075
    %v1470 = vpop.f32.mrf.mxu0
    %v1471 = vadd.f32 %v1358, %v1470
    %1472 = vmatmul.f32.gmra.mxu0 %v1077
    %v1473 = vpop.f32.mrf.mxu0
    %v1474 = vadd.f32 %v1361, %v1473
    %1475 = vmatmul.f32.gmra.mxu0 %v1080
    %v1476 = vpop.f32.mrf.mxu0
    %v1477 = vadd.f32 %v1364, %v1476
    %1478 = vmatmul.f32.gmra.mxu0 %v1082
    %v1479 = vpop.f32.mrf.mxu0
    %v1480 = vadd.f32 %v1367, %v1479
    %1481 = vmatmul.f32.gmra.mxu0 %v1085
    %v1482 = vpop.f32.mrf.mxu0
    %v1483 = vadd.f32 %v1370, %v1482
    %1484 = vmatmul.f32.gmra.mxu0 %v1087
    %v1485 = vpop.f32.mrf.mxu0
    %v1486 = vadd.f32 %v1373, %v1485
    %1487 = vmatmul.f32.gmra.mxu0 %v1090
    %v1488 = vpop.f32.mrf.mxu0
    %v1489 = vadd.f32 %v1376, %v1488
    %1490 = vmatmul.f32.gmra.mxu0 %v1092
    %v1491 = vpop.f32.mrf.mxu0
    %v1492 = vadd.f32 %v1379, %v1491
    %1493 = vmatmul.f32.gmra.mxu0 %v1095
    %v1494 = vpop.f32.mrf.mxu0
    %v1495 = vadd.f32 %v1382, %v1494
    %1496 = vmatmul.f32.gmra.mxu0 %v1097
    %v1497 = vpop.f32.mrf.mxu0
    %v1498 = vadd.f32 %v1385, %v1497
    %1499 = vmatmul.f32.gmra.mxu0 %v1100
    %v1500 = vpop.f32.mrf.mxu0
    %v1501 = vadd.f32 %v1388, %v1500
    %1502 = vmatmul.f32.gmra.mxu0 %v1102
    %v1503 = vpop.f32.mrf.mxu0
    %v1504 = vadd.f32 %v1391, %v1503
    %1505 = vmatmul.f32.gmra.mxu0 %v1105
    %v1506 = vpop.f32.mrf.mxu0
    %v1507 = vadd.f32 %v1394, %v1506
    %1508 = vmatmul.f32.gmra.mxu0 %v1107
    %v1509 = vpop.f32.mrf.mxu0
    %v1510 = vadd.f32 %v1397, %v1509
    %1511 = vmatmul.f32.gmra.mxu0 %v1110
    %v1512 = vpop.f32.mrf.mxu0
    %v1513 = vadd.f32 %v1400, %v1512
    %1514 = vmatmul.f32.gmra.mxu0 %v1112
    %v1515 = vpop.f32.mrf.mxu0
    %v1516 = vadd.f32 %v1403, %v1515
    %1517 = vmatmul.f32.gmra.mxu0 %v1115
    %v1518 = vpop.f32.mrf.mxu0
    %v1519 = vadd.f32 %v1406, %v1518
    %1520 = vmatmul.f32.gmra.mxu0 %v1117
    %v1521 = vpop.f32.mrf.mxu0
    %v1522 = vadd.f32 %v1409, %v1521
    %1523 = vmatmul.f32.gmra.mxu0 %v1120
    %v1524 = vpop.f32.mrf.mxu0
    %v1525 = vadd.f32 %v1412, %v1524
    %1526 = vmatmul.f32.gmra.mxu0 %v1122
    %v1527 = vpop.f32.mrf.mxu0
    %v1528 = vadd.f32 %v1415, %v1527
    %1529 = vmatmul.f32.gmra.mxu0 %v1125
    %v1530 = vpop.f32.mrf.mxu0
    %v1531 = vadd.f32 %v1418, %v1530
    %1532 = vmatmul.f32.gmra.mxu0 %v1127
    %v1533 = vpop.f32.mrf.mxu0
    %v1534 = vadd.f32 %v1421, %v1533
    %1535 = vdwg.mxu0
    %1536 = vmatpush.msra.mxu0 %v384
    %1537 = vmatpush.msra.mxu0 %v383
    %1538 = vmatpush.msra.mxu0 %v382
    %1539 = vmatpush.msra.mxu0 %v381
    %1540 = vmatpush.msra.mxu0 %v380
    %1541 = vmatpush.msra.mxu0 %v379
    %1542 = vmatpush.msra.mxu0 %v378
    %1543 = vmatpush.msra.mxu0 %v377
    %1544 = vmatpush.msra.mxu0 %v376
    %1545 = vmatpush.msra.mxu0 %v375
    %1546 = vmatpush.msra.mxu0 %v374
    %1547 = vmatpush.msra.mxu0 %v373
    %1548 = vmatpush.msra.mxu0 %v372
    %1549 = vmatpush.msra.mxu0 %v371
    %1550 = vmatpush.msra.mxu0 %v370
    %1551 = vmatpush.msra.mxu0 %v369
    %1552 = vmatmul.f32.gmra.mxu0 %v1163
    %v1553 = vpop.f32.mrf.mxu0
    %v1554 = vadd.f32 %v1441, %v1553
    %1555 = vmatmul.f32.gmra.mxu0 %v1165
    %v1556 = vpop.f32.mrf.mxu0
    %v1557 = vadd.f32 %v1444, %v1556
    %1558 = vmatmul.f32.gmra.mxu0 %v1168
    %v1559 = vpop.f32.mrf.mxu0
    %v1560 = vadd.f32 %v1447, %v1559
    %1561 = vmatmul.f32.gmra.mxu0 %v1170
    %v1562 = vpop.f32.mrf.mxu0
    %v1563 = vadd.f32 %v1450, %v1562
    %1564 = vmatmul.f32.gmra.mxu0 %v1173
    %v1565 = vpop.f32.mrf.mxu0
    %v1566 = vadd.f32 %v1453, %v1565
    %1567 = vmatmul.f32.gmra.mxu0 %v1175
    %v1568 = vpop.f32.mrf.mxu0
    %v1569 = vadd.f32 %v1456, %v1568
    %1570 = vmatmul.f32.gmra.mxu0 %v1178
    %v1571 = vpop.f32.mrf.mxu0
    %v1572 = vadd.f32 %v1459, %v1571
    %1573 = vmatmul.f32.gmra.mxu0 %v1180
    %v1574 = vpop.f32.mrf.mxu0
    %v1575 = vadd.f32 %v1462, %v1574
    %1576 = vmatmul.f32.gmra.mxu0 %v1183
    %v1577 = vpop.f32.mrf.mxu0
    %v1578 = vadd.f32 %v1465, %v1577
    %1579 = vmatmul.f32.gmra.mxu0 %v1185
    %v1580 = vpop.f32.mrf.mxu0
    %v1581 = vadd.f32 %v1468, %v1580
    %1582 = vmatmul.f32.gmra.mxu0 %v1188
    %v1583 = vpop.f32.mrf.mxu0
    %v1584 = vadd.f32 %v1471, %v1583
    %1585 = vmatmul.f32.gmra.mxu0 %v1190
    %v1586 = vpop.f32.mrf.mxu0
    %v1587 = vadd.f32 %v1474, %v1586
    %1588 = vmatmul.f32.gmra.mxu0 %v1193
    %v1589 = vpop.f32.mrf.mxu0
    %v1590 = vadd.f32 %v1477, %v1589
    %1591 = vmatmul.f32.gmra.mxu0 %v1195
    %v1592 = vpop.f32.mrf.mxu0
    %v1593 = vadd.f32 %v1480, %v1592
    %1594 = vmatmul.f32.gmra.mxu0 %v1198
    %v1595 = vpop.f32.mrf.mxu0
    %v1596 = vadd.f32 %v1483, %v1595
    %1597 = vmatmul.f32.gmra.mxu0 %v1200
    %v1598 = vpop.f32.mrf.mxu0
    %v1599 = vadd.f32 %v1486, %v1598
    %1600 = vmatmul.f32.gmra.mxu0 %v1203
    %v1601 = vpop.f32.mrf.mxu0
    %v1602 = vadd.f32 %v1489, %v1601
    %1603 = vmatmul.f32.gmra.mxu0 %v1205
    %v1604 = vpop.f32.mrf.mxu0
    %v1605 = vadd.f32 %v1492, %v1604
    %1606 = vmatmul.f32.gmra.mxu0 %v1208
    %v1607 = vpop.f32.mrf.mxu0
    %v1608 = vadd.f32 %v1495, %v1607
    %1609 = vmatmul.f32.gmra.mxu0 %v1210
    %v1610 = vpop.f32.mrf.mxu0
    %v1611 = vadd.f32 %v1498, %v1610
    %1612 = vmatmul.f32.gmra.mxu0 %v1213
    %v1613 = vpop.f32.mrf.mxu0
    %v1614 = vadd.f32 %v1501, %v1613
    %1615 = vmatmul.f32.gmra.mxu0 %v1215
    %v1616 = vpop.f32.mrf.mxu0
    %v1617 = vadd.f32 %v1504, %v1616
    %1618 = vmatmul.f32.gmra.mxu0 %v1218
    %v1619 = vpop.f32.mrf.mxu0
    %v1620 = vadd.f32 %v1507, %v1619
    %1621 = vmatmul.f32.gmra.mxu0 %v1220
    %v1622 = vpop.f32.mrf.mxu0
    %v1623 = vadd.f32 %v1510, %v1622
    %1624 = vmatmul.f32.gmra.mxu0 %v1223
    %v1625 = vpop.f32.mrf.mxu0
    %v1626 = vadd.f32 %v1513, %v1625
    %1627 = vmatmul.f32.gmra.mxu0 %v1225
    %v1628 = vpop.f32.mrf.mxu0
    %v1629 = vadd.f32 %v1516, %v1628
    %1630 = vmatmul.f32.gmra.mxu0 %v1228
    %v1631 = vpop.f32.mrf.mxu0
    %v1632 = vadd.f32 %v1519, %v1631
    %1633 = vmatmul.f32.gmra.mxu0 %v1230
    %v1634 = vpop.f32.mrf.mxu0
    %v1635 = vadd.f32 %v1522, %v1634
    %1636 = vmatmul.f32.gmra.mxu0 %v1233
    %v1637 = vpop.f32.mrf.mxu0
    %v1638 = vadd.f32 %v1525, %v1637
    %1639 = vmatmul.f32.gmra.mxu0 %v1235
    %v1640 = vpop.f32.mrf.mxu0
    %v1641 = vadd.f32 %v1528, %v1640
    %1642 = vmatmul.f32.gmra.mxu0 %v1238
    %v1643 = vpop.f32.mrf.mxu0
    %v1644 = vadd.f32 %v1531, %v1643
    %1645 = vmatmul.f32.gmra.mxu0 %v1240
    %v1646 = vpop.f32.mrf.mxu0
    %v1647 = vadd.f32 %v1534, %v1646
    %1648 = vdwg.mxu0
    %1649 = vmatpush.msra.mxu0 %v400
    %1650 = vmatpush.msra.mxu0 %v399
    %1651 = vmatpush.msra.mxu0 %v398
    %1652 = vmatpush.msra.mxu0 %v397
    %1653 = vmatpush.msra.mxu0 %v396
    %1654 = vmatpush.msra.mxu0 %v395
    %1655 = vmatpush.msra.mxu0 %v394
    %1656 = vmatpush.msra.mxu0 %v393
    %1657 = vmatpush.msra.mxu0 %v392
    %1658 = vmatpush.msra.mxu0 %v391
    %1659 = vmatpush.msra.mxu0 %v390
    %1660 = vmatpush.msra.mxu0 %v389
    %1661 = vmatpush.msra.mxu0 %v388
    %1662 = vmatpush.msra.mxu0 %v387
    %1663 = vmatpush.msra.mxu0 %v386
    %1664 = vmatpush.msra.mxu0 %v385
    %1665 = vmatmul.f32.gmra.mxu0 %v847
    %v1666 = vpop.f32.mrf.mxu0
    %v1667 = vadd.f32 %v1554, %v1666
    %1668 = vmatmul.f32.gmra.mxu0 %v850
    %v1669 = vpop.f32.mrf.mxu0
    %v1670 = vadd.f32 %v1557, %v1669
    %1671 = vmatmul.f32.gmra.mxu0 %v856
    %v1672 = vpop.f32.mrf.mxu0
    %v1673 = vadd.f32 %v1560, %v1672
    %1674 = vmatmul.f32.gmra.mxu0 %v859
    %v1675 = vpop.f32.mrf.mxu0
    %v1676 = vadd.f32 %v1563, %v1675
    %1677 = vmatmul.f32.gmra.mxu0 %v865
    %v1678 = vpop.f32.mrf.mxu0
    %v1679 = vadd.f32 %v1566, %v1678
    %1680 = vmatmul.f32.gmra.mxu0 %v868
    %v1681 = vpop.f32.mrf.mxu0
    %v1682 = vadd.f32 %v1569, %v1681
    %1683 = vmatmul.f32.gmra.mxu0 %v874
    %v1684 = vpop.f32.mrf.mxu0
    %v1685 = vadd.f32 %v1572, %v1684
    %1686 = vmatmul.f32.gmra.mxu0 %v877
    %v1687 = vpop.f32.mrf.mxu0
    %v1688 = vadd.f32 %v1575, %v1687
    %1689 = vmatmul.f32.gmra.mxu0 %v883
    %v1690 = vpop.f32.mrf.mxu0
    %v1691 = vadd.f32 %v1578, %v1690
    %1692 = vmatmul.f32.gmra.mxu0 %v886
    %v1693 = vpop.f32.mrf.mxu0
    %v1694 = vadd.f32 %v1581, %v1693
    %1695 = vmatmul.f32.gmra.mxu0 %v892
    %v1696 = vpop.f32.mrf.mxu0
    %v1697 = vadd.f32 %v1584, %v1696
    %1698 = vmatmul.f32.gmra.mxu0 %v895
    %v1699 = vpop.f32.mrf.mxu0
    %v1700 = vadd.f32 %v1587, %v1699
    %1701 = vmatmul.f32.gmra.mxu0 %v901
    %v1702 = vpop.f32.mrf.mxu0
    %v1703 = vadd.f32 %v1590, %v1702
    %1704 = vmatmul.f32.gmra.mxu0 %v904
    %v1705 = vpop.f32.mrf.mxu0
    %v1706 = vadd.f32 %v1593, %v1705
    %1707 = vmatmul.f32.gmra.mxu0 %v910
    %v1708 = vpop.f32.mrf.mxu0
    %v1709 = vadd.f32 %v1596, %v1708
    %1710 = vmatmul.f32.gmra.mxu0 %v913
    %v1711 = vpop.f32.mrf.mxu0
    %v1712 = vadd.f32 %v1599, %v1711
    %1713 = vmatmul.f32.gmra.mxu0 %v919
    %v1714 = vpop.f32.mrf.mxu0
    %v1715 = vadd.f32 %v1602, %v1714
    %1716 = vmatmul.f32.gmra.mxu0 %v922
    %v1717 = vpop.f32.mrf.mxu0
    %v1718 = vadd.f32 %v1605, %v1717
    %1719 = vmatmul.f32.gmra.mxu0 %v928
    %v1720 = vpop.f32.mrf.mxu0
    %v1721 = vadd.f32 %v1608, %v1720
    %1722 = vmatmul.f32.gmra.mxu0 %v931
    %v1723 = vpop.f32.mrf.mxu0
    %v1724 = vadd.f32 %v1611, %v1723
    %1725 = vmatmul.f32.gmra.mxu0 %v937
    %v1726 = vpop.f32.mrf.mxu0
    %v1727 = vadd.f32 %v1614, %v1726
    %1728 = vmatmul.f32.gmra.mxu0 %v940
    %v1729 = vpop.f32.mrf.mxu0
    %v1730 = vadd.f32 %v1617, %v1729
    %1731 = vmatmul.f32.gmra.mxu0 %v946
    %v1732 = vpop.f32.mrf.mxu0
    %v1733 = vadd.f32 %v1620, %v1732
    %1734 = vmatmul.f32.gmra.mxu0 %v949
    %v1735 = vpop.f32.mrf.mxu0
    %v1736 = vadd.f32 %v1623, %v1735
    %1737 = vmatmul.f32.gmra.mxu0 %v955
    %v1738 = vpop.f32.mrf.mxu0
    %v1739 = vadd.f32 %v1626, %v1738
    %1740 = vmatmul.f32.gmra.mxu0 %v958
    %v1741 = vpop.f32.mrf.mxu0
    %v1742 = vadd.f32 %v1629, %v1741
    %1743 = vmatmul.f32.gmra.mxu0 %v964
    %v1744 = vpop.f32.mrf.mxu0
    %v1745 = vadd.f32 %v1632, %v1744
    %1746 = vmatmul.f32.gmra.mxu0 %v967
    %v1747 = vpop.f32.mrf.mxu0
    %v1748 = vadd.f32 %v1635, %v1747
    %1749 = vmatmul.f32.gmra.mxu0 %v973
    %v1750 = vpop.f32.mrf.mxu0
    %v1751 = vadd.f32 %v1638, %v1750
    %1752 = vmatmul.f32.gmra.mxu0 %v976
    %v1753 = vpop.f32.mrf.mxu0
    %v1754 = vadd.f32 %v1641, %v1753
    %1755 = vmatmul.f32.gmra.mxu0 %v982
    %v1756 = vpop.f32.mrf.mxu0
    %v1757 = vadd.f32 %v1644, %v1756
    %1758 = vmatmul.f32.gmra.mxu0 %v985
    %v1759 = vpop.f32.mrf.mxu0
    %v1760 = vadd.f32 %v1647, %v1759
    %1761 = vdwg.mxu0
    %1762 = vmatpush.msra.mxu0 %v416
    %1763 = vmatpush.msra.mxu0 %v415
    %1764 = vmatpush.msra.mxu0 %v414
    %1765 = vmatpush.msra.mxu0 %v413
    %1766 = vmatpush.msra.mxu0 %v412
    %1767 = vmatpush.msra.mxu0 %v411
    %1768 = vmatpush.msra.mxu0 %v410
    %1769 = vmatpush.msra.mxu0 %v409
    %1770 = vmatpush.msra.mxu0 %v408
    %1771 = vmatpush.msra.mxu0 %v407
    %1772 = vmatpush.msra.mxu0 %v406
    %1773 = vmatpush.msra.mxu0 %v405
    %1774 = vmatpush.msra.mxu0 %v404
    %1775 = vmatpush.msra.mxu0 %v403
    %1776 = vmatpush.msra.mxu0 %v402
    %1777 = vmatpush.msra.mxu0 %v401
    %1778 = vmatmul.f32.gmra.mxu0 %v1055
    %v1779 = vpop.f32.mrf.mxu0
    %v1780 = vadd.f32 %v1667, %v1779
    %1781 = vmatmul.f32.gmra.mxu0 %v1057
    %v1782 = vpop.f32.mrf.mxu0
    %v1783 = vadd.f32 %v1670, %v1782
    %1784 = vmatmul.f32.gmra.mxu0 %v1060
    %v1785 = vpop.f32.mrf.mxu0
    %v1786 = vadd.f32 %v1673, %v1785
    %1787 = vmatmul.f32.gmra.mxu0 %v1062
    %v1788 = vpop.f32.mrf.mxu0
    %v1789 = vadd.f32 %v1676, %v1788
    %1790 = vmatmul.f32.gmra.mxu0 %v1065
    %v1791 = vpop.f32.mrf.mxu0
    %v1792 = vadd.f32 %v1679, %v1791
    %1793 = vmatmul.f32.gmra.mxu0 %v1067
    %v1794 = vpop.f32.mrf.mxu0
    %v1795 = vadd.f32 %v1682, %v1794
    %1796 = vmatmul.f32.gmra.mxu0 %v1070
    %v1797 = vpop.f32.mrf.mxu0
    %v1798 = vadd.f32 %v1685, %v1797
    %1799 = vmatmul.f32.gmra.mxu0 %v1072
    %v1800 = vpop.f32.mrf.mxu0
    %v1801 = vadd.f32 %v1688, %v1800
    %1802 = vmatmul.f32.gmra.mxu0 %v1075
    %v1803 = vpop.f32.mrf.mxu0
    %v1804 = vadd.f32 %v1691, %v1803
    %1805 = vmatmul.f32.gmra.mxu0 %v1077
    %v1806 = vpop.f32.mrf.mxu0
    %v1807 = vadd.f32 %v1694, %v1806
    %1808 = vmatmul.f32.gmra.mxu0 %v1080
    %v1809 = vpop.f32.mrf.mxu0
    %v1810 = vadd.f32 %v1697, %v1809
    %1811 = vmatmul.f32.gmra.mxu0 %v1082
    %v1812 = vpop.f32.mrf.mxu0
    %v1813 = vadd.f32 %v1700, %v1812
    %1814 = vmatmul.f32.gmra.mxu0 %v1085
    %v1815 = vpop.f32.mrf.mxu0
    %v1816 = vadd.f32 %v1703, %v1815
    %1817 = vmatmul.f32.gmra.mxu0 %v1087
    %v1818 = vpop.f32.mrf.mxu0
    %v1819 = vadd.f32 %v1706, %v1818
    %1820 = vmatmul.f32.gmra.mxu0 %v1090
    %v1821 = vpop.f32.mrf.mxu0
    %v1822 = vadd.f32 %v1709, %v1821
    %1823 = vmatmul.f32.gmra.mxu0 %v1092
    %v1824 = vpop.f32.mrf.mxu0
    %v1825 = vadd.f32 %v1712, %v1824
    %1826 = vmatmul.f32.gmra.mxu0 %v1095
    %v1827 = vpop.f32.mrf.mxu0
    %v1828 = vadd.f32 %v1715, %v1827
    %1829 = vmatmul.f32.gmra.mxu0 %v1097
    %v1830 = vpop.f32.mrf.mxu0
    %v1831 = vadd.f32 %v1718, %v1830
    %1832 = vmatmul.f32.gmra.mxu0 %v1100
    %v1833 = vpop.f32.mrf.mxu0
    %v1834 = vadd.f32 %v1721, %v1833
    %1835 = vmatmul.f32.gmra.mxu0 %v1102
    %v1836 = vpop.f32.mrf.mxu0
    %v1837 = vadd.f32 %v1724, %v1836
    %1838 = vmatmul.f32.gmra.mxu0 %v1105
    %v1839 = vpop.f32.mrf.mxu0
    %v1840 = vadd.f32 %v1727, %v1839
    %1841 = vmatmul.f32.gmra.mxu0 %v1107
    %v1842 = vpop.f32.mrf.mxu0
    %v1843 = vadd.f32 %v1730, %v1842
    %1844 = vmatmul.f32.gmra.mxu0 %v1110
    %v1845 = vpop.f32.mrf.mxu0
    %v1846 = vadd.f32 %v1733, %v1845
    %1847 = vmatmul.f32.gmra.mxu0 %v1112
    %v1848 = vpop.f32.mrf.mxu0
    %v1849 = vadd.f32 %v1736, %v1848
    %1850 = vmatmul.f32.gmra.mxu0 %v1115
    %v1851 = vpop.f32.mrf.mxu0
    %v1852 = vadd.f32 %v1739, %v1851
    %1853 = vmatmul.f32.gmra.mxu0 %v1117
    %v1854 = vpop.f32.mrf.mxu0
    %v1855 = vadd.f32 %v1742, %v1854
    %1856 = vmatmul.f32.gmra.mxu0 %v1120
    %v1857 = vpop.f32.mrf.mxu0
    %v1858 = vadd.f32 %v1745, %v1857
    %1859 = vmatmul.f32.gmra.mxu0 %v1122
    %v1860 = vpop.f32.mrf.mxu0
    %v1861 = vadd.f32 %v1748, %v1860
    %1862 = vmatmul.f32.gmra.mxu0 %v1125
    %v1863 = vpop.f32.mrf.mxu0
    %v1864 = vadd.f32 %v1751, %v1863
    %1865 = vmatmul.f32.gmra.mxu0 %v1127
    %v1866 = vpop.f32.mrf.mxu0
    %v1867 = vadd.f32 %v1754, %v1866
    %1868 = vmatmul.f32.gmra.mxu0 %v1278
    %v1869 = vpop.f32.mrf.mxu0
    %v1870 = vadd.f32 %v1757, %v1869
    %1871 = vmatmul.f32.gmra.mxu0 %v1280
    %v1872 = vpop.f32.mrf.mxu0
    %v1873 = vadd.f32 %v1760, %v1872
    %1874 = vdwg.mxu0
    %1875 = vmatpush.msra.mxu0 %v432
    %1876 = vmatpush.msra.mxu0 %v431
    %1877 = vmatpush.msra.mxu0 %v430
    %1878 = vmatpush.msra.mxu0 %v429
    %1879 = vmatpush.msra.mxu0 %v428
    %1880 = vmatpush.msra.mxu0 %v427
    %1881 = vmatpush.msra.mxu0 %v426
    %1882 = vmatpush.msra.mxu0 %v425
    %1883 = vmatpush.msra.mxu0 %v424
    %1884 = vmatpush.msra.mxu0 %v423
    %1885 = vmatpush.msra.mxu0 %v422
    %1886 = vmatpush.msra.mxu0 %v421
    %1887 = vmatpush.msra.mxu0 %v420
    %1888 = vmatpush.msra.mxu0 %v419
    %1889 = vmatpush.msra.mxu0 %v418
    %1890 = vmatpush.msra.mxu0 %v417
    %1891 = vmatmul.f32.gmra.mxu0 %v1168
    %v1892 = vpop.f32.mrf.mxu0
    %v1893 = vadd.f32 %v1780, %v1892
    %1894 = vmatmul.f32.gmra.mxu0 %v1170
    %v1895 = vpop.f32.mrf.mxu0
    %v1896 = vadd.f32 %v1783, %v1895
    %1897 = vmatmul.f32.gmra.mxu0 %v1173
    %v1898 = vpop.f32.mrf.mxu0
    %v1899 = vadd.f32 %v1786, %v1898
    %1900 = vmatmul.f32.gmra.mxu0 %v1175
    %v1901 = vpop.f32.mrf.mxu0
    %v1902 = vadd.f32 %v1789, %v1901
    %1903 = vmatmul.f32.gmra.mxu0 %v1178
    %v1904 = vpop.f32.mrf.mxu0
    %v1905 = vadd.f32 %v1792, %v1904
    %1906 = vmatmul.f32.gmra.mxu0 %v1180
    %v1907 = vpop.f32.mrf.mxu0
    %v1908 = vadd.f32 %v1795, %v1907
    %1909 = vmatmul.f32.gmra.mxu0 %v1183
    %v1910 = vpop.f32.mrf.mxu0
    %v1911 = vadd.f32 %v1798, %v1910
    %1912 = vmatmul.f32.gmra.mxu0 %v1185
    %v1913 = vpop.f32.mrf.mxu0
    %v1914 = vadd.f32 %v1801, %v1913
    %1915 = vmatmul.f32.gmra.mxu0 %v1188
    %v1916 = vpop.f32.mrf.mxu0
    %v1917 = vadd.f32 %v1804, %v1916
    %1918 = vmatmul.f32.gmra.mxu0 %v1190
    %v1919 = vpop.f32.mrf.mxu0
    %v1920 = vadd.f32 %v1807, %v1919
    %1921 = vmatmul.f32.gmra.mxu0 %v1193
    %v1922 = vpop.f32.mrf.mxu0
    %v1923 = vadd.f32 %v1810, %v1922
    %1924 = vmatmul.f32.gmra.mxu0 %v1195
    %v1925 = vpop.f32.mrf.mxu0
    %v1926 = vadd.f32 %v1813, %v1925
    %1927 = vmatmul.f32.gmra.mxu0 %v1198
    %v1928 = vpop.f32.mrf.mxu0
    %v1929 = vadd.f32 %v1816, %v1928
    %1930 = vmatmul.f32.gmra.mxu0 %v1200
    %v1931 = vpop.f32.mrf.mxu0
    %v1932 = vadd.f32 %v1819, %v1931
    %1933 = vmatmul.f32.gmra.mxu0 %v1203
    %v1934 = vpop.f32.mrf.mxu0
    %v1935 = vadd.f32 %v1822, %v1934
    %1936 = vmatmul.f32.gmra.mxu0 %v1205
    %v1937 = vpop.f32.mrf.mxu0
    %v1938 = vadd.f32 %v1825, %v1937
    %1939 = vmatmul.f32.gmra.mxu0 %v1208
    %v1940 = vpop.f32.mrf.mxu0
    %v1941 = vadd.f32 %v1828, %v1940
    %1942 = vmatmul.f32.gmra.mxu0 %v1210
    %v1943 = vpop.f32.mrf.mxu0
    %v1944 = vadd.f32 %v1831, %v1943
    %1945 = vmatmul.f32.gmra.mxu0 %v1213
    %v1946 = vpop.f32.mrf.mxu0
    %v1947 = vadd.f32 %v1834, %v1946
    %1948 = vmatmul.f32.gmra.mxu0 %v1215
    %v1949 = vpop.f32.mrf.mxu0
    %v1950 = vadd.f32 %v1837, %v1949
    %1951 = vmatmul.f32.gmra.mxu0 %v1218
    %v1952 = vpop.f32.mrf.mxu0
    %v1953 = vadd.f32 %v1840, %v1952
    %1954 = vmatmul.f32.gmra.mxu0 %v1220
    %v1955 = vpop.f32.mrf.mxu0
    %v1956 = vadd.f32 %v1843, %v1955
    %1957 = vmatmul.f32.gmra.mxu0 %v1223
    %v1958 = vpop.f32.mrf.mxu0
    %v1959 = vadd.f32 %v1846, %v1958
    %1960 = vmatmul.f32.gmra.mxu0 %v1225
    %v1961 = vpop.f32.mrf.mxu0
    %v1962 = vadd.f32 %v1849, %v1961
    %1963 = vmatmul.f32.gmra.mxu0 %v1228
    %v1964 = vpop.f32.mrf.mxu0
    %v1965 = vadd.f32 %v1852, %v1964
    %1966 = vmatmul.f32.gmra.mxu0 %v1230
    %v1967 = vpop.f32.mrf.mxu0
    %v1968 = vadd.f32 %v1855, %v1967
    %1969 = vmatmul.f32.gmra.mxu0 %v1233
    %v1970 = vpop.f32.mrf.mxu0
    %v1971 = vadd.f32 %v1858, %v1970
    %1972 = vmatmul.f32.gmra.mxu0 %v1235
    %v1973 = vpop.f32.mrf.mxu0
    %v1974 = vadd.f32 %v1861, %v1973
    %1975 = vmatmul.f32.gmra.mxu0 %v1238
    %v1976 = vpop.f32.mrf.mxu0
    %v1977 = vadd.f32 %v1864, %v1976
    %1978 = vmatmul.f32.gmra.mxu0 %v1240
    %v1979 = vpop.f32.mrf.mxu0
    %v1980 = vadd.f32 %v1867, %v1979
    %1981 = vmatmul.f32.gmra.mxu0 %v1285
    %v1982 = vpop.f32.mrf.mxu0
    %v1983 = vadd.f32 %v1870, %v1982
    %1984 = vmatmul.f32.gmra.mxu0 %v1287
    %v1985 = vpop.f32.mrf.mxu0
    %v1986 = vadd.f32 %v1873, %v1985
    %1987 = vdwg.mxu0
    %1988 = vmatpush.msra.mxu0 %v448
    %1989 = vmatpush.msra.mxu0 %v447
    %1990 = vmatpush.msra.mxu0 %v446
    %1991 = vmatpush.msra.mxu0 %v445
    %1992 = vmatpush.msra.mxu0 %v444
    %1993 = vmatpush.msra.mxu0 %v443
    %1994 = vmatpush.msra.mxu0 %v442
    %1995 = vmatpush.msra.mxu0 %v441
    %1996 = vmatpush.msra.mxu0 %v440
    %1997 = vmatpush.msra.mxu0 %v439
    %1998 = vmatpush.msra.mxu0 %v438
    %1999 = vmatpush.msra.mxu0 %v437
    %2000 = vmatpush.msra.mxu0 %v436
    %2001 = vmatpush.msra.mxu0 %v435
    %2002 = vmatpush.msra.mxu0 %v434
    %2003 = vmatpush.msra.mxu0 %v433
    %2004 = vmatmul.f32.gmra.mxu0 %v856
    %v2005 = vpop.f32.mrf.mxu0
    %v2006 = vadd.f32 %v1893, %v2005
    %2007 = vmatmul.f32.gmra.mxu0 %v859
    %v2008 = vpop.f32.mrf.mxu0
    %v2009 = vadd.f32 %v1896, %v2008
    %2010 = vmatmul.f32.gmra.mxu0 %v865
    %v2011 = vpop.f32.mrf.mxu0
    %v2012 = vadd.f32 %v1899, %v2011
    %2013 = vmatmul.f32.gmra.mxu0 %v868
    %v2014 = vpop.f32.mrf.mxu0
    %v2015 = vadd.f32 %v1902, %v2014
    %2016 = vmatmul.f32.gmra.mxu0 %v874
    %v2017 = vpop.f32.mrf.mxu0
    %v2018 = vadd.f32 %v1905, %v2017
    %2019 = vmatmul.f32.gmra.mxu0 %v877
    %v2020 = vpop.f32.mrf.mxu0
    %v2021 = vadd.f32 %v1908, %v2020
    %2022 = vmatmul.f32.gmra.mxu0 %v883
    %v2023 = vpop.f32.mrf.mxu0
    %v2024 = vadd.f32 %v1911, %v2023
    %2025 = vmatmul.f32.gmra.mxu0 %v886
    %v2026 = vpop.f32.mrf.mxu0
    %v2027 = vadd.f32 %v1914, %v2026
    %2028 = vmatmul.f32.gmra.mxu0 %v892
    %v2029 = vpop.f32.mrf.mxu0
    %v2030 = vadd.f32 %v1917, %v2029
    %2031 = vmatmul.f32.gmra.mxu0 %v895
    %v2032 = vpop.f32.mrf.mxu0
    %v2033 = vadd.f32 %v1920, %v2032
    %2034 = vmatmul.f32.gmra.mxu0 %v901
    %v2035 = vpop.f32.mrf.mxu0
    %v2036 = vadd.f32 %v1923, %v2035
    %2037 = vmatmul.f32.gmra.mxu0 %v904
    %v2038 = vpop.f32.mrf.mxu0
    %v2039 = vadd.f32 %v1926, %v2038
    %2040 = vmatmul.f32.gmra.mxu0 %v910
    %v2041 = vpop.f32.mrf.mxu0
    %v2042 = vadd.f32 %v1929, %v2041
    %2043 = vmatmul.f32.gmra.mxu0 %v913
    %v2044 = vpop.f32.mrf.mxu0
    %v2045 = vadd.f32 %v1932, %v2044
    %2046 = vmatmul.f32.gmra.mxu0 %v919
    %v2047 = vpop.f32.mrf.mxu0
    %v2048 = vadd.f32 %v1935, %v2047
    %2049 = vmatmul.f32.gmra.mxu0 %v922
    %v2050 = vpop.f32.mrf.mxu0
    %v2051 = vadd.f32 %v1938, %v2050
    %2052 = vmatmul.f32.gmra.mxu0 %v928
    %v2053 = vpop.f32.mrf.mxu0
    %v2054 = vadd.f32 %v1941, %v2053
    %2055 = vmatmul.f32.gmra.mxu0 %v931
    %v2056 = vpop.f32.mrf.mxu0
    %v2057 = vadd.f32 %v1944, %v2056
    %2058 = vmatmul.f32.gmra.mxu0 %v937
    %v2059 = vpop.f32.mrf.mxu0
    %v2060 = vadd.f32 %v1947, %v2059
    %2061 = vmatmul.f32.gmra.mxu0 %v940
    %v2062 = vpop.f32.mrf.mxu0
    %v2063 = vadd.f32 %v1950, %v2062
    %2064 = vmatmul.f32.gmra.mxu0 %v946
    %v2065 = vpop.f32.mrf.mxu0
    %v2066 = vadd.f32 %v1953, %v2065
    %2067 = vmatmul.f32.gmra.mxu0 %v949
    %v2068 = vpop.f32.mrf.mxu0
    %v2069 = vadd.f32 %v1956, %v2068
    %2070 = vmatmul.f32.gmra.mxu0 %v955
    %v2071 = vpop.f32.mrf.mxu0
    %v2072 = vadd.f32 %v1959, %v2071
    %2073 = vmatmul.f32.gmra.mxu0 %v958
    %v2074 = vpop.f32.mrf.mxu0
    %v2075 = vadd.f32 %v1962, %v2074
    %2076 = vmatmul.f32.gmra.mxu0 %v964
    %v2077 = vpop.f32.mrf.mxu0
    %v2078 = vadd.f32 %v1965, %v2077
    %2079 = vmatmul.f32.gmra.mxu0 %v967
    %v2080 = vpop.f32.mrf.mxu0
    %v2081 = vadd.f32 %v1968, %v2080
    %2082 = vmatmul.f32.gmra.mxu0 %v973
    %v2083 = vpop.f32.mrf.mxu0
    %v2084 = vadd.f32 %v1971, %v2083
    %2085 = vmatmul.f32.gmra.mxu0 %v976
    %v2086 = vpop.f32.mrf.mxu0
    %v2087 = vadd.f32 %v1974, %v2086
    %2088 = vmatmul.f32.gmra.mxu0 %v982
    %v2089 = vpop.f32.mrf.mxu0
    %v2090 = vadd.f32 %v1977, %v2089
    %2091 = vmatmul.f32.gmra.mxu0 %v985
    %v2092 = vpop.f32.mrf.mxu0
    %v2093 = vadd.f32 %v1980, %v2092
    %2094 = vmatmul.f32.gmra.mxu0 %v991
    %v2095 = vpop.f32.mrf.mxu0
    %v2096 = vadd.f32 %v1983, %v2095
    %2097 = vmatmul.f32.gmra.mxu0 %v994
    %v2098 = vpop.f32.mrf.mxu0
    %v2099 = vadd.f32 %v1986, %v2098
    %2100 = vdwg.mxu0
    %2101 = vmatpush.msra.mxu0 %v464
    %2102 = vmatpush.msra.mxu0 %v463
    %2103 = vmatpush.msra.mxu0 %v462
    %2104 = vmatpush.msra.mxu0 %v461
    %2105 = vmatpush.msra.mxu0 %v460
    %2106 = vmatpush.msra.mxu0 %v459
    %2107 = vmatpush.msra.mxu0 %v458
    %2108 = vmatpush.msra.mxu0 %v457
    %2109 = vmatpush.msra.mxu0 %v456
    %2110 = vmatpush.msra.mxu0 %v455
    %2111 = vmatpush.msra.mxu0 %v454
    %2112 = vmatpush.msra.mxu0 %v453
    %2113 = vmatpush.msra.mxu0 %v452
    %2114 = vmatpush.msra.mxu0 %v451
    %2115 = vmatpush.msra.mxu0 %v450
    %2116 = vmatpush.msra.mxu0 %v449
    %2117 = vmatmul.f32.gmra.mxu0 %v1060
    %v2118 = vpop.f32.mrf.mxu0
    %v2119 = vadd.f32 %v2006, %v2118
    %2120 = vmatmul.f32.gmra.mxu0 %v1062
    %v2121 = vpop.f32.mrf.mxu0
    %v2122 = vadd.f32 %v2009, %v2121
    %2123 = vmatmul.f32.gmra.mxu0 %v1065
    %v2124 = vpop.f32.mrf.mxu0
    %v2125 = vadd.f32 %v2012, %v2124
    %2126 = vmatmul.f32.gmra.mxu0 %v1067
    %v2127 = vpop.f32.mrf.mxu0
    %v2128 = vadd.f32 %v2015, %v2127
    %2129 = vmatmul.f32.gmra.mxu0 %v1070
    %v2130 = vpop.f32.mrf.mxu0
    %v2131 = vadd.f32 %v2018, %v2130
    %2132 = vmatmul.f32.gmra.mxu0 %v1072
    %v2133 = vpop.f32.mrf.mxu0
    %v2134 = vadd.f32 %v2021, %v2133
    %2135 = vmatmul.f32.gmra.mxu0 %v1075
    %v2136 = vpop.f32.mrf.mxu0
    %v2137 = vadd.f32 %v2024, %v2136
    %2138 = vmatmul.f32.gmra.mxu0 %v1077
    %v2139 = vpop.f32.mrf.mxu0
    %v2140 = vadd.f32 %v2027, %v2139
    %2141 = vmatmul.f32.gmra.mxu0 %v1080
    %v2142 = vpop.f32.mrf.mxu0
    %v2143 = vadd.f32 %v2030, %v2142
    %2144 = vmatmul.f32.gmra.mxu0 %v1082
    %v2145 = vpop.f32.mrf.mxu0
    %v2146 = vadd.f32 %v2033, %v2145
    %2147 = vmatmul.f32.gmra.mxu0 %v1085
    %v2148 = vpop.f32.mrf.mxu0
    %v2149 = vadd.f32 %v2036, %v2148
    %2150 = vmatmul.f32.gmra.mxu0 %v1087
    %v2151 = vpop.f32.mrf.mxu0
    %v2152 = vadd.f32 %v2039, %v2151
    %2153 = vmatmul.f32.gmra.mxu0 %v1090
    %v2154 = vpop.f32.mrf.mxu0
    %v2155 = vadd.f32 %v2042, %v2154
    %2156 = vmatmul.f32.gmra.mxu0 %v1092
    %v2157 = vpop.f32.mrf.mxu0
    %v2158 = vadd.f32 %v2045, %v2157
    %2159 = vmatmul.f32.gmra.mxu0 %v1095
    %v2160 = vpop.f32.mrf.mxu0
    %v2161 = vadd.f32 %v2048, %v2160
    %2162 = vmatmul.f32.gmra.mxu0 %v1097
    %v2163 = vpop.f32.mrf.mxu0
    %v2164 = vadd.f32 %v2051, %v2163
    %2165 = vmatmul.f32.gmra.mxu0 %v1100
    %v2166 = vpop.f32.mrf.mxu0
    %v2167 = vadd.f32 %v2054, %v2166
    %2168 = vmatmul.f32.gmra.mxu0 %v1102
    %v2169 = vpop.f32.mrf.mxu0
    %v2170 = vadd.f32 %v2057, %v2169
    %2171 = vmatmul.f32.gmra.mxu0 %v1105
    %v2172 = vpop.f32.mrf.mxu0
    %v2173 = vadd.f32 %v2060, %v2172
    %2174 = vmatmul.f32.gmra.mxu0 %v1107
    %v2175 = vpop.f32.mrf.mxu0
    %v2176 = vadd.f32 %v2063, %v2175
    %2177 = vmatmul.f32.gmra.mxu0 %v1110
    %v2178 = vpop.f32.mrf.mxu0
    %v2179 = vadd.f32 %v2066, %v2178
    %2180 = vmatmul.f32.gmra.mxu0 %v1112
    %v2181 = vpop.f32.mrf.mxu0
    %v2182 = vadd.f32 %v2069, %v2181
    %2183 = vmatmul.f32.gmra.mxu0 %v1115
    %v2184 = vpop.f32.mrf.mxu0
    %v2185 = vadd.f32 %v2072, %v2184
    %2186 = vmatmul.f32.gmra.mxu0 %v1117
    %v2187 = vpop.f32.mrf.mxu0
    %v2188 = vadd.f32 %v2075, %v2187
    %2189 = vmatmul.f32.gmra.mxu0 %v1120
    %v2190 = vpop.f32.mrf.mxu0
    %v2191 = vadd.f32 %v2078, %v2190
    %2192 = vmatmul.f32.gmra.mxu0 %v1122
    %v2193 = vpop.f32.mrf.mxu0
    %v2194 = vadd.f32 %v2081, %v2193
    %2195 = vmatmul.f32.gmra.mxu0 %v1125
    %v2196 = vpop.f32.mrf.mxu0
    %v2197 = vadd.f32 %v2084, %v2196
    %2198 = vmatmul.f32.gmra.mxu0 %v1127
    %v2199 = vpop.f32.mrf.mxu0
    %v2200 = vadd.f32 %v2087, %v2199
    %2201 = vmatmul.f32.gmra.mxu0 %v1278
    %v2202 = vpop.f32.mrf.mxu0
    %v2203 = vadd.f32 %v2090, %v2202
    %2204 = vmatmul.f32.gmra.mxu0 %v1280
    %v2205 = vpop.f32.mrf.mxu0
    %v2206 = vadd.f32 %v2093, %v2205
    %2207 = vmatmul.f32.gmra.mxu0 %v1295
    %v2208 = vpop.f32.mrf.mxu0
    %v2209 = vadd.f32 %v2096, %v2208
    %2210 = vmatmul.f32.gmra.mxu0 %v1297
    %v2211 = vpop.f32.mrf.mxu0
    %v2212 = vadd.f32 %v2099, %v2211
    %2213 = vdwg.mxu0
    %2214 = vmatpush.msra.mxu0 %v480
    %2215 = vmatpush.msra.mxu0 %v479
    %2216 = vmatpush.msra.mxu0 %v478
    %2217 = vmatpush.msra.mxu0 %v477
    %2218 = vmatpush.msra.mxu0 %v476
    %2219 = vmatpush.msra.mxu0 %v475
    %2220 = vmatpush.msra.mxu0 %v474
    %2221 = vmatpush.msra.mxu0 %v473
    %2222 = vmatpush.msra.mxu0 %v472
    %2223 = vmatpush.msra.mxu0 %v471
    %2224 = vmatpush.msra.mxu0 %v470
    %2225 = vmatpush.msra.mxu0 %v469
    %2226 = vmatpush.msra.mxu0 %v468
    %2227 = vmatpush.msra.mxu0 %v467
    %2228 = vmatpush.msra.mxu0 %v466
    %2229 = vmatpush.msra.mxu0 %v465
    %2230 = vmatmul.f32.gmra.mxu0 %v1173
    %v2231 = vpop.f32.mrf.mxu0
    %v2232 = vadd.f32 %v2119, %v2231
    %2233 = vmatmul.f32.gmra.mxu0 %v1175
    %v2234 = vpop.f32.mrf.mxu0
    %v2235 = vadd.f32 %v2122, %v2234
    %2236 = vmatmul.f32.gmra.mxu0 %v1178
    %v2237 = vpop.f32.mrf.mxu0
    %v2238 = vadd.f32 %v2125, %v2237
    %2239 = vmatmul.f32.gmra.mxu0 %v1180
    %v2240 = vpop.f32.mrf.mxu0
    %v2241 = vadd.f32 %v2128, %v2240
    %2242 = vmatmul.f32.gmra.mxu0 %v1183
    %v2243 = vpop.f32.mrf.mxu0
    %v2244 = vadd.f32 %v2131, %v2243
    %2245 = vmatmul.f32.gmra.mxu0 %v1185
    %v2246 = vpop.f32.mrf.mxu0
    %v2247 = vadd.f32 %v2134, %v2246
    %2248 = vmatmul.f32.gmra.mxu0 %v1188
    %v2249 = vpop.f32.mrf.mxu0
    %v2250 = vadd.f32 %v2137, %v2249
    %2251 = vmatmul.f32.gmra.mxu0 %v1190
    %v2252 = vpop.f32.mrf.mxu0
    %v2253 = vadd.f32 %v2140, %v2252
    %2254 = vmatmul.f32.gmra.mxu0 %v1193
    %v2255 = vpop.f32.mrf.mxu0
    %v2256 = vadd.f32 %v2143, %v2255
    %2257 = vmatmul.f32.gmra.mxu0 %v1195
    %v2258 = vpop.f32.mrf.mxu0
    %v2259 = vadd.f32 %v2146, %v2258
    %2260 = vmatmul.f32.gmra.mxu0 %v1198
    %v2261 = vpop.f32.mrf.mxu0
    %v2262 = vadd.f32 %v2149, %v2261
    %2263 = vmatmul.f32.gmra.mxu0 %v1200
    %v2264 = vpop.f32.mrf.mxu0
    %v2265 = vadd.f32 %v2152, %v2264
    %2266 = vmatmul.f32.gmra.mxu0 %v1203
    %v2267 = vpop.f32.mrf.mxu0
    %v2268 = vadd.f32 %v2155, %v2267
    %2269 = vmatmul.f32.gmra.mxu0 %v1205
    %v2270 = vpop.f32.mrf.mxu0
    %v2271 = vadd.f32 %v2158, %v2270
    %2272 = vmatmul.f32.gmra.mxu0 %v1208
    %v2273 = vpop.f32.mrf.mxu0
    %v2274 = vadd.f32 %v2161, %v2273
    %2275 = vmatmul.f32.gmra.mxu0 %v1210
    %v2276 = vpop.f32.mrf.mxu0
    %v2277 = vadd.f32 %v2164, %v2276
    %2278 = vmatmul.f32.gmra.mxu0 %v1213
    %v2279 = vpop.f32.mrf.mxu0
    %v2280 = vadd.f32 %v2167, %v2279
    %2281 = vmatmul.f32.gmra.mxu0 %v1215
    %v2282 = vpop.f32.mrf.mxu0
    %v2283 = vadd.f32 %v2170, %v2282
    %2284 = vmatmul.f32.gmra.mxu0 %v1218
    %v2285 = vpop.f32.mrf.mxu0
    %v2286 = vadd.f32 %v2173, %v2285
    %2287 = vmatmul.f32.gmra.mxu0 %v1220
    %v2288 = vpop.f32.mrf.mxu0
    %v2289 = vadd.f32 %v2176, %v2288
    %2290 = vmatmul.f32.gmra.mxu0 %v1223
    %v2291 = vpop.f32.mrf.mxu0
    %v2292 = vadd.f32 %v2179, %v2291
    %2293 = vmatmul.f32.gmra.mxu0 %v1225
    %v2294 = vpop.f32.mrf.mxu0
    %v2295 = vadd.f32 %v2182, %v2294
    %2296 = vmatmul.f32.gmra.mxu0 %v1228
    %v2297 = vpop.f32.mrf.mxu0
    %v2298 = vadd.f32 %v2185, %v2297
    %2299 = vmatmul.f32.gmra.mxu0 %v1230
    %v2300 = vpop.f32.mrf.mxu0
    %v2301 = vadd.f32 %v2188, %v2300
    %2302 = vmatmul.f32.gmra.mxu0 %v1233
    %v2303 = vpop.f32.mrf.mxu0
    %v2304 = vadd.f32 %v2191, %v2303
    %2305 = vmatmul.f32.gmra.mxu0 %v1235
    %v2306 = vpop.f32.mrf.mxu0
    %v2307 = vadd.f32 %v2194, %v2306
    %2308 = vmatmul.f32.gmra.mxu0 %v1238
    %v2309 = vpop.f32.mrf.mxu0
    %v2310 = vadd.f32 %v2197, %v2309
    %2311 = vmatmul.f32.gmra.mxu0 %v1240
    %v2312 = vpop.f32.mrf.mxu0
    %v2313 = vadd.f32 %v2200, %v2312
    %2314 = vmatmul.f32.gmra.mxu0 %v1285
    %v2315 = vpop.f32.mrf.mxu0
    %v2316 = vadd.f32 %v2203, %v2315
    %2317 = vmatmul.f32.gmra.mxu0 %v1287
    %v2318 = vpop.f32.mrf.mxu0
    %v2319 = vadd.f32 %v2206, %v2318
    %2320 = vmatmul.f32.gmra.mxu0 %v1302
    %v2321 = vpop.f32.mrf.mxu0
    %v2322 = vadd.f32 %v2209, %v2321
    %2323 = vmatmul.f32.gmra.mxu0 %v1304
    %v2324 = vpop.f32.mrf.mxu0
    %v2325 = vadd.f32 %v2212, %v2324
    %2326 = vdwg.mxu0
    %v2327 = vadd.f32 %v2232, %v2235
    %v2328 = vadd.f32 %v2327, %v2238
    %v2329 = vadd.f32 %v2328, %v2241
    %v2330 = vadd.f32 %v2329, %v2244
    %v2331 = vadd.f32 %v2330, %v2247
    %v2332 = vadd.f32 %v2331, %v2250
    %v2333 = vadd.f32 %v2332, %v2253
    %v2334 = vadd.f32 %v2333, %v2256
    %v2335 = vadd.f32 %v2334, %v2259
    %v2336 = vadd.f32 %v2335, %v2262
    %v2337 = vadd.f32 %v2336, %v2265
    %v2338 = vadd.f32 %v2337, %v2268
    %v2339 = vadd.f32 %v2338, %v2271
    %v2340 = vadd.f32 %v2339, %v2274
    %v2341 = vadd.f32 %v2340, %v2277
    %v2342 = vadd.f32 %v2341, %v2280
    %v2343 = vadd.f32 %v2342, %v2283
    %v2344 = vadd.f32 %v2343, %v2286
    %v2345 = vadd.f32 %v2344, %v2289
    %v2346 = vadd.f32 %v2345, %v2292
    %v2347 = vadd.f32 %v2346, %v2295
    %v2348 = vadd.f32 %v2347, %v2298
    %v2349 = vadd.f32 %v2348, %v2301
    %v2350 = vadd.f32 %v2349, %v2304
    %v2351 = vadd.f32 %v2350, %v2307
    %v2352 = vadd.f32 %v2351, %v2310
    %v2353 = vadd.f32 %v2352, %v2313
    %v2354 = vadd.f32 %v2353, %v2316
    %v2355 = vadd.f32 %v2354, %v2319
    %v2356 = vadd.f32 %v2355, %v2322
    %v2357 = vadd.f32 %v2356, %v2325
    %v2358 = vrot.slane %v2357, 4
    %v2359 = vadd.f32 %v2357, %v2358
    %v2360 = vrot.slane %v2359, 2
    %v2361 = vadd.f32 %v2359, %v2360
    %v2362 = vrot.slane %v2361, 1
    %v2363 = vadd.f32 %v2361, %v2362
    %v2364 = vadd.f32 %v2363, 0.0
    %v2365 = vmul.f32 %v2232, %v2232
    %v2366 = vmul.f32 %v2235, %v2235
    %v2367 = vmul.f32 %v2238, %v2238
    %v2368 = vmul.f32 %v2241, %v2241
    %v2369 = vmul.f32 %v2244, %v2244
    %v2370 = vmul.f32 %v2247, %v2247
    %v2371 = vmul.f32 %v2250, %v2250
    %v2372 = vmul.f32 %v2253, %v2253
    %v2373 = vmul.f32 %v2256, %v2256
    %v2374 = vmul.f32 %v2259, %v2259
    %v2375 = vmul.f32 %v2262, %v2262
    %v2376 = vmul.f32 %v2265, %v2265
    %v2377 = vmul.f32 %v2268, %v2268
    %v2378 = vmul.f32 %v2271, %v2271
    %v2379 = vmul.f32 %v2274, %v2274
    %v2380 = vmul.f32 %v2277, %v2277
    %v2381 = vmul.f32 %v2280, %v2280
    %v2382 = vmul.f32 %v2283, %v2283
    %v2383 = vmul.f32 %v2286, %v2286
    %v2384 = vmul.f32 %v2289, %v2289
    %v2385 = vmul.f32 %v2292, %v2292
    %v2386 = vmul.f32 %v2295, %v2295
    %v2387 = vmul.f32 %v2298, %v2298
    %v2388 = vmul.f32 %v2301, %v2301
    %v2389 = vmul.f32 %v2304, %v2304
    %v2390 = vmul.f32 %v2307, %v2307
    %v2391 = vmul.f32 %v2310, %v2310
    %v2392 = vmul.f32 %v2313, %v2313
    %v2393 = vmul.f32 %v2316, %v2316
    %v2394 = vmul.f32 %v2319, %v2319
    %v2395 = vmul.f32 %v2322, %v2322
    %v2396 = vmul.f32 %v2325, %v2325
    %v2397 = vadd.f32 %v2365, %v2366
    %v2398 = vadd.f32 %v2397, %v2367
    %v2399 = vadd.f32 %v2398, %v2368
    %v2400 = vadd.f32 %v2399, %v2369
    %v2401 = vadd.f32 %v2400, %v2370
    %v2402 = vadd.f32 %v2401, %v2371
    %v2403 = vadd.f32 %v2402, %v2372
    %v2404 = vadd.f32 %v2403, %v2373
    %v2405 = vadd.f32 %v2404, %v2374
    %v2406 = vadd.f32 %v2405, %v2375
    %v2407 = vadd.f32 %v2406, %v2376
    %v2408 = vadd.f32 %v2407, %v2377
    %v2409 = vadd.f32 %v2408, %v2378
    %v2410 = vadd.f32 %v2409, %v2379
    %v2411 = vadd.f32 %v2410, %v2380
    %v2412 = vadd.f32 %v2411, %v2381
    %v2413 = vadd.f32 %v2412, %v2382
    %v2414 = vadd.f32 %v2413, %v2383
    %v2415 = vadd.f32 %v2414, %v2384
    %v2416 = vadd.f32 %v2415, %v2385
    %v2417 = vadd.f32 %v2416, %v2386
    %v2418 = vadd.f32 %v2417, %v2387
    %v2419 = vadd.f32 %v2418, %v2388
    %v2420 = vadd.f32 %v2419, %v2389
    %v2421 = vadd.f32 %v2420, %v2390
    %v2422 = vadd.f32 %v2421, %v2391
    %v2423 = vadd.f32 %v2422, %v2392
    %v2424 = vadd.f32 %v2423, %v2393
    %v2425 = vadd.f32 %v2424, %v2394
    %v2426 = vadd.f32 %v2425, %v2395
    %v2427 = vadd.f32 %v2426, %v2396
    %v2428 = vrot.slane %v2427, 4
    %v2429 = vadd.f32 %v2427, %v2428
    %v2430 = vrot.slane %v2429, 2
    %v2431 = vadd.f32 %v2429, %v2430
    %v2432 = vrot.slane %v2431, 1
    %v2433 = vadd.f32 %v2431, %v2432
    %v2434 = vadd.f32 %v2433, 0.0
    %v2435 = vmul.f32 %v50, %v628
    %v2436 = vmul.f32 %v51, %v628
    %v2437 = vmul.f32 %v52, %v628
    %v2438 = vmul.f32 %v53, %v628
    %v2439 = vmul.f32 %v54, %v628
    %v2440 = vmul.f32 %v55, %v628
    %v2441 = vmul.f32 %v56, %v628
    %v2442 = vmul.f32 %v57, %v628
    %v2443 = vadd.f32 %v2435, %v639
    %v2444 = vadd.f32 %v2436, %v639
    %v2445 = vadd.f32 %v2437, %v639
    %v2446 = vadd.f32 %v2438, %v639
    %v2447 = vadd.f32 %v2439, %v639
    %v2448 = vadd.f32 %v2440, %v639
    %v2449 = vadd.f32 %v2441, %v639
    %v2450 = vadd.f32 %v2442, %v639
    %v2451 = vmax.f32 %v2443, 0.0
    %v2452 = vmax.f32 %v2444, 0.0
    %v2453 = vmax.f32 %v2445, 0.0
    %v2454 = vmax.f32 %v2446, 0.0
    %v2455 = vmax.f32 %v2447, 0.0
    %v2456 = vmax.f32 %v2448, 0.0
    %v2457 = vmax.f32 %v2449, 0.0
    %v2458 = vmax.f32 %v2450, 0.0
    %2459 = vmatpush.msra.mxu0 0.0
    %2460 = vmatpush.msra.mxu0 0.0
    %2461 = vmatpush.msra.mxu0 0.0
    %2462 = vmatpush.msra.mxu0 0.0
    %2463 = vmatpush.msra.mxu0 0.0
    %2464 = vmatpush.msra.mxu0 0.0
    %2465 = vmatpush.msra.mxu0 0.0
    %2466 = vmatpush.msra.mxu0 0.0
    %2467 = vmatpush.msra.mxu0 %v2458
    %2468 = vmatpush.msra.mxu0 %v2457
    %2469 = vmatpush.msra.mxu0 %v2456
    %2470 = vmatpush.msra.mxu0 %v2455
    %2471 = vmatpush.msra.mxu0 %v2454
    %2472 = vmatpush.msra.mxu0 %v2453
    %2473 = vmatpush.msra.mxu0 %v2452
    %2474 = vmatpush.msra.mxu0 %v2451
    %2475 = vmatmul.f32.gmra.mxu0 %v659
    %v2476 = vpop.f32.mrf.mxu0
    %v2477 = vadd.f32 0.0, %v2476
    %2478 = vmatmul.f32.gmra.mxu0 %v662
    %v2479 = vpop.f32.mrf.mxu0
    %v2480 = vadd.f32 0.0, %v2479
    %2481 = vmatmul.f32.gmra.mxu0 %v665
    %v2482 = vpop.f32.mrf.mxu0
    %v2483 = vadd.f32 0.0, %v2482
    %2484 = vmatmul.f32.gmra.mxu0 %v668
    %v2485 = vpop.f32.mrf.mxu0
    %v2486 = vadd.f32 0.0, %v2485
    %2487 = vmatmul.f32.gmra.mxu0 %v671
    %v2488 = vpop.f32.mrf.mxu0
    %v2489 = vadd.f32 0.0, %v2488
    %2490 = vmatmul.f32.gmra.mxu0 %v674
    %v2491 = vpop.f32.mrf.mxu0
    %v2492 = vadd.f32 0.0, %v2491
    %2493 = vmatmul.f32.gmra.mxu0 %v677
    %v2494 = vpop.f32.mrf.mxu0
    %v2495 = vadd.f32 0.0, %v2494
    %2496 = vmatmul.f32.gmra.mxu0 %v680
    %v2497 = vpop.f32.mrf.mxu0
    %v2498 = vadd.f32 0.0, %v2497
    %2499 = vmatmul.f32.gmra.mxu0 %v683
    %v2500 = vpop.f32.mrf.mxu0
    %v2501 = vadd.f32 0.0, %v2500
    %2502 = vmatmul.f32.gmra.mxu0 %v686
    %v2503 = vpop.f32.mrf.mxu0
    %v2504 = vadd.f32 0.0, %v2503
    %2505 = vmatmul.f32.gmra.mxu0 %v689
    %v2506 = vpop.f32.mrf.mxu0
    %v2507 = vadd.f32 0.0, %v2506
    %2508 = vmatmul.f32.gmra.mxu0 %v692
    %v2509 = vpop.f32.mrf.mxu0
    %v2510 = vadd.f32 0.0, %v2509
    %2511 = vmatmul.f32.gmra.mxu0 %v695
    %v2512 = vpop.f32.mrf.mxu0
    %v2513 = vadd.f32 0.0, %v2512
    %2514 = vmatmul.f32.gmra.mxu0 %v698
    %v2515 = vpop.f32.mrf.mxu0
    %v2516 = vadd.f32 0.0, %v2515
    %2517 = vmatmul.f32.gmra.mxu0 %v701
    %v2518 = vpop.f32.mrf.mxu0
    %v2519 = vadd.f32 0.0, %v2518
    %2520 = vmatmul.f32.gmra.mxu0 %v704
    %v2521 = vpop.f32.mrf.mxu0
    %v2522 = vadd.f32 0.0, %v2521
    %2523 = vmatmul.f32.gmra.mxu0 %v707
    %v2524 = vpop.f32.mrf.mxu0
    %v2525 = vadd.f32 0.0, %v2524
    %2526 = vmatmul.f32.gmra.mxu0 %v710
    %v2527 = vpop.f32.mrf.mxu0
    %v2528 = vadd.f32 0.0, %v2527
    %2529 = vmatmul.f32.gmra.mxu0 %v713
    %v2530 = vpop.f32.mrf.mxu0
    %v2531 = vadd.f32 0.0, %v2530
    %2532 = vmatmul.f32.gmra.mxu0 %v716
    %v2533 = vpop.f32.mrf.mxu0
    %v2534 = vadd.f32 0.0, %v2533
    %2535 = vmatmul.f32.gmra.mxu0 %v719
    %v2536 = vpop.f32.mrf.mxu0
    %v2537 = vadd.f32 0.0, %v2536
    %2538 = vmatmul.f32.gmra.mxu0 %v722
    %v2539 = vpop.f32.mrf.mxu0
    %v2540 = vadd.f32 0.0, %v2539
    %2541 = vmatmul.f32.gmra.mxu0 %v725
    %v2542 = vpop.f32.mrf.mxu0
    %v2543 = vadd.f32 0.0, %v2542
    %2544 = vmatmul.f32.gmra.mxu0 %v728
    %v2545 = vpop.f32.mrf.mxu0
    %v2546 = vadd.f32 0.0, %v2545
    %2547 = vmatmul.f32.gmra.mxu0 %v731
    %v2548 = vpop.f32.mrf.mxu0
    %v2549 = vadd.f32 0.0, %v2548
    %2550 = vmatmul.f32.gmra.mxu0 %v734
    %v2551 = vpop.f32.mrf.mxu0
    %v2552 = vadd.f32 0.0, %v2551
    %2553 = vmatmul.f32.gmra.mxu0 %v737
    %v2554 = vpop.f32.mrf.mxu0
    %v2555 = vadd.f32 0.0, %v2554
    %2556 = vmatmul.f32.gmra.mxu0 %v740
    %v2557 = vpop.f32.mrf.mxu0
    %v2558 = vadd.f32 0.0, %v2557
    %2559 = vmatmul.f32.gmra.mxu0 %v743
    %v2560 = vpop.f32.mrf.mxu0
    %v2561 = vadd.f32 0.0, %v2560
    %2562 = vmatmul.f32.gmra.mxu0 %v746
    %v2563 = vpop.f32.mrf.mxu0
    %v2564 = vadd.f32 0.0, %v2563
    %2565 = vmatmul.f32.gmra.mxu0 %v749
    %v2566 = vpop.f32.mrf.mxu0
    %v2567 = vadd.f32 0.0, %v2566
    %2568 = vmatmul.f32.gmra.mxu0 %v752
    %v2569 = vpop.f32.mrf.mxu0
    %v2570 = vadd.f32 0.0, %v2569
    %2571 = vmatmul.f32.gmra.mxu0 %v755
    %v2572 = vpop.f32.mrf.mxu0
    %v2573 = vadd.f32 0.0, %v2572
    %2574 = vmatmul.f32.gmra.mxu0 %v758
    %v2575 = vpop.f32.mrf.mxu0
    %v2576 = vadd.f32 0.0, %v2575
    %2577 = vmatmul.f32.gmra.mxu0 %v761
    %v2578 = vpop.f32.mrf.mxu0
    %v2579 = vadd.f32 0.0, %v2578
    %2580 = vmatmul.f32.gmra.mxu0 %v764
    %v2581 = vpop.f32.mrf.mxu0
    %v2582 = vadd.f32 0.0, %v2581
    %2583 = vmatmul.f32.gmra.mxu0 %v767
    %v2584 = vpop.f32.mrf.mxu0
    %v2585 = vadd.f32 0.0, %v2584
    %2586 = vmatmul.f32.gmra.mxu0 %v770
    %v2587 = vpop.f32.mrf.mxu0
    %v2588 = vadd.f32 0.0, %v2587
    %2589 = vmatmul.f32.gmra.mxu0 %v773
    %v2590 = vpop.f32.mrf.mxu0
    %v2591 = vadd.f32 0.0, %v2590
    %2592 = vmatmul.f32.gmra.mxu0 %v776
    %v2593 = vpop.f32.mrf.mxu0
    %v2594 = vadd.f32 0.0, %v2593
    %2595 = vmatmul.f32.gmra.mxu0 %v779
    %v2596 = vpop.f32.mrf.mxu0
    %v2597 = vadd.f32 0.0, %v2596
    %2598 = vmatmul.f32.gmra.mxu0 %v782
    %v2599 = vpop.f32.mrf.mxu0
    %v2600 = vadd.f32 0.0, %v2599
    %2601 = vmatmul.f32.gmra.mxu0 %v785
    %v2602 = vpop.f32.mrf.mxu0
    %v2603 = vadd.f32 0.0, %v2602
    %2604 = vmatmul.f32.gmra.mxu0 %v788
    %v2605 = vpop.f32.mrf.mxu0
    %v2606 = vadd.f32 0.0, %v2605
    %2607 = vmatmul.f32.gmra.mxu0 %v791
    %v2608 = vpop.f32.mrf.mxu0
    %v2609 = vadd.f32 0.0, %v2608
    %2610 = vmatmul.f32.gmra.mxu0 %v794
    %v2611 = vpop.f32.mrf.mxu0
    %v2612 = vadd.f32 0.0, %v2611
    %2613 = vmatmul.f32.gmra.mxu0 %v797
    %v2614 = vpop.f32.mrf.mxu0
    %v2615 = vadd.f32 0.0, %v2614
    %2616 = vmatmul.f32.gmra.mxu0 %v800
    %v2617 = vpop.f32.mrf.mxu0
    %v2618 = vadd.f32 0.0, %v2617
    %2619 = vmatmul.f32.gmra.mxu0 %v803
    %v2620 = vpop.f32.mrf.mxu0
    %v2621 = vadd.f32 0.0, %v2620
    %2622 = vmatmul.f32.gmra.mxu0 %v806
    %v2623 = vpop.f32.mrf.mxu0
    %v2624 = vadd.f32 0.0, %v2623
    %2625 = vmatmul.f32.gmra.mxu0 %v809
    %v2626 = vpop.f32.mrf.mxu0
    %v2627 = vadd.f32 0.0, %v2626
    %2628 = vmatmul.f32.gmra.mxu0 %v812
    %v2629 = vpop.f32.mrf.mxu0
    %v2630 = vadd.f32 0.0, %v2629
    %2631 = vmatmul.f32.gmra.mxu0 %v815
    %v2632 = vpop.f32.mrf.mxu0
    %v2633 = vadd.f32 0.0, %v2632
    %2634 = vmatmul.f32.gmra.mxu0 %v818
    %v2635 = vpop.f32.mrf.mxu0
    %v2636 = vadd.f32 0.0, %v2635
    %2637 = vdwg.mxu0
    %v2686 = vrot.slane %v2477, 1
    %v2687 = vrot.slane %v2480, 1
    %v2688 = vsel %vm1047, %v2686, %v2687
    %v2689 = vrot.slane %v2483, 1
    %v2690 = vsel %vm1047, %v2687, %v2689
    %v2691 = vrot.slane %v2486, 1
    %v2692 = vrot.slane %v2489, 1
    %v2693 = vsel %vm1047, %v2691, %v2692
    %v2694 = vrot.slane %v2492, 1
    %v2695 = vsel %vm1047, %v2692, %v2694
    %v2696 = vrot.slane %v2495, 1
    %v2697 = vrot.slane %v2498, 1
    %v2698 = vsel %vm1047, %v2696, %v2697
    %v2699 = vrot.slane %v2501, 1
    %v2700 = vsel %vm1047, %v2697, %v2699
    %v2701 = vrot.slane %v2504, 1
    %v2702 = vrot.slane %v2507, 1
    %v2703 = vsel %vm1047, %v2701, %v2702
    %v2704 = vrot.slane %v2510, 1
    %v2705 = vsel %vm1047, %v2702, %v2704
    %v2706 = vrot.slane %v2513, 1
    %v2707 = vrot.slane %v2516, 1
    %v2708 = vsel %vm1047, %v2706, %v2707
    %v2709 = vrot.slane %v2519, 1
    %v2710 = vsel %vm1047, %v2707, %v2709
    %v2711 = vrot.slane %v2522, 1
    %v2712 = vrot.slane %v2525, 1
    %v2713 = vsel %vm1047, %v2711, %v2712
    %v2714 = vrot.slane %v2528, 1
    %v2715 = vsel %vm1047, %v2712, %v2714
    %v2716 = vrot.slane %v2531, 1
    %v2717 = vrot.slane %v2534, 1
    %v2718 = vsel %vm1047, %v2716, %v2717
    %v2719 = vrot.slane %v2537, 1
    %v2720 = vsel %vm1047, %v2717, %v2719
    %v2721 = vrot.slane %v2540, 1
    %v2722 = vrot.slane %v2543, 1
    %v2723 = vsel %vm1047, %v2721, %v2722
    %v2724 = vrot.slane %v2546, 1
    %v2725 = vsel %vm1047, %v2722, %v2724
    %v2726 = vrot.slane %v2549, 1
    %v2727 = vrot.slane %v2552, 1
    %v2728 = vsel %vm1047, %v2726, %v2727
    %v2729 = vrot.slane %v2555, 1
    %v2730 = vsel %vm1047, %v2727, %v2729
    %v2731 = vrot.slane %v2558, 1
    %v2732 = vrot.slane %v2561, 1
    %v2733 = vsel %vm1047, %v2731, %v2732
    %v2734 = vrot.slane %v2564, 1
    %v2735 = vsel %vm1047, %v2732, %v2734
    %v2736 = vrot.slane %v2567, 1
    %v2737 = vrot.slane %v2570, 1
    %v2738 = vsel %vm1047, %v2736, %v2737
    %v2739 = vrot.slane %v2573, 1
    %v2740 = vsel %vm1047, %v2737, %v2739
    %v2741 = vrot.slane %v2576, 1
    %v2742 = vrot.slane %v2579, 1
    %v2743 = vsel %vm1047, %v2741, %v2742
    %v2744 = vrot.slane %v2582, 1
    %v2745 = vsel %vm1047, %v2742, %v2744
    %v2746 = vrot.slane %v2585, 1
    %v2747 = vrot.slane %v2588, 1
    %v2748 = vsel %vm1047, %v2746, %v2747
    %v2749 = vrot.slane %v2591, 1
    %v2750 = vsel %vm1047, %v2747, %v2749
    %v2751 = vrot.slane %v2594, 1
    %v2752 = vrot.slane %v2597, 1
    %v2753 = vsel %vm1047, %v2751, %v2752
    %v2754 = vrot.slane %v2600, 1
    %v2755 = vsel %vm1047, %v2752, %v2754
    %v2756 = vrot.slane %v2603, 1
    %v2757 = vrot.slane %v2606, 1
    %v2758 = vsel %vm1047, %v2756, %v2757
    %v2759 = vrot.slane %v2609, 1
    %v2760 = vsel %vm1047, %v2757, %v2759
    %v2761 = vrot.slane %v2612, 1
    %v2762 = vrot.slane %v2615, 1
    %v2763 = vsel %vm1047, %v2761, %v2762
    %v2764 = vrot.slane %v2618, 1
    %v2765 = vsel %vm1047, %v2762, %v2764
    %v2798 = vrot.slane %v2477, 2
    %v2799 = vrot.slane %v2480, 2
    %v2800 = vsel %vm1160, %v2798, %v2799
    %v2801 = vrot.slane %v2483, 2
    %v2802 = vsel %vm1160, %v2799, %v2801
    %v2803 = vrot.slane %v2486, 2
    %v2804 = vrot.slane %v2489, 2
    %v2805 = vsel %vm1160, %v2803, %v2804
    %v2806 = vrot.slane %v2492, 2
    %v2807 = vsel %vm1160, %v2804, %v2806
    %v2808 = vrot.slane %v2495, 2
    %v2809 = vrot.slane %v2498, 2
    %v2810 = vsel %vm1160, %v2808, %v2809
    %v2811 = vrot.slane %v2501, 2
    %v2812 = vsel %vm1160, %v2809, %v2811
    %v2813 = vrot.slane %v2504, 2
    %v2814 = vrot.slane %v2507, 2
    %v2815 = vsel %vm1160, %v2813, %v2814
    %v2816 = vrot.slane %v2510, 2
    %v2817 = vsel %vm1160, %v2814, %v2816
    %v2818 = vrot.slane %v2513, 2
    %v2819 = vrot.slane %v2516, 2
    %v2820 = vsel %vm1160, %v2818, %v2819
    %v2821 = vrot.slane %v2519, 2
    %v2822 = vsel %vm1160, %v2819, %v2821
    %v2823 = vrot.slane %v2522, 2
    %v2824 = vrot.slane %v2525, 2
    %v2825 = vsel %vm1160, %v2823, %v2824
    %v2826 = vrot.slane %v2528, 2
    %v2827 = vsel %vm1160, %v2824, %v2826
    %v2828 = vrot.slane %v2531, 2
    %v2829 = vrot.slane %v2534, 2
    %v2830 = vsel %vm1160, %v2828, %v2829
    %v2831 = vrot.slane %v2537, 2
    %v2832 = vsel %vm1160, %v2829, %v2831
    %v2833 = vrot.slane %v2540, 2
    %v2834 = vrot.slane %v2543, 2
    %v2835 = vsel %vm1160, %v2833, %v2834
    %v2836 = vrot.slane %v2546, 2
    %v2837 = vsel %vm1160, %v2834, %v2836
    %v2838 = vrot.slane %v2549, 2
    %v2839 = vrot.slane %v2552, 2
    %v2840 = vsel %vm1160, %v2838, %v2839
    %v2841 = vrot.slane %v2555, 2
    %v2842 = vsel %vm1160, %v2839, %v2841
    %v2843 = vrot.slane %v2558, 2
    %v2844 = vrot.slane %v2561, 2
    %v2845 = vsel %vm1160, %v2843, %v2844
    %v2846 = vrot.slane %v2564, 2
    %v2847 = vsel %vm1160, %v2844, %v2846
    %v2848 = vrot.slane %v2567, 2
    %v2849 = vrot.slane %v2570, 2
    %v2850 = vsel %vm1160, %v2848, %v2849
    %v2851 = vrot.slane %v2573, 2
    %v2852 = vsel %vm1160, %v2849, %v2851
    %v2853 = vrot.slane %v2576, 2
    %v2854 = vrot.slane %v2579, 2
    %v2855 = vsel %vm1160, %v2853, %v2854
    %v2856 = vrot.slane %v2582, 2
    %v2857 = vsel %vm1160, %v2854, %v2856
    %v2858 = vrot.slane %v2585, 2
    %v2859 = vrot.slane %v2588, 2
    %v2860 = vsel %vm1160, %v2858, %v2859
    %v2861 = vrot.slane %v2591, 2
    %v2862 = vsel %vm1160, %v2859, %v2861
    %v2863 = vrot.slane %v2594, 2
    %v2864 = vrot.slane %v2597, 2
    %v2865 = vsel %vm1160, %v2863, %v2864
    %v2866 = vrot.slane %v2600, 2
    %v2867 = vsel %vm1160, %v2864, %v2866
    %v2868 = vrot.slane %v2603, 2
    %v2869 = vrot.slane %v2606, 2
    %v2870 = vsel %vm1160, %v2868, %v2869
    %v2871 = vrot.slane %v2609, 2
    %v2872 = vsel %vm1160, %v2869, %v2871
    %v2873 = vrot.slane %v2612, 2
    %v2874 = vrot.slane %v2615, 2
    %v2875 = vsel %vm1160, %v2873, %v2874
    %v2876 = vrot.slane %v2618, 2
    %v2877 = vsel %vm1160, %v2874, %v2876
    %v2913 = vrot.slane %v2621, 1
    %v2914 = vrot.slane %v2624, 1
    %v2915 = vsel %vm1047, %v2913, %v2914
    %v2916 = vrot.slane %v2627, 1
    %v2917 = vsel %vm1047, %v2914, %v2916
    %v2920 = vrot.slane %v2621, 2
    %v2921 = vrot.slane %v2624, 2
    %v2922 = vsel %vm1160, %v2920, %v2921
    %v2923 = vrot.slane %v2627, 2
    %v2924 = vsel %vm1160, %v2921, %v2923
    %v2930 = vrot.slane %v2630, 1
    %v2931 = vrot.slane %v2633, 1
    %v2932 = vsel %vm1047, %v2930, %v2931
    %v2933 = vrot.slane %v2636, 1
    %v2934 = vsel %vm1047, %v2931, %v2933
    %v2937 = vrot.slane %v2630, 2
    %v2938 = vrot.slane %v2633, 2
    %v2939 = vsel %vm1160, %v2937, %v2938
    %v2940 = vrot.slane %v2636, 2
    %v2941 = vsel %vm1160, %v2938, %v2940
    %2944 = vmatpush.msra.mxu0 %v352
    %2945 = vmatpush.msra.mxu0 %v351
    %2946 = vmatpush.msra.mxu0 %v350
    %2947 = vmatpush.msra.mxu0 %v349
    %2948 = vmatpush.msra.mxu0 %v348
    %2949 = vmatpush.msra.mxu0 %v347
    %2950 = vmatpush.msra.mxu0 %v346
    %2951 = vmatpush.msra.mxu0 %v345
    %2952 = vmatpush.msra.mxu0 %v344
    %2953 = vmatpush.msra.mxu0 %v343
    %2954 = vmatpush.msra.mxu0 %v342
    %2955 = vmatpush.msra.mxu0 %v341
    %2956 = vmatpush.msra.mxu0 %v340
    %2957 = vmatpush.msra.mxu0 %v339
    %2958 = vmatpush.msra.mxu0 %v338
    %2959 = vmatpush.msra.mxu0 %v337
    %2960 = vmatmul.f32.gmra.mxu0 %v2477
    %v2961 = vpop.f32.mrf.mxu0
    %v2962 = vadd.f32 %v1308, %v2961
    %2963 = vmatmul.f32.gmra.mxu0 %v2480
    %v2964 = vpop.f32.mrf.mxu0
    %v2965 = vadd.f32 %v1308, %v2964
    %2966 = vmatmul.f32.gmra.mxu0 %v2486
    %v2967 = vpop.f32.mrf.mxu0
    %v2968 = vadd.f32 %v1308, %v2967
    %2969 = vmatmul.f32.gmra.mxu0 %v2489
    %v2970 = vpop.f32.mrf.mxu0
    %v2971 = vadd.f32 %v1308, %v2970
    %2972 = vmatmul.f32.gmra.mxu0 %v2495
    %v2973 = vpop.f32.mrf.mxu0
    %v2974 = vadd.f32 %v1308, %v2973
    %2975 = vmatmul.f32.gmra.mxu0 %v2498
    %v2976 = vpop.f32.mrf.mxu0
    %v2977 = vadd.f32 %v1308, %v2976
    %2978 = vmatmul.f32.gmra.mxu0 %v2504
    %v2979 = vpop.f32.mrf.mxu0
    %v2980 = vadd.f32 %v1308, %v2979
    %2981 = vmatmul.f32.gmra.mxu0 %v2507
    %v2982 = vpop.f32.mrf.mxu0
    %v2983 = vadd.f32 %v1308, %v2982
    %2984 = vmatmul.f32.gmra.mxu0 %v2513
    %v2985 = vpop.f32.mrf.mxu0
    %v2986 = vadd.f32 %v1308, %v2985
    %2987 = vmatmul.f32.gmra.mxu0 %v2516
    %v2988 = vpop.f32.mrf.mxu0
    %v2989 = vadd.f32 %v1308, %v2988
    %2990 = vmatmul.f32.gmra.mxu0 %v2522
    %v2991 = vpop.f32.mrf.mxu0
    %v2992 = vadd.f32 %v1308, %v2991
    %2993 = vmatmul.f32.gmra.mxu0 %v2525
    %v2994 = vpop.f32.mrf.mxu0
    %v2995 = vadd.f32 %v1308, %v2994
    %2996 = vmatmul.f32.gmra.mxu0 %v2531
    %v2997 = vpop.f32.mrf.mxu0
    %v2998 = vadd.f32 %v1308, %v2997
    %2999 = vmatmul.f32.gmra.mxu0 %v2534
    %v3000 = vpop.f32.mrf.mxu0
    %v3001 = vadd.f32 %v1308, %v3000
    %3002 = vmatmul.f32.gmra.mxu0 %v2540
    %v3003 = vpop.f32.mrf.mxu0
    %v3004 = vadd.f32 %v1308, %v3003
    %3005 = vmatmul.f32.gmra.mxu0 %v2543
    %v3006 = vpop.f32.mrf.mxu0
    %v3007 = vadd.f32 %v1308, %v3006
    %3008 = vmatmul.f32.gmra.mxu0 %v2549
    %v3009 = vpop.f32.mrf.mxu0
    %v3010 = vadd.f32 %v1308, %v3009
    %3011 = vmatmul.f32.gmra.mxu0 %v2552
    %v3012 = vpop.f32.mrf.mxu0
    %v3013 = vadd.f32 %v1308, %v3012
    %3014 = vmatmul.f32.gmra.mxu0 %v2558
    %v3015 = vpop.f32.mrf.mxu0
    %v3016 = vadd.f32 %v1308, %v3015
    %3017 = vmatmul.f32.gmra.mxu0 %v2561
    %v3018 = vpop.f32.mrf.mxu0
    %v3019 = vadd.f32 %v1308, %v3018
    %3020 = vmatmul.f32.gmra.mxu0 %v2567
    %v3021 = vpop.f32.mrf.mxu0
    %v3022 = vadd.f32 %v1308, %v3021
    %3023 = vmatmul.f32.gmra.mxu0 %v2570
    %v3024 = vpop.f32.mrf.mxu0
    %v3025 = vadd.f32 %v1308, %v3024
    %3026 = vmatmul.f32.gmra.mxu0 %v2576
    %v3027 = vpop.f32.mrf.mxu0
    %v3028 = vadd.f32 %v1308, %v3027
    %3029 = vmatmul.f32.gmra.mxu0 %v2579
    %v3030 = vpop.f32.mrf.mxu0
    %v3031 = vadd.f32 %v1308, %v3030
    %3032 = vmatmul.f32.gmra.mxu0 %v2585
    %v3033 = vpop.f32.mrf.mxu0
    %v3034 = vadd.f32 %v1308, %v3033
    %3035 = vmatmul.f32.gmra.mxu0 %v2588
    %v3036 = vpop.f32.mrf.mxu0
    %v3037 = vadd.f32 %v1308, %v3036
    %3038 = vmatmul.f32.gmra.mxu0 %v2594
    %v3039 = vpop.f32.mrf.mxu0
    %v3040 = vadd.f32 %v1308, %v3039
    %3041 = vmatmul.f32.gmra.mxu0 %v2597
    %v3042 = vpop.f32.mrf.mxu0
    %v3043 = vadd.f32 %v1308, %v3042
    %3044 = vmatmul.f32.gmra.mxu0 %v2603
    %v3045 = vpop.f32.mrf.mxu0
    %v3046 = vadd.f32 %v1308, %v3045
    %3047 = vmatmul.f32.gmra.mxu0 %v2606
    %v3048 = vpop.f32.mrf.mxu0
    %v3049 = vadd.f32 %v1308, %v3048
    %3050 = vmatmul.f32.gmra.mxu0 %v2612
    %v3051 = vpop.f32.mrf.mxu0
    %v3052 = vadd.f32 %v1308, %v3051
    %3053 = vmatmul.f32.gmra.mxu0 %v2615
    %v3054 = vpop.f32.mrf.mxu0
    %v3055 = vadd.f32 %v1308, %v3054
    %3056 = vdwg.mxu0
    %3057 = vmatpush.msra.mxu0 %v368
    %3058 = vmatpush.msra.mxu0 %v367
    %3059 = vmatpush.msra.mxu0 %v366
    %3060 = vmatpush.msra.mxu0 %v365
    %3061 = vmatpush.msra.mxu0 %v364
    %3062 = vmatpush.msra.mxu0 %v363
    %3063 = vmatpush.msra.mxu0 %v362
    %3064 = vmatpush.msra.mxu0 %v361
    %3065 = vmatpush.msra.mxu0 %v360
    %3066 = vmatpush.msra.mxu0 %v359
    %3067 = vmatpush.msra.mxu0 %v358
    %3068 = vmatpush.msra.mxu0 %v357
    %3069 = vmatpush.msra.mxu0 %v356
    %3070 = vmatpush.msra.mxu0 %v355
    %3071 = vmatpush.msra.mxu0 %v354
    %3072 = vmatpush.msra.mxu0 %v353
    %3073 = vmatmul.f32.gmra.mxu0 %v2688
    %v3074 = vpop.f32.mrf.mxu0
    %v3075 = vadd.f32 %v2962, %v3074
    %3076 = vmatmul.f32.gmra.mxu0 %v2690
    %v3077 = vpop.f32.mrf.mxu0
    %v3078 = vadd.f32 %v2965, %v3077
    %3079 = vmatmul.f32.gmra.mxu0 %v2693
    %v3080 = vpop.f32.mrf.mxu0
    %v3081 = vadd.f32 %v2968, %v3080
    %3082 = vmatmul.f32.gmra.mxu0 %v2695
    %v3083 = vpop.f32.mrf.mxu0
    %v3084 = vadd.f32 %v2971, %v3083
    %3085 = vmatmul.f32.gmra.mxu0 %v2698
    %v3086 = vpop.f32.mrf.mxu0
    %v3087 = vadd.f32 %v2974, %v3086
    %3088 = vmatmul.f32.gmra.mxu0 %v2700
    %v3089 = vpop.f32.mrf.mxu0
    %v3090 = vadd.f32 %v2977, %v3089
    %3091 = vmatmul.f32.gmra.mxu0 %v2703
    %v3092 = vpop.f32.mrf.mxu0
    %v3093 = vadd.f32 %v2980, %v3092
    %3094 = vmatmul.f32.gmra.mxu0 %v2705
    %v3095 = vpop.f32.mrf.mxu0
    %v3096 = vadd.f32 %v2983, %v3095
    %3097 = vmatmul.f32.gmra.mxu0 %v2708
    %v3098 = vpop.f32.mrf.mxu0
    %v3099 = vadd.f32 %v2986, %v3098
    %3100 = vmatmul.f32.gmra.mxu0 %v2710
    %v3101 = vpop.f32.mrf.mxu0
    %v3102 = vadd.f32 %v2989, %v3101
    %3103 = vmatmul.f32.gmra.mxu0 %v2713
    %v3104 = vpop.f32.mrf.mxu0
    %v3105 = vadd.f32 %v2992, %v3104
    %3106 = vmatmul.f32.gmra.mxu0 %v2715
    %v3107 = vpop.f32.mrf.mxu0
    %v3108 = vadd.f32 %v2995, %v3107
    %3109 = vmatmul.f32.gmra.mxu0 %v2718
    %v3110 = vpop.f32.mrf.mxu0
    %v3111 = vadd.f32 %v2998, %v3110
    %3112 = vmatmul.f32.gmra.mxu0 %v2720
    %v3113 = vpop.f32.mrf.mxu0
    %v3114 = vadd.f32 %v3001, %v3113
    %3115 = vmatmul.f32.gmra.mxu0 %v2723
    %v3116 = vpop.f32.mrf.mxu0
    %v3117 = vadd.f32 %v3004, %v3116
    %3118 = vmatmul.f32.gmra.mxu0 %v2725
    %v3119 = vpop.f32.mrf.mxu0
    %v3120 = vadd.f32 %v3007, %v3119
    %3121 = vmatmul.f32.gmra.mxu0 %v2728
    %v3122 = vpop.f32.mrf.mxu0
    %v3123 = vadd.f32 %v3010, %v3122
    %3124 = vmatmul.f32.gmra.mxu0 %v2730
    %v3125 = vpop.f32.mrf.mxu0
    %v3126 = vadd.f32 %v3013, %v3125
    %3127 = vmatmul.f32.gmra.mxu0 %v2733
    %v3128 = vpop.f32.mrf.mxu0
    %v3129 = vadd.f32 %v3016, %v3128
    %3130 = vmatmul.f32.gmra.mxu0 %v2735
    %v3131 = vpop.f32.mrf.mxu0
    %v3132 = vadd.f32 %v3019, %v3131
    %3133 = vmatmul.f32.gmra.mxu0 %v2738
    %v3134 = vpop.f32.mrf.mxu0
    %v3135 = vadd.f32 %v3022, %v3134
    %3136 = vmatmul.f32.gmra.mxu0 %v2740
    %v3137 = vpop.f32.mrf.mxu0
    %v3138 = vadd.f32 %v3025, %v3137
    %3139 = vmatmul.f32.gmra.mxu0 %v2743
    %v3140 = vpop.f32.mrf.mxu0
    %v3141 = vadd.f32 %v3028, %v3140
    %3142 = vmatmul.f32.gmra.mxu0 %v2745
    %v3143 = vpop.f32.mrf.mxu0
    %v3144 = vadd.f32 %v3031, %v3143
    %3145 = vmatmul.f32.gmra.mxu0 %v2748
    %v3146 = vpop.f32.mrf.mxu0
    %v3147 = vadd.f32 %v3034, %v3146
    %3148 = vmatmul.f32.gmra.mxu0 %v2750
    %v3149 = vpop.f32.mrf.mxu0
    %v3150 = vadd.f32 %v3037, %v3149
    %3151 = vmatmul.f32.gmra.mxu0 %v2753
    %v3152 = vpop.f32.mrf.mxu0
    %v3153 = vadd.f32 %v3040, %v3152
    %3154 = vmatmul.f32.gmra.mxu0 %v2755
    %v3155 = vpop.f32.mrf.mxu0
    %v3156 = vadd.f32 %v3043, %v3155
    %3157 = vmatmul.f32.gmra.mxu0 %v2758
    %v3158 = vpop.f32.mrf.mxu0
    %v3159 = vadd.f32 %v3046, %v3158
    %3160 = vmatmul.f32.gmra.mxu0 %v2760
    %v3161 = vpop.f32.mrf.mxu0
    %v3162 = vadd.f32 %v3049, %v3161
    %3163 = vmatmul.f32.gmra.mxu0 %v2763
    %v3164 = vpop.f32.mrf.mxu0
    %v3165 = vadd.f32 %v3052, %v3164
    %3166 = vmatmul.f32.gmra.mxu0 %v2765
    %v3167 = vpop.f32.mrf.mxu0
    %v3168 = vadd.f32 %v3055, %v3167
    %3169 = vdwg.mxu0
    %3170 = vmatpush.msra.mxu0 %v384
    %3171 = vmatpush.msra.mxu0 %v383
    %3172 = vmatpush.msra.mxu0 %v382
    %3173 = vmatpush.msra.mxu0 %v381
    %3174 = vmatpush.msra.mxu0 %v380
    %3175 = vmatpush.msra.mxu0 %v379
    %3176 = vmatpush.msra.mxu0 %v378
    %3177 = vmatpush.msra.mxu0 %v377
    %3178 = vmatpush.msra.mxu0 %v376
    %3179 = vmatpush.msra.mxu0 %v375
    %3180 = vmatpush.msra.mxu0 %v374
    %3181 = vmatpush.msra.mxu0 %v373
    %3182 = vmatpush.msra.mxu0 %v372
    %3183 = vmatpush.msra.mxu0 %v371
    %3184 = vmatpush.msra.mxu0 %v370
    %3185 = vmatpush.msra.mxu0 %v369
    %3186 = vmatmul.f32.gmra.mxu0 %v2800
    %v3187 = vpop.f32.mrf.mxu0
    %v3188 = vadd.f32 %v3075, %v3187
    %3189 = vmatmul.f32.gmra.mxu0 %v2802
    %v3190 = vpop.f32.mrf.mxu0
    %v3191 = vadd.f32 %v3078, %v3190
    %3192 = vmatmul.f32.gmra.mxu0 %v2805
    %v3193 = vpop.f32.mrf.mxu0
    %v3194 = vadd.f32 %v3081, %v3193
    %3195 = vmatmul.f32.gmra.mxu0 %v2807
    %v3196 = vpop.f32.mrf.mxu0
    %v3197 = vadd.f32 %v3084, %v3196
    %3198 = vmatmul.f32.gmra.mxu0 %v2810
    %v3199 = vpop.f32.mrf.mxu0
    %v3200 = vadd.f32 %v3087, %v3199
    %3201 = vmatmul.f32.gmra.mxu0 %v2812
    %v3202 = vpop.f32.mrf.mxu0
    %v3203 = vadd.f32 %v3090, %v3202
    %3204 = vmatmul.f32.gmra.mxu0 %v2815
    %v3205 = vpop.f32.mrf.mxu0
    %v3206 = vadd.f32 %v3093, %v3205
    %3207 = vmatmul.f32.gmra.mxu0 %v2817
    %v3208 = vpop.f32.mrf.mxu0
    %v3209 = vadd.f32 %v3096, %v3208
    %3210 = vmatmul.f32.gmra.mxu0 %v2820
    %v3211 = vpop.f32.mrf.mxu0
    %v3212 = vadd.f32 %v3099, %v3211
    %3213 = vmatmul.f32.gmra.mxu0 %v2822
    %v3214 = vpop.f32.mrf.mxu0
    %v3215 = vadd.f32 %v3102, %v3214
    %3216 = vmatmul.f32.gmra.mxu0 %v2825
    %v3217 = vpop.f32.mrf.mxu0
    %v3218 = vadd.f32 %v3105, %v3217
    %3219 = vmatmul.f32.gmra.mxu0 %v2827
    %v3220 = vpop.f32.mrf.mxu0
    %v3221 = vadd.f32 %v3108, %v3220
    %3222 = vmatmul.f32.gmra.mxu0 %v2830
    %v3223 = vpop.f32.mrf.mxu0
    %v3224 = vadd.f32 %v3111, %v3223
    %3225 = vmatmul.f32.gmra.mxu0 %v2832
    %v3226 = vpop.f32.mrf.mxu0
    %v3227 = vadd.f32 %v3114, %v3226
    %3228 = vmatmul.f32.gmra.mxu0 %v2835
    %v3229 = vpop.f32.mrf.mxu0
    %v3230 = vadd.f32 %v3117, %v3229
    %3231 = vmatmul.f32.gmra.mxu0 %v2837
    %v3232 = vpop.f32.mrf.mxu0
    %v3233 = vadd.f32 %v3120, %v3232
    %3234 = vmatmul.f32.gmra.mxu0 %v2840
    %v3235 = vpop.f32.mrf.mxu0
    %v3236 = vadd.f32 %v3123, %v3235
    %3237 = vmatmul.f32.gmra.mxu0 %v2842
    %v3238 = vpop.f32.mrf.mxu0
    %v3239 = vadd.f32 %v3126, %v3238
    %3240 = vmatmul.f32.gmra.mxu0 %v2845
    %v3241 = vpop.f32.mrf.mxu0
    %v3242 = vadd.f32 %v3129, %v3241
    %3243 = vmatmul.f32.gmra.mxu0 %v2847
    %v3244 = vpop.f32.mrf.mxu0
    %v3245 = vadd.f32 %v3132, %v3244
    %3246 = vmatmul.f32.gmra.mxu0 %v2850
    %v3247 = vpop.f32.mrf.mxu0
    %v3248 = vadd.f32 %v3135, %v3247
    %3249 = vmatmul.f32.gmra.mxu0 %v2852
    %v3250 = vpop.f32.mrf.mxu0
    %v3251 = vadd.f32 %v3138, %v3250
    %3252 = vmatmul.f32.gmra.mxu0 %v2855
    %v3253 = vpop.f32.mrf.mxu0
    %v3254 = vadd.f32 %v3141, %v3253
    %3255 = vmatmul.f32.gmra.mxu0 %v2857
    %v3256 = vpop.f32.mrf.mxu0
    %v3257 = vadd.f32 %v3144, %v3256
    %3258 = vmatmul.f32.gmra.mxu0 %v2860
    %v3259 = vpop.f32.mrf.mxu0
    %v3260 = vadd.f32 %v3147, %v3259
    %3261 = vmatmul.f32.gmra.mxu0 %v2862
    %v3262 = vpop.f32.mrf.mxu0
    %v3263 = vadd.f32 %v3150, %v3262
    %3264 = vmatmul.f32.gmra.mxu0 %v2865
    %v3265 = vpop.f32.mrf.mxu0
    %v3266 = vadd.f32 %v3153, %v3265
    %3267 = vmatmul.f32.gmra.mxu0 %v2867
    %v3268 = vpop.f32.mrf.mxu0
    %v3269 = vadd.f32 %v3156, %v3268
    %3270 = vmatmul.f32.gmra.mxu0 %v2870
    %v3271 = vpop.f32.mrf.mxu0
    %v3272 = vadd.f32 %v3159, %v3271
    %3273 = vmatmul.f32.gmra.mxu0 %v2872
    %v3274 = vpop.f32.mrf.mxu0
    %v3275 = vadd.f32 %v3162, %v3274
    %3276 = vmatmul.f32.gmra.mxu0 %v2875
    %v3277 = vpop.f32.mrf.mxu0
    %v3278 = vadd.f32 %v3165, %v3277
    %3279 = vmatmul.f32.gmra.mxu0 %v2877
    %v3280 = vpop.f32.mrf.mxu0
    %v3281 = vadd.f32 %v3168, %v3280
    %3282 = vdwg.mxu0
    %3283 = vmatpush.msra.mxu0 %v400
    %3284 = vmatpush.msra.mxu0 %v399
    %3285 = vmatpush.msra.mxu0 %v398
    %3286 = vmatpush.msra.mxu0 %v397
    %3287 = vmatpush.msra.mxu0 %v396
    %3288 = vmatpush.msra.mxu0 %v395
    %3289 = vmatpush.msra.mxu0 %v394
    %3290 = vmatpush.msra.mxu0 %v393
    %3291 = vmatpush.msra.mxu0 %v392
    %3292 = vmatpush.msra.mxu0 %v391
    %3293 = vmatpush.msra.mxu0 %v390
    %3294 = vmatpush.msra.mxu0 %v389
    %3295 = vmatpush.msra.mxu0 %v388
    %3296 = vmatpush.msra.mxu0 %v387
    %3297 = vmatpush.msra.mxu0 %v386
    %3298 = vmatpush.msra.mxu0 %v385
    %3299 = vmatmul.f32.gmra.mxu0 %v2486
    %v3300 = vpop.f32.mrf.mxu0
    %v3301 = vadd.f32 %v3188, %v3300
    %3302 = vmatmul.f32.gmra.mxu0 %v2489
    %v3303 = vpop.f32.mrf.mxu0
    %v3304 = vadd.f32 %v3191, %v3303
    %3305 = vmatmul.f32.gmra.mxu0 %v2495
    %v3306 = vpop.f32.mrf.mxu0
    %v3307 = vadd.f32 %v3194, %v3306
    %3308 = vmatmul.f32.gmra.mxu0 %v2498
    %v3309 = vpop.f32.mrf.mxu0
    %v3310 = vadd.f32 %v3197, %v3309
    %3311 = vmatmul.f32.gmra.mxu0 %v2504
    %v3312 = vpop.f32.mrf.mxu0
    %v3313 = vadd.f32 %v3200, %v3312
    %3314 = vmatmul.f32.gmra.mxu0 %v2507
    %v3315 = vpop.f32.mrf.mxu0
    %v3316 = vadd.f32 %v3203, %v3315
    %3317 = vmatmul.f32.gmra.mxu0 %v2513
    %v3318 = vpop.f32.mrf.mxu0
    %v3319 = vadd.f32 %v3206, %v3318
    %3320 = vmatmul.f32.gmra.mxu0 %v2516
    %v3321 = vpop.f32.mrf.mxu0
    %v3322 = vadd.f32 %v3209, %v3321
    %3323 = vmatmul.f32.gmra.mxu0 %v2522
    %v3324 = vpop.f32.mrf.mxu0
    %v3325 = vadd.f32 %v3212, %v3324
    %3326 = vmatmul.f32.gmra.mxu0 %v2525
    %v3327 = vpop.f32.mrf.mxu0
    %v3328 = vadd.f32 %v3215, %v3327
    %3329 = vmatmul.f32.gmra.mxu0 %v2531
    %v3330 = vpop.f32.mrf.mxu0
    %v3331 = vadd.f32 %v3218, %v3330
    %3332 = vmatmul.f32.gmra.mxu0 %v2534
    %v3333 = vpop.f32.mrf.mxu0
    %v3334 = vadd.f32 %v3221, %v3333
    %3335 = vmatmul.f32.gmra.mxu0 %v2540
    %v3336 = vpop.f32.mrf.mxu0
    %v3337 = vadd.f32 %v3224, %v3336
    %3338 = vmatmul.f32.gmra.mxu0 %v2543
    %v3339 = vpop.f32.mrf.mxu0
    %v3340 = vadd.f32 %v3227, %v3339
    %3341 = vmatmul.f32.gmra.mxu0 %v2549
    %v3342 = vpop.f32.mrf.mxu0
    %v3343 = vadd.f32 %v3230, %v3342
    %3344 = vmatmul.f32.gmra.mxu0 %v2552
    %v3345 = vpop.f32.mrf.mxu0
    %v3346 = vadd.f32 %v3233, %v3345
    %3347 = vmatmul.f32.gmra.mxu0 %v2558
    %v3348 = vpop.f32.mrf.mxu0
    %v3349 = vadd.f32 %v3236, %v3348
    %3350 = vmatmul.f32.gmra.mxu0 %v2561
    %v3351 = vpop.f32.mrf.mxu0
    %v3352 = vadd.f32 %v3239, %v3351
    %3353 = vmatmul.f32.gmra.mxu0 %v2567
    %v3354 = vpop.f32.mrf.mxu0
    %v3355 = vadd.f32 %v3242, %v3354
    %3356 = vmatmul.f32.gmra.mxu0 %v2570
    %v3357 = vpop.f32.mrf.mxu0
    %v3358 = vadd.f32 %v3245, %v3357
    %3359 = vmatmul.f32.gmra.mxu0 %v2576
    %v3360 = vpop.f32.mrf.mxu0
    %v3361 = vadd.f32 %v3248, %v3360
    %3362 = vmatmul.f32.gmra.mxu0 %v2579
    %v3363 = vpop.f32.mrf.mxu0
    %v3364 = vadd.f32 %v3251, %v3363
    %3365 = vmatmul.f32.gmra.mxu0 %v2585
    %v3366 = vpop.f32.mrf.mxu0
    %v3367 = vadd.f32 %v3254, %v3366
    %3368 = vmatmul.f32.gmra.mxu0 %v2588
    %v3369 = vpop.f32.mrf.mxu0
    %v3370 = vadd.f32 %v3257, %v3369
    %3371 = vmatmul.f32.gmra.mxu0 %v2594
    %v3372 = vpop.f32.mrf.mxu0
    %v3373 = vadd.f32 %v3260, %v3372
    %3374 = vmatmul.f32.gmra.mxu0 %v2597
    %v3375 = vpop.f32.mrf.mxu0
    %v3376 = vadd.f32 %v3263, %v3375
    %3377 = vmatmul.f32.gmra.mxu0 %v2603
    %v3378 = vpop.f32.mrf.mxu0
    %v3379 = vadd.f32 %v3266, %v3378
    %3380 = vmatmul.f32.gmra.mxu0 %v2606
    %v3381 = vpop.f32.mrf.mxu0
    %v3382 = vadd.f32 %v3269, %v3381
    %3383 = vmatmul.f32.gmra.mxu0 %v2612
    %v3384 = vpop.f32.mrf.mxu0
    %v3385 = vadd.f32 %v3272, %v3384
    %3386 = vmatmul.f32.gmra.mxu0 %v2615
    %v3387 = vpop.f32.mrf.mxu0
    %v3388 = vadd.f32 %v3275, %v3387
    %3389 = vmatmul.f32.gmra.mxu0 %v2621
    %v3390 = vpop.f32.mrf.mxu0
    %v3391 = vadd.f32 %v3278, %v3390
    %3392 = vmatmul.f32.gmra.mxu0 %v2624
    %v3393 = vpop.f32.mrf.mxu0
    %v3394 = vadd.f32 %v3281, %v3393
    %3395 = vdwg.mxu0
    %3396 = vmatpush.msra.mxu0 %v416
    %3397 = vmatpush.msra.mxu0 %v415
    %3398 = vmatpush.msra.mxu0 %v414
    %3399 = vmatpush.msra.mxu0 %v413
    %3400 = vmatpush.msra.mxu0 %v412
    %3401 = vmatpush.msra.mxu0 %v411
    %3402 = vmatpush.msra.mxu0 %v410
    %3403 = vmatpush.msra.mxu0 %v409
    %3404 = vmatpush.msra.mxu0 %v408
    %3405 = vmatpush.msra.mxu0 %v407
    %3406 = vmatpush.msra.mxu0 %v406
    %3407 = vmatpush.msra.mxu0 %v405
    %3408 = vmatpush.msra.mxu0 %v404
    %3409 = vmatpush.msra.mxu0 %v403
    %3410 = vmatpush.msra.mxu0 %v402
    %3411 = vmatpush.msra.mxu0 %v401
    %3412 = vmatmul.f32.gmra.mxu0 %v2693
    %v3413 = vpop.f32.mrf.mxu0
    %v3414 = vadd.f32 %v3301, %v3413
    %3415 = vmatmul.f32.gmra.mxu0 %v2695
    %v3416 = vpop.f32.mrf.mxu0
    %v3417 = vadd.f32 %v3304, %v3416
    %3418 = vmatmul.f32.gmra.mxu0 %v2698
    %v3419 = vpop.f32.mrf.mxu0
    %v3420 = vadd.f32 %v3307, %v3419
    %3421 = vmatmul.f32.gmra.mxu0 %v2700
    %v3422 = vpop.f32.mrf.mxu0
    %v3423 = vadd.f32 %v3310, %v3422
    %3424 = vmatmul.f32.gmra.mxu0 %v2703
    %v3425 = vpop.f32.mrf.mxu0
    %v3426 = vadd.f32 %v3313, %v3425
    %3427 = vmatmul.f32.gmra.mxu0 %v2705
    %v3428 = vpop.f32.mrf.mxu0
    %v3429 = vadd.f32 %v3316, %v3428
    %3430 = vmatmul.f32.gmra.mxu0 %v2708
    %v3431 = vpop.f32.mrf.mxu0
    %v3432 = vadd.f32 %v3319, %v3431
    %3433 = vmatmul.f32.gmra.mxu0 %v2710
    %v3434 = vpop.f32.mrf.mxu0
    %v3435 = vadd.f32 %v3322, %v3434
    %3436 = vmatmul.f32.gmra.mxu0 %v2713
    %v3437 = vpop.f32.mrf.mxu0
    %v3438 = vadd.f32 %v3325, %v3437
    %3439 = vmatmul.f32.gmra.mxu0 %v2715
    %v3440 = vpop.f32.mrf.mxu0
    %v3441 = vadd.f32 %v3328, %v3440
    %3442 = vmatmul.f32.gmra.mxu0 %v2718
    %v3443 = vpop.f32.mrf.mxu0
    %v3444 = vadd.f32 %v3331, %v3443
    %3445 = vmatmul.f32.gmra.mxu0 %v2720
    %v3446 = vpop.f32.mrf.mxu0
    %v3447 = vadd.f32 %v3334, %v3446
    %3448 = vmatmul.f32.gmra.mxu0 %v2723
    %v3449 = vpop.f32.mrf.mxu0
    %v3450 = vadd.f32 %v3337, %v3449
    %3451 = vmatmul.f32.gmra.mxu0 %v2725
    %v3452 = vpop.f32.mrf.mxu0
    %v3453 = vadd.f32 %v3340, %v3452
    %3454 = vmatmul.f32.gmra.mxu0 %v2728
    %v3455 = vpop.f32.mrf.mxu0
    %v3456 = vadd.f32 %v3343, %v3455
    %3457 = vmatmul.f32.gmra.mxu0 %v2730
    %v3458 = vpop.f32.mrf.mxu0
    %v3459 = vadd.f32 %v3346, %v3458
    %3460 = vmatmul.f32.gmra.mxu0 %v2733
    %v3461 = vpop.f32.mrf.mxu0
    %v3462 = vadd.f32 %v3349, %v3461
    %3463 = vmatmul.f32.gmra.mxu0 %v2735
    %v3464 = vpop.f32.mrf.mxu0
    %v3465 = vadd.f32 %v3352, %v3464
    %3466 = vmatmul.f32.gmra.mxu0 %v2738
    %v3467 = vpop.f32.mrf.mxu0
    %v3468 = vadd.f32 %v3355, %v3467
    %3469 = vmatmul.f32.gmra.mxu0 %v2740
    %v3470 = vpop.f32.mrf.mxu0
    %v3471 = vadd.f32 %v3358, %v3470
    %3472 = vmatmul.f32.gmra.mxu0 %v2743
    %v3473 = vpop.f32.mrf.mxu0
    %v3474 = vadd.f32 %v3361, %v3473
    %3475 = vmatmul.f32.gmra.mxu0 %v2745
    %v3476 = vpop.f32.mrf.mxu0
    %v3477 = vadd.f32 %v3364, %v3476
    %3478 = vmatmul.f32.gmra.mxu0 %v2748
    %v3479 = vpop.f32.mrf.mxu0
    %v3480 = vadd.f32 %v3367, %v3479
    %3481 = vmatmul.f32.gmra.mxu0 %v2750
    %v3482 = vpop.f32.mrf.mxu0
    %v3483 = vadd.f32 %v3370, %v3482
    %3484 = vmatmul.f32.gmra.mxu0 %v2753
    %v3485 = vpop.f32.mrf.mxu0
    %v3486 = vadd.f32 %v3373, %v3485
    %3487 = vmatmul.f32.gmra.mxu0 %v2755
    %v3488 = vpop.f32.mrf.mxu0
    %v3489 = vadd.f32 %v3376, %v3488
    %3490 = vmatmul.f32.gmra.mxu0 %v2758
    %v3491 = vpop.f32.mrf.mxu0
    %v3492 = vadd.f32 %v3379, %v3491
    %3493 = vmatmul.f32.gmra.mxu0 %v2760
    %v3494 = vpop.f32.mrf.mxu0
    %v3495 = vadd.f32 %v3382, %v3494
    %3496 = vmatmul.f32.gmra.mxu0 %v2763
    %v3497 = vpop.f32.mrf.mxu0
    %v3498 = vadd.f32 %v3385, %v3497
    %3499 = vmatmul.f32.gmra.mxu0 %v2765
    %v3500 = vpop.f32.mrf.mxu0
    %v3501 = vadd.f32 %v3388, %v3500
    %3502 = vmatmul.f32.gmra.mxu0 %v2915
    %v3503 = vpop.f32.mrf.mxu0
    %v3504 = vadd.f32 %v3391, %v3503
    %3505 = vmatmul.f32.gmra.mxu0 %v2917
    %v3506 = vpop.f32.mrf.mxu0
    %v3507 = vadd.f32 %v3394, %v3506
    %3508 = vdwg.mxu0
    %3509 = vmatpush.msra.mxu0 %v432
    %3510 = vmatpush.msra.mxu0 %v431
    %3511 = vmatpush.msra.mxu0 %v430
    %3512 = vmatpush.msra.mxu0 %v429
    %3513 = vmatpush.msra.mxu0 %v428
    %3514 = vmatpush.msra.mxu0 %v427
    %3515 = vmatpush.msra.mxu0 %v426
    %3516 = vmatpush.msra.mxu0 %v425
    %3517 = vmatpush.msra.mxu0 %v424
    %3518 = vmatpush.msra.mxu0 %v423
    %3519 = vmatpush.msra.mxu0 %v422
    %3520 = vmatpush.msra.mxu0 %v421
    %3521 = vmatpush.msra.mxu0 %v420
    %3522 = vmatpush.msra.mxu0 %v419
    %3523 = vmatpush.msra.mxu0 %v418
    %3524 = vmatpush.msra.mxu0 %v417
    %3525 = vmatmul.f32.gmra.mxu0 %v2805
    %v3526 = vpop.f32.mrf.mxu0
    %v3527 = vadd.f32 %v3414, %v3526
    %3528 = vmatmul.f32.gmra.mxu0 %v2807
    %v3529 = vpop.f32.mrf.mxu0
    %v3530 = vadd.f32 %v3417, %v3529
    %3531 = vmatmul.f32.gmra.mxu0 %v2810
    %v3532 = vpop.f32.mrf.mxu0
    %v3533 = vadd.f32 %v3420, %v3532
    %3534 = vmatmul.f32.gmra.mxu0 %v2812
    %v3535 = vpop.f32.mrf.mxu0
    %v3536 = vadd.f32 %v3423, %v3535
    %3537 = vmatmul.f32.gmra.mxu0 %v2815
    %v3538 = vpop.f32.mrf.mxu0
    %v3539 = vadd.f32 %v3426, %v3538
    %3540 = vmatmul.f32.gmra.mxu0 %v2817
    %v3541 = vpop.f32.mrf.mxu0
    %v3542 = vadd.f32 %v3429, %v3541
    %3543 = vmatmul.f32.gmra.mxu0 %v2820
    %v3544 = vpop.f32.mrf.mxu0
    %v3545 = vadd.f32 %v3432, %v3544
    %3546 = vmatmul.f32.gmra.mxu0 %v2822
    %v3547 = vpop.f32.mrf.mxu0
    %v3548 = vadd.f32 %v3435, %v3547
    %3549 = vmatmul.f32.gmra.mxu0 %v2825
    %v3550 = vpop.f32.mrf.mxu0
    %v3551 = vadd.f32 %v3438, %v3550
    %3552 = vmatmul.f32.gmra.mxu0 %v2827
    %v3553 = vpop.f32.mrf.mxu0
    %v3554 = vadd.f32 %v3441, %v3553
    %3555 = vmatmul.f32.gmra.mxu0 %v2830
    %v3556 = vpop.f32.mrf.mxu0
    %v3557 = vadd.f32 %v3444, %v3556
    %3558 = vmatmul.f32.gmra.mxu0 %v2832
    %v3559 = vpop.f32.mrf.mxu0
    %v3560 = vadd.f32 %v3447, %v3559
    %3561 = vmatmul.f32.gmra.mxu0 %v2835
    %v3562 = vpop.f32.mrf.mxu0
    %v3563 = vadd.f32 %v3450, %v3562
    %3564 = vmatmul.f32.gmra.mxu0 %v2837
    %v3565 = vpop.f32.mrf.mxu0
    %v3566 = vadd.f32 %v3453, %v3565
    %3567 = vmatmul.f32.gmra.mxu0 %v2840
    %v3568 = vpop.f32.mrf.mxu0
    %v3569 = vadd.f32 %v3456, %v3568
    %3570 = vmatmul.f32.gmra.mxu0 %v2842
    %v3571 = vpop.f32.mrf.mxu0
    %v3572 = vadd.f32 %v3459, %v3571
    %3573 = vmatmul.f32.gmra.mxu0 %v2845
    %v3574 = vpop.f32.mrf.mxu0
    %v3575 = vadd.f32 %v3462, %v3574
    %3576 = vmatmul.f32.gmra.mxu0 %v2847
    %v3577 = vpop.f32.mrf.mxu0
    %v3578 = vadd.f32 %v3465, %v3577
    %3579 = vmatmul.f32.gmra.mxu0 %v2850
    %v3580 = vpop.f32.mrf.mxu0
    %v3581 = vadd.f32 %v3468, %v3580
    %3582 = vmatmul.f32.gmra.mxu0 %v2852
    %v3583 = vpop.f32.mrf.mxu0
    %v3584 = vadd.f32 %v3471, %v3583
    %3585 = vmatmul.f32.gmra.mxu0 %v2855
    %v3586 = vpop.f32.mrf.mxu0
    %v3587 = vadd.f32 %v3474, %v3586
    %3588 = vmatmul.f32.gmra.mxu0 %v2857
    %v3589 = vpop.f32.mrf.mxu0
    %v3590 = vadd.f32 %v3477, %v3589
    %3591 = vmatmul.f32.gmra.mxu0 %v2860
    %v3592 = vpop.f32.mrf.mxu0
    %v3593 = vadd.f32 %v3480, %v3592
    %3594 = vmatmul.f32.gmra.mxu0 %v2862
    %v3595 = vpop.f32.mrf.mxu0
    %v3596 = vadd.f32 %v3483, %v3595
    %3597 = vmatmul.f32.gmra.mxu0 %v2865
    %v3598 = vpop.f32.mrf.mxu0
    %v3599 = vadd.f32 %v3486, %v3598
    %3600 = vmatmul.f32.gmra.mxu0 %v2867
    %v3601 = vpop.f32.mrf.mxu0
    %v3602 = vadd.f32 %v3489, %v3601
    %3603 = vmatmul.f32.gmra.mxu0 %v2870
    %v3604 = vpop.f32.mrf.mxu0
    %v3605 = vadd.f32 %v3492, %v3604
    %3606 = vmatmul.f32.gmra.mxu0 %v2872
    %v3607 = vpop.f32.mrf.mxu0
    %v3608 = vadd.f32 %v3495, %v3607
    %3609 = vmatmul.f32.gmra.mxu0 %v2875
    %v3610 = vpop.f32.mrf.mxu0
    %v3611 = vadd.f32 %v3498, %v3610
    %3612 = vmatmul.f32.gmra.mxu0 %v2877
    %v3613 = vpop.f32.mrf.mxu0
    %v3614 = vadd.f32 %v3501, %v3613
    %3615 = vmatmul.f32.gmra.mxu0 %v2922
    %v3616 = vpop.f32.mrf.mxu0
    %v3617 = vadd.f32 %v3504, %v3616
    %3618 = vmatmul.f32.gmra.mxu0 %v2924
    %v3619 = vpop.f32.mrf.mxu0
    %v3620 = vadd.f32 %v3507, %v3619
    %3621 = vdwg.mxu0
    %3622 = vmatpush.msra.mxu0 %v448
    %3623 = vmatpush.msra.mxu0 %v447
    %3624 = vmatpush.msra.mxu0 %v446
    %3625 = vmatpush.msra.mxu0 %v445
    %3626 = vmatpush.msra.mxu0 %v444
    %3627 = vmatpush.msra.mxu0 %v443
    %3628 = vmatpush.msra.mxu0 %v442
    %3629 = vmatpush.msra.mxu0 %v441
    %3630 = vmatpush.msra.mxu0 %v440
    %3631 = vmatpush.msra.mxu0 %v439
    %3632 = vmatpush.msra.mxu0 %v438
    %3633 = vmatpush.msra.mxu0 %v437
    %3634 = vmatpush.msra.mxu0 %v436
    %3635 = vmatpush.msra.mxu0 %v435
    %3636 = vmatpush.msra.mxu0 %v434
    %3637 = vmatpush.msra.mxu0 %v433
    %3638 = vmatmul.f32.gmra.mxu0 %v2495
    %v3639 = vpop.f32.mrf.mxu0
    %v3640 = vadd.f32 %v3527, %v3639
    %3641 = vmatmul.f32.gmra.mxu0 %v2498
    %v3642 = vpop.f32.mrf.mxu0
    %v3643 = vadd.f32 %v3530, %v3642
    %3644 = vmatmul.f32.gmra.mxu0 %v2504
    %v3645 = vpop.f32.mrf.mxu0
    %v3646 = vadd.f32 %v3533, %v3645
    %3647 = vmatmul.f32.gmra.mxu0 %v2507
    %v3648 = vpop.f32.mrf.mxu0
    %v3649 = vadd.f32 %v3536, %v3648
    %3650 = vmatmul.f32.gmra.mxu0 %v2513
    %v3651 = vpop.f32.mrf.mxu0
    %v3652 = vadd.f32 %v3539, %v3651
    %3653 = vmatmul.f32.gmra.mxu0 %v2516
    %v3654 = vpop.f32.mrf.mxu0
    %v3655 = vadd.f32 %v3542, %v3654
    %3656 = vmatmul.f32.gmra.mxu0 %v2522
    %v3657 = vpop.f32.mrf.mxu0
    %v3658 = vadd.f32 %v3545, %v3657
    %3659 = vmatmul.f32.gmra.mxu0 %v2525
    %v3660 = vpop.f32.mrf.mxu0
    %v3661 = vadd.f32 %v3548, %v3660
    %3662 = vmatmul.f32.gmra.mxu0 %v2531
    %v3663 = vpop.f32.mrf.mxu0
    %v3664 = vadd.f32 %v3551, %v3663
    %3665 = vmatmul.f32.gmra.mxu0 %v2534
    %v3666 = vpop.f32.mrf.mxu0
    %v3667 = vadd.f32 %v3554, %v3666
    %3668 = vmatmul.f32.gmra.mxu0 %v2540
    %v3669 = vpop.f32.mrf.mxu0
    %v3670 = vadd.f32 %v3557, %v3669
    %3671 = vmatmul.f32.gmra.mxu0 %v2543
    %v3672 = vpop.f32.mrf.mxu0
    %v3673 = vadd.f32 %v3560, %v3672
    %3674 = vmatmul.f32.gmra.mxu0 %v2549
    %v3675 = vpop.f32.mrf.mxu0
    %v3676 = vadd.f32 %v3563, %v3675
    %3677 = vmatmul.f32.gmra.mxu0 %v2552
    %v3678 = vpop.f32.mrf.mxu0
    %v3679 = vadd.f32 %v3566, %v3678
    %3680 = vmatmul.f32.gmra.mxu0 %v2558
    %v3681 = vpop.f32.mrf.mxu0
    %v3682 = vadd.f32 %v3569, %v3681
    %3683 = vmatmul.f32.gmra.mxu0 %v2561
    %v3684 = vpop.f32.mrf.mxu0
    %v3685 = vadd.f32 %v3572, %v3684
    %3686 = vmatmul.f32.gmra.mxu0 %v2567
    %v3687 = vpop.f32.mrf.mxu0
    %v3688 = vadd.f32 %v3575, %v3687
    %3689 = vmatmul.f32.gmra.mxu0 %v2570
    %v3690 = vpop.f32.mrf.mxu0
    %v3691 = vadd.f32 %v3578, %v3690
    %3692 = vmatmul.f32.gmra.mxu0 %v2576
    %v3693 = vpop.f32.mrf.mxu0
    %v3694 = vadd.f32 %v3581, %v3693
    %3695 = vmatmul.f32.gmra.mxu0 %v2579
    %v3696 = vpop.f32.mrf.mxu0
    %v3697 = vadd.f32 %v3584, %v3696
    %3698 = vmatmul.f32.gmra.mxu0 %v2585
    %v3699 = vpop.f32.mrf.mxu0
    %v3700 = vadd.f32 %v3587, %v3699
    %3701 = vmatmul.f32.gmra.mxu0 %v2588
    %v3702 = vpop.f32.mrf.mxu0
    %v3703 = vadd.f32 %v3590, %v3702
    %3704 = vmatmul.f32.gmra.mxu0 %v2594
    %v3705 = vpop.f32.mrf.mxu0
    %v3706 = vadd.f32 %v3593, %v3705
    %3707 = vmatmul.f32.gmra.mxu0 %v2597
    %v3708 = vpop.f32.mrf.mxu0
    %v3709 = vadd.f32 %v3596, %v3708
    %3710 = vmatmul.f32.gmra.mxu0 %v2603
    %v3711 = vpop.f32.mrf.mxu0
    %v3712 = vadd.f32 %v3599, %v3711
    %3713 = vmatmul.f32.gmra.mxu0 %v2606
    %v3714 = vpop.f32.mrf.mxu0
    %v3715 = vadd.f32 %v3602, %v3714
    %3716 = vmatmul.f32.gmra.mxu0 %v2612
    %v3717 = vpop.f32.mrf.mxu0
    %v3718 = vadd.f32 %v3605, %v3717
    %3719 = vmatmul.f32.gmra.mxu0 %v2615
    %v3720 = vpop.f32.mrf.mxu0
    %v3721 = vadd.f32 %v3608, %v3720
    %3722 = vmatmul.f32.gmra.mxu0 %v2621
    %v3723 = vpop.f32.mrf.mxu0
    %v3724 = vadd.f32 %v3611, %v3723
    %3725 = vmatmul.f32.gmra.mxu0 %v2624
    %v3726 = vpop.f32.mrf.mxu0
    %v3727 = vadd.f32 %v3614, %v3726
    %3728 = vmatmul.f32.gmra.mxu0 %v2630
    %v3729 = vpop.f32.mrf.mxu0
    %v3730 = vadd.f32 %v3617, %v3729
    %3731 = vmatmul.f32.gmra.mxu0 %v2633
    %v3732 = vpop.f32.mrf.mxu0
    %v3733 = vadd.f32 %v3620, %v3732
    %3734 = vdwg.mxu0
    %3735 = vmatpush.msra.mxu0 %v464
    %3736 = vmatpush.msra.mxu0 %v463
    %3737 = vmatpush.msra.mxu0 %v462
    %3738 = vmatpush.msra.mxu0 %v461
    %3739 = vmatpush.msra.mxu0 %v460
    %3740 = vmatpush.msra.mxu0 %v459
    %3741 = vmatpush.msra.mxu0 %v458
    %3742 = vmatpush.msra.mxu0 %v457
    %3743 = vmatpush.msra.mxu0 %v456
    %3744 = vmatpush.msra.mxu0 %v455
    %3745 = vmatpush.msra.mxu0 %v454
    %3746 = vmatpush.msra.mxu0 %v453
    %3747 = vmatpush.msra.mxu0 %v452
    %3748 = vmatpush.msra.mxu0 %v451
    %3749 = vmatpush.msra.mxu0 %v450
    %3750 = vmatpush.msra.mxu0 %v449
    %3751 = vmatmul.f32.gmra.mxu0 %v2698
    %v3752 = vpop.f32.mrf.mxu0
    %v3753 = vadd.f32 %v3640, %v3752
    %3754 = vmatmul.f32.gmra.mxu0 %v2700
    %v3755 = vpop.f32.mrf.mxu0
    %v3756 = vadd.f32 %v3643, %v3755
    %3757 = vmatmul.f32.gmra.mxu0 %v2703
    %v3758 = vpop.f32.mrf.mxu0
    %v3759 = vadd.f32 %v3646, %v3758
    %3760 = vmatmul.f32.gmra.mxu0 %v2705
    %v3761 = vpop.f32.mrf.mxu0
    %v3762 = vadd.f32 %v3649, %v3761
    %3763 = vmatmul.f32.gmra.mxu0 %v2708
    %v3764 = vpop.f32.mrf.mxu0
    %v3765 = vadd.f32 %v3652, %v3764
    %3766 = vmatmul.f32.gmra.mxu0 %v2710
    %v3767 = vpop.f32.mrf.mxu0
    %v3768 = vadd.f32 %v3655, %v3767
    %3769 = vmatmul.f32.gmra.mxu0 %v2713
    %v3770 = vpop.f32.mrf.mxu0
    %v3771 = vadd.f32 %v3658, %v3770
    %3772 = vmatmul.f32.gmra.mxu0 %v2715
    %v3773 = vpop.f32.mrf.mxu0
    %v3774 = vadd.f32 %v3661, %v3773
    %3775 = vmatmul.f32.gmra.mxu0 %v2718
    %v3776 = vpop.f32.mrf.mxu0
    %v3777 = vadd.f32 %v3664, %v3776
    %3778 = vmatmul.f32.gmra.mxu0 %v2720
    %v3779 = vpop.f32.mrf.mxu0
    %v3780 = vadd.f32 %v3667, %v3779
    %3781 = vmatmul.f32.gmra.mxu0 %v2723
    %v3782 = vpop.f32.mrf.mxu0
    %v3783 = vadd.f32 %v3670, %v3782
    %3784 = vmatmul.f32.gmra.mxu0 %v2725
    %v3785 = vpop.f32.mrf.mxu0
    %v3786 = vadd.f32 %v3673, %v3785
    %3787 = vmatmul.f32.gmra.mxu0 %v2728
    %v3788 = vpop.f32.mrf.mxu0
    %v3789 = vadd.f32 %v3676, %v3788
    %3790 = vmatmul.f32.gmra.mxu0 %v2730
    %v3791 = vpop.f32.mrf.mxu0
    %v3792 = vadd.f32 %v3679, %v3791
    %3793 = vmatmul.f32.gmra.mxu0 %v2733
    %v3794 = vpop.f32.mrf.mxu0
    %v3795 = vadd.f32 %v3682, %v3794
    %3796 = vmatmul.f32.gmra.mxu0 %v2735
    %v3797 = vpop.f32.mrf.mxu0
    %v3798 = vadd.f32 %v3685, %v3797
    %3799 = vmatmul.f32.gmra.mxu0 %v2738
    %v3800 = vpop.f32.mrf.mxu0
    %v3801 = vadd.f32 %v3688, %v3800
    %3802 = vmatmul.f32.gmra.mxu0 %v2740
    %v3803 = vpop.f32.mrf.mxu0
    %v3804 = vadd.f32 %v3691, %v3803
    %3805 = vmatmul.f32.gmra.mxu0 %v2743
    %v3806 = vpop.f32.mrf.mxu0
    %v3807 = vadd.f32 %v3694, %v3806
    %3808 = vmatmul.f32.gmra.mxu0 %v2745
    %v3809 = vpop.f32.mrf.mxu0
    %v3810 = vadd.f32 %v3697, %v3809
    %3811 = vmatmul.f32.gmra.mxu0 %v2748
    %v3812 = vpop.f32.mrf.mxu0
    %v3813 = vadd.f32 %v3700, %v3812
    %3814 = vmatmul.f32.gmra.mxu0 %v2750
    %v3815 = vpop.f32.mrf.mxu0
    %v3816 = vadd.f32 %v3703, %v3815
    %3817 = vmatmul.f32.gmra.mxu0 %v2753
    %v3818 = vpop.f32.mrf.mxu0
    %v3819 = vadd.f32 %v3706, %v3818
    %3820 = vmatmul.f32.gmra.mxu0 %v2755
    %v3821 = vpop.f32.mrf.mxu0
    %v3822 = vadd.f32 %v3709, %v3821
    %3823 = vmatmul.f32.gmra.mxu0 %v2758
    %v3824 = vpop.f32.mrf.mxu0
    %v3825 = vadd.f32 %v3712, %v3824
    %3826 = vmatmul.f32.gmra.mxu0 %v2760
    %v3827 = vpop.f32.mrf.mxu0
    %v3828 = vadd.f32 %v3715, %v3827
    %3829 = vmatmul.f32.gmra.mxu0 %v2763
    %v3830 = vpop.f32.mrf.mxu0
    %v3831 = vadd.f32 %v3718, %v3830
    %3832 = vmatmul.f32.gmra.mxu0 %v2765
    %v3833 = vpop.f32.mrf.mxu0
    %v3834 = vadd.f32 %v3721, %v3833
    %3835 = vmatmul.f32.gmra.mxu0 %v2915
    %v3836 = vpop.f32.mrf.mxu0
    %v3837 = vadd.f32 %v3724, %v3836
    %3838 = vmatmul.f32.gmra.mxu0 %v2917
    %v3839 = vpop.f32.mrf.mxu0
    %v3840 = vadd.f32 %v3727, %v3839
    %3841 = vmatmul.f32.gmra.mxu0 %v2932
    %v3842 = vpop.f32.mrf.mxu0
    %v3843 = vadd.f32 %v3730, %v3842
    %3844 = vmatmul.f32.gmra.mxu0 %v2934
    %v3845 = vpop.f32.mrf.mxu0
    %v3846 = vadd.f32 %v3733, %v3845
    %3847 = vdwg.mxu0
    %3848 = vmatpush.msra.mxu0 %v480
    %3849 = vmatpush.msra.mxu0 %v479
    %3850 = vmatpush.msra.mxu0 %v478
    %3851 = vmatpush.msra.mxu0 %v477
    %3852 = vmatpush.msra.mxu0 %v476
    %3853 = vmatpush.msra.mxu0 %v475
    %3854 = vmatpush.msra.mxu0 %v474
    %3855 = vmatpush.msra.mxu0 %v473
    %3856 = vmatpush.msra.mxu0 %v472
    %3857 = vmatpush.msra.mxu0 %v471
    %3858 = vmatpush.msra.mxu0 %v470
    %3859 = vmatpush.msra.mxu0 %v469
    %3860 = vmatpush.msra.mxu0 %v468
    %3861 = vmatpush.msra.mxu0 %v467
    %3862 = vmatpush.msra.mxu0 %v466
    %3863 = vmatpush.msra.mxu0 %v465
    %3864 = vmatmul.f32.gmra.mxu0 %v2810
    %v3865 = vpop.f32.mrf.mxu0
    %v3866 = vadd.f32 %v3753, %v3865
    %3867 = vmatmul.f32.gmra.mxu0 %v2812
    %v3868 = vpop.f32.mrf.mxu0
    %v3869 = vadd.f32 %v3756, %v3868
    %3870 = vmatmul.f32.gmra.mxu0 %v2815
    %v3871 = vpop.f32.mrf.mxu0
    %v3872 = vadd.f32 %v3759, %v3871
    %3873 = vmatmul.f32.gmra.mxu0 %v2817
    %v3874 = vpop.f32.mrf.mxu0
    %v3875 = vadd.f32 %v3762, %v3874
    %3876 = vmatmul.f32.gmra.mxu0 %v2820
    %v3877 = vpop.f32.mrf.mxu0
    %v3878 = vadd.f32 %v3765, %v3877
    %3879 = vmatmul.f32.gmra.mxu0 %v2822
    %v3880 = vpop.f32.mrf.mxu0
    %v3881 = vadd.f32 %v3768, %v3880
    %3882 = vmatmul.f32.gmra.mxu0 %v2825
    %v3883 = vpop.f32.mrf.mxu0
    %v3884 = vadd.f32 %v3771, %v3883
    %3885 = vmatmul.f32.gmra.mxu0 %v2827
    %v3886 = vpop.f32.mrf.mxu0
    %v3887 = vadd.f32 %v3774, %v3886
    %3888 = vmatmul.f32.gmra.mxu0 %v2830
    %v3889 = vpop.f32.mrf.mxu0
    %v3890 = vadd.f32 %v3777, %v3889
    %3891 = vmatmul.f32.gmra.mxu0 %v2832
    %v3892 = vpop.f32.mrf.mxu0
    %v3893 = vadd.f32 %v3780, %v3892
    %3894 = vmatmul.f32.gmra.mxu0 %v2835
    %v3895 = vpop.f32.mrf.mxu0
    %v3896 = vadd.f32 %v3783, %v3895
    %3897 = vmatmul.f32.gmra.mxu0 %v2837
    %v3898 = vpop.f32.mrf.mxu0
    %v3899 = vadd.f32 %v3786, %v3898
    %3900 = vmatmul.f32.gmra.mxu0 %v2840
    %v3901 = vpop.f32.mrf.mxu0
    %v3902 = vadd.f32 %v3789, %v3901
    %3903 = vmatmul.f32.gmra.mxu0 %v2842
    %v3904 = vpop.f32.mrf.mxu0
    %v3905 = vadd.f32 %v3792, %v3904
    %3906 = vmatmul.f32.gmra.mxu0 %v2845
    %v3907 = vpop.f32.mrf.mxu0
    %v3908 = vadd.f32 %v3795, %v3907
    %3909 = vmatmul.f32.gmra.mxu0 %v2847
    %v3910 = vpop.f32.mrf.mxu0
    %v3911 = vadd.f32 %v3798, %v3910
    %3912 = vmatmul.f32.gmra.mxu0 %v2850
    %v3913 = vpop.f32.mrf.mxu0
    %v3914 = vadd.f32 %v3801, %v3913
    %3915 = vmatmul.f32.gmra.mxu0 %v2852
    %v3916 = vpop.f32.mrf.mxu0
    %v3917 = vadd.f32 %v3804, %v3916
    %3918 = vmatmul.f32.gmra.mxu0 %v2855
    %v3919 = vpop.f32.mrf.mxu0
    %v3920 = vadd.f32 %v3807, %v3919
    %3921 = vmatmul.f32.gmra.mxu0 %v2857
    %v3922 = vpop.f32.mrf.mxu0
    %v3923 = vadd.f32 %v3810, %v3922
    %3924 = vmatmul.f32.gmra.mxu0 %v2860
    %v3925 = vpop.f32.mrf.mxu0
    %v3926 = vadd.f32 %v3813, %v3925
    %3927 = vmatmul.f32.gmra.mxu0 %v2862
    %v3928 = vpop.f32.mrf.mxu0
    %v3929 = vadd.f32 %v3816, %v3928
    %3930 = vmatmul.f32.gmra.mxu0 %v2865
    %v3931 = vpop.f32.mrf.mxu0
    %v3932 = vadd.f32 %v3819, %v3931
    %3933 = vmatmul.f32.gmra.mxu0 %v2867
    %v3934 = vpop.f32.mrf.mxu0
    %v3935 = vadd.f32 %v3822, %v3934
    %3936 = vmatmul.f32.gmra.mxu0 %v2870
    %v3937 = vpop.f32.mrf.mxu0
    %v3938 = vadd.f32 %v3825, %v3937
    %3939 = vmatmul.f32.gmra.mxu0 %v2872
    %v3940 = vpop.f32.mrf.mxu0
    %v3941 = vadd.f32 %v3828, %v3940
    %3942 = vmatmul.f32.gmra.mxu0 %v2875
    %v3943 = vpop.f32.mrf.mxu0
    %v3944 = vadd.f32 %v3831, %v3943
    %3945 = vmatmul.f32.gmra.mxu0 %v2877
    %v3946 = vpop.f32.mrf.mxu0
    %v3947 = vadd.f32 %v3834, %v3946
    %3948 = vmatmul.f32.gmra.mxu0 %v2922
    %v3949 = vpop.f32.mrf.mxu0
    %v3950 = vadd.f32 %v3837, %v3949
    %3951 = vmatmul.f32.gmra.mxu0 %v2924
    %v3952 = vpop.f32.mrf.mxu0
    %v3953 = vadd.f32 %v3840, %v3952
    %3954 = vmatmul.f32.gmra.mxu0 %v2939
    %v3955 = vpop.f32.mrf.mxu0
    %v3956 = vadd.f32 %v3843, %v3955
    %3957 = vmatmul.f32.gmra.mxu0 %v2941
    %v3958 = vpop.f32.mrf.mxu0
    %v3959 = vadd.f32 %v3846, %v3958
    %3960 = vdwg.mxu0
    %v3961 = vadd.f32 %v3866, %v3869
    %v3962 = vadd.f32 %v3961, %v3872
    %v3963 = vadd.f32 %v3962, %v3875
    %v3964 = vadd.f32 %v3963, %v3878
    %v3965 = vadd.f32 %v3964, %v3881
    %v3966 = vadd.f32 %v3965, %v3884
    %v3967 = vadd.f32 %v3966, %v3887
    %v3968 = vadd.f32 %v3967, %v3890
    %v3969 = vadd.f32 %v3968, %v3893
    %v3970 = vadd.f32 %v3969, %v3896
    %v3971 = vadd.f32 %v3970, %v3899
    %v3972 = vadd.f32 %v3971, %v3902
    %v3973 = vadd.f32 %v3972, %v3905
    %v3974 = vadd.f32 %v3973, %v3908
    %v3975 = vadd.f32 %v3974, %v3911
    %v3976 = vadd.f32 %v3975, %v3914
    %v3977 = vadd.f32 %v3976, %v3917
    %v3978 = vadd.f32 %v3977, %v3920
    %v3979 = vadd.f32 %v3978, %v3923
    %v3980 = vadd.f32 %v3979, %v3926
    %v3981 = vadd.f32 %v3980, %v3929
    %v3982 = vadd.f32 %v3981, %v3932
    %v3983 = vadd.f32 %v3982, %v3935
    %v3984 = vadd.f32 %v3983, %v3938
    %v3985 = vadd.f32 %v3984, %v3941
    %v3986 = vadd.f32 %v3985, %v3944
    %v3987 = vadd.f32 %v3986, %v3947
    %v3988 = vadd.f32 %v3987, %v3950
    %v3989 = vadd.f32 %v3988, %v3953
    %v3990 = vadd.f32 %v3989, %v3956
    %v3991 = vadd.f32 %v3990, %v3959
    %v3992 = vrot.slane %v3991, 4
    %v3993 = vadd.f32 %v3991, %v3992
    %v3994 = vrot.slane %v3993, 2
    %v3995 = vadd.f32 %v3993, %v3994
    %v3996 = vrot.slane %v3995, 1
    %v3997 = vadd.f32 %v3995, %v3996
    %v3998 = vadd.f32 %v2364, %v3997
    %v3999 = vmul.f32 %v3866, %v3866
    %v4000 = vmul.f32 %v3869, %v3869
    %v4001 = vmul.f32 %v3872, %v3872
    %v4002 = vmul.f32 %v3875, %v3875
    %v4003 = vmul.f32 %v3878, %v3878
    %v4004 = vmul.f32 %v3881, %v3881
    %v4005 = vmul.f32 %v3884, %v3884
    %v4006 = vmul.f32 %v3887, %v3887
    %v4007 = vmul.f32 %v3890, %v3890
    %v4008 = vmul.f32 %v3893, %v3893
    %v4009 = vmul.f32 %v3896, %v3896
    %v4010 = vmul.f32 %v3899, %v3899
    %v4011 = vmul.f32 %v3902, %v3902
    %v4012 = vmul.f32 %v3905, %v3905
    %v4013 = vmul.f32 %v3908, %v3908
    %v4014 = vmul.f32 %v3911, %v3911
    %v4015 = vmul.f32 %v3914, %v3914
    %v4016 = vmul.f32 %v3917, %v3917
    %v4017 = vmul.f32 %v3920, %v3920
    %v4018 = vmul.f32 %v3923, %v3923
    %v4019 = vmul.f32 %v3926, %v3926
    %v4020 = vmul.f32 %v3929, %v3929
    %v4021 = vmul.f32 %v3932, %v3932
    %v4022 = vmul.f32 %v3935, %v3935
    %v4023 = vmul.f32 %v3938, %v3938
    %v4024 = vmul.f32 %v3941, %v3941
    %v4025 = vmul.f32 %v3944, %v3944
    %v4026 = vmul.f32 %v3947, %v3947
    %v4027 = vmul.f32 %v3950, %v3950
    %v4028 = vmul.f32 %v3953, %v3953
    %v4029 = vmul.f32 %v3956, %v3956
    %v4030 = vmul.f32 %v3959, %v3959
    %v4031 = vadd.f32 %v3999, %v4000
    %v4032 = vadd.f32 %v4031, %v4001
    %v4033 = vadd.f32 %v4032, %v4002
    %v4034 = vadd.f32 %v4033, %v4003
    %v4035 = vadd.f32 %v4034, %v4004
    %v4036 = vadd.f32 %v4035, %v4005
    %v4037 = vadd.f32 %v4036, %v4006
    %v4038 = vadd.f32 %v4037, %v4007
    %v4039 = vadd.f32 %v4038, %v4008
    %v4040 = vadd.f32 %v4039, %v4009
    %v4041 = vadd.f32 %v4040, %v4010
    %v4042 = vadd.f32 %v4041, %v4011
    %v4043 = vadd.f32 %v4042, %v4012
    %v4044 = vadd.f32 %v4043, %v4013
    %v4045 = vadd.f32 %v4044, %v4014
    %v4046 = vadd.f32 %v4045, %v4015
    %v4047 = vadd.f32 %v4046, %v4016
    %v4048 = vadd.f32 %v4047, %v4017
    %v4049 = vadd.f32 %v4048, %v4018
    %v4050 = vadd.f32 %v4049, %v4019
    %v4051 = vadd.f32 %v4050, %v4020
    %v4052 = vadd.f32 %v4051, %v4021
    %v4053 = vadd.f32 %v4052, %v4022
    %v4054 = vadd.f32 %v4053, %v4023
    %v4055 = vadd.f32 %v4054, %v4024
    %v4056 = vadd.f32 %v4055, %v4025
    %v4057 = vadd.f32 %v4056, %v4026
    %v4058 = vadd.f32 %v4057, %v4027
    %v4059 = vadd.f32 %v4058, %v4028
    %v4060 = vadd.f32 %v4059, %v4029
    %v4061 = vadd.f32 %v4060, %v4030
    %v4062 = vrot.slane %v4061, 4
    %v4063 = vadd.f32 %v4061, %v4062
    %v4064 = vrot.slane %v4063, 2
    %v4065 = vadd.f32 %v4063, %v4064
    %v4066 = vrot.slane %v4065, 1
    %v4067 = vadd.f32 %v4065, %v4066
    %v4068 = vadd.f32 %v2434, %v4067
    %v4069 = vrcp.pop 512.0
    %v4070 = vmul.f32 512.0, %v4069
    %v4071 = vsub.f32 1.0, %v4070
    %v4072 = vmul.f32 %v4069, %v4071
    %v4073 = vadd.f32 %v4069, %v4072
    %vm4074 = vweird.f32 %v4069
    %v4075 = vsel %vm4074, %v4069, %v4073
    %v4076 = vmul.f32 %v3998, %v4075
    %v4077 = vmul.f32 %v4068, %v4075
    %v4078 = vmul.f32 %v4076, %v4076
    %v4079 = vsub.f32 %v4077, %v4078
    %v4080 = vld [vmem:[%s10] sm:$0x1]
    %v4081 = vadd.f32 %v4079, 1e-05
    %v4082 = vrsqrt.pop %v4081
    %v4083 = vmul.f32 %v4082, %v4081
    %v4084 = vmul.f32 %v4083, %v4082
    %v4085 = vmul.f32 0.5, %v4084
    %v4086 = vsub.f32 1.5, %v4085
    %v4087 = vmul.f32 %v4082, %v4086
    %vm4088 = vweird.f32 %v4081
    %vm4089 = vweird.f32 %v4082
    %vm4090 = vmor %vm4088, %vm4089
    %v4091 = vsel %vm4090, %v4082, %v4087
    %v4092 = vmul.f32 %v4080, %v4091
    %v4093 = vld [vmem:[%s11] sm:$0x1]
    %v4094 = vmul.f32 %v4076, %v4092
    %v4095 = vsub.f32 %v4093, %v4094
    %v4097 = vperm.slane %v4092, 0
    %v4099 = vmul.f32 %v2232, %v4097
    %v4100 = vmul.f32 %v2235, %v4097
    %v4101 = vmul.f32 %v2238, %v4097
    %v4102 = vmul.f32 %v2241, %v4097
    %v4103 = vmul.f32 %v2244, %v4097
    %v4104 = vmul.f32 %v2247, %v4097
    %v4105 = vmul.f32 %v2250, %v4097
    %v4106 = vmul.f32 %v2253, %v4097
    %v4107 = vmul.f32 %v2256, %v4097
    %v4108 = vmul.f32 %v2259, %v4097
    %v4109 = vmul.f32 %v2262, %v4097
    %v4110 = vmul.f32 %v2265, %v4097
    %v4111 = vmul.f32 %v2268, %v4097
    %v4112 = vmul.f32 %v2271, %v4097
    %v4113 = vmul.f32 %v2274, %v4097
    %v4114 = vmul.f32 %v2277, %v4097
    %v4115 = vmul.f32 %v2280, %v4097
    %v4116 = vmul.f32 %v2283, %v4097
    %v4117 = vmul.f32 %v2286, %v4097
    %v4118 = vmul.f32 %v2289, %v4097
    %v4119 = vmul.f32 %v2292, %v4097
    %v4120 = vmul.f32 %v2295, %v4097
    %v4121 = vmul.f32 %v2298, %v4097
    %v4122 = vmul.f32 %v2301, %v4097
    %v4123 = vmul.f32 %v2304, %v4097
    %v4124 = vmul.f32 %v2307, %v4097
    %v4125 = vmul.f32 %v2310, %v4097
    %v4126 = vmul.f32 %v2313, %v4097
    %v4127 = vmul.f32 %v2316, %v4097
    %v4128 = vmul.f32 %v2319, %v4097
    %v4129 = vmul.f32 %v2322, %v4097
    %v4130 = vmul.f32 %v2325, %v4097
    %v4132 = vperm.slane %v4095, 0
    %v4134 = vadd.f32 %v4099, %v4132
    %v4135 = vadd.f32 %v4100, %v4132
    %v4136 = vadd.f32 %v4101, %v4132
    %v4137 = vadd.f32 %v4102, %v4132
    %v4138 = vadd.f32 %v4103, %v4132
    %v4139 = vadd.f32 %v4104, %v4132
    %v4140 = vadd.f32 %v4105, %v4132
    %v4141 = vadd.f32 %v4106, %v4132
    %v4142 = vadd.f32 %v4107, %v4132
    %v4143 = vadd.f32 %v4108, %v4132
    %v4144 = vadd.f32 %v4109, %v4132
    %v4145 = vadd.f32 %v4110, %v4132
    %v4146 = vadd.f32 %v4111, %v4132
    %v4147 = vadd.f32 %v4112, %v4132
    %v4148 = vadd.f32 %v4113, %v4132
    %v4149 = vadd.f32 %v4114, %v4132
    %v4150 = vadd.f32 %v4115, %v4132
    %v4151 = vadd.f32 %v4116, %v4132
    %v4152 = vadd.f32 %v4117, %v4132
    %v4153 = vadd.f32 %v4118, %v4132
    %v4154 = vadd.f32 %v4119, %v4132
    %v4155 = vadd.f32 %v4120, %v4132
    %v4156 = vadd.f32 %v4121, %v4132
    %v4157 = vadd.f32 %v4122, %v4132
    %v4158 = vadd.f32 %v4123, %v4132
    %v4159 = vadd.f32 %v4124, %v4132
    %v4160 = vadd.f32 %v4125, %v4132
    %v4161 = vadd.f32 %v4126, %v4132
    %v4162 = vadd.f32 %v4127, %v4132
    %v4163 = vadd.f32 %v4128, %v4132
    %v4164 = vadd.f32 %v4129, %v4132
    %v4165 = vadd.f32 %v4130, %v4132
    %v4166 = vmax.f32 %v4134, 0.0
    %v4167 = vmax.f32 %v4135, 0.0
    %v4168 = vmax.f32 %v4136, 0.0
    %v4169 = vmax.f32 %v4137, 0.0
    %v4170 = vmax.f32 %v4138, 0.0
    %v4171 = vmax.f32 %v4139, 0.0
    %v4172 = vmax.f32 %v4140, 0.0
    %v4173 = vmax.f32 %v4141, 0.0
    %v4174 = vmax.f32 %v4142, 0.0
    %v4175 = vmax.f32 %v4143, 0.0
    %v4176 = vmax.f32 %v4144, 0.0
    %v4177 = vmax.f32 %v4145, 0.0
    %v4178 = vmax.f32 %v4146, 0.0
    %v4179 = vmax.f32 %v4147, 0.0
    %v4180 = vmax.f32 %v4148, 0.0
    %v4181 = vmax.f32 %v4149, 0.0
    %v4182 = vmax.f32 %v4150, 0.0
    %v4183 = vmax.f32 %v4151, 0.0
    %v4184 = vmax.f32 %v4152, 0.0
    %v4185 = vmax.f32 %v4153, 0.0
    %v4186 = vmax.f32 %v4154, 0.0
    %v4187 = vmax.f32 %v4155, 0.0
    %v4188 = vmax.f32 %v4156, 0.0
    %v4189 = vmax.f32 %v4157, 0.0
    %v4190 = vmax.f32 %v4158, 0.0
    %v4191 = vmax.f32 %v4159, 0.0
    %v4192 = vmax.f32 %v4160, 0.0
    %v4193 = vmax.f32 %v4161, 0.0
    %v4194 = vmax.f32 %v4162, 0.0
    %v4195 = vmax.f32 %v4163, 0.0
    %v4196 = vmax.f32 %v4164, 0.0
    %v4197 = vmax.f32 %v4165, 0.0
    %4198 = vmatpush.msra.mxu0 %v4181
    %4199 = vmatpush.msra.mxu0 %v4180
    %4200 = vmatpush.msra.mxu0 %v4179
    %4201 = vmatpush.msra.mxu0 %v4178
    %4202 = vmatpush.msra.mxu0 %v4177
    %4203 = vmatpush.msra.mxu0 %v4176
    %4204 = vmatpush.msra.mxu0 %v4175
    %4205 = vmatpush.msra.mxu0 %v4174
    %4206 = vmatpush.msra.mxu0 %v4173
    %4207 = vmatpush.msra.mxu0 %v4172
    %4208 = vmatpush.msra.mxu0 %v4171
    %4209 = vmatpush.msra.mxu0 %v4170
    %4210 = vmatpush.msra.mxu0 %v4169
    %4211 = vmatpush.msra.mxu0 %v4168
    %4212 = vmatpush.msra.mxu0 %v4167
    %4213 = vmatpush.msra.mxu0 %v4166
    %4214 = vmatmul.f32.gmra.mxu0 %v229
    %v4215 = vpop.f32.mrf.mxu0
    %v4216 = vadd.f32 0.0, %v4215
    %4217 = vmatmul.f32.gmra.mxu0 %v231
    %v4218 = vpop.f32.mrf.mxu0
    %v4219 = vadd.f32 0.0, %v4218
    %4220 = vmatmul.f32.gmra.mxu0 %v233
    %v4221 = vpop.f32.mrf.mxu0
    %v4222 = vadd.f32 0.0, %v4221
    %4223 = vmatmul.f32.gmra.mxu0 %v235
    %v4224 = vpop.f32.mrf.mxu0
    %v4225 = vadd.f32 0.0, %v4224
    %4226 = vmatmul.f32.gmra.mxu0 %v237
    %v4227 = vpop.f32.mrf.mxu0
    %v4228 = vadd.f32 0.0, %v4227
    %4229 = vmatmul.f32.gmra.mxu0 %v239
    %v4230 = vpop.f32.mrf.mxu0
    %v4231 = vadd.f32 0.0, %v4230
    %4232 = vmatmul.f32.gmra.mxu0 %v241
    %v4233 = vpop.f32.mrf.mxu0
    %v4234 = vadd.f32 0.0, %v4233
    %4235 = vmatmul.f32.gmra.mxu0 %v243
    %v4236 = vpop.f32.mrf.mxu0
    %v4237 = vadd.f32 0.0, %v4236
    %4238 = vmatmul.f32.gmra.mxu0 %v245
    %v4239 = vpop.f32.mrf.mxu0
    %v4240 = vadd.f32 0.0, %v4239
    %4241 = vmatmul.f32.gmra.mxu0 %v247
    %v4242 = vpop.f32.mrf.mxu0
    %v4243 = vadd.f32 0.0, %v4242
    %4244 = vmatmul.f32.gmra.mxu0 %v249
    %v4245 = vpop.f32.mrf.mxu0
    %v4246 = vadd.f32 0.0, %v4245
    %4247 = vmatmul.f32.gmra.mxu0 %v251
    %v4248 = vpop.f32.mrf.mxu0
    %v4249 = vadd.f32 0.0, %v4248
    %4250 = vmatmul.f32.gmra.mxu0 %v253
    %v4251 = vpop.f32.mrf.mxu0
    %v4252 = vadd.f32 0.0, %v4251
    %4253 = vmatmul.f32.gmra.mxu0 %v255
    %v4254 = vpop.f32.mrf.mxu0
    %v4255 = vadd.f32 0.0, %v4254
    %4256 = vmatmul.f32.gmra.mxu0 %v257
    %v4257 = vpop.f32.mrf.mxu0
    %v4258 = vadd.f32 0.0, %v4257
    %4259 = vmatmul.f32.gmra.mxu0 %v259
    %v4260 = vpop.f32.mrf.mxu0
    %v4261 = vadd.f32 0.0, %v4260
    %4262 = vmatmul.f32.gmra.mxu0 %v261
    %v4263 = vpop.f32.mrf.mxu0
    %v4264 = vadd.f32 0.0, %v4263
    %4265 = vmatmul.f32.gmra.mxu0 %v263
    %v4266 = vpop.f32.mrf.mxu0
    %v4267 = vadd.f32 0.0, %v4266
    %4268 = vmatmul.f32.gmra.mxu0 %v265
    %v4269 = vpop.f32.mrf.mxu0
    %v4270 = vadd.f32 0.0, %v4269
    %4271 = vmatmul.f32.gmra.mxu0 %v267
    %v4272 = vpop.f32.mrf.mxu0
    %v4273 = vadd.f32 0.0, %v4272
    %4274 = vmatmul.f32.gmra.mxu0 %v269
    %v4275 = vpop.f32.mrf.mxu0
    %v4276 = vadd.f32 0.0, %v4275
    %4277 = vmatmul.f32.gmra.mxu0 %v271
    %v4278 = vpop.f32.mrf.mxu0
    %v4279 = vadd.f32 0.0, %v4278
    %4280 = vmatmul.f32.gmra.mxu0 %v273
    %v4281 = vpop.f32.mrf.mxu0
    %v4282 = vadd.f32 0.0, %v4281
    %4283 = vmatmul.f32.gmra.mxu0 %v275
    %v4284 = vpop.f32.mrf.mxu0
    %v4285 = vadd.f32 0.0, %v4284
    %4286 = vmatmul.f32.gmra.mxu0 %v277
    %v4287 = vpop.f32.mrf.mxu0
    %v4288 = vadd.f32 0.0, %v4287
    %4289 = vmatmul.f32.gmra.mxu0 %v279
    %v4290 = vpop.f32.mrf.mxu0
    %v4291 = vadd.f32 0.0, %v4290
    %4292 = vmatmul.f32.gmra.mxu0 %v281
    %v4293 = vpop.f32.mrf.mxu0
    %v4294 = vadd.f32 0.0, %v4293
    %4295 = vmatmul.f32.gmra.mxu0 %v283
    %v4296 = vpop.f32.mrf.mxu0
    %v4297 = vadd.f32 0.0, %v4296
    %4298 = vmatmul.f32.gmra.mxu0 %v285
    %v4299 = vpop.f32.mrf.mxu0
    %v4300 = vadd.f32 0.0, %v4299
    %4301 = vmatmul.f32.gmra.mxu0 %v287
    %v4302 = vpop.f32.mrf.mxu0
    %v4303 = vadd.f32 0.0, %v4302
    %4304 = vmatmul.f32.gmra.mxu0 %v289
    %v4305 = vpop.f32.mrf.mxu0
    %v4306 = vadd.f32 0.0, %v4305
    %4307 = vmatmul.f32.gmra.mxu0 %v291
    %v4308 = vpop.f32.mrf.mxu0
    %v4309 = vadd.f32 0.0, %v4308
    %4310 = vmatmul.f32.gmra.mxu0 %v293
    %v4311 = vpop.f32.mrf.mxu0
    %v4312 = vadd.f32 0.0, %v4311
    %4313 = vmatmul.f32.gmra.mxu0 %v295
    %v4314 = vpop.f32.mrf.mxu0
    %v4315 = vadd.f32 0.0, %v4314
    %4316 = vmatmul.f32.gmra.mxu0 %v297
    %v4317 = vpop.f32.mrf.mxu0
    %v4318 = vadd.f32 0.0, %v4317
    %4319 = vmatmul.f32.gmra.mxu0 %v299
    %v4320 = vpop.f32.mrf.mxu0
    %v4321 = vadd.f32 0.0, %v4320
    %4322 = vmatmul.f32.gmra.mxu0 %v301
    %v4323 = vpop.f32.mrf.mxu0
    %v4324 = vadd.f32 0.0, %v4323
    %4325 = vmatmul.f32.gmra.mxu0 %v303
    %v4326 = vpop.f32.mrf.mxu0
    %v4327 = vadd.f32 0.0, %v4326
    %4328 = vmatmul.f32.gmra.mxu0 %v305
    %v4329 = vpop.f32.mrf.mxu0
    %v4330 = vadd.f32 0.0, %v4329
    %4331 = vmatmul.f32.gmra.mxu0 %v307
    %v4332 = vpop.f32.mrf.mxu0
    %v4333 = vadd.f32 0.0, %v4332
    %4334 = vmatmul.f32.gmra.mxu0 %v309
    %v4335 = vpop.f32.mrf.mxu0
    %v4336 = vadd.f32 0.0, %v4335
    %4337 = vmatmul.f32.gmra.mxu0 %v311
    %v4338 = vpop.f32.mrf.mxu0
    %v4339 = vadd.f32 0.0, %v4338
    %4340 = vmatmul.f32.gmra.mxu0 %v313
    %v4341 = vpop.f32.mrf.mxu0
    %v4342 = vadd.f32 0.0, %v4341
    %4343 = vmatmul.f32.gmra.mxu0 %v315
    %v4344 = vpop.f32.mrf.mxu0
    %v4345 = vadd.f32 0.0, %v4344
    %4346 = vmatmul.f32.gmra.mxu0 %v317
    %v4347 = vpop.f32.mrf.mxu0
    %v4348 = vadd.f32 0.0, %v4347
    %4349 = vmatmul.f32.gmra.mxu0 %v319
    %v4350 = vpop.f32.mrf.mxu0
    %v4351 = vadd.f32 0.0, %v4350
    %4352 = vmatmul.f32.gmra.mxu0 %v321
    %v4353 = vpop.f32.mrf.mxu0
    %v4354 = vadd.f32 0.0, %v4353
    %4355 = vmatmul.f32.gmra.mxu0 %v323
    %v4356 = vpop.f32.mrf.mxu0
    %v4357 = vadd.f32 0.0, %v4356
    %4358 = vmatmul.f32.gmra.mxu0 %v325
    %v4359 = vpop.f32.mrf.mxu0
    %v4360 = vadd.f32 0.0, %v4359
    %4361 = vmatmul.f32.gmra.mxu0 %v327
    %v4362 = vpop.f32.mrf.mxu0
    %v4363 = vadd.f32 0.0, %v4362
    %4364 = vmatmul.f32.gmra.mxu0 %v329
    %v4365 = vpop.f32.mrf.mxu0
    %v4366 = vadd.f32 0.0, %v4365
    %4367 = vmatmul.f32.gmra.mxu0 %v331
    %v4368 = vpop.f32.mrf.mxu0
    %v4369 = vadd.f32 0.0, %v4368
    %4370 = vmatmul.f32.gmra.mxu0 %v333
    %v4371 = vpop.f32.mrf.mxu0
    %v4372 = vadd.f32 0.0, %v4371
    %4373 = vmatmul.f32.gmra.mxu0 %v335
    %v4374 = vpop.f32.mrf.mxu0
    %v4375 = vadd.f32 0.0, %v4374
    %4376 = vdwg.mxu0
    %4377 = vmatpush.msra.mxu0 %v4197
    %4378 = vmatpush.msra.mxu0 %v4196
    %4379 = vmatpush.msra.mxu0 %v4195
    %4380 = vmatpush.msra.mxu0 %v4194
    %4381 = vmatpush.msra.mxu0 %v4193
    %4382 = vmatpush.msra.mxu0 %v4192
    %4383 = vmatpush.msra.mxu0 %v4191
    %4384 = vmatpush.msra.mxu0 %v4190
    %4385 = vmatpush.msra.mxu0 %v4189
    %4386 = vmatpush.msra.mxu0 %v4188
    %4387 = vmatpush.msra.mxu0 %v4187
    %4388 = vmatpush.msra.mxu0 %v4186
    %4389 = vmatpush.msra.mxu0 %v4185
    %4390 = vmatpush.msra.mxu0 %v4184
    %4391 = vmatpush.msra.mxu0 %v4183
    %4392 = vmatpush.msra.mxu0 %v4182
    %4393 = vmatmul.f32.gmra.mxu0 %v230
    %v4394 = vpop.f32.mrf.mxu0
    %v4395 = vadd.f32 %v4216, %v4394
    %4396 = vmatmul.f32.gmra.mxu0 %v232
    %v4397 = vpop.f32.mrf.mxu0
    %v4398 = vadd.f32 %v4219, %v4397
    %4399 = vmatmul.f32.gmra.mxu0 %v234
    %v4400 = vpop.f32.mrf.mxu0
    %v4401 = vadd.f32 %v4222, %v4400
    %4402 = vmatmul.f32.gmra.mxu0 %v236
    %v4403 = vpop.f32.mrf.mxu0
    %v4404 = vadd.f32 %v4225, %v4403
    %4405 = vmatmul.f32.gmra.mxu0 %v238
    %v4406 = vpop.f32.mrf.mxu0
    %v4407 = vadd.f32 %v4228, %v4406
    %4408 = vmatmul.f32.gmra.mxu0 %v240
    %v4409 = vpop.f32.mrf.mxu0
    %v4410 = vadd.f32 %v4231, %v4409
    %4411 = vmatmul.f32.gmra.mxu0 %v242
    %v4412 = vpop.f32.mrf.mxu0
    %v4413 = vadd.f32 %v4234, %v4412
    %4414 = vmatmul.f32.gmra.mxu0 %v244
    %v4415 = vpop.f32.mrf.mxu0
    %v4416 = vadd.f32 %v4237, %v4415
    %4417 = vmatmul.f32.gmra.mxu0 %v246
    %v4418 = vpop.f32.mrf.mxu0
    %v4419 = vadd.f32 %v4240, %v4418
    %4420 = vmatmul.f32.gmra.mxu0 %v248
    %v4421 = vpop.f32.mrf.mxu0
    %v4422 = vadd.f32 %v4243, %v4421
    %4423 = vmatmul.f32.gmra.mxu0 %v250
    %v4424 = vpop.f32.mrf.mxu0
    %v4425 = vadd.f32 %v4246, %v4424
    %4426 = vmatmul.f32.gmra.mxu0 %v252
    %v4427 = vpop.f32.mrf.mxu0
    %v4428 = vadd.f32 %v4249, %v4427
    %4429 = vmatmul.f32.gmra.mxu0 %v254
    %v4430 = vpop.f32.mrf.mxu0
    %v4431 = vadd.f32 %v4252, %v4430
    %4432 = vmatmul.f32.gmra.mxu0 %v256
    %v4433 = vpop.f32.mrf.mxu0
    %v4434 = vadd.f32 %v4255, %v4433
    %4435 = vmatmul.f32.gmra.mxu0 %v258
    %v4436 = vpop.f32.mrf.mxu0
    %v4437 = vadd.f32 %v4258, %v4436
    %4438 = vmatmul.f32.gmra.mxu0 %v260
    %v4439 = vpop.f32.mrf.mxu0
    %v4440 = vadd.f32 %v4261, %v4439
    %4441 = vmatmul.f32.gmra.mxu0 %v262
    %v4442 = vpop.f32.mrf.mxu0
    %v4443 = vadd.f32 %v4264, %v4442
    %4444 = vmatmul.f32.gmra.mxu0 %v264
    %v4445 = vpop.f32.mrf.mxu0
    %v4446 = vadd.f32 %v4267, %v4445
    %4447 = vmatmul.f32.gmra.mxu0 %v266
    %v4448 = vpop.f32.mrf.mxu0
    %v4449 = vadd.f32 %v4270, %v4448
    %4450 = vmatmul.f32.gmra.mxu0 %v268
    %v4451 = vpop.f32.mrf.mxu0
    %v4452 = vadd.f32 %v4273, %v4451
    %4453 = vmatmul.f32.gmra.mxu0 %v270
    %v4454 = vpop.f32.mrf.mxu0
    %v4455 = vadd.f32 %v4276, %v4454
    %4456 = vmatmul.f32.gmra.mxu0 %v272
    %v4457 = vpop.f32.mrf.mxu0
    %v4458 = vadd.f32 %v4279, %v4457
    %4459 = vmatmul.f32.gmra.mxu0 %v274
    %v4460 = vpop.f32.mrf.mxu0
    %v4461 = vadd.f32 %v4282, %v4460
    %4462 = vmatmul.f32.gmra.mxu0 %v276
    %v4463 = vpop.f32.mrf.mxu0
    %v4464 = vadd.f32 %v4285, %v4463
    %4465 = vmatmul.f32.gmra.mxu0 %v278
    %v4466 = vpop.f32.mrf.mxu0
    %v4467 = vadd.f32 %v4288, %v4466
    %4468 = vmatmul.f32.gmra.mxu0 %v280
    %v4469 = vpop.f32.mrf.mxu0
    %v4470 = vadd.f32 %v4291, %v4469
    %4471 = vmatmul.f32.gmra.mxu0 %v282
    %v4472 = vpop.f32.mrf.mxu0
    %v4473 = vadd.f32 %v4294, %v4472
    %4474 = vmatmul.f32.gmra.mxu0 %v284
    %v4475 = vpop.f32.mrf.mxu0
    %v4476 = vadd.f32 %v4297, %v4475
    %4477 = vmatmul.f32.gmra.mxu0 %v286
    %v4478 = vpop.f32.mrf.mxu0
    %v4479 = vadd.f32 %v4300, %v4478
    %4480 = vmatmul.f32.gmra.mxu0 %v288
    %v4481 = vpop.f32.mrf.mxu0
    %v4482 = vadd.f32 %v4303, %v4481
    %4483 = vmatmul.f32.gmra.mxu0 %v290
    %v4484 = vpop.f32.mrf.mxu0
    %v4485 = vadd.f32 %v4306, %v4484
    %4486 = vmatmul.f32.gmra.mxu0 %v292
    %v4487 = vpop.f32.mrf.mxu0
    %v4488 = vadd.f32 %v4309, %v4487
    %4489 = vmatmul.f32.gmra.mxu0 %v294
    %v4490 = vpop.f32.mrf.mxu0
    %v4491 = vadd.f32 %v4312, %v4490
    %4492 = vmatmul.f32.gmra.mxu0 %v296
    %v4493 = vpop.f32.mrf.mxu0
    %v4494 = vadd.f32 %v4315, %v4493
    %4495 = vmatmul.f32.gmra.mxu0 %v298
    %v4496 = vpop.f32.mrf.mxu0
    %v4497 = vadd.f32 %v4318, %v4496
    %4498 = vmatmul.f32.gmra.mxu0 %v300
    %v4499 = vpop.f32.mrf.mxu0
    %v4500 = vadd.f32 %v4321, %v4499
    %4501 = vmatmul.f32.gmra.mxu0 %v302
    %v4502 = vpop.f32.mrf.mxu0
    %v4503 = vadd.f32 %v4324, %v4502
    %4504 = vmatmul.f32.gmra.mxu0 %v304
    %v4505 = vpop.f32.mrf.mxu0
    %v4506 = vadd.f32 %v4327, %v4505
    %4507 = vmatmul.f32.gmra.mxu0 %v306
    %v4508 = vpop.f32.mrf.mxu0
    %v4509 = vadd.f32 %v4330, %v4508
    %4510 = vmatmul.f32.gmra.mxu0 %v308
    %v4511 = vpop.f32.mrf.mxu0
    %v4512 = vadd.f32 %v4333, %v4511
    %4513 = vmatmul.f32.gmra.mxu0 %v310
    %v4514 = vpop.f32.mrf.mxu0
    %v4515 = vadd.f32 %v4336, %v4514
    %4516 = vmatmul.f32.gmra.mxu0 %v312
    %v4517 = vpop.f32.mrf.mxu0
    %v4518 = vadd.f32 %v4339, %v4517
    %4519 = vmatmul.f32.gmra.mxu0 %v314
    %v4520 = vpop.f32.mrf.mxu0
    %v4521 = vadd.f32 %v4342, %v4520
    %4522 = vmatmul.f32.gmra.mxu0 %v316
    %v4523 = vpop.f32.mrf.mxu0
    %v4524 = vadd.f32 %v4345, %v4523
    %4525 = vmatmul.f32.gmra.mxu0 %v318
    %v4526 = vpop.f32.mrf.mxu0
    %v4527 = vadd.f32 %v4348, %v4526
    %4528 = vmatmul.f32.gmra.mxu0 %v320
    %v4529 = vpop.f32.mrf.mxu0
    %v4530 = vadd.f32 %v4351, %v4529
    %4531 = vmatmul.f32.gmra.mxu0 %v322
    %v4532 = vpop.f32.mrf.mxu0
    %v4533 = vadd.f32 %v4354, %v4532
    %4534 = vmatmul.f32.gmra.mxu0 %v324
    %v4535 = vpop.f32.mrf.mxu0
    %v4536 = vadd.f32 %v4357, %v4535
    %4537 = vmatmul.f32.gmra.mxu0 %v326
    %v4538 = vpop.f32.mrf.mxu0
    %v4539 = vadd.f32 %v4360, %v4538
    %4540 = vmatmul.f32.gmra.mxu0 %v328
    %v4541 = vpop.f32.mrf.mxu0
    %v4542 = vadd.f32 %v4363, %v4541
    %4543 = vmatmul.f32.gmra.mxu0 %v330
    %v4544 = vpop.f32.mrf.mxu0
    %v4545 = vadd.f32 %v4366, %v4544
    %4546 = vmatmul.f32.gmra.mxu0 %v332
    %v4547 = vpop.f32.mrf.mxu0
    %v4548 = vadd.f32 %v4369, %v4547
    %4549 = vmatmul.f32.gmra.mxu0 %v334
    %v4550 = vpop.f32.mrf.mxu0
    %v4551 = vadd.f32 %v4372, %v4550
    %4552 = vmatmul.f32.gmra.mxu0 %v336
    %v4553 = vpop.f32.mrf.mxu0
    %v4554 = vadd.f32 %v4375, %v4553
    %4555 = vdwg.mxu0
    %v4604 = vrot.slane %v4395, 1
    %v4605 = vrot.slane %v4398, 1
    %v4606 = vsel %vm1047, %v4604, %v4605
    %v4607 = vrot.slane %v4401, 1
    %v4608 = vsel %vm1047, %v4605, %v4607
    %v4609 = vrot.slane %v4404, 1
    %v4610 = vrot.slane %v4407, 1
    %v4611 = vsel %vm1047, %v4609, %v4610
    %v4612 = vrot.slane %v4410, 1
    %v4613 = vsel %vm1047, %v4610, %v4612
    %v4614 = vrot.slane %v4413, 1
    %v4615 = vrot.slane %v4416, 1
    %v4616 = vsel %vm1047, %v4614, %v4615
    %v4617 = vrot.slane %v4419, 1
    %v4618 = vsel %vm1047, %v4615, %v4617
    %v4619 = vrot.slane %v4422, 1
    %v4620 = vrot.slane %v4425, 1
    %v4621 = vsel %vm1047, %v4619, %v4620
    %v4622 = vrot.slane %v4428, 1
    %v4623 = vsel %vm1047, %v4620, %v4622
    %v4624 = vrot.slane %v4431, 1
    %v4625 = vrot.slane %v4434, 1
    %v4626 = vsel %vm1047, %v4624, %v4625
    %v4627 = vrot.slane %v4437, 1
    %v4628 = vsel %vm1047, %v4625, %v4627
    %v4629 = vrot.slane %v4440, 1
    %v4630 = vrot.slane %v4443, 1
    %v4631 = vsel %vm1047, %v4629, %v4630
    %v4632 = vrot.slane %v4446, 1
    %v4633 = vsel %vm1047, %v4630, %v4632
    %v4634 = vrot.slane %v4449, 1
    %v4635 = vrot.slane %v4452, 1
    %v4636 = vsel %vm1047, %v4634, %v4635
    %v4637 = vrot.slane %v4455, 1
    %v4638 = vsel %vm1047, %v4635, %v4637
    %v4639 = vrot.slane %v4458, 1
    %v4640 = vrot.slane %v4461, 1
    %v4641 = vsel %vm1047, %v4639, %v4640
    %v4642 = vrot.slane %v4464, 1
    %v4643 = vsel %vm1047, %v4640, %v4642
    %v4644 = vrot.slane %v4467, 1
    %v4645 = vrot.slane %v4470, 1
    %v4646 = vsel %vm1047, %v4644, %v4645
    %v4647 = vrot.slane %v4473, 1
    %v4648 = vsel %vm1047, %v4645, %v4647
    %v4649 = vrot.slane %v4476, 1
    %v4650 = vrot.slane %v4479, 1
    %v4651 = vsel %vm1047, %v4649, %v4650
    %v4652 = vrot.slane %v4482, 1
    %v4653 = vsel %vm1047, %v4650, %v4652
    %v4654 = vrot.slane %v4485, 1
    %v4655 = vrot.slane %v4488, 1
    %v4656 = vsel %vm1047, %v4654, %v4655
    %v4657 = vrot.slane %v4491, 1
    %v4658 = vsel %vm1047, %v4655, %v4657
    %v4659 = vrot.slane %v4494, 1
    %v4660 = vrot.slane %v4497, 1
    %v4661 = vsel %vm1047, %v4659, %v4660
    %v4662 = vrot.slane %v4500, 1
    %v4663 = vsel %vm1047, %v4660, %v4662
    %v4664 = vrot.slane %v4503, 1
    %v4665 = vrot.slane %v4506, 1
    %v4666 = vsel %vm1047, %v4664, %v4665
    %v4667 = vrot.slane %v4509, 1
    %v4668 = vsel %vm1047, %v4665, %v4667
    %v4669 = vrot.slane %v4512, 1
    %v4670 = vrot.slane %v4515, 1
    %v4671 = vsel %vm1047, %v4669, %v4670
    %v4672 = vrot.slane %v4518, 1
    %v4673 = vsel %vm1047, %v4670, %v4672
    %v4674 = vrot.slane %v4521, 1
    %v4675 = vrot.slane %v4524, 1
    %v4676 = vsel %vm1047, %v4674, %v4675
    %v4677 = vrot.slane %v4527, 1
    %v4678 = vsel %vm1047, %v4675, %v4677
    %v4679 = vrot.slane %v4530, 1
    %v4680 = vrot.slane %v4533, 1
    %v4681 = vsel %vm1047, %v4679, %v4680
    %v4682 = vrot.slane %v4536, 1
    %v4683 = vsel %vm1047, %v4680, %v4682
    %v4716 = vrot.slane %v4395, 2
    %v4717 = vrot.slane %v4398, 2
    %v4718 = vsel %vm1160, %v4716, %v4717
    %v4719 = vrot.slane %v4401, 2
    %v4720 = vsel %vm1160, %v4717, %v4719
    %v4721 = vrot.slane %v4404, 2
    %v4722 = vrot.slane %v4407, 2
    %v4723 = vsel %vm1160, %v4721, %v4722
    %v4724 = vrot.slane %v4410, 2
    %v4725 = vsel %vm1160, %v4722, %v4724
    %v4726 = vrot.slane %v4413, 2
    %v4727 = vrot.slane %v4416, 2
    %v4728 = vsel %vm1160, %v4726, %v4727
    %v4729 = vrot.slane %v4419, 2
    %v4730 = vsel %vm1160, %v4727, %v4729
    %v4731 = vrot.slane %v4422, 2
    %v4732 = vrot.slane %v4425, 2
    %v4733 = vsel %vm1160, %v4731, %v4732
    %v4734 = vrot.slane %v4428, 2
    %v4735 = vsel %vm1160, %v4732, %v4734
    %v4736 = vrot.slane %v4431, 2
    %v4737 = vrot.slane %v4434, 2
    %v4738 = vsel %vm1160, %v4736, %v4737
    %v4739 = vrot.slane %v4437, 2
    %v4740 = vsel %vm1160, %v4737, %v4739
    %v4741 = vrot.slane %v4440, 2
    %v4742 = vrot.slane %v4443, 2
    %v4743 = vsel %vm1160, %v4741, %v4742
    %v4744 = vrot.slane %v4446, 2
    %v4745 = vsel %vm1160, %v4742, %v4744
    %v4746 = vrot.slane %v4449, 2
    %v4747 = vrot.slane %v4452, 2
    %v4748 = vsel %vm1160, %v4746, %v4747
    %v4749 = vrot.slane %v4455, 2
    %v4750 = vsel %vm1160, %v4747, %v4749
    %v4751 = vrot.slane %v4458, 2
    %v4752 = vrot.slane %v4461, 2
    %v4753 = vsel %vm1160, %v4751, %v4752
    %v4754 = vrot.slane %v4464, 2
    %v4755 = vsel %vm1160, %v4752, %v4754
    %v4756 = vrot.slane %v4467, 2
    %v4757 = vrot.slane %v4470, 2
    %v4758 = vsel %vm1160, %v4756, %v4757
    %v4759 = vrot.slane %v4473, 2
    %v4760 = vsel %vm1160, %v4757, %v4759
    %v4761 = vrot.slane %v4476, 2
    %v4762 = vrot.slane %v4479, 2
    %v4763 = vsel %vm1160, %v4761, %v4762
    %v4764 = vrot.slane %v4482, 2
    %v4765 = vsel %vm1160, %v4762, %v4764
    %v4766 = vrot.slane %v4485, 2
    %v4767 = vrot.slane %v4488, 2
    %v4768 = vsel %vm1160, %v4766, %v4767
    %v4769 = vrot.slane %v4491, 2
    %v4770 = vsel %vm1160, %v4767, %v4769
    %v4771 = vrot.slane %v4494, 2
    %v4772 = vrot.slane %v4497, 2
    %v4773 = vsel %vm1160, %v4771, %v4772
    %v4774 = vrot.slane %v4500, 2
    %v4775 = vsel %vm1160, %v4772, %v4774
    %v4776 = vrot.slane %v4503, 2
    %v4777 = vrot.slane %v4506, 2
    %v4778 = vsel %vm1160, %v4776, %v4777
    %v4779 = vrot.slane %v4509, 2
    %v4780 = vsel %vm1160, %v4777, %v4779
    %v4781 = vrot.slane %v4512, 2
    %v4782 = vrot.slane %v4515, 2
    %v4783 = vsel %vm1160, %v4781, %v4782
    %v4784 = vrot.slane %v4518, 2
    %v4785 = vsel %vm1160, %v4782, %v4784
    %v4786 = vrot.slane %v4521, 2
    %v4787 = vrot.slane %v4524, 2
    %v4788 = vsel %vm1160, %v4786, %v4787
    %v4789 = vrot.slane %v4527, 2
    %v4790 = vsel %vm1160, %v4787, %v4789
    %v4791 = vrot.slane %v4530, 2
    %v4792 = vrot.slane %v4533, 2
    %v4793 = vsel %vm1160, %v4791, %v4792
    %v4794 = vrot.slane %v4536, 2
    %v4795 = vsel %vm1160, %v4792, %v4794
    %v4831 = vrot.slane %v4539, 1
    %v4832 = vrot.slane %v4542, 1
    %v4833 = vsel %vm1047, %v4831, %v4832
    %v4834 = vrot.slane %v4545, 1
    %v4835 = vsel %vm1047, %v4832, %v4834
    %v4838 = vrot.slane %v4539, 2
    %v4839 = vrot.slane %v4542, 2
    %v4840 = vsel %vm1160, %v4838, %v4839
    %v4841 = vrot.slane %v4545, 2
    %v4842 = vsel %vm1160, %v4839, %v4841
    %v4848 = vrot.slane %v4548, 1
    %v4849 = vrot.slane %v4551, 1
    %v4850 = vsel %vm1047, %v4848, %v4849
    %v4851 = vrot.slane %v4554, 1
    %v4852 = vsel %vm1047, %v4849, %v4851
    %v4855 = vrot.slane %v4548, 2
    %v4856 = vrot.slane %v4551, 2
    %v4857 = vsel %vm1160, %v4855, %v4856
    %v4858 = vrot.slane %v4554, 2
    %v4859 = vsel %vm1160, %v4856, %v4858
    %v4863 = vperm.slane %v626, 0
    %4865 = vmatpush.msra.mxu0 %v496
    %4866 = vmatpush.msra.mxu0 %v495
    %4867 = vmatpush.msra.mxu0 %v494
    %4868 = vmatpush.msra.mxu0 %v493
    %4869 = vmatpush.msra.mxu0 %v492
    %4870 = vmatpush.msra.mxu0 %v491
    %4871 = vmatpush.msra.mxu0 %v490
    %4872 = vmatpush.msra.mxu0 %v489
    %4873 = vmatpush.msra.mxu0 %v488
    %4874 = vmatpush.msra.mxu0 %v487
    %4875 = vmatpush.msra.mxu0 %v486
    %4876 = vmatpush.msra.mxu0 %v485
    %4877 = vmatpush.msra.mxu0 %v484
    %4878 = vmatpush.msra.mxu0 %v483
    %4879 = vmatpush.msra.mxu0 %v482
    %4880 = vmatpush.msra.mxu0 %v481
    %4881 = vmatmul.f32.gmra.mxu0 %v4395
    %v4882 = vpop.f32.mrf.mxu0
    %v4883 = vadd.f32 %v4863, %v4882
    %4884 = vmatmul.f32.gmra.mxu0 %v4398
    %v4885 = vpop.f32.mrf.mxu0
    %v4886 = vadd.f32 %v4863, %v4885
    %4887 = vmatmul.f32.gmra.mxu0 %v4404
    %v4888 = vpop.f32.mrf.mxu0
    %v4889 = vadd.f32 %v4863, %v4888
    %4890 = vmatmul.f32.gmra.mxu0 %v4407
    %v4891 = vpop.f32.mrf.mxu0
    %v4892 = vadd.f32 %v4863, %v4891
    %4893 = vmatmul.f32.gmra.mxu0 %v4413
    %v4894 = vpop.f32.mrf.mxu0
    %v4895 = vadd.f32 %v4863, %v4894
    %4896 = vmatmul.f32.gmra.mxu0 %v4416
    %v4897 = vpop.f32.mrf.mxu0
    %v4898 = vadd.f32 %v4863, %v4897
    %4899 = vmatmul.f32.gmra.mxu0 %v4422
    %v4900 = vpop.f32.mrf.mxu0
    %v4901 = vadd.f32 %v4863, %v4900
    %4902 = vmatmul.f32.gmra.mxu0 %v4425
    %v4903 = vpop.f32.mrf.mxu0
    %v4904 = vadd.f32 %v4863, %v4903
    %4905 = vmatmul.f32.gmra.mxu0 %v4431
    %v4906 = vpop.f32.mrf.mxu0
    %v4907 = vadd.f32 %v4863, %v4906
    %4908 = vmatmul.f32.gmra.mxu0 %v4434
    %v4909 = vpop.f32.mrf.mxu0
    %v4910 = vadd.f32 %v4863, %v4909
    %4911 = vmatmul.f32.gmra.mxu0 %v4440
    %v4912 = vpop.f32.mrf.mxu0
    %v4913 = vadd.f32 %v4863, %v4912
    %4914 = vmatmul.f32.gmra.mxu0 %v4443
    %v4915 = vpop.f32.mrf.mxu0
    %v4916 = vadd.f32 %v4863, %v4915
    %4917 = vmatmul.f32.gmra.mxu0 %v4449
    %v4918 = vpop.f32.mrf.mxu0
    %v4919 = vadd.f32 %v4863, %v4918
    %4920 = vmatmul.f32.gmra.mxu0 %v4452
    %v4921 = vpop.f32.mrf.mxu0
    %v4922 = vadd.f32 %v4863, %v4921
    %4923 = vmatmul.f32.gmra.mxu0 %v4458
    %v4924 = vpop.f32.mrf.mxu0
    %v4925 = vadd.f32 %v4863, %v4924
    %4926 = vmatmul.f32.gmra.mxu0 %v4461
    %v4927 = vpop.f32.mrf.mxu0
    %v4928 = vadd.f32 %v4863, %v4927
    %4929 = vmatmul.f32.gmra.mxu0 %v4467
    %v4930 = vpop.f32.mrf.mxu0
    %v4931 = vadd.f32 %v4863, %v4930
    %4932 = vmatmul.f32.gmra.mxu0 %v4470
    %v4933 = vpop.f32.mrf.mxu0
    %v4934 = vadd.f32 %v4863, %v4933
    %4935 = vmatmul.f32.gmra.mxu0 %v4476
    %v4936 = vpop.f32.mrf.mxu0
    %v4937 = vadd.f32 %v4863, %v4936
    %4938 = vmatmul.f32.gmra.mxu0 %v4479
    %v4939 = vpop.f32.mrf.mxu0
    %v4940 = vadd.f32 %v4863, %v4939
    %4941 = vmatmul.f32.gmra.mxu0 %v4485
    %v4942 = vpop.f32.mrf.mxu0
    %v4943 = vadd.f32 %v4863, %v4942
    %4944 = vmatmul.f32.gmra.mxu0 %v4488
    %v4945 = vpop.f32.mrf.mxu0
    %v4946 = vadd.f32 %v4863, %v4945
    %4947 = vmatmul.f32.gmra.mxu0 %v4494
    %v4948 = vpop.f32.mrf.mxu0
    %v4949 = vadd.f32 %v4863, %v4948
    %4950 = vmatmul.f32.gmra.mxu0 %v4497
    %v4951 = vpop.f32.mrf.mxu0
    %v4952 = vadd.f32 %v4863, %v4951
    %4953 = vmatmul.f32.gmra.mxu0 %v4503
    %v4954 = vpop.f32.mrf.mxu0
    %v4955 = vadd.f32 %v4863, %v4954
    %4956 = vmatmul.f32.gmra.mxu0 %v4506
    %v4957 = vpop.f32.mrf.mxu0
    %v4958 = vadd.f32 %v4863, %v4957
    %4959 = vmatmul.f32.gmra.mxu0 %v4512
    %v4960 = vpop.f32.mrf.mxu0
    %v4961 = vadd.f32 %v4863, %v4960
    %4962 = vmatmul.f32.gmra.mxu0 %v4515
    %v4963 = vpop.f32.mrf.mxu0
    %v4964 = vadd.f32 %v4863, %v4963
    %4965 = vmatmul.f32.gmra.mxu0 %v4521
    %v4966 = vpop.f32.mrf.mxu0
    %v4967 = vadd.f32 %v4863, %v4966
    %4968 = vmatmul.f32.gmra.mxu0 %v4524
    %v4969 = vpop.f32.mrf.mxu0
    %v4970 = vadd.f32 %v4863, %v4969
    %4971 = vmatmul.f32.gmra.mxu0 %v4530
    %v4972 = vpop.f32.mrf.mxu0
    %v4973 = vadd.f32 %v4863, %v4972
    %4974 = vmatmul.f32.gmra.mxu0 %v4533
    %v4975 = vpop.f32.mrf.mxu0
    %v4976 = vadd.f32 %v4863, %v4975
    %4977 = vdwg.mxu0
    %4978 = vmatpush.msra.mxu0 %v512
    %4979 = vmatpush.msra.mxu0 %v511
    %4980 = vmatpush.msra.mxu0 %v510
    %4981 = vmatpush.msra.mxu0 %v509
    %4982 = vmatpush.msra.mxu0 %v508
    %4983 = vmatpush.msra.mxu0 %v507
    %4984 = vmatpush.msra.mxu0 %v506
    %4985 = vmatpush.msra.mxu0 %v505
    %4986 = vmatpush.msra.mxu0 %v504
    %4987 = vmatpush.msra.mxu0 %v503
    %4988 = vmatpush.msra.mxu0 %v502
    %4989 = vmatpush.msra.mxu0 %v501
    %4990 = vmatpush.msra.mxu0 %v500
    %4991 = vmatpush.msra.mxu0 %v499
    %4992 = vmatpush.msra.mxu0 %v498
    %4993 = vmatpush.msra.mxu0 %v497
    %4994 = vmatmul.f32.gmra.mxu0 %v4606
    %v4995 = vpop.f32.mrf.mxu0
    %v4996 = vadd.f32 %v4883, %v4995
    %4997 = vmatmul.f32.gmra.mxu0 %v4608
    %v4998 = vpop.f32.mrf.mxu0
    %v4999 = vadd.f32 %v4886, %v4998
    %5000 = vmatmul.f32.gmra.mxu0 %v4611
    %v5001 = vpop.f32.mrf.mxu0
    %v5002 = vadd.f32 %v4889, %v5001
    %5003 = vmatmul.f32.gmra.mxu0 %v4613
    %v5004 = vpop.f32.mrf.mxu0
    %v5005 = vadd.f32 %v4892, %v5004
    %5006 = vmatmul.f32.gmra.mxu0 %v4616
    %v5007 = vpop.f32.mrf.mxu0
    %v5008 = vadd.f32 %v4895, %v5007
    %5009 = vmatmul.f32.gmra.mxu0 %v4618
    %v5010 = vpop.f32.mrf.mxu0
    %v5011 = vadd.f32 %v4898, %v5010
    %5012 = vmatmul.f32.gmra.mxu0 %v4621
    %v5013 = vpop.f32.mrf.mxu0
    %v5014 = vadd.f32 %v4901, %v5013
    %5015 = vmatmul.f32.gmra.mxu0 %v4623
    %v5016 = vpop.f32.mrf.mxu0
    %v5017 = vadd.f32 %v4904, %v5016
    %5018 = vmatmul.f32.gmra.mxu0 %v4626
    %v5019 = vpop.f32.mrf.mxu0
    %v5020 = vadd.f32 %v4907, %v5019
    %5021 = vmatmul.f32.gmra.mxu0 %v4628
    %v5022 = vpop.f32.mrf.mxu0
    %v5023 = vadd.f32 %v4910, %v5022
    %5024 = vmatmul.f32.gmra.mxu0 %v4631
    %v5025 = vpop.f32.mrf.mxu0
    %v5026 = vadd.f32 %v4913, %v5025
    %5027 = vmatmul.f32.gmra.mxu0 %v4633
    %v5028 = vpop.f32.mrf.mxu0
    %v5029 = vadd.f32 %v4916, %v5028
    %5030 = vmatmul.f32.gmra.mxu0 %v4636
    %v5031 = vpop.f32.mrf.mxu0
    %v5032 = vadd.f32 %v4919, %v5031
    %5033 = vmatmul.f32.gmra.mxu0 %v4638
    %v5034 = vpop.f32.mrf.mxu0
    %v5035 = vadd.f32 %v4922, %v5034
    %5036 = vmatmul.f32.gmra.mxu0 %v4641
    %v5037 = vpop.f32.mrf.mxu0
    %v5038 = vadd.f32 %v4925, %v5037
    %5039 = vmatmul.f32.gmra.mxu0 %v4643
    %v5040 = vpop.f32.mrf.mxu0
    %v5041 = vadd.f32 %v4928, %v5040
    %5042 = vmatmul.f32.gmra.mxu0 %v4646
    %v5043 = vpop.f32.mrf.mxu0
    %v5044 = vadd.f32 %v4931, %v5043
    %5045 = vmatmul.f32.gmra.mxu0 %v4648
    %v5046 = vpop.f32.mrf.mxu0
    %v5047 = vadd.f32 %v4934, %v5046
    %5048 = vmatmul.f32.gmra.mxu0 %v4651
    %v5049 = vpop.f32.mrf.mxu0
    %v5050 = vadd.f32 %v4937, %v5049
    %5051 = vmatmul.f32.gmra.mxu0 %v4653
    %v5052 = vpop.f32.mrf.mxu0
    %v5053 = vadd.f32 %v4940, %v5052
    %5054 = vmatmul.f32.gmra.mxu0 %v4656
    %v5055 = vpop.f32.mrf.mxu0
    %v5056 = vadd.f32 %v4943, %v5055
    %5057 = vmatmul.f32.gmra.mxu0 %v4658
    %v5058 = vpop.f32.mrf.mxu0
    %v5059 = vadd.f32 %v4946, %v5058
    %5060 = vmatmul.f32.gmra.mxu0 %v4661
    %v5061 = vpop.f32.mrf.mxu0
    %v5062 = vadd.f32 %v4949, %v5061
    %5063 = vmatmul.f32.gmra.mxu0 %v4663
    %v5064 = vpop.f32.mrf.mxu0
    %v5065 = vadd.f32 %v4952, %v5064
    %5066 = vmatmul.f32.gmra.mxu0 %v4666
    %v5067 = vpop.f32.mrf.mxu0
    %v5068 = vadd.f32 %v4955, %v5067
    %5069 = vmatmul.f32.gmra.mxu0 %v4668
    %v5070 = vpop.f32.mrf.mxu0
    %v5071 = vadd.f32 %v4958, %v5070
    %5072 = vmatmul.f32.gmra.mxu0 %v4671
    %v5073 = vpop.f32.mrf.mxu0
    %v5074 = vadd.f32 %v4961, %v5073
    %5075 = vmatmul.f32.gmra.mxu0 %v4673
    %v5076 = vpop.f32.mrf.mxu0
    %v5077 = vadd.f32 %v4964, %v5076
    %5078 = vmatmul.f32.gmra.mxu0 %v4676
    %v5079 = vpop.f32.mrf.mxu0
    %v5080 = vadd.f32 %v4967, %v5079
    %5081 = vmatmul.f32.gmra.mxu0 %v4678
    %v5082 = vpop.f32.mrf.mxu0
    %v5083 = vadd.f32 %v4970, %v5082
    %5084 = vmatmul.f32.gmra.mxu0 %v4681
    %v5085 = vpop.f32.mrf.mxu0
    %v5086 = vadd.f32 %v4973, %v5085
    %5087 = vmatmul.f32.gmra.mxu0 %v4683
    %v5088 = vpop.f32.mrf.mxu0
    %v5089 = vadd.f32 %v4976, %v5088
    %5090 = vdwg.mxu0
    %5091 = vmatpush.msra.mxu0 %v528
    %5092 = vmatpush.msra.mxu0 %v527
    %5093 = vmatpush.msra.mxu0 %v526
    %5094 = vmatpush.msra.mxu0 %v525
    %5095 = vmatpush.msra.mxu0 %v524
    %5096 = vmatpush.msra.mxu0 %v523
    %5097 = vmatpush.msra.mxu0 %v522
    %5098 = vmatpush.msra.mxu0 %v521
    %5099 = vmatpush.msra.mxu0 %v520
    %5100 = vmatpush.msra.mxu0 %v519
    %5101 = vmatpush.msra.mxu0 %v518
    %5102 = vmatpush.msra.mxu0 %v517
    %5103 = vmatpush.msra.mxu0 %v516
    %5104 = vmatpush.msra.mxu0 %v515
    %5105 = vmatpush.msra.mxu0 %v514
    %5106 = vmatpush.msra.mxu0 %v513
    %5107 = vmatmul.f32.gmra.mxu0 %v4718
    %v5108 = vpop.f32.mrf.mxu0
    %v5109 = vadd.f32 %v4996, %v5108
    %5110 = vmatmul.f32.gmra.mxu0 %v4720
    %v5111 = vpop.f32.mrf.mxu0
    %v5112 = vadd.f32 %v4999, %v5111
    %5113 = vmatmul.f32.gmra.mxu0 %v4723
    %v5114 = vpop.f32.mrf.mxu0
    %v5115 = vadd.f32 %v5002, %v5114
    %5116 = vmatmul.f32.gmra.mxu0 %v4725
    %v5117 = vpop.f32.mrf.mxu0
    %v5118 = vadd.f32 %v5005, %v5117
    %5119 = vmatmul.f32.gmra.mxu0 %v4728
    %v5120 = vpop.f32.mrf.mxu0
    %v5121 = vadd.f32 %v5008, %v5120
    %5122 = vmatmul.f32.gmra.mxu0 %v4730
    %v5123 = vpop.f32.mrf.mxu0
    %v5124 = vadd.f32 %v5011, %v5123
    %5125 = vmatmul.f32.gmra.mxu0 %v4733
    %v5126 = vpop.f32.mrf.mxu0
    %v5127 = vadd.f32 %v5014, %v5126
    %5128 = vmatmul.f32.gmra.mxu0 %v4735
    %v5129 = vpop.f32.mrf.mxu0
    %v5130 = vadd.f32 %v5017, %v5129
    %5131 = vmatmul.f32.gmra.mxu0 %v4738
    %v5132 = vpop.f32.mrf.mxu0
    %v5133 = vadd.f32 %v5020, %v5132
    %5134 = vmatmul.f32.gmra.mxu0 %v4740
    %v5135 = vpop.f32.mrf.mxu0
    %v5136 = vadd.f32 %v5023, %v5135
    %5137 = vmatmul.f32.gmra.mxu0 %v4743
    %v5138 = vpop.f32.mrf.mxu0
    %v5139 = vadd.f32 %v5026, %v5138
    %5140 = vmatmul.f32.gmra.mxu0 %v4745
    %v5141 = vpop.f32.mrf.mxu0
    %v5142 = vadd.f32 %v5029, %v5141
    %5143 = vmatmul.f32.gmra.mxu0 %v4748
    %v5144 = vpop.f32.mrf.mxu0
    %v5145 = vadd.f32 %v5032, %v5144
    %5146 = vmatmul.f32.gmra.mxu0 %v4750
    %v5147 = vpop.f32.mrf.mxu0
    %v5148 = vadd.f32 %v5035, %v5147
    %5149 = vmatmul.f32.gmra.mxu0 %v4753
    %v5150 = vpop.f32.mrf.mxu0
    %v5151 = vadd.f32 %v5038, %v5150
    %5152 = vmatmul.f32.gmra.mxu0 %v4755
    %v5153 = vpop.f32.mrf.mxu0
    %v5154 = vadd.f32 %v5041, %v5153
    %5155 = vmatmul.f32.gmra.mxu0 %v4758
    %v5156 = vpop.f32.mrf.mxu0
    %v5157 = vadd.f32 %v5044, %v5156
    %5158 = vmatmul.f32.gmra.mxu0 %v4760
    %v5159 = vpop.f32.mrf.mxu0
    %v5160 = vadd.f32 %v5047, %v5159
    %5161 = vmatmul.f32.gmra.mxu0 %v4763
    %v5162 = vpop.f32.mrf.mxu0
    %v5163 = vadd.f32 %v5050, %v5162
    %5164 = vmatmul.f32.gmra.mxu0 %v4765
    %v5165 = vpop.f32.mrf.mxu0
    %v5166 = vadd.f32 %v5053, %v5165
    %5167 = vmatmul.f32.gmra.mxu0 %v4768
    %v5168 = vpop.f32.mrf.mxu0
    %v5169 = vadd.f32 %v5056, %v5168
    %5170 = vmatmul.f32.gmra.mxu0 %v4770
    %v5171 = vpop.f32.mrf.mxu0
    %v5172 = vadd.f32 %v5059, %v5171
    %5173 = vmatmul.f32.gmra.mxu0 %v4773
    %v5174 = vpop.f32.mrf.mxu0
    %v5175 = vadd.f32 %v5062, %v5174
    %5176 = vmatmul.f32.gmra.mxu0 %v4775
    %v5177 = vpop.f32.mrf.mxu0
    %v5178 = vadd.f32 %v5065, %v5177
    %5179 = vmatmul.f32.gmra.mxu0 %v4778
    %v5180 = vpop.f32.mrf.mxu0
    %v5181 = vadd.f32 %v5068, %v5180
    %5182 = vmatmul.f32.gmra.mxu0 %v4780
    %v5183 = vpop.f32.mrf.mxu0
    %v5184 = vadd.f32 %v5071, %v5183
    %5185 = vmatmul.f32.gmra.mxu0 %v4783
    %v5186 = vpop.f32.mrf.mxu0
    %v5187 = vadd.f32 %v5074, %v5186
    %5188 = vmatmul.f32.gmra.mxu0 %v4785
    %v5189 = vpop.f32.mrf.mxu0
    %v5190 = vadd.f32 %v5077, %v5189
    %5191 = vmatmul.f32.gmra.mxu0 %v4788
    %v5192 = vpop.f32.mrf.mxu0
    %v5193 = vadd.f32 %v5080, %v5192
    %5194 = vmatmul.f32.gmra.mxu0 %v4790
    %v5195 = vpop.f32.mrf.mxu0
    %v5196 = vadd.f32 %v5083, %v5195
    %5197 = vmatmul.f32.gmra.mxu0 %v4793
    %v5198 = vpop.f32.mrf.mxu0
    %v5199 = vadd.f32 %v5086, %v5198
    %5200 = vmatmul.f32.gmra.mxu0 %v4795
    %v5201 = vpop.f32.mrf.mxu0
    %v5202 = vadd.f32 %v5089, %v5201
    %5203 = vdwg.mxu0
    %5204 = vmatpush.msra.mxu0 %v544
    %5205 = vmatpush.msra.mxu0 %v543
    %5206 = vmatpush.msra.mxu0 %v542
    %5207 = vmatpush.msra.mxu0 %v541
    %5208 = vmatpush.msra.mxu0 %v540
    %5209 = vmatpush.msra.mxu0 %v539
    %5210 = vmatpush.msra.mxu0 %v538
    %5211 = vmatpush.msra.mxu0 %v537
    %5212 = vmatpush.msra.mxu0 %v536
    %5213 = vmatpush.msra.mxu0 %v535
    %5214 = vmatpush.msra.mxu0 %v534
    %5215 = vmatpush.msra.mxu0 %v533
    %5216 = vmatpush.msra.mxu0 %v532
    %5217 = vmatpush.msra.mxu0 %v531
    %5218 = vmatpush.msra.mxu0 %v530
    %5219 = vmatpush.msra.mxu0 %v529
    %5220 = vmatmul.f32.gmra.mxu0 %v4404
    %v5221 = vpop.f32.mrf.mxu0
    %v5222 = vadd.f32 %v5109, %v5221
    %5223 = vmatmul.f32.gmra.mxu0 %v4407
    %v5224 = vpop.f32.mrf.mxu0
    %v5225 = vadd.f32 %v5112, %v5224
    %5226 = vmatmul.f32.gmra.mxu0 %v4413
    %v5227 = vpop.f32.mrf.mxu0
    %v5228 = vadd.f32 %v5115, %v5227
    %5229 = vmatmul.f32.gmra.mxu0 %v4416
    %v5230 = vpop.f32.mrf.mxu0
    %v5231 = vadd.f32 %v5118, %v5230
    %5232 = vmatmul.f32.gmra.mxu0 %v4422
    %v5233 = vpop.f32.mrf.mxu0
    %v5234 = vadd.f32 %v5121, %v5233
    %5235 = vmatmul.f32.gmra.mxu0 %v4425
    %v5236 = vpop.f32.mrf.mxu0
    %v5237 = vadd.f32 %v5124, %v5236
    %5238 = vmatmul.f32.gmra.mxu0 %v4431
    %v5239 = vpop.f32.mrf.mxu0
    %v5240 = vadd.f32 %v5127, %v5239
    %5241 = vmatmul.f32.gmra.mxu0 %v4434
    %v5242 = vpop.f32.mrf.mxu0
    %v5243 = vadd.f32 %v5130, %v5242
    %5244 = vmatmul.f32.gmra.mxu0 %v4440
    %v5245 = vpop.f32.mrf.mxu0
    %v5246 = vadd.f32 %v5133, %v5245
    %5247 = vmatmul.f32.gmra.mxu0 %v4443
    %v5248 = vpop.f32.mrf.mxu0
    %v5249 = vadd.f32 %v5136, %v5248
    %5250 = vmatmul.f32.gmra.mxu0 %v4449
    %v5251 = vpop.f32.mrf.mxu0
    %v5252 = vadd.f32 %v5139, %v5251
    %5253 = vmatmul.f32.gmra.mxu0 %v4452
    %v5254 = vpop.f32.mrf.mxu0
    %v5255 = vadd.f32 %v5142, %v5254
    %5256 = vmatmul.f32.gmra.mxu0 %v4458
    %v5257 = vpop.f32.mrf.mxu0
    %v5258 = vadd.f32 %v5145, %v5257
    %5259 = vmatmul.f32.gmra.mxu0 %v4461
    %v5260 = vpop.f32.mrf.mxu0
    %v5261 = vadd.f32 %v5148, %v5260
    %5262 = vmatmul.f32.gmra.mxu0 %v4467
    %v5263 = vpop.f32.mrf.mxu0
    %v5264 = vadd.f32 %v5151, %v5263
    %5265 = vmatmul.f32.gmra.mxu0 %v4470
    %v5266 = vpop.f32.mrf.mxu0
    %v5267 = vadd.f32 %v5154, %v5266
    %5268 = vmatmul.f32.gmra.mxu0 %v4476
    %v5269 = vpop.f32.mrf.mxu0
    %v5270 = vadd.f32 %v5157, %v5269
    %5271 = vmatmul.f32.gmra.mxu0 %v4479
    %v5272 = vpop.f32.mrf.mxu0
    %v5273 = vadd.f32 %v5160, %v5272
    %5274 = vmatmul.f32.gmra.mxu0 %v4485
    %v5275 = vpop.f32.mrf.mxu0
    %v5276 = vadd.f32 %v5163, %v5275
    %5277 = vmatmul.f32.gmra.mxu0 %v4488
    %v5278 = vpop.f32.mrf.mxu0
    %v5279 = vadd.f32 %v5166, %v5278
    %5280 = vmatmul.f32.gmra.mxu0 %v4494
    %v5281 = vpop.f32.mrf.mxu0
    %v5282 = vadd.f32 %v5169, %v5281
    %5283 = vmatmul.f32.gmra.mxu0 %v4497
    %v5284 = vpop.f32.mrf.mxu0
    %v5285 = vadd.f32 %v5172, %v5284
    %5286 = vmatmul.f32.gmra.mxu0 %v4503
    %v5287 = vpop.f32.mrf.mxu0
    %v5288 = vadd.f32 %v5175, %v5287
    %5289 = vmatmul.f32.gmra.mxu0 %v4506
    %v5290 = vpop.f32.mrf.mxu0
    %v5291 = vadd.f32 %v5178, %v5290
    %5292 = vmatmul.f32.gmra.mxu0 %v4512
    %v5293 = vpop.f32.mrf.mxu0
    %v5294 = vadd.f32 %v5181, %v5293
    %5295 = vmatmul.f32.gmra.mxu0 %v4515
    %v5296 = vpop.f32.mrf.mxu0
    %v5297 = vadd.f32 %v5184, %v5296
    %5298 = vmatmul.f32.gmra.mxu0 %v4521
    %v5299 = vpop.f32.mrf.mxu0
    %v5300 = vadd.f32 %v5187, %v5299
    %5301 = vmatmul.f32.gmra.mxu0 %v4524
    %v5302 = vpop.f32.mrf.mxu0
    %v5303 = vadd.f32 %v5190, %v5302
    %5304 = vmatmul.f32.gmra.mxu0 %v4530
    %v5305 = vpop.f32.mrf.mxu0
    %v5306 = vadd.f32 %v5193, %v5305
    %5307 = vmatmul.f32.gmra.mxu0 %v4533
    %v5308 = vpop.f32.mrf.mxu0
    %v5309 = vadd.f32 %v5196, %v5308
    %5310 = vmatmul.f32.gmra.mxu0 %v4539
    %v5311 = vpop.f32.mrf.mxu0
    %v5312 = vadd.f32 %v5199, %v5311
    %5313 = vmatmul.f32.gmra.mxu0 %v4542
    %v5314 = vpop.f32.mrf.mxu0
    %v5315 = vadd.f32 %v5202, %v5314
    %5316 = vdwg.mxu0
    %5317 = vmatpush.msra.mxu0 %v560
    %5318 = vmatpush.msra.mxu0 %v559
    %5319 = vmatpush.msra.mxu0 %v558
    %5320 = vmatpush.msra.mxu0 %v557
    %5321 = vmatpush.msra.mxu0 %v556
    %5322 = vmatpush.msra.mxu0 %v555
    %5323 = vmatpush.msra.mxu0 %v554
    %5324 = vmatpush.msra.mxu0 %v553
    %5325 = vmatpush.msra.mxu0 %v552
    %5326 = vmatpush.msra.mxu0 %v551
    %5327 = vmatpush.msra.mxu0 %v550
    %5328 = vmatpush.msra.mxu0 %v549
    %5329 = vmatpush.msra.mxu0 %v548
    %5330 = vmatpush.msra.mxu0 %v547
    %5331 = vmatpush.msra.mxu0 %v546
    %5332 = vmatpush.msra.mxu0 %v545
    %5333 = vmatmul.f32.gmra.mxu0 %v4611
    %v5334 = vpop.f32.mrf.mxu0
    %v5335 = vadd.f32 %v5222, %v5334
    %5336 = vmatmul.f32.gmra.mxu0 %v4613
    %v5337 = vpop.f32.mrf.mxu0
    %v5338 = vadd.f32 %v5225, %v5337
    %5339 = vmatmul.f32.gmra.mxu0 %v4616
    %v5340 = vpop.f32.mrf.mxu0
    %v5341 = vadd.f32 %v5228, %v5340
    %5342 = vmatmul.f32.gmra.mxu0 %v4618
    %v5343 = vpop.f32.mrf.mxu0
    %v5344 = vadd.f32 %v5231, %v5343
    %5345 = vmatmul.f32.gmra.mxu0 %v4621
    %v5346 = vpop.f32.mrf.mxu0
    %v5347 = vadd.f32 %v5234, %v5346
    %5348 = vmatmul.f32.gmra.mxu0 %v4623
    %v5349 = vpop.f32.mrf.mxu0
    %v5350 = vadd.f32 %v5237, %v5349
    %5351 = vmatmul.f32.gmra.mxu0 %v4626
    %v5352 = vpop.f32.mrf.mxu0
    %v5353 = vadd.f32 %v5240, %v5352
    %5354 = vmatmul.f32.gmra.mxu0 %v4628
    %v5355 = vpop.f32.mrf.mxu0
    %v5356 = vadd.f32 %v5243, %v5355
    %5357 = vmatmul.f32.gmra.mxu0 %v4631
    %v5358 = vpop.f32.mrf.mxu0
    %v5359 = vadd.f32 %v5246, %v5358
    %5360 = vmatmul.f32.gmra.mxu0 %v4633
    %v5361 = vpop.f32.mrf.mxu0
    %v5362 = vadd.f32 %v5249, %v5361
    %5363 = vmatmul.f32.gmra.mxu0 %v4636
    %v5364 = vpop.f32.mrf.mxu0
    %v5365 = vadd.f32 %v5252, %v5364
    %5366 = vmatmul.f32.gmra.mxu0 %v4638
    %v5367 = vpop.f32.mrf.mxu0
    %v5368 = vadd.f32 %v5255, %v5367
    %5369 = vmatmul.f32.gmra.mxu0 %v4641
    %v5370 = vpop.f32.mrf.mxu0
    %v5371 = vadd.f32 %v5258, %v5370
    %5372 = vmatmul.f32.gmra.mxu0 %v4643
    %v5373 = vpop.f32.mrf.mxu0
    %v5374 = vadd.f32 %v5261, %v5373
    %5375 = vmatmul.f32.gmra.mxu0 %v4646
    %v5376 = vpop.f32.mrf.mxu0
    %v5377 = vadd.f32 %v5264, %v5376
    %5378 = vmatmul.f32.gmra.mxu0 %v4648
    %v5379 = vpop.f32.mrf.mxu0
    %v5380 = vadd.f32 %v5267, %v5379
    %5381 = vmatmul.f32.gmra.mxu0 %v4651
    %v5382 = vpop.f32.mrf.mxu0
    %v5383 = vadd.f32 %v5270, %v5382
    %5384 = vmatmul.f32.gmra.mxu0 %v4653
    %v5385 = vpop.f32.mrf.mxu0
    %v5386 = vadd.f32 %v5273, %v5385
    %5387 = vmatmul.f32.gmra.mxu0 %v4656
    %v5388 = vpop.f32.mrf.mxu0
    %v5389 = vadd.f32 %v5276, %v5388
    %5390 = vmatmul.f32.gmra.mxu0 %v4658
    %v5391 = vpop.f32.mrf.mxu0
    %v5392 = vadd.f32 %v5279, %v5391
    %5393 = vmatmul.f32.gmra.mxu0 %v4661
    %v5394 = vpop.f32.mrf.mxu0
    %v5395 = vadd.f32 %v5282, %v5394
    %5396 = vmatmul.f32.gmra.mxu0 %v4663
    %v5397 = vpop.f32.mrf.mxu0
    %v5398 = vadd.f32 %v5285, %v5397
    %5399 = vmatmul.f32.gmra.mxu0 %v4666
    %v5400 = vpop.f32.mrf.mxu0
    %v5401 = vadd.f32 %v5288, %v5400
    %5402 = vmatmul.f32.gmra.mxu0 %v4668
    %v5403 = vpop.f32.mrf.mxu0
    %v5404 = vadd.f32 %v5291, %v5403
    %5405 = vmatmul.f32.gmra.mxu0 %v4671
    %v5406 = vpop.f32.mrf.mxu0
    %v5407 = vadd.f32 %v5294, %v5406
    %5408 = vmatmul.f32.gmra.mxu0 %v4673
    %v5409 = vpop.f32.mrf.mxu0
    %v5410 = vadd.f32 %v5297, %v5409
    %5411 = vmatmul.f32.gmra.mxu0 %v4676
    %v5412 = vpop.f32.mrf.mxu0
    %v5413 = vadd.f32 %v5300, %v5412
    %5414 = vmatmul.f32.gmra.mxu0 %v4678
    %v5415 = vpop.f32.mrf.mxu0
    %v5416 = vadd.f32 %v5303, %v5415
    %5417 = vmatmul.f32.gmra.mxu0 %v4681
    %v5418 = vpop.f32.mrf.mxu0
    %v5419 = vadd.f32 %v5306, %v5418
    %5420 = vmatmul.f32.gmra.mxu0 %v4683
    %v5421 = vpop.f32.mrf.mxu0
    %v5422 = vadd.f32 %v5309, %v5421
    %5423 = vmatmul.f32.gmra.mxu0 %v4833
    %v5424 = vpop.f32.mrf.mxu0
    %v5425 = vadd.f32 %v5312, %v5424
    %5426 = vmatmul.f32.gmra.mxu0 %v4835
    %v5427 = vpop.f32.mrf.mxu0
    %v5428 = vadd.f32 %v5315, %v5427
    %5429 = vdwg.mxu0
    %5430 = vmatpush.msra.mxu0 %v576
    %5431 = vmatpush.msra.mxu0 %v575
    %5432 = vmatpush.msra.mxu0 %v574
    %5433 = vmatpush.msra.mxu0 %v573
    %5434 = vmatpush.msra.mxu0 %v572
    %5435 = vmatpush.msra.mxu0 %v571
    %5436 = vmatpush.msra.mxu0 %v570
    %5437 = vmatpush.msra.mxu0 %v569
    %5438 = vmatpush.msra.mxu0 %v568
    %5439 = vmatpush.msra.mxu0 %v567
    %5440 = vmatpush.msra.mxu0 %v566
    %5441 = vmatpush.msra.mxu0 %v565
    %5442 = vmatpush.msra.mxu0 %v564
    %5443 = vmatpush.msra.mxu0 %v563
    %5444 = vmatpush.msra.mxu0 %v562
    %5445 = vmatpush.msra.mxu0 %v561
    %5446 = vmatmul.f32.gmra.mxu0 %v4723
    %v5447 = vpop.f32.mrf.mxu0
    %v5448 = vadd.f32 %v5335, %v5447
    %5449 = vmatmul.f32.gmra.mxu0 %v4725
    %v5450 = vpop.f32.mrf.mxu0
    %v5451 = vadd.f32 %v5338, %v5450
    %5452 = vmatmul.f32.gmra.mxu0 %v4728
    %v5453 = vpop.f32.mrf.mxu0
    %v5454 = vadd.f32 %v5341, %v5453
    %5455 = vmatmul.f32.gmra.mxu0 %v4730
    %v5456 = vpop.f32.mrf.mxu0
    %v5457 = vadd.f32 %v5344, %v5456
    %5458 = vmatmul.f32.gmra.mxu0 %v4733
    %v5459 = vpop.f32.mrf.mxu0
    %v5460 = vadd.f32 %v5347, %v5459
    %5461 = vmatmul.f32.gmra.mxu0 %v4735
    %v5462 = vpop.f32.mrf.mxu0
    %v5463 = vadd.f32 %v5350, %v5462
    %5464 = vmatmul.f32.gmra.mxu0 %v4738
    %v5465 = vpop.f32.mrf.mxu0
    %v5466 = vadd.f32 %v5353, %v5465
    %5467 = vmatmul.f32.gmra.mxu0 %v4740
    %v5468 = vpop.f32.mrf.mxu0
    %v5469 = vadd.f32 %v5356, %v5468
    %5470 = vmatmul.f32.gmra.mxu0 %v4743
    %v5471 = vpop.f32.mrf.mxu0
    %v5472 = vadd.f32 %v5359, %v5471
    %5473 = vmatmul.f32.gmra.mxu0 %v4745
    %v5474 = vpop.f32.mrf.mxu0
    %v5475 = vadd.f32 %v5362, %v5474
    %5476 = vmatmul.f32.gmra.mxu0 %v4748
    %v5477 = vpop.f32.mrf.mxu0
    %v5478 = vadd.f32 %v5365, %v5477
    %5479 = vmatmul.f32.gmra.mxu0 %v4750
    %v5480 = vpop.f32.mrf.mxu0
    %v5481 = vadd.f32 %v5368, %v5480
    %5482 = vmatmul.f32.gmra.mxu0 %v4753
    %v5483 = vpop.f32.mrf.mxu0
    %v5484 = vadd.f32 %v5371, %v5483
    %5485 = vmatmul.f32.gmra.mxu0 %v4755
    %v5486 = vpop.f32.mrf.mxu0
    %v5487 = vadd.f32 %v5374, %v5486
    %5488 = vmatmul.f32.gmra.mxu0 %v4758
    %v5489 = vpop.f32.mrf.mxu0
    %v5490 = vadd.f32 %v5377, %v5489
    %5491 = vmatmul.f32.gmra.mxu0 %v4760
    %v5492 = vpop.f32.mrf.mxu0
    %v5493 = vadd.f32 %v5380, %v5492
    %5494 = vmatmul.f32.gmra.mxu0 %v4763
    %v5495 = vpop.f32.mrf.mxu0
    %v5496 = vadd.f32 %v5383, %v5495
    %5497 = vmatmul.f32.gmra.mxu0 %v4765
    %v5498 = vpop.f32.mrf.mxu0
    %v5499 = vadd.f32 %v5386, %v5498
    %5500 = vmatmul.f32.gmra.mxu0 %v4768
    %v5501 = vpop.f32.mrf.mxu0
    %v5502 = vadd.f32 %v5389, %v5501
    %5503 = vmatmul.f32.gmra.mxu0 %v4770
    %v5504 = vpop.f32.mrf.mxu0
    %v5505 = vadd.f32 %v5392, %v5504
    %5506 = vmatmul.f32.gmra.mxu0 %v4773
    %v5507 = vpop.f32.mrf.mxu0
    %v5508 = vadd.f32 %v5395, %v5507
    %5509 = vmatmul.f32.gmra.mxu0 %v4775
    %v5510 = vpop.f32.mrf.mxu0
    %v5511 = vadd.f32 %v5398, %v5510
    %5512 = vmatmul.f32.gmra.mxu0 %v4778
    %v5513 = vpop.f32.mrf.mxu0
    %v5514 = vadd.f32 %v5401, %v5513
    %5515 = vmatmul.f32.gmra.mxu0 %v4780
    %v5516 = vpop.f32.mrf.mxu0
    %v5517 = vadd.f32 %v5404, %v5516
    %5518 = vmatmul.f32.gmra.mxu0 %v4783
    %v5519 = vpop.f32.mrf.mxu0
    %v5520 = vadd.f32 %v5407, %v5519
    %5521 = vmatmul.f32.gmra.mxu0 %v4785
    %v5522 = vpop.f32.mrf.mxu0
    %v5523 = vadd.f32 %v5410, %v5522
    %5524 = vmatmul.f32.gmra.mxu0 %v4788
    %v5525 = vpop.f32.mrf.mxu0
    %v5526 = vadd.f32 %v5413, %v5525
    %5527 = vmatmul.f32.gmra.mxu0 %v4790
    %v5528 = vpop.f32.mrf.mxu0
    %v5529 = vadd.f32 %v5416, %v5528
    %5530 = vmatmul.f32.gmra.mxu0 %v4793
    %v5531 = vpop.f32.mrf.mxu0
    %v5532 = vadd.f32 %v5419, %v5531
    %5533 = vmatmul.f32.gmra.mxu0 %v4795
    %v5534 = vpop.f32.mrf.mxu0
    %v5535 = vadd.f32 %v5422, %v5534
    %5536 = vmatmul.f32.gmra.mxu0 %v4840
    %v5537 = vpop.f32.mrf.mxu0
    %v5538 = vadd.f32 %v5425, %v5537
    %5539 = vmatmul.f32.gmra.mxu0 %v4842
    %v5540 = vpop.f32.mrf.mxu0
    %v5541 = vadd.f32 %v5428, %v5540
    %5542 = vdwg.mxu0
    %5543 = vmatpush.msra.mxu0 %v592
    %5544 = vmatpush.msra.mxu0 %v591
    %5545 = vmatpush.msra.mxu0 %v590
    %5546 = vmatpush.msra.mxu0 %v589
    %5547 = vmatpush.msra.mxu0 %v588
    %5548 = vmatpush.msra.mxu0 %v587
    %5549 = vmatpush.msra.mxu0 %v586
    %5550 = vmatpush.msra.mxu0 %v585
    %5551 = vmatpush.msra.mxu0 %v584
    %5552 = vmatpush.msra.mxu0 %v583
    %5553 = vmatpush.msra.mxu0 %v582
    %5554 = vmatpush.msra.mxu0 %v581
    %5555 = vmatpush.msra.mxu0 %v580
    %5556 = vmatpush.msra.mxu0 %v579
    %5557 = vmatpush.msra.mxu0 %v578
    %5558 = vmatpush.msra.mxu0 %v577
    %5559 = vmatmul.f32.gmra.mxu0 %v4413
    %v5560 = vpop.f32.mrf.mxu0
    %v5561 = vadd.f32 %v5448, %v5560
    %5562 = vmatmul.f32.gmra.mxu0 %v4416
    %v5563 = vpop.f32.mrf.mxu0
    %v5564 = vadd.f32 %v5451, %v5563
    %5565 = vmatmul.f32.gmra.mxu0 %v4422
    %v5566 = vpop.f32.mrf.mxu0
    %v5567 = vadd.f32 %v5454, %v5566
    %5568 = vmatmul.f32.gmra.mxu0 %v4425
    %v5569 = vpop.f32.mrf.mxu0
    %v5570 = vadd.f32 %v5457, %v5569
    %5571 = vmatmul.f32.gmra.mxu0 %v4431
    %v5572 = vpop.f32.mrf.mxu0
    %v5573 = vadd.f32 %v5460, %v5572
    %5574 = vmatmul.f32.gmra.mxu0 %v4434
    %v5575 = vpop.f32.mrf.mxu0
    %v5576 = vadd.f32 %v5463, %v5575
    %5577 = vmatmul.f32.gmra.mxu0 %v4440
    %v5578 = vpop.f32.mrf.mxu0
    %v5579 = vadd.f32 %v5466, %v5578
    %5580 = vmatmul.f32.gmra.mxu0 %v4443
    %v5581 = vpop.f32.mrf.mxu0
    %v5582 = vadd.f32 %v5469, %v5581
    %5583 = vmatmul.f32.gmra.mxu0 %v4449
    %v5584 = vpop.f32.mrf.mxu0
    %v5585 = vadd.f32 %v5472, %v5584
    %5586 = vmatmul.f32.gmra.mxu0 %v4452
    %v5587 = vpop.f32.mrf.mxu0
    %v5588 = vadd.f32 %v5475, %v5587
    %5589 = vmatmul.f32.gmra.mxu0 %v4458
    %v5590 = vpop.f32.mrf.mxu0
    %v5591 = vadd.f32 %v5478, %v5590
    %5592 = vmatmul.f32.gmra.mxu0 %v4461
    %v5593 = vpop.f32.mrf.mxu0
    %v5594 = vadd.f32 %v5481, %v5593
    %5595 = vmatmul.f32.gmra.mxu0 %v4467
    %v5596 = vpop.f32.mrf.mxu0
    %v5597 = vadd.f32 %v5484, %v5596
    %5598 = vmatmul.f32.gmra.mxu0 %v4470
    %v5599 = vpop.f32.mrf.mxu0
    %v5600 = vadd.f32 %v5487, %v5599
    %5601 = vmatmul.f32.gmra.mxu0 %v4476
    %v5602 = vpop.f32.mrf.mxu0
    %v5603 = vadd.f32 %v5490, %v5602
    %5604 = vmatmul.f32.gmra.mxu0 %v4479
    %v5605 = vpop.f32.mrf.mxu0
    %v5606 = vadd.f32 %v5493, %v5605
    %5607 = vmatmul.f32.gmra.mxu0 %v4485
    %v5608 = vpop.f32.mrf.mxu0
    %v5609 = vadd.f32 %v5496, %v5608
    %5610 = vmatmul.f32.gmra.mxu0 %v4488
    %v5611 = vpop.f32.mrf.mxu0
    %v5612 = vadd.f32 %v5499, %v5611
    %5613 = vmatmul.f32.gmra.mxu0 %v4494
    %v5614 = vpop.f32.mrf.mxu0
    %v5615 = vadd.f32 %v5502, %v5614
    %5616 = vmatmul.f32.gmra.mxu0 %v4497
    %v5617 = vpop.f32.mrf.mxu0
    %v5618 = vadd.f32 %v5505, %v5617
    %5619 = vmatmul.f32.gmra.mxu0 %v4503
    %v5620 = vpop.f32.mrf.mxu0
    %v5621 = vadd.f32 %v5508, %v5620
    %5622 = vmatmul.f32.gmra.mxu0 %v4506
    %v5623 = vpop.f32.mrf.mxu0
    %v5624 = vadd.f32 %v5511, %v5623
    %5625 = vmatmul.f32.gmra.mxu0 %v4512
    %v5626 = vpop.f32.mrf.mxu0
    %v5627 = vadd.f32 %v5514, %v5626
    %5628 = vmatmul.f32.gmra.mxu0 %v4515
    %v5629 = vpop.f32.mrf.mxu0
    %v5630 = vadd.f32 %v5517, %v5629
    %5631 = vmatmul.f32.gmra.mxu0 %v4521
    %v5632 = vpop.f32.mrf.mxu0
    %v5633 = vadd.f32 %v5520, %v5632
    %5634 = vmatmul.f32.gmra.mxu0 %v4524
    %v5635 = vpop.f32.mrf.mxu0
    %v5636 = vadd.f32 %v5523, %v5635
    %5637 = vmatmul.f32.gmra.mxu0 %v4530
    %v5638 = vpop.f32.mrf.mxu0
    %v5639 = vadd.f32 %v5526, %v5638
    %5640 = vmatmul.f32.gmra.mxu0 %v4533
    %v5641 = vpop.f32.mrf.mxu0
    %v5642 = vadd.f32 %v5529, %v5641
    %5643 = vmatmul.f32.gmra.mxu0 %v4539
    %v5644 = vpop.f32.mrf.mxu0
    %v5645 = vadd.f32 %v5532, %v5644
    %5646 = vmatmul.f32.gmra.mxu0 %v4542
    %v5647 = vpop.f32.mrf.mxu0
    %v5648 = vadd.f32 %v5535, %v5647
    %5649 = vmatmul.f32.gmra.mxu0 %v4548
    %v5650 = vpop.f32.mrf.mxu0
    %v5651 = vadd.f32 %v5538, %v5650
    %5652 = vmatmul.f32.gmra.mxu0 %v4551
    %v5653 = vpop.f32.mrf.mxu0
    %v5654 = vadd.f32 %v5541, %v5653
    %5655 = vdwg.mxu0
    %5656 = vmatpush.msra.mxu0 %v608
    %5657 = vmatpush.msra.mxu0 %v607
    %5658 = vmatpush.msra.mxu0 %v606
    %5659 = vmatpush.msra.mxu0 %v605
    %5660 = vmatpush.msra.mxu0 %v604
    %5661 = vmatpush.msra.mxu0 %v603
    %5662 = vmatpush.msra.mxu0 %v602
    %5663 = vmatpush.msra.mxu0 %v601
    %5664 = vmatpush.msra.mxu0 %v600
    %5665 = vmatpush.msra.mxu0 %v599
    %5666 = vmatpush.msra.mxu0 %v598
    %5667 = vmatpush.msra.mxu0 %v597
    %5668 = vmatpush.msra.mxu0 %v596
    %5669 = vmatpush.msra.mxu0 %v595
    %5670 = vmatpush.msra.mxu0 %v594
    %5671 = vmatpush.msra.mxu0 %v593
    %5672 = vmatmul.f32.gmra.mxu0 %v4616
    %v5673 = vpop.f32.mrf.mxu0
    %v5674 = vadd.f32 %v5561, %v5673
    %5675 = vmatmul.f32.gmra.mxu0 %v4618
    %v5676 = vpop.f32.mrf.mxu0
    %v5677 = vadd.f32 %v5564, %v5676
    %5678 = vmatmul.f32.gmra.mxu0 %v4621
    %v5679 = vpop.f32.mrf.mxu0
    %v5680 = vadd.f32 %v5567, %v5679
    %5681 = vmatmul.f32.gmra.mxu0 %v4623
    %v5682 = vpop.f32.mrf.mxu0
    %v5683 = vadd.f32 %v5570, %v5682
    %5684 = vmatmul.f32.gmra.mxu0 %v4626
    %v5685 = vpop.f32.mrf.mxu0
    %v5686 = vadd.f32 %v5573, %v5685
    %5687 = vmatmul.f32.gmra.mxu0 %v4628
    %v5688 = vpop.f32.mrf.mxu0
    %v5689 = vadd.f32 %v5576, %v5688
    %5690 = vmatmul.f32.gmra.mxu0 %v4631
    %v5691 = vpop.f32.mrf.mxu0
    %v5692 = vadd.f32 %v5579, %v5691
    %5693 = vmatmul.f32.gmra.mxu0 %v4633
    %v5694 = vpop.f32.mrf.mxu0
    %v5695 = vadd.f32 %v5582, %v5694
    %5696 = vmatmul.f32.gmra.mxu0 %v4636
    %v5697 = vpop.f32.mrf.mxu0
    %v5698 = vadd.f32 %v5585, %v5697
    %5699 = vmatmul.f32.gmra.mxu0 %v4638
    %v5700 = vpop.f32.mrf.mxu0
    %v5701 = vadd.f32 %v5588, %v5700
    %5702 = vmatmul.f32.gmra.mxu0 %v4641
    %v5703 = vpop.f32.mrf.mxu0
    %v5704 = vadd.f32 %v5591, %v5703
    %5705 = vmatmul.f32.gmra.mxu0 %v4643
    %v5706 = vpop.f32.mrf.mxu0
    %v5707 = vadd.f32 %v5594, %v5706
    %5708 = vmatmul.f32.gmra.mxu0 %v4646
    %v5709 = vpop.f32.mrf.mxu0
    %v5710 = vadd.f32 %v5597, %v5709
    %5711 = vmatmul.f32.gmra.mxu0 %v4648
    %v5712 = vpop.f32.mrf.mxu0
    %v5713 = vadd.f32 %v5600, %v5712
    %5714 = vmatmul.f32.gmra.mxu0 %v4651
    %v5715 = vpop.f32.mrf.mxu0
    %v5716 = vadd.f32 %v5603, %v5715
    %5717 = vmatmul.f32.gmra.mxu0 %v4653
    %v5718 = vpop.f32.mrf.mxu0
    %v5719 = vadd.f32 %v5606, %v5718
    %5720 = vmatmul.f32.gmra.mxu0 %v4656
    %v5721 = vpop.f32.mrf.mxu0
    %v5722 = vadd.f32 %v5609, %v5721
    %5723 = vmatmul.f32.gmra.mxu0 %v4658
    %v5724 = vpop.f32.mrf.mxu0
    %v5725 = vadd.f32 %v5612, %v5724
    %5726 = vmatmul.f32.gmra.mxu0 %v4661
    %v5727 = vpop.f32.mrf.mxu0
    %v5728 = vadd.f32 %v5615, %v5727
    %5729 = vmatmul.f32.gmra.mxu0 %v4663
    %v5730 = vpop.f32.mrf.mxu0
    %v5731 = vadd.f32 %v5618, %v5730
    %5732 = vmatmul.f32.gmra.mxu0 %v4666
    %v5733 = vpop.f32.mrf.mxu0
    %v5734 = vadd.f32 %v5621, %v5733
    %5735 = vmatmul.f32.gmra.mxu0 %v4668
    %v5736 = vpop.f32.mrf.mxu0
    %v5737 = vadd.f32 %v5624, %v5736
    %5738 = vmatmul.f32.gmra.mxu0 %v4671
    %v5739 = vpop.f32.mrf.mxu0
    %v5740 = vadd.f32 %v5627, %v5739
    %5741 = vmatmul.f32.gmra.mxu0 %v4673
    %v5742 = vpop.f32.mrf.mxu0
    %v5743 = vadd.f32 %v5630, %v5742
    %5744 = vmatmul.f32.gmra.mxu0 %v4676
    %v5745 = vpop.f32.mrf.mxu0
    %v5746 = vadd.f32 %v5633, %v5745
    %5747 = vmatmul.f32.gmra.mxu0 %v4678
    %v5748 = vpop.f32.mrf.mxu0
    %v5749 = vadd.f32 %v5636, %v5748
    %5750 = vmatmul.f32.gmra.mxu0 %v4681
    %v5751 = vpop.f32.mrf.mxu0
    %v5752 = vadd.f32 %v5639, %v5751
    %5753 = vmatmul.f32.gmra.mxu0 %v4683
    %v5754 = vpop.f32.mrf.mxu0
    %v5755 = vadd.f32 %v5642, %v5754
    %5756 = vmatmul.f32.gmra.mxu0 %v4833
    %v5757 = vpop.f32.mrf.mxu0
    %v5758 = vadd.f32 %v5645, %v5757
    %5759 = vmatmul.f32.gmra.mxu0 %v4835
    %v5760 = vpop.f32.mrf.mxu0
    %v5761 = vadd.f32 %v5648, %v5760
    %5762 = vmatmul.f32.gmra.mxu0 %v4850
    %v5763 = vpop.f32.mrf.mxu0
    %v5764 = vadd.f32 %v5651, %v5763
    %5765 = vmatmul.f32.gmra.mxu0 %v4852
    %v5766 = vpop.f32.mrf.mxu0
    %v5767 = vadd.f32 %v5654, %v5766
    %5768 = vdwg.mxu0
    %5769 = vmatpush.msra.mxu0 %v624
    %5770 = vmatpush.msra.mxu0 %v623
    %5771 = vmatpush.msra.mxu0 %v622
    %5772 = vmatpush.msra.mxu0 %v621
    %5773 = vmatpush.msra.mxu0 %v620
    %5774 = vmatpush.msra.mxu0 %v619
    %5775 = vmatpush.msra.mxu0 %v618
    %5776 = vmatpush.msra.mxu0 %v617
    %5777 = vmatpush.msra.mxu0 %v616
    %5778 = vmatpush.msra.mxu0 %v615
    %5779 = vmatpush.msra.mxu0 %v614
    %5780 = vmatpush.msra.mxu0 %v613
    %5781 = vmatpush.msra.mxu0 %v612
    %5782 = vmatpush.msra.mxu0 %v611
    %5783 = vmatpush.msra.mxu0 %v610
    %5784 = vmatpush.msra.mxu0 %v609
    %5785 = vmatmul.f32.gmra.mxu0 %v4728
    %v5786 = vpop.f32.mrf.mxu0
    %v5787 = vadd.f32 %v5674, %v5786
    %5788 = vmatmul.f32.gmra.mxu0 %v4730
    %v5789 = vpop.f32.mrf.mxu0
    %v5790 = vadd.f32 %v5677, %v5789
    %5791 = vmatmul.f32.gmra.mxu0 %v4733
    %v5792 = vpop.f32.mrf.mxu0
    %v5793 = vadd.f32 %v5680, %v5792
    %5794 = vmatmul.f32.gmra.mxu0 %v4735
    %v5795 = vpop.f32.mrf.mxu0
    %v5796 = vadd.f32 %v5683, %v5795
    %5797 = vmatmul.f32.gmra.mxu0 %v4738
    %v5798 = vpop.f32.mrf.mxu0
    %v5799 = vadd.f32 %v5686, %v5798
    %5800 = vmatmul.f32.gmra.mxu0 %v4740
    %v5801 = vpop.f32.mrf.mxu0
    %v5802 = vadd.f32 %v5689, %v5801
    %5803 = vmatmul.f32.gmra.mxu0 %v4743
    %v5804 = vpop.f32.mrf.mxu0
    %v5805 = vadd.f32 %v5692, %v5804
    %5806 = vmatmul.f32.gmra.mxu0 %v4745
    %v5807 = vpop.f32.mrf.mxu0
    %v5808 = vadd.f32 %v5695, %v5807
    %5809 = vmatmul.f32.gmra.mxu0 %v4748
    %v5810 = vpop.f32.mrf.mxu0
    %v5811 = vadd.f32 %v5698, %v5810
    %5812 = vmatmul.f32.gmra.mxu0 %v4750
    %v5813 = vpop.f32.mrf.mxu0
    %v5814 = vadd.f32 %v5701, %v5813
    %5815 = vmatmul.f32.gmra.mxu0 %v4753
    %v5816 = vpop.f32.mrf.mxu0
    %v5817 = vadd.f32 %v5704, %v5816
    %5818 = vmatmul.f32.gmra.mxu0 %v4755
    %v5819 = vpop.f32.mrf.mxu0
    %v5820 = vadd.f32 %v5707, %v5819
    %5821 = vmatmul.f32.gmra.mxu0 %v4758
    %v5822 = vpop.f32.mrf.mxu0
    %v5823 = vadd.f32 %v5710, %v5822
    %5824 = vmatmul.f32.gmra.mxu0 %v4760
    %v5825 = vpop.f32.mrf.mxu0
    %v5826 = vadd.f32 %v5713, %v5825
    %5827 = vmatmul.f32.gmra.mxu0 %v4763
    %v5828 = vpop.f32.mrf.mxu0
    %v5829 = vadd.f32 %v5716, %v5828
    %5830 = vmatmul.f32.gmra.mxu0 %v4765
    %v5831 = vpop.f32.mrf.mxu0
    %v5832 = vadd.f32 %v5719, %v5831
    %5833 = vmatmul.f32.gmra.mxu0 %v4768
    %v5834 = vpop.f32.mrf.mxu0
    %v5835 = vadd.f32 %v5722, %v5834
    %5836 = vmatmul.f32.gmra.mxu0 %v4770
    %v5837 = vpop.f32.mrf.mxu0
    %v5838 = vadd.f32 %v5725, %v5837
    %5839 = vmatmul.f32.gmra.mxu0 %v4773
    %v5840 = vpop.f32.mrf.mxu0
    %v5841 = vadd.f32 %v5728, %v5840
    %5842 = vmatmul.f32.gmra.mxu0 %v4775
    %v5843 = vpop.f32.mrf.mxu0
    %v5844 = vadd.f32 %v5731, %v5843
    %5845 = vmatmul.f32.gmra.mxu0 %v4778
    %v5846 = vpop.f32.mrf.mxu0
    %v5847 = vadd.f32 %v5734, %v5846
    %5848 = vmatmul.f32.gmra.mxu0 %v4780
    %v5849 = vpop.f32.mrf.mxu0
    %v5850 = vadd.f32 %v5737, %v5849
    %5851 = vmatmul.f32.gmra.mxu0 %v4783
    %v5852 = vpop.f32.mrf.mxu0
    %v5853 = vadd.f32 %v5740, %v5852
    %5854 = vmatmul.f32.gmra.mxu0 %v4785
    %v5855 = vpop.f32.mrf.mxu0
    %v5856 = vadd.f32 %v5743, %v5855
    %5857 = vmatmul.f32.gmra.mxu0 %v4788
    %v5858 = vpop.f32.mrf.mxu0
    %v5859 = vadd.f32 %v5746, %v5858
    %5860 = vmatmul.f32.gmra.mxu0 %v4790
    %v5861 = vpop.f32.mrf.mxu0
    %v5862 = vadd.f32 %v5749, %v5861
    %5863 = vmatmul.f32.gmra.mxu0 %v4793
    %v5864 = vpop.f32.mrf.mxu0
    %v5865 = vadd.f32 %v5752, %v5864
    %5866 = vmatmul.f32.gmra.mxu0 %v4795
    %v5867 = vpop.f32.mrf.mxu0
    %v5868 = vadd.f32 %v5755, %v5867
    %5869 = vmatmul.f32.gmra.mxu0 %v4840
    %v5870 = vpop.f32.mrf.mxu0
    %v5871 = vadd.f32 %v5758, %v5870
    %5872 = vmatmul.f32.gmra.mxu0 %v4842
    %v5873 = vpop.f32.mrf.mxu0
    %v5874 = vadd.f32 %v5761, %v5873
    %5875 = vmatmul.f32.gmra.mxu0 %v4857
    %v5876 = vpop.f32.mrf.mxu0
    %v5877 = vadd.f32 %v5764, %v5876
    %5878 = vmatmul.f32.gmra.mxu0 %v4859
    %v5879 = vpop.f32.mrf.mxu0
    %v5880 = vadd.f32 %v5767, %v5879
    %5881 = vdwg.mxu0
    %v5883 = vsel %vm657, %v197, 0
    %v5886 = vsel %vm657, %v198, 0
    %v5889 = vsel %vm657, %v199, 0
    %v5892 = vsel %vm657, %v200, 0
    %v5895 = vsel %vm657, %v201, 0
    %v5898 = vsel %vm657, %v202, 0
    %v5901 = vsel %vm657, %v203, 0
    %v5904 = vsel %vm657, %v204, 0
    %v5907 = vsel %vm657, %v205, 0
    %v5910 = vsel %vm657, %v206, 0
    %v5913 = vsel %vm657, %v207, 0
    %v5916 = vsel %vm657, %v208, 0
    %v5919 = vsel %vm657, %v209, 0
    %v5922 = vsel %vm657, %v210, 0
    %v5925 = vsel %vm657, %v211, 0
    %v5928 = vsel %vm657, %v212, 0
    %v5931 = vsel %vm657, %v213, 0
    %v5934 = vsel %vm657, %v214, 0
    %v5937 = vsel %vm657, %v215, 0
    %v5940 = vsel %vm657, %v216, 0
    %v5943 = vsel %vm657, %v217, 0
    %v5946 = vsel %vm657, %v218, 0
    %v5949 = vsel %vm657, %v219, 0
    %v5952 = vsel %vm657, %v220, 0
    %v5955 = vsel %vm657, %v221, 0
    %v5958 = vsel %vm657, %v222, 0
    %v5961 = vsel %vm657, %v223, 0
    %v5964 = vsel %vm657, %v224, 0
    %v5967 = vsel %vm657, %v225, 0
    %v5970 = vsel %vm657, %v226, 0
    %v5973 = vsel %vm657, %v227, 0
    %v5976 = vsel %vm657, %v228, 0
    %5978 = vmatpush.msra.mxu0 0.0
    %5979 = vmatpush.msra.mxu0 0.0
    %5980 = vmatpush.msra.mxu0 0.0
    %5981 = vmatpush.msra.mxu0 0.0
    %5982 = vmatpush.msra.mxu0 0.0
    %5983 = vmatpush.msra.mxu0 0.0
    %5984 = vmatpush.msra.mxu0 0.0
    %5985 = vmatpush.msra.mxu0 0.0
    %5986 = vmatpush.msra.mxu0 %v49
    %5987 = vmatpush.msra.mxu0 %v48
    %5988 = vmatpush.msra.mxu0 %v47
    %5989 = vmatpush.msra.mxu0 %v46
    %5990 = vmatpush.msra.mxu0 %v45
    %5991 = vmatpush.msra.mxu0 %v44
    %5992 = vmatpush.msra.mxu0 %v43
    %5993 = vmatpush.msra.mxu0 %v42
    %5994 = vmatmul.f32.gmra.mxu0 %v5883
    %v5995 = vpop.f32.mrf.mxu0
    %v5996 = vadd.f32 0.0, %v5995
    %5997 = vmatmul.f32.gmra.mxu0 %v5886
    %v5998 = vpop.f32.mrf.mxu0
    %v5999 = vadd.f32 0.0, %v5998
    %6000 = vmatmul.f32.gmra.mxu0 %v5889
    %v6001 = vpop.f32.mrf.mxu0
    %v6002 = vadd.f32 0.0, %v6001
    %6003 = vmatmul.f32.gmra.mxu0 %v5892
    %v6004 = vpop.f32.mrf.mxu0
    %v6005 = vadd.f32 0.0, %v6004
    %6006 = vmatmul.f32.gmra.mxu0 %v5895
    %v6007 = vpop.f32.mrf.mxu0
    %v6008 = vadd.f32 0.0, %v6007
    %6009 = vmatmul.f32.gmra.mxu0 %v5898
    %v6010 = vpop.f32.mrf.mxu0
    %v6011 = vadd.f32 0.0, %v6010
    %6012 = vmatmul.f32.gmra.mxu0 %v5901
    %v6013 = vpop.f32.mrf.mxu0
    %v6014 = vadd.f32 0.0, %v6013
    %6015 = vmatmul.f32.gmra.mxu0 %v5904
    %v6016 = vpop.f32.mrf.mxu0
    %v6017 = vadd.f32 0.0, %v6016
    %6018 = vmatmul.f32.gmra.mxu0 %v5907
    %v6019 = vpop.f32.mrf.mxu0
    %v6020 = vadd.f32 0.0, %v6019
    %6021 = vmatmul.f32.gmra.mxu0 %v5910
    %v6022 = vpop.f32.mrf.mxu0
    %v6023 = vadd.f32 0.0, %v6022
    %6024 = vmatmul.f32.gmra.mxu0 %v5913
    %v6025 = vpop.f32.mrf.mxu0
    %v6026 = vadd.f32 0.0, %v6025
    %6027 = vmatmul.f32.gmra.mxu0 %v5916
    %v6028 = vpop.f32.mrf.mxu0
    %v6029 = vadd.f32 0.0, %v6028
    %6030 = vmatmul.f32.gmra.mxu0 %v5919
    %v6031 = vpop.f32.mrf.mxu0
    %v6032 = vadd.f32 0.0, %v6031
    %6033 = vmatmul.f32.gmra.mxu0 %v5922
    %v6034 = vpop.f32.mrf.mxu0
    %v6035 = vadd.f32 0.0, %v6034
    %6036 = vmatmul.f32.gmra.mxu0 %v5925
    %v6037 = vpop.f32.mrf.mxu0
    %v6038 = vadd.f32 0.0, %v6037
    %6039 = vmatmul.f32.gmra.mxu0 %v5928
    %v6040 = vpop.f32.mrf.mxu0
    %v6041 = vadd.f32 0.0, %v6040
    %6042 = vmatmul.f32.gmra.mxu0 %v5931
    %v6043 = vpop.f32.mrf.mxu0
    %v6044 = vadd.f32 0.0, %v6043
    %6045 = vmatmul.f32.gmra.mxu0 %v5934
    %v6046 = vpop.f32.mrf.mxu0
    %v6047 = vadd.f32 0.0, %v6046
    %6048 = vmatmul.f32.gmra.mxu0 %v5937
    %v6049 = vpop.f32.mrf.mxu0
    %v6050 = vadd.f32 0.0, %v6049
    %6051 = vmatmul.f32.gmra.mxu0 %v5940
    %v6052 = vpop.f32.mrf.mxu0
    %v6053 = vadd.f32 0.0, %v6052
    %6054 = vmatmul.f32.gmra.mxu0 %v5943
    %v6055 = vpop.f32.mrf.mxu0
    %v6056 = vadd.f32 0.0, %v6055
    %6057 = vmatmul.f32.gmra.mxu0 %v5946
    %v6058 = vpop.f32.mrf.mxu0
    %v6059 = vadd.f32 0.0, %v6058
    %6060 = vmatmul.f32.gmra.mxu0 %v5949
    %v6061 = vpop.f32.mrf.mxu0
    %v6062 = vadd.f32 0.0, %v6061
    %6063 = vmatmul.f32.gmra.mxu0 %v5952
    %v6064 = vpop.f32.mrf.mxu0
    %v6065 = vadd.f32 0.0, %v6064
    %6066 = vmatmul.f32.gmra.mxu0 %v5955
    %v6067 = vpop.f32.mrf.mxu0
    %v6068 = vadd.f32 0.0, %v6067
    %6069 = vmatmul.f32.gmra.mxu0 %v5958
    %v6070 = vpop.f32.mrf.mxu0
    %v6071 = vadd.f32 0.0, %v6070
    %6072 = vmatmul.f32.gmra.mxu0 %v5961
    %v6073 = vpop.f32.mrf.mxu0
    %v6074 = vadd.f32 0.0, %v6073
    %6075 = vmatmul.f32.gmra.mxu0 %v5964
    %v6076 = vpop.f32.mrf.mxu0
    %v6077 = vadd.f32 0.0, %v6076
    %6078 = vmatmul.f32.gmra.mxu0 %v5967
    %v6079 = vpop.f32.mrf.mxu0
    %v6080 = vadd.f32 0.0, %v6079
    %6081 = vmatmul.f32.gmra.mxu0 %v5970
    %v6082 = vpop.f32.mrf.mxu0
    %v6083 = vadd.f32 0.0, %v6082
    %6084 = vmatmul.f32.gmra.mxu0 %v5973
    %v6085 = vpop.f32.mrf.mxu0
    %v6086 = vadd.f32 0.0, %v6085
    %6087 = vmatmul.f32.gmra.mxu0 %v5976
    %v6088 = vpop.f32.mrf.mxu0
    %v6089 = vadd.f32 0.0, %v6088
    %6090 = vdwg.mxu0
    %v6091 = vadd.f32 %v5787, %v5996
    %v6092 = vadd.f32 %v5790, %v5999
    %v6093 = vadd.f32 %v5793, %v6002
    %v6094 = vadd.f32 %v5796, %v6005
    %v6095 = vadd.f32 %v5799, %v6008
    %v6096 = vadd.f32 %v5802, %v6011
    %v6097 = vadd.f32 %v5805, %v6014
    %v6098 = vadd.f32 %v5808, %v6017
    %v6099 = vadd.f32 %v5811, %v6020
    %v6100 = vadd.f32 %v5814, %v6023
    %v6101 = vadd.f32 %v5817, %v6026
    %v6102 = vadd.f32 %v5820, %v6029
    %v6103 = vadd.f32 %v5823, %v6032
    %v6104 = vadd.f32 %v5826, %v6035
    %v6105 = vadd.f32 %v5829, %v6038
    %v6106 = vadd.f32 %v5832, %v6041
    %v6107 = vadd.f32 %v5835, %v6044
    %v6108 = vadd.f32 %v5838, %v6047
    %v6109 = vadd.f32 %v5841, %v6050
    %v6110 = vadd.f32 %v5844, %v6053
    %v6111 = vadd.f32 %v5847, %v6056
    %v6112 = vadd.f32 %v5850, %v6059
    %v6113 = vadd.f32 %v5853, %v6062
    %v6114 = vadd.f32 %v5856, %v6065
    %v6115 = vadd.f32 %v5859, %v6068
    %v6116 = vadd.f32 %v5862, %v6071
    %v6117 = vadd.f32 %v5865, %v6074
    %v6118 = vadd.f32 %v5868, %v6077
    %v6119 = vadd.f32 %v5871, %v6080
    %v6120 = vadd.f32 %v5874, %v6083
    %v6121 = vadd.f32 %v5877, %v6086
    %v6122 = vadd.f32 %v5880, %v6089
    %6123 = vst [vmem:[#allocation2] sm:$0xff] %v6091
    %6124 = vst [vmem:[#allocation2 + $0x8] sm:$0xff] %v6092
    %6125 = vst [vmem:[#allocation2 + $0x10] sm:$0xff] %v6093
    %6126 = vst [vmem:[#allocation2 + $0x18] sm:$0xff] %v6094
    %6127 = vst [vmem:[#allocation2 + $0x20] sm:$0xff] %v6095
    %6128 = vst [vmem:[#allocation2 + $0x28] sm:$0xff] %v6096
    %6129 = vst [vmem:[#allocation2 + $0x30] sm:$0xff] %v6097
    %6130 = vst [vmem:[#allocation2 + $0x38] sm:$0xff] %v6098
    %6131 = vst [vmem:[#allocation2 + $0x40] sm:$0xff] %v6099
    %6132 = vst [vmem:[#allocation2 + $0x48] sm:$0xff] %v6100
    %6133 = vst [vmem:[#allocation2 + $0x50] sm:$0xff] %v6101
    %6134 = vst [vmem:[#allocation2 + $0x58] sm:$0xff] %v6102
    %6135 = vst [vmem:[#allocation2 + $0x60] sm:$0xff] %v6103
    %6136 = vst [vmem:[#allocation2 + $0x68] sm:$0xff] %v6104
    %6137 = vst [vmem:[#allocation2 + $0x70] sm:$0xff] %v6105
    %6138 = vst [vmem:[#allocation2 + $0x78] sm:$0xff] %v6106
    %6139 = vst [vmem:[#allocation2 + $0x80] sm:$0xff] %v6107
    %6140 = vst [vmem:[#allocation2 + $0x88] sm:$0xff] %v6108
    %6141 = vst [vmem:[#allocation2 + $0x90] sm:$0xff] %v6109
    %6142 = vst [vmem:[#allocation2 + $0x98] sm:$0xff] %v6110
    %6143 = vst [vmem:[#allocation2 + $0xa0] sm:$0xff] %v6111
    %6144 = vst [vmem:[#allocation2 + $0xa8] sm:$0xff] %v6112
    %6145 = vst [vmem:[#allocation2 + $0xb0] sm:$0xff] %v6113
    %6146 = vst [vmem:[#allocation2 + $0xb8] sm:$0xff] %v6114
    %6147 = vst [vmem:[#allocation2 + $0xc0] sm:$0xff] %v6115
    %6148 = vst [vmem:[#allocation2 + $0xc8] sm:$0xff] %v6116
    %6149 = vst [vmem:[#allocation2 + $0xd0] sm:$0xff] %v6117
    %6150 = vst [vmem:[#allocation2 + $0xd8] sm:$0xff] %v6118
    %6151 = vst [vmem:[#allocation2 + $0xe0] sm:$0xff] %v6119
    %6152 = vst [vmem:[#allocation2 + $0xe8] sm:$0xff] %v6120
    %6153 = vst [vmem:[#allocation2 + $0xf0] sm:$0xff] %v6121
    %6154 = vst [vmem:[#allocation2 + $0xf8] sm:$0xff] %v6122
    %v6155 = vmul.f32 %v3866, %v4097
    %v6156 = vmul.f32 %v3869, %v4097
    %v6157 = vmul.f32 %v3872, %v4097
    %v6158 = vmul.f32 %v3875, %v4097
    %v6159 = vmul.f32 %v3878, %v4097
    %v6160 = vmul.f32 %v3881, %v4097
    %v6161 = vmul.f32 %v3884, %v4097
    %v6162 = vmul.f32 %v3887, %v4097
    %v6163 = vmul.f32 %v3890, %v4097
    %v6164 = vmul.f32 %v3893, %v4097
    %v6165 = vmul.f32 %v3896, %v4097
    %v6166 = vmul.f32 %v3899, %v4097
    %v6167 = vmul.f32 %v3902, %v4097
    %v6168 = vmul.f32 %v3905, %v4097
    %v6169 = vmul.f32 %v3908, %v4097
    %v6170 = vmul.f32 %v3911, %v4097
    %v6171 = vmul.f32 %v3914, %v4097
    %v6172 = vmul.f32 %v3917, %v4097
    %v6173 = vmul.f32 %v3920, %v4097
    %v6174 = vmul.f32 %v3923, %v4097
    %v6175 = vmul.f32 %v3926, %v4097
    %v6176 = vmul.f32 %v3929, %v4097
    %v6177 = vmul.f32 %v3932, %v4097
    %v6178 = vmul.f32 %v3935, %v4097
    %v6179 = vmul.f32 %v3938, %v4097
    %v6180 = vmul.f32 %v3941, %v4097
    %v6181 = vmul.f32 %v3944, %v4097
    %v6182 = vmul.f32 %v3947, %v4097
    %v6183 = vmul.f32 %v3950, %v4097
    %v6184 = vmul.f32 %v3953, %v4097
    %v6185 = vmul.f32 %v3956, %v4097
    %v6186 = vmul.f32 %v3959, %v4097
    %v6187 = vadd.f32 %v6155, %v4132
    %v6188 = vadd.f32 %v6156, %v4132
    %v6189 = vadd.f32 %v6157, %v4132
    %v6190 = vadd.f32 %v6158, %v4132
    %v6191 = vadd.f32 %v6159, %v4132
    %v6192 = vadd.f32 %v6160, %v4132
    %v6193 = vadd.f32 %v6161, %v4132
    %v6194 = vadd.f32 %v6162, %v4132
    %v6195 = vadd.f32 %v6163, %v4132
    %v6196 = vadd.f32 %v6164, %v4132
    %v6197 = vadd.f32 %v6165, %v4132
    %v6198 = vadd.f32 %v6166, %v4132
    %v6199 = vadd.f32 %v6167, %v4132
    %v6200 = vadd.f32 %v6168, %v4132
    %v6201 = vadd.f32 %v6169, %v4132
    %v6202 = vadd.f32 %v6170, %v4132
    %v6203 = vadd.f32 %v6171, %v4132
    %v6204 = vadd.f32 %v6172, %v4132
    %v6205 = vadd.f32 %v6173, %v4132
    %v6206 = vadd.f32 %v6174, %v4132
    %v6207 = vadd.f32 %v6175, %v4132
    %v6208 = vadd.f32 %v6176, %v4132
    %v6209 = vadd.f32 %v6177, %v4132
    %v6210 = vadd.f32 %v6178, %v4132
    %v6211 = vadd.f32 %v6179, %v4132
    %v6212 = vadd.f32 %v6180, %v4132
    %v6213 = vadd.f32 %v6181, %v4132
    %v6214 = vadd.f32 %v6182, %v4132
    %v6215 = vadd.f32 %v6183, %v4132
    %v6216 = vadd.f32 %v6184, %v4132
    %v6217 = vadd.f32 %v6185, %v4132
    %v6218 = vadd.f32 %v6186, %v4132
    %v6219 = vmax.f32 %v6187, 0.0
    %v6220 = vmax.f32 %v6188, 0.0
    %v6221 = vmax.f32 %v6189, 0.0
    %v6222 = vmax.f32 %v6190, 0.0
    %v6223 = vmax.f32 %v6191, 0.0
    %v6224 = vmax.f32 %v6192, 0.0
    %v6225 = vmax.f32 %v6193, 0.0
    %v6226 = vmax.f32 %v6194, 0.0
    %v6227 = vmax.f32 %v6195, 0.0
    %v6228 = vmax.f32 %v6196, 0.0
    %v6229 = vmax.f32 %v6197, 0.0
    %v6230 = vmax.f32 %v6198, 0.0
    %v6231 = vmax.f32 %v6199, 0.0
    %v6232 = vmax.f32 %v6200, 0.0
    %v6233 = vmax.f32 %v6201, 0.0
    %v6234 = vmax.f32 %v6202, 0.0
    %v6235 = vmax.f32 %v6203, 0.0
    %v6236 = vmax.f32 %v6204, 0.0
    %v6237 = vmax.f32 %v6205, 0.0
    %v6238 = vmax.f32 %v6206, 0.0
    %v6239 = vmax.f32 %v6207, 0.0
    %v6240 = vmax.f32 %v6208, 0.0
    %v6241 = vmax.f32 %v6209, 0.0
    %v6242 = vmax.f32 %v6210, 0.0
    %v6243 = vmax.f32 %v6211, 0.0
    %v6244 = vmax.f32 %v6212, 0.0
    %v6245 = vmax.f32 %v6213, 0.0
    %v6246 = vmax.f32 %v6214, 0.0
    %v6247 = vmax.f32 %v6215, 0.0
    %v6248 = vmax.f32 %v6216, 0.0
    %v6249 = vmax.f32 %v6217, 0.0
    %v6250 = vmax.f32 %v6218, 0.0
    %6251 = vmatpush.msra.mxu0 %v6234
    %6252 = vmatpush.msra.mxu0 %v6233
    %6253 = vmatpush.msra.mxu0 %v6232
    %6254 = vmatpush.msra.mxu0 %v6231
    %6255 = vmatpush.msra.mxu0 %v6230
    %6256 = vmatpush.msra.mxu0 %v6229
    %6257 = vmatpush.msra.mxu0 %v6228
    %6258 = vmatpush.msra.mxu0 %v6227
    %6259 = vmatpush.msra.mxu0 %v6226
    %6260 = vmatpush.msra.mxu0 %v6225
    %6261 = vmatpush.msra.mxu0 %v6224
    %6262 = vmatpush.msra.mxu0 %v6223
    %6263 = vmatpush.msra.mxu0 %v6222
    %6264 = vmatpush.msra.mxu0 %v6221
    %6265 = vmatpush.msra.mxu0 %v6220
    %6266 = vmatpush.msra.mxu0 %v6219
    %6267 = vmatmul.f32.gmra.mxu0 %v229
    %v6268 = vpop.f32.mrf.mxu0
    %v6269 = vadd.f32 0.0, %v6268
    %6270 = vmatmul.f32.gmra.mxu0 %v231
    %v6271 = vpop.f32.mrf.mxu0
    %v6272 = vadd.f32 0.0, %v6271
    %6273 = vmatmul.f32.gmra.mxu0 %v233
    %v6274 = vpop.f32.mrf.mxu0
    %v6275 = vadd.f32 0.0, %v6274
    %6276 = vmatmul.f32.gmra.mxu0 %v235
    %v6277 = vpop.f32.mrf.mxu0
    %v6278 = vadd.f32 0.0, %v6277
    %6279 = vmatmul.f32.gmra.mxu0 %v237
    %v6280 = vpop.f32.mrf.mxu0
    %v6281 = vadd.f32 0.0, %v6280
    %6282 = vmatmul.f32.gmra.mxu0 %v239
    %v6283 = vpop.f32.mrf.mxu0
    %v6284 = vadd.f32 0.0, %v6283
    %6285 = vmatmul.f32.gmra.mxu0 %v241
    %v6286 = vpop.f32.mrf.mxu0
    %v6287 = vadd.f32 0.0, %v6286
    %6288 = vmatmul.f32.gmra.mxu0 %v243
    %v6289 = vpop.f32.mrf.mxu0
    %v6290 = vadd.f32 0.0, %v6289
    %6291 = vmatmul.f32.gmra.mxu0 %v245
    %v6292 = vpop.f32.mrf.mxu0
    %v6293 = vadd.f32 0.0, %v6292
    %6294 = vmatmul.f32.gmra.mxu0 %v247
    %v6295 = vpop.f32.mrf.mxu0
    %v6296 = vadd.f32 0.0, %v6295
    %6297 = vmatmul.f32.gmra.mxu0 %v249
    %v6298 = vpop.f32.mrf.mxu0
    %v6299 = vadd.f32 0.0, %v6298
    %6300 = vmatmul.f32.gmra.mxu0 %v251
    %v6301 = vpop.f32.mrf.mxu0
    %v6302 = vadd.f32 0.0, %v6301
    %6303 = vmatmul.f32.gmra.mxu0 %v253
    %v6304 = vpop.f32.mrf.mxu0
    %v6305 = vadd.f32 0.0, %v6304
    %6306 = vmatmul.f32.gmra.mxu0 %v255
    %v6307 = vpop.f32.mrf.mxu0
    %v6308 = vadd.f32 0.0, %v6307
    %6309 = vmatmul.f32.gmra.mxu0 %v257
    %v6310 = vpop.f32.mrf.mxu0
    %v6311 = vadd.f32 0.0, %v6310
    %6312 = vmatmul.f32.gmra.mxu0 %v259
    %v6313 = vpop.f32.mrf.mxu0
    %v6314 = vadd.f32 0.0, %v6313
    %6315 = vmatmul.f32.gmra.mxu0 %v261
    %v6316 = vpop.f32.mrf.mxu0
    %v6317 = vadd.f32 0.0, %v6316
    %6318 = vmatmul.f32.gmra.mxu0 %v263
    %v6319 = vpop.f32.mrf.mxu0
    %v6320 = vadd.f32 0.0, %v6319
    %6321 = vmatmul.f32.gmra.mxu0 %v265
    %v6322 = vpop.f32.mrf.mxu0
    %v6323 = vadd.f32 0.0, %v6322
    %6324 = vmatmul.f32.gmra.mxu0 %v267
    %v6325 = vpop.f32.mrf.mxu0
    %v6326 = vadd.f32 0.0, %v6325
    %6327 = vmatmul.f32.gmra.mxu0 %v269
    %v6328 = vpop.f32.mrf.mxu0
    %v6329 = vadd.f32 0.0, %v6328
    %6330 = vmatmul.f32.gmra.mxu0 %v271
    %v6331 = vpop.f32.mrf.mxu0
    %v6332 = vadd.f32 0.0, %v6331
    %6333 = vmatmul.f32.gmra.mxu0 %v273
    %v6334 = vpop.f32.mrf.mxu0
    %v6335 = vadd.f32 0.0, %v6334
    %6336 = vmatmul.f32.gmra.mxu0 %v275
    %v6337 = vpop.f32.mrf.mxu0
    %v6338 = vadd.f32 0.0, %v6337
    %6339 = vmatmul.f32.gmra.mxu0 %v277
    %v6340 = vpop.f32.mrf.mxu0
    %v6341 = vadd.f32 0.0, %v6340
    %6342 = vmatmul.f32.gmra.mxu0 %v279
    %v6343 = vpop.f32.mrf.mxu0
    %v6344 = vadd.f32 0.0, %v6343
    %6345 = vmatmul.f32.gmra.mxu0 %v281
    %v6346 = vpop.f32.mrf.mxu0
    %v6347 = vadd.f32 0.0, %v6346
    %6348 = vmatmul.f32.gmra.mxu0 %v283
    %v6349 = vpop.f32.mrf.mxu0
    %v6350 = vadd.f32 0.0, %v6349
    %6351 = vmatmul.f32.gmra.mxu0 %v285
    %v6352 = vpop.f32.mrf.mxu0
    %v6353 = vadd.f32 0.0, %v6352
    %6354 = vmatmul.f32.gmra.mxu0 %v287
    %v6355 = vpop.f32.mrf.mxu0
    %v6356 = vadd.f32 0.0, %v6355
    %6357 = vmatmul.f32.gmra.mxu0 %v289
    %v6358 = vpop.f32.mrf.mxu0
    %v6359 = vadd.f32 0.0, %v6358
    %6360 = vmatmul.f32.gmra.mxu0 %v291
    %v6361 = vpop.f32.mrf.mxu0
    %v6362 = vadd.f32 0.0, %v6361
    %6363 = vmatmul.f32.gmra.mxu0 %v293
    %v6364 = vpop.f32.mrf.mxu0
    %v6365 = vadd.f32 0.0, %v6364
    %6366 = vmatmul.f32.gmra.mxu0 %v295
    %v6367 = vpop.f32.mrf.mxu0
    %v6368 = vadd.f32 0.0, %v6367
    %6369 = vmatmul.f32.gmra.mxu0 %v297
    %v6370 = vpop.f32.mrf.mxu0
    %v6371 = vadd.f32 0.0, %v6370
    %6372 = vmatmul.f32.gmra.mxu0 %v299
    %v6373 = vpop.f32.mrf.mxu0
    %v6374 = vadd.f32 0.0, %v6373
    %6375 = vmatmul.f32.gmra.mxu0 %v301
    %v6376 = vpop.f32.mrf.mxu0
    %v6377 = vadd.f32 0.0, %v6376
    %6378 = vmatmul.f32.gmra.mxu0 %v303
    %v6379 = vpop.f32.mrf.mxu0
    %v6380 = vadd.f32 0.0, %v6379
    %6381 = vmatmul.f32.gmra.mxu0 %v305
    %v6382 = vpop.f32.mrf.mxu0
    %v6383 = vadd.f32 0.0, %v6382
    %6384 = vmatmul.f32.gmra.mxu0 %v307
    %v6385 = vpop.f32.mrf.mxu0
    %v6386 = vadd.f32 0.0, %v6385
    %6387 = vmatmul.f32.gmra.mxu0 %v309
    %v6388 = vpop.f32.mrf.mxu0
    %v6389 = vadd.f32 0.0, %v6388
    %6390 = vmatmul.f32.gmra.mxu0 %v311
    %v6391 = vpop.f32.mrf.mxu0
    %v6392 = vadd.f32 0.0, %v6391
    %6393 = vmatmul.f32.gmra.mxu0 %v313
    %v6394 = vpop.f32.mrf.mxu0
    %v6395 = vadd.f32 0.0, %v6394
    %6396 = vmatmul.f32.gmra.mxu0 %v315
    %v6397 = vpop.f32.mrf.mxu0
    %v6398 = vadd.f32 0.0, %v6397
    %6399 = vmatmul.f32.gmra.mxu0 %v317
    %v6400 = vpop.f32.mrf.mxu0
    %v6401 = vadd.f32 0.0, %v6400
    %6402 = vmatmul.f32.gmra.mxu0 %v319
    %v6403 = vpop.f32.mrf.mxu0
    %v6404 = vadd.f32 0.0, %v6403
    %6405 = vmatmul.f32.gmra.mxu0 %v321
    %v6406 = vpop.f32.mrf.mxu0
    %v6407 = vadd.f32 0.0, %v6406
    %6408 = vmatmul.f32.gmra.mxu0 %v323
    %v6409 = vpop.f32.mrf.mxu0
    %v6410 = vadd.f32 0.0, %v6409
    %6411 = vmatmul.f32.gmra.mxu0 %v325
    %v6412 = vpop.f32.mrf.mxu0
    %v6413 = vadd.f32 0.0, %v6412
    %6414 = vmatmul.f32.gmra.mxu0 %v327
    %v6415 = vpop.f32.mrf.mxu0
    %v6416 = vadd.f32 0.0, %v6415
    %6417 = vmatmul.f32.gmra.mxu0 %v329
    %v6418 = vpop.f32.mrf.mxu0
    %v6419 = vadd.f32 0.0, %v6418
    %6420 = vmatmul.f32.gmra.mxu0 %v331
    %v6421 = vpop.f32.mrf.mxu0
    %v6422 = vadd.f32 0.0, %v6421
    %6423 = vmatmul.f32.gmra.mxu0 %v333
    %v6424 = vpop.f32.mrf.mxu0
    %v6425 = vadd.f32 0.0, %v6424
    %6426 = vmatmul.f32.gmra.mxu0 %v335
    %v6427 = vpop.f32.mrf.mxu0
    %v6428 = vadd.f32 0.0, %v6427
    %6429 = vdwg.mxu0
    %6430 = vmatpush.msra.mxu0 %v6250
    %6431 = vmatpush.msra.mxu0 %v6249
    %6432 = vmatpush.msra.mxu0 %v6248
    %6433 = vmatpush.msra.mxu0 %v6247
    %6434 = vmatpush.msra.mxu0 %v6246
    %6435 = vmatpush.msra.mxu0 %v6245
    %6436 = vmatpush.msra.mxu0 %v6244
    %6437 = vmatpush.msra.mxu0 %v6243
    %6438 = vmatpush.msra.mxu0 %v6242
    %6439 = vmatpush.msra.mxu0 %v6241
    %6440 = vmatpush.msra.mxu0 %v6240
    %6441 = vmatpush.msra.mxu0 %v6239
    %6442 = vmatpush.msra.mxu0 %v6238
    %6443 = vmatpush.msra.mxu0 %v6237
    %6444 = vmatpush.msra.mxu0 %v6236
    %6445 = vmatpush.msra.mxu0 %v6235
    %6446 = vmatmul.f32.gmra.mxu0 %v230
    %v6447 = vpop.f32.mrf.mxu0
    %v6448 = vadd.f32 %v6269, %v6447
    %6449 = vmatmul.f32.gmra.mxu0 %v232
    %v6450 = vpop.f32.mrf.mxu0
    %v6451 = vadd.f32 %v6272, %v6450
    %6452 = vmatmul.f32.gmra.mxu0 %v234
    %v6453 = vpop.f32.mrf.mxu0
    %v6454 = vadd.f32 %v6275, %v6453
    %6455 = vmatmul.f32.gmra.mxu0 %v236
    %v6456 = vpop.f32.mrf.mxu0
    %v6457 = vadd.f32 %v6278, %v6456
    %6458 = vmatmul.f32.gmra.mxu0 %v238
    %v6459 = vpop.f32.mrf.mxu0
    %v6460 = vadd.f32 %v6281, %v6459
    %6461 = vmatmul.f32.gmra.mxu0 %v240
    %v6462 = vpop.f32.mrf.mxu0
    %v6463 = vadd.f32 %v6284, %v6462
    %6464 = vmatmul.f32.gmra.mxu0 %v242
    %v6465 = vpop.f32.mrf.mxu0
    %v6466 = vadd.f32 %v6287, %v6465
    %6467 = vmatmul.f32.gmra.mxu0 %v244
    %v6468 = vpop.f32.mrf.mxu0
    %v6469 = vadd.f32 %v6290, %v6468
    %6470 = vmatmul.f32.gmra.mxu0 %v246
    %v6471 = vpop.f32.mrf.mxu0
    %v6472 = vadd.f32 %v6293, %v6471
    %6473 = vmatmul.f32.gmra.mxu0 %v248
    %v6474 = vpop.f32.mrf.mxu0
    %v6475 = vadd.f32 %v6296, %v6474
    %6476 = vmatmul.f32.gmra.mxu0 %v250
    %v6477 = vpop.f32.mrf.mxu0
    %v6478 = vadd.f32 %v6299, %v6477
    %6479 = vmatmul.f32.gmra.mxu0 %v252
    %v6480 = vpop.f32.mrf.mxu0
    %v6481 = vadd.f32 %v6302, %v6480
    %6482 = vmatmul.f32.gmra.mxu0 %v254
    %v6483 = vpop.f32.mrf.mxu0
    %v6484 = vadd.f32 %v6305, %v6483
    %6485 = vmatmul.f32.gmra.mxu0 %v256
    %v6486 = vpop.f32.mrf.mxu0
    %v6487 = vadd.f32 %v6308, %v6486
    %6488 = vmatmul.f32.gmra.mxu0 %v258
    %v6489 = vpop.f32.mrf.mxu0
    %v6490 = vadd.f32 %v6311, %v6489
    %6491 = vmatmul.f32.gmra.mxu0 %v260
    %v6492 = vpop.f32.mrf.mxu0
    %v6493 = vadd.f32 %v6314, %v6492
    %6494 = vmatmul.f32.gmra.mxu0 %v262
    %v6495 = vpop.f32.mrf.mxu0
    %v6496 = vadd.f32 %v6317, %v6495
    %6497 = vmatmul.f32.gmra.mxu0 %v264
    %v6498 = vpop.f32.mrf.mxu0
    %v6499 = vadd.f32 %v6320, %v6498
    %6500 = vmatmul.f32.gmra.mxu0 %v266
    %v6501 = vpop.f32.mrf.mxu0
    %v6502 = vadd.f32 %v6323, %v6501
    %6503 = vmatmul.f32.gmra.mxu0 %v268
    %v6504 = vpop.f32.mrf.mxu0
    %v6505 = vadd.f32 %v6326, %v6504
    %6506 = vmatmul.f32.gmra.mxu0 %v270
    %v6507 = vpop.f32.mrf.mxu0
    %v6508 = vadd.f32 %v6329, %v6507
    %6509 = vmatmul.f32.gmra.mxu0 %v272
    %v6510 = vpop.f32.mrf.mxu0
    %v6511 = vadd.f32 %v6332, %v6510
    %6512 = vmatmul.f32.gmra.mxu0 %v274
    %v6513 = vpop.f32.mrf.mxu0
    %v6514 = vadd.f32 %v6335, %v6513
    %6515 = vmatmul.f32.gmra.mxu0 %v276
    %v6516 = vpop.f32.mrf.mxu0
    %v6517 = vadd.f32 %v6338, %v6516
    %6518 = vmatmul.f32.gmra.mxu0 %v278
    %v6519 = vpop.f32.mrf.mxu0
    %v6520 = vadd.f32 %v6341, %v6519
    %6521 = vmatmul.f32.gmra.mxu0 %v280
    %v6522 = vpop.f32.mrf.mxu0
    %v6523 = vadd.f32 %v6344, %v6522
    %6524 = vmatmul.f32.gmra.mxu0 %v282
    %v6525 = vpop.f32.mrf.mxu0
    %v6526 = vadd.f32 %v6347, %v6525
    %6527 = vmatmul.f32.gmra.mxu0 %v284
    %v6528 = vpop.f32.mrf.mxu0
    %v6529 = vadd.f32 %v6350, %v6528
    %6530 = vmatmul.f32.gmra.mxu0 %v286
    %v6531 = vpop.f32.mrf.mxu0
    %v6532 = vadd.f32 %v6353, %v6531
    %6533 = vmatmul.f32.gmra.mxu0 %v288
    %v6534 = vpop.f32.mrf.mxu0
    %v6535 = vadd.f32 %v6356, %v6534
    %6536 = vmatmul.f32.gmra.mxu0 %v290
    %v6537 = vpop.f32.mrf.mxu0
    %v6538 = vadd.f32 %v6359, %v6537
    %6539 = vmatmul.f32.gmra.mxu0 %v292
    %v6540 = vpop.f32.mrf.mxu0
    %v6541 = vadd.f32 %v6362, %v6540
    %6542 = vmatmul.f32.gmra.mxu0 %v294
    %v6543 = vpop.f32.mrf.mxu0
    %v6544 = vadd.f32 %v6365, %v6543
    %6545 = vmatmul.f32.gmra.mxu0 %v296
    %v6546 = vpop.f32.mrf.mxu0
    %v6547 = vadd.f32 %v6368, %v6546
    %6548 = vmatmul.f32.gmra.mxu0 %v298
    %v6549 = vpop.f32.mrf.mxu0
    %v6550 = vadd.f32 %v6371, %v6549
    %6551 = vmatmul.f32.gmra.mxu0 %v300
    %v6552 = vpop.f32.mrf.mxu0
    %v6553 = vadd.f32 %v6374, %v6552
    %6554 = vmatmul.f32.gmra.mxu0 %v302
    %v6555 = vpop.f32.mrf.mxu0
    %v6556 = vadd.f32 %v6377, %v6555
    %6557 = vmatmul.f32.gmra.mxu0 %v304
    %v6558 = vpop.f32.mrf.mxu0
    %v6559 = vadd.f32 %v6380, %v6558
    %6560 = vmatmul.f32.gmra.mxu0 %v306
    %v6561 = vpop.f32.mrf.mxu0
    %v6562 = vadd.f32 %v6383, %v6561
    %6563 = vmatmul.f32.gmra.mxu0 %v308
    %v6564 = vpop.f32.mrf.mxu0
    %v6565 = vadd.f32 %v6386, %v6564
    %6566 = vmatmul.f32.gmra.mxu0 %v310
    %v6567 = vpop.f32.mrf.mxu0
    %v6568 = vadd.f32 %v6389, %v6567
    %6569 = vmatmul.f32.gmra.mxu0 %v312
    %v6570 = vpop.f32.mrf.mxu0
    %v6571 = vadd.f32 %v6392, %v6570
    %6572 = vmatmul.f32.gmra.mxu0 %v314
    %v6573 = vpop.f32.mrf.mxu0
    %v6574 = vadd.f32 %v6395, %v6573
    %6575 = vmatmul.f32.gmra.mxu0 %v316
    %v6576 = vpop.f32.mrf.mxu0
    %v6577 = vadd.f32 %v6398, %v6576
    %6578 = vmatmul.f32.gmra.mxu0 %v318
    %v6579 = vpop.f32.mrf.mxu0
    %v6580 = vadd.f32 %v6401, %v6579
    %6581 = vmatmul.f32.gmra.mxu0 %v320
    %v6582 = vpop.f32.mrf.mxu0
    %v6583 = vadd.f32 %v6404, %v6582
    %6584 = vmatmul.f32.gmra.mxu0 %v322
    %v6585 = vpop.f32.mrf.mxu0
    %v6586 = vadd.f32 %v6407, %v6585
    %6587 = vmatmul.f32.gmra.mxu0 %v324
    %v6588 = vpop.f32.mrf.mxu0
    %v6589 = vadd.f32 %v6410, %v6588
    %6590 = vmatmul.f32.gmra.mxu0 %v326
    %v6591 = vpop.f32.mrf.mxu0
    %v6592 = vadd.f32 %v6413, %v6591
    %6593 = vmatmul.f32.gmra.mxu0 %v328
    %v6594 = vpop.f32.mrf.mxu0
    %v6595 = vadd.f32 %v6416, %v6594
    %6596 = vmatmul.f32.gmra.mxu0 %v330
    %v6597 = vpop.f32.mrf.mxu0
    %v6598 = vadd.f32 %v6419, %v6597
    %6599 = vmatmul.f32.gmra.mxu0 %v332
    %v6600 = vpop.f32.mrf.mxu0
    %v6601 = vadd.f32 %v6422, %v6600
    %6602 = vmatmul.f32.gmra.mxu0 %v334
    %v6603 = vpop.f32.mrf.mxu0
    %v6604 = vadd.f32 %v6425, %v6603
    %6605 = vmatmul.f32.gmra.mxu0 %v336
    %v6606 = vpop.f32.mrf.mxu0
    %v6607 = vadd.f32 %v6428, %v6606
    %6608 = vdwg.mxu0
    %v6657 = vrot.slane %v6448, 1
    %v6658 = vrot.slane %v6451, 1
    %v6659 = vsel %vm1047, %v6657, %v6658
    %v6660 = vrot.slane %v6454, 1
    %v6661 = vsel %vm1047, %v6658, %v6660
    %v6662 = vrot.slane %v6457, 1
    %v6663 = vrot.slane %v6460, 1
    %v6664 = vsel %vm1047, %v6662, %v6663
    %v6665 = vrot.slane %v6463, 1
    %v6666 = vsel %vm1047, %v6663, %v6665
    %v6667 = vrot.slane %v6466, 1
    %v6668 = vrot.slane %v6469, 1
    %v6669 = vsel %vm1047, %v6667, %v6668
    %v6670 = vrot.slane %v6472, 1
    %v6671 = vsel %vm1047, %v6668, %v6670
    %v6672 = vrot.slane %v6475, 1
    %v6673 = vrot.slane %v6478, 1
    %v6674 = vsel %vm1047, %v6672, %v6673
    %v6675 = vrot.slane %v6481, 1
    %v6676 = vsel %vm1047, %v6673, %v6675
    %v6677 = vrot.slane %v6484, 1
    %v6678 = vrot.slane %v6487, 1
    %v6679 = vsel %vm1047, %v6677, %v6678
    %v6680 = vrot.slane %v6490, 1
    %v6681 = vsel %vm1047, %v6678, %v6680
    %v6682 = vrot.slane %v6493, 1
    %v6683 = vrot.slane %v6496, 1
    %v6684 = vsel %vm1047, %v6682, %v6683
    %v6685 = vrot.slane %v6499, 1
    %v6686 = vsel %vm1047, %v6683, %v6685
    %v6687 = vrot.slane %v6502, 1
    %v6688 = vrot.slane %v6505, 1
    %v6689 = vsel %vm1047, %v6687, %v6688
    %v6690 = vrot.slane %v6508, 1
    %v6691 = vsel %vm1047, %v6688, %v6690
    %v6692 = vrot.slane %v6511, 1
    %v6693 = vrot.slane %v6514, 1
    %v6694 = vsel %vm1047, %v6692, %v6693
    %v6695 = vrot.slane %v6517, 1
    %v6696 = vsel %vm1047, %v6693, %v6695
    %v6697 = vrot.slane %v6520, 1
    %v6698 = vrot.slane %v6523, 1
    %v6699 = vsel %vm1047, %v6697, %v6698
    %v6700 = vrot.slane %v6526, 1
    %v6701 = vsel %vm1047, %v6698, %v6700
    %v6702 = vrot.slane %v6529, 1
    %v6703 = vrot.slane %v6532, 1
    %v6704 = vsel %vm1047, %v6702, %v6703
    %v6705 = vrot.slane %v6535, 1
    %v6706 = vsel %vm1047, %v6703, %v6705
    %v6707 = vrot.slane %v6538, 1
    %v6708 = vrot.slane %v6541, 1
    %v6709 = vsel %vm1047, %v6707, %v6708
    %v6710 = vrot.slane %v6544, 1
    %v6711 = vsel %vm1047, %v6708, %v6710
    %v6712 = vrot.slane %v6547, 1
    %v6713 = vrot.slane %v6550, 1
    %v6714 = vsel %vm1047, %v6712, %v6713
    %v6715 = vrot.slane %v6553, 1
    %v6716 = vsel %vm1047, %v6713, %v6715
    %v6717 = vrot.slane %v6556, 1
    %v6718 = vrot.slane %v6559, 1
    %v6719 = vsel %vm1047, %v6717, %v6718
    %v6720 = vrot.slane %v6562, 1
    %v6721 = vsel %vm1047, %v6718, %v6720
    %v6722 = vrot.slane %v6565, 1
    %v6723 = vrot.slane %v6568, 1
    %v6724 = vsel %vm1047, %v6722, %v6723
    %v6725 = vrot.slane %v6571, 1
    %v6726 = vsel %vm1047, %v6723, %v6725
    %v6727 = vrot.slane %v6574, 1
    %v6728 = vrot.slane %v6577, 1
    %v6729 = vsel %vm1047, %v6727, %v6728
    %v6730 = vrot.slane %v6580, 1
    %v6731 = vsel %vm1047, %v6728, %v6730
    %v6732 = vrot.slane %v6583, 1
    %v6733 = vrot.slane %v6586, 1
    %v6734 = vsel %vm1047, %v6732, %v6733
    %v6735 = vrot.slane %v6589, 1
    %v6736 = vsel %vm1047, %v6733, %v6735
    %v6769 = vrot.slane %v6448, 2
    %v6770 = vrot.slane %v6451, 2
    %v6771 = vsel %vm1160, %v6769, %v6770
    %v6772 = vrot.slane %v6454, 2
    %v6773 = vsel %vm1160, %v6770, %v6772
    %v6774 = vrot.slane %v6457, 2
    %v6775 = vrot.slane %v6460, 2
    %v6776 = vsel %vm1160, %v6774, %v6775
    %v6777 = vrot.slane %v6463, 2
    %v6778 = vsel %vm1160, %v6775, %v6777
    %v6779 = vrot.slane %v6466, 2
    %v6780 = vrot.slane %v6469, 2
    %v6781 = vsel %vm1160, %v6779, %v6780
    %v6782 = vrot.slane %v6472, 2
    %v6783 = vsel %vm1160, %v6780, %v6782
    %v6784 = vrot.slane %v6475, 2
    %v6785 = vrot.slane %v6478, 2
    %v6786 = vsel %vm1160, %v6784, %v6785
    %v6787 = vrot.slane %v6481, 2
    %v6788 = vsel %vm1160, %v6785, %v6787
    %v6789 = vrot.slane %v6484, 2
    %v6790 = vrot.slane %v6487, 2
    %v6791 = vsel %vm1160, %v6789, %v6790
    %v6792 = vrot.slane %v6490, 2
    %v6793 = vsel %vm1160, %v6790, %v6792
    %v6794 = vrot.slane %v6493, 2
    %v6795 = vrot.slane %v6496, 2
    %v6796 = vsel %vm1160, %v6794, %v6795
    %v6797 = vrot.slane %v6499, 2
    %v6798 = vsel %vm1160, %v6795, %v6797
    %v6799 = vrot.slane %v6502, 2
    %v6800 = vrot.slane %v6505, 2
    %v6801 = vsel %vm1160, %v6799, %v6800
    %v6802 = vrot.slane %v6508, 2
    %v6803 = vsel %vm1160, %v6800, %v6802
    %v6804 = vrot.slane %v6511, 2
    %v6805 = vrot.slane %v6514, 2
    %v6806 = vsel %vm1160, %v6804, %v6805
    %v6807 = vrot.slane %v6517, 2
    %v6808 = vsel %vm1160, %v6805, %v6807
    %v6809 = vrot.slane %v6520, 2
    %v6810 = vrot.slane %v6523, 2
    %v6811 = vsel %vm1160, %v6809, %v6810
    %v6812 = vrot.slane %v6526, 2
    %v6813 = vsel %vm1160, %v6810, %v6812
    %v6814 = vrot.slane %v6529, 2
    %v6815 = vrot.slane %v6532, 2
    %v6816 = vsel %vm1160, %v6814, %v6815
    %v6817 = vrot.slane %v6535, 2
    %v6818 = vsel %vm1160, %v6815, %v6817
    %v6819 = vrot.slane %v6538, 2
    %v6820 = vrot.slane %v6541, 2
    %v6821 = vsel %vm1160, %v6819, %v6820
    %v6822 = vrot.slane %v6544, 2
    %v6823 = vsel %vm1160, %v6820, %v6822
    %v6824 = vrot.slane %v6547, 2
    %v6825 = vrot.slane %v6550, 2
    %v6826 = vsel %vm1160, %v6824, %v6825
    %v6827 = vrot.slane %v6553, 2
    %v6828 = vsel %vm1160, %v6825, %v6827
    %v6829 = vrot.slane %v6556, 2
    %v6830 = vrot.slane %v6559, 2
    %v6831 = vsel %vm1160, %v6829, %v6830
    %v6832 = vrot.slane %v6562, 2
    %v6833 = vsel %vm1160, %v6830, %v6832
    %v6834 = vrot.slane %v6565, 2
    %v6835 = vrot.slane %v6568, 2
    %v6836 = vsel %vm1160, %v6834, %v6835
    %v6837 = vrot.slane %v6571, 2
    %v6838 = vsel %vm1160, %v6835, %v6837
    %v6839 = vrot.slane %v6574, 2
    %v6840 = vrot.slane %v6577, 2
    %v6841 = vsel %vm1160, %v6839, %v6840
    %v6842 = vrot.slane %v6580, 2
    %v6843 = vsel %vm1160, %v6840, %v6842
    %v6844 = vrot.slane %v6583, 2
    %v6845 = vrot.slane %v6586, 2
    %v6846 = vsel %vm1160, %v6844, %v6845
    %v6847 = vrot.slane %v6589, 2
    %v6848 = vsel %vm1160, %v6845, %v6847
    %v6884 = vrot.slane %v6592, 1
    %v6885 = vrot.slane %v6595, 1
    %v6886 = vsel %vm1047, %v6884, %v6885
    %v6887 = vrot.slane %v6598, 1
    %v6888 = vsel %vm1047, %v6885, %v6887
    %v6891 = vrot.slane %v6592, 2
    %v6892 = vrot.slane %v6595, 2
    %v6893 = vsel %vm1160, %v6891, %v6892
    %v6894 = vrot.slane %v6598, 2
    %v6895 = vsel %vm1160, %v6892, %v6894
    %v6901 = vrot.slane %v6601, 1
    %v6902 = vrot.slane %v6604, 1
    %v6903 = vsel %vm1047, %v6901, %v6902
    %v6904 = vrot.slane %v6607, 1
    %v6905 = vsel %vm1047, %v6902, %v6904
    %v6908 = vrot.slane %v6601, 2
    %v6909 = vrot.slane %v6604, 2
    %v6910 = vsel %vm1160, %v6908, %v6909
    %v6911 = vrot.slane %v6607, 2
    %v6912 = vsel %vm1160, %v6909, %v6911
    %6915 = vmatpush.msra.mxu0 %v496
    %6916 = vmatpush.msra.mxu0 %v495
    %6917 = vmatpush.msra.mxu0 %v494
    %6918 = vmatpush.msra.mxu0 %v493
    %6919 = vmatpush.msra.mxu0 %v492
    %6920 = vmatpush.msra.mxu0 %v491
    %6921 = vmatpush.msra.mxu0 %v490
    %6922 = vmatpush.msra.mxu0 %v489
    %6923 = vmatpush.msra.mxu0 %v488
    %6924 = vmatpush.msra.mxu0 %v487
    %6925 = vmatpush.msra.mxu0 %v486
    %6926 = vmatpush.msra.mxu0 %v485
    %6927 = vmatpush.msra.mxu0 %v484
    %6928 = vmatpush.msra.mxu0 %v483
    %6929 = vmatpush.msra.mxu0 %v482
    %6930 = vmatpush.msra.mxu0 %v481
    %6931 = vmatmul.f32.gmra.mxu0 %v6448
    %v6932 = vpop.f32.mrf.mxu0
    %v6933 = vadd.f32 %v4863, %v6932
    %6934 = vmatmul.f32.gmra.mxu0 %v6451
    %v6935 = vpop.f32.mrf.mxu0
    %v6936 = vadd.f32 %v4863, %v6935
    %6937 = vmatmul.f32.gmra.mxu0 %v6457
    %v6938 = vpop.f32.mrf.mxu0
    %v6939 = vadd.f32 %v4863, %v6938
    %6940 = vmatmul.f32.gmra.mxu0 %v6460
    %v6941 = vpop.f32.mrf.mxu0
    %v6942 = vadd.f32 %v4863, %v6941
    %6943 = vmatmul.f32.gmra.mxu0 %v6466
    %v6944 = vpop.f32.mrf.mxu0
    %v6945 = vadd.f32 %v4863, %v6944
    %6946 = vmatmul.f32.gmra.mxu0 %v6469
    %v6947 = vpop.f32.mrf.mxu0
    %v6948 = vadd.f32 %v4863, %v6947
    %6949 = vmatmul.f32.gmra.mxu0 %v6475
    %v6950 = vpop.f32.mrf.mxu0
    %v6951 = vadd.f32 %v4863, %v6950
    %6952 = vmatmul.f32.gmra.mxu0 %v6478
    %v6953 = vpop.f32.mrf.mxu0
    %v6954 = vadd.f32 %v4863, %v6953
    %6955 = vmatmul.f32.gmra.mxu0 %v6484
    %v6956 = vpop.f32.mrf.mxu0
    %v6957 = vadd.f32 %v4863, %v6956
    %6958 = vmatmul.f32.gmra.mxu0 %v6487
    %v6959 = vpop.f32.mrf.mxu0
    %v6960 = vadd.f32 %v4863, %v6959
    %6961 = vmatmul.f32.gmra.mxu0 %v6493
    %v6962 = vpop.f32.mrf.mxu0
    %v6963 = vadd.f32 %v4863, %v6962
    %6964 = vmatmul.f32.gmra.mxu0 %v6496
    %v6965 = vpop.f32.mrf.mxu0
    %v6966 = vadd.f32 %v4863, %v6965
    %6967 = vmatmul.f32.gmra.mxu0 %v6502
    %v6968 = vpop.f32.mrf.mxu0
    %v6969 = vadd.f32 %v4863, %v6968
    %6970 = vmatmul.f32.gmra.mxu0 %v6505
    %v6971 = vpop.f32.mrf.mxu0
    %v6972 = vadd.f32 %v4863, %v6971
    %6973 = vmatmul.f32.gmra.mxu0 %v6511
    %v6974 = vpop.f32.mrf.mxu0
    %v6975 = vadd.f32 %v4863, %v6974
    %6976 = vmatmul.f32.gmra.mxu0 %v6514
    %v6977 = vpop.f32.mrf.mxu0
    %v6978 = vadd.f32 %v4863, %v6977
    %6979 = vmatmul.f32.gmra.mxu0 %v6520
    %v6980 = vpop.f32.mrf.mxu0
    %v6981 = vadd.f32 %v4863, %v6980
    %6982 = vmatmul.f32.gmra.mxu0 %v6523
    %v6983 = vpop.f32.mrf.mxu0
    %v6984 = vadd.f32 %v4863, %v6983
    %6985 = vmatmul.f32.gmra.mxu0 %v6529
    %v6986 = vpop.f32.mrf.mxu0
    %v6987 = vadd.f32 %v4863, %v6986
    %6988 = vmatmul.f32.gmra.mxu0 %v6532
    %v6989 = vpop.f32.mrf.mxu0
    %v6990 = vadd.f32 %v4863, %v6989
    %6991 = vmatmul.f32.gmra.mxu0 %v6538
    %v6992 = vpop.f32.mrf.mxu0
    %v6993 = vadd.f32 %v4863, %v6992
    %6994 = vmatmul.f32.gmra.mxu0 %v6541
    %v6995 = vpop.f32.mrf.mxu0
    %v6996 = vadd.f32 %v4863, %v6995
    %6997 = vmatmul.f32.gmra.mxu0 %v6547
    %v6998 = vpop.f32.mrf.mxu0
    %v6999 = vadd.f32 %v4863, %v6998
    %7000 = vmatmul.f32.gmra.mxu0 %v6550
    %v7001 = vpop.f32.mrf.mxu0
    %v7002 = vadd.f32 %v4863, %v7001
    %7003 = vmatmul.f32.gmra.mxu0 %v6556
    %v7004 = vpop.f32.mrf.mxu0
    %v7005 = vadd.f32 %v4863, %v7004
    %7006 = vmatmul.f32.gmra.mxu0 %v6559
    %v7007 = vpop.f32.mrf.mxu0
    %v7008 = vadd.f32 %v4863, %v7007
    %7009 = vmatmul.f32.gmra.mxu0 %v6565
    %v7010 = vpop.f32.mrf.mxu0
    %v7011 = vadd.f32 %v4863, %v7010
    %7012 = vmatmul.f32.gmra.mxu0 %v6568
    %v7013 = vpop.f32.mrf.mxu0
    %v7014 = vadd.f32 %v4863, %v7013
    %7015 = vmatmul.f32.gmra.mxu0 %v6574
    %v7016 = vpop.f32.mrf.mxu0
    %v7017 = vadd.f32 %v4863, %v7016
    %7018 = vmatmul.f32.gmra.mxu0 %v6577
    %v7019 = vpop.f32.mrf.mxu0
    %v7020 = vadd.f32 %v4863, %v7019
    %7021 = vmatmul.f32.gmra.mxu0 %v6583
    %v7022 = vpop.f32.mrf.mxu0
    %v7023 = vadd.f32 %v4863, %v7022
    %7024 = vmatmul.f32.gmra.mxu0 %v6586
    %v7025 = vpop.f32.mrf.mxu0
    %v7026 = vadd.f32 %v4863, %v7025
    %7027 = vdwg.mxu0
    %7028 = vmatpush.msra.mxu0 %v512
    %7029 = vmatpush.msra.mxu0 %v511
    %7030 = vmatpush.msra.mxu0 %v510
    %7031 = vmatpush.msra.mxu0 %v509
    %7032 = vmatpush.msra.mxu0 %v508
    %7033 = vmatpush.msra.mxu0 %v507
    %7034 = vmatpush.msra.mxu0 %v506
    %7035 = vmatpush.msra.mxu0 %v505
    %7036 = vmatpush.msra.mxu0 %v504
    %7037 = vmatpush.msra.mxu0 %v503
    %7038 = vmatpush.msra.mxu0 %v502
    %7039 = vmatpush.msra.mxu0 %v501
    %7040 = vmatpush.msra.mxu0 %v500
    %7041 = vmatpush.msra.mxu0 %v499
    %7042 = vmatpush.msra.mxu0 %v498
    %7043 = vmatpush.msra.mxu0 %v497
    %7044 = vmatmul.f32.gmra.mxu0 %v6659
    %v7045 = vpop.f32.mrf.mxu0
    %v7046 = vadd.f32 %v6933, %v7045
    %7047 = vmatmul.f32.gmra.mxu0 %v6661
    %v7048 = vpop.f32.mrf.mxu0
    %v7049 = vadd.f32 %v6936, %v7048
    %7050 = vmatmul.f32.gmra.mxu0 %v6664
    %v7051 = vpop.f32.mrf.mxu0
    %v7052 = vadd.f32 %v6939, %v7051
    %7053 = vmatmul.f32.gmra.mxu0 %v6666
    %v7054 = vpop.f32.mrf.mxu0
    %v7055 = vadd.f32 %v6942, %v7054
    %7056 = vmatmul.f32.gmra.mxu0 %v6669
    %v7057 = vpop.f32.mrf.mxu0
    %v7058 = vadd.f32 %v6945, %v7057
    %7059 = vmatmul.f32.gmra.mxu0 %v6671
    %v7060 = vpop.f32.mrf.mxu0
    %v7061 = vadd.f32 %v6948, %v7060
    %7062 = vmatmul.f32.gmra.mxu0 %v6674
    %v7063 = vpop.f32.mrf.mxu0
    %v7064 = vadd.f32 %v6951, %v7063
    %7065 = vmatmul.f32.gmra.mxu0 %v6676
    %v7066 = vpop.f32.mrf.mxu0
    %v7067 = vadd.f32 %v6954, %v7066
    %7068 = vmatmul.f32.gmra.mxu0 %v6679
    %v7069 = vpop.f32.mrf.mxu0
    %v7070 = vadd.f32 %v6957, %v7069
    %7071 = vmatmul.f32.gmra.mxu0 %v6681
    %v7072 = vpop.f32.mrf.mxu0
    %v7073 = vadd.f32 %v6960, %v7072
    %7074 = vmatmul.f32.gmra.mxu0 %v6684
    %v7075 = vpop.f32.mrf.mxu0
    %v7076 = vadd.f32 %v6963, %v7075
    %7077 = vmatmul.f32.gmra.mxu0 %v6686
    %v7078 = vpop.f32.mrf.mxu0
    %v7079 = vadd.f32 %v6966, %v7078
    %7080 = vmatmul.f32.gmra.mxu0 %v6689
    %v7081 = vpop.f32.mrf.mxu0
    %v7082 = vadd.f32 %v6969, %v7081
    %7083 = vmatmul.f32.gmra.mxu0 %v6691
    %v7084 = vpop.f32.mrf.mxu0
    %v7085 = vadd.f32 %v6972, %v7084
    %7086 = vmatmul.f32.gmra.mxu0 %v6694
    %v7087 = vpop.f32.mrf.mxu0
    %v7088 = vadd.f32 %v6975, %v7087
    %7089 = vmatmul.f32.gmra.mxu0 %v6696
    %v7090 = vpop.f32.mrf.mxu0
    %v7091 = vadd.f32 %v6978, %v7090
    %7092 = vmatmul.f32.gmra.mxu0 %v6699
    %v7093 = vpop.f32.mrf.mxu0
    %v7094 = vadd.f32 %v6981, %v7093
    %7095 = vmatmul.f32.gmra.mxu0 %v6701
    %v7096 = vpop.f32.mrf.mxu0
    %v7097 = vadd.f32 %v6984, %v7096
    %7098 = vmatmul.f32.gmra.mxu0 %v6704
    %v7099 = vpop.f32.mrf.mxu0
    %v7100 = vadd.f32 %v6987, %v7099
    %7101 = vmatmul.f32.gmra.mxu0 %v6706
    %v7102 = vpop.f32.mrf.mxu0
    %v7103 = vadd.f32 %v6990, %v7102
    %7104 = vmatmul.f32.gmra.mxu0 %v6709
    %v7105 = vpop.f32.mrf.mxu0
    %v7106 = vadd.f32 %v6993, %v7105
    %7107 = vmatmul.f32.gmra.mxu0 %v6711
    %v7108 = vpop.f32.mrf.mxu0
    %v7109 = vadd.f32 %v6996, %v7108
    %7110 = vmatmul.f32.gmra.mxu0 %v6714
    %v7111 = vpop.f32.mrf.mxu0
    %v7112 = vadd.f32 %v6999, %v7111
    %7113 = vmatmul.f32.gmra.mxu0 %v6716
    %v7114 = vpop.f32.mrf.mxu0
    %v7115 = vadd.f32 %v7002, %v7114
    %7116 = vmatmul.f32.gmra.mxu0 %v6719
    %v7117 = vpop.f32.mrf.mxu0
    %v7118 = vadd.f32 %v7005, %v7117
    %7119 = vmatmul.f32.gmra.mxu0 %v6721
    %v7120 = vpop.f32.mrf.mxu0
    %v7121 = vadd.f32 %v7008, %v7120
    %7122 = vmatmul.f32.gmra.mxu0 %v6724
    %v7123 = vpop.f32.mrf.mxu0
    %v7124 = vadd.f32 %v7011, %v7123
    %7125 = vmatmul.f32.gmra.mxu0 %v6726
    %v7126 = vpop.f32.mrf.mxu0
    %v7127 = vadd.f32 %v7014, %v7126
    %7128 = vmatmul.f32.gmra.mxu0 %v6729
    %v7129 = vpop.f32.mrf.mxu0
    %v7130 = vadd.f32 %v7017, %v7129
    %7131 = vmatmul.f32.gmra.mxu0 %v6731
    %v7132 = vpop.f32.mrf.mxu0
    %v7133 = vadd.f32 %v7020, %v7132
    %7134 = vmatmul.f32.gmra.mxu0 %v6734
    %v7135 = vpop.f32.mrf.mxu0
    %v7136 = vadd.f32 %v7023, %v7135
    %7137 = vmatmul.f32.gmra.mxu0 %v6736
    %v7138 = vpop.f32.mrf.mxu0
    %v7139 = vadd.f32 %v7026, %v7138
    %7140 = vdwg.mxu0
    %7141 = vmatpush.msra.mxu0 %v528
    %7142 = vmatpush.msra.mxu0 %v527
    %7143 = vmatpush.msra.mxu0 %v526
    %7144 = vmatpush.msra.mxu0 %v525
    %7145 = vmatpush.msra.mxu0 %v524
    %7146 = vmatpush.msra.mxu0 %v523
    %7147 = vmatpush.msra.mxu0 %v522
    %7148 = vmatpush.msra.mxu0 %v521
    %7149 = vmatpush.msra.mxu0 %v520
    %7150 = vmatpush.msra.mxu0 %v519
    %7151 = vmatpush.msra.mxu0 %v518
    %7152 = vmatpush.msra.mxu0 %v517
    %7153 = vmatpush.msra.mxu0 %v516
    %7154 = vmatpush.msra.mxu0 %v515
    %7155 = vmatpush.msra.mxu0 %v514
    %7156 = vmatpush.msra.mxu0 %v513
    %7157 = vmatmul.f32.gmra.mxu0 %v6771
    %v7158 = vpop.f32.mrf.mxu0
    %v7159 = vadd.f32 %v7046, %v7158
    %7160 = vmatmul.f32.gmra.mxu0 %v6773
    %v7161 = vpop.f32.mrf.mxu0
    %v7162 = vadd.f32 %v7049, %v7161
    %7163 = vmatmul.f32.gmra.mxu0 %v6776
    %v7164 = vpop.f32.mrf.mxu0
    %v7165 = vadd.f32 %v7052, %v7164
    %7166 = vmatmul.f32.gmra.mxu0 %v6778
    %v7167 = vpop.f32.mrf.mxu0
    %v7168 = vadd.f32 %v7055, %v7167
    %7169 = vmatmul.f32.gmra.mxu0 %v6781
    %v7170 = vpop.f32.mrf.mxu0
    %v7171 = vadd.f32 %v7058, %v7170
    %7172 = vmatmul.f32.gmra.mxu0 %v6783
    %v7173 = vpop.f32.mrf.mxu0
    %v7174 = vadd.f32 %v7061, %v7173
    %7175 = vmatmul.f32.gmra.mxu0 %v6786
    %v7176 = vpop.f32.mrf.mxu0
    %v7177 = vadd.f32 %v7064, %v7176
    %7178 = vmatmul.f32.gmra.mxu0 %v6788
    %v7179 = vpop.f32.mrf.mxu0
    %v7180 = vadd.f32 %v7067, %v7179
    %7181 = vmatmul.f32.gmra.mxu0 %v6791
    %v7182 = vpop.f32.mrf.mxu0
    %v7183 = vadd.f32 %v7070, %v7182
    %7184 = vmatmul.f32.gmra.mxu0 %v6793
    %v7185 = vpop.f32.mrf.mxu0
    %v7186 = vadd.f32 %v7073, %v7185
    %7187 = vmatmul.f32.gmra.mxu0 %v6796
    %v7188 = vpop.f32.mrf.mxu0
    %v7189 = vadd.f32 %v7076, %v7188
    %7190 = vmatmul.f32.gmra.mxu0 %v6798
    %v7191 = vpop.f32.mrf.mxu0
    %v7192 = vadd.f32 %v7079, %v7191
    %7193 = vmatmul.f32.gmra.mxu0 %v6801
    %v7194 = vpop.f32.mrf.mxu0
    %v7195 = vadd.f32 %v7082, %v7194
    %7196 = vmatmul.f32.gmra.mxu0 %v6803
    %v7197 = vpop.f32.mrf.mxu0
    %v7198 = vadd.f32 %v7085, %v7197
    %7199 = vmatmul.f32.gmra.mxu0 %v6806
    %v7200 = vpop.f32.mrf.mxu0
    %v7201 = vadd.f32 %v7088, %v7200
    %7202 = vmatmul.f32.gmra.mxu0 %v6808
    %v7203 = vpop.f32.mrf.mxu0
    %v7204 = vadd.f32 %v7091, %v7203
    %7205 = vmatmul.f32.gmra.mxu0 %v6811
    %v7206 = vpop.f32.mrf.mxu0
    %v7207 = vadd.f32 %v7094, %v7206
    %7208 = vmatmul.f32.gmra.mxu0 %v6813
    %v7209 = vpop.f32.mrf.mxu0
    %v7210 = vadd.f32 %v7097, %v7209
    %7211 = vmatmul.f32.gmra.mxu0 %v6816
    %v7212 = vpop.f32.mrf.mxu0
    %v7213 = vadd.f32 %v7100, %v7212
    %7214 = vmatmul.f32.gmra.mxu0 %v6818
    %v7215 = vpop.f32.mrf.mxu0
    %v7216 = vadd.f32 %v7103, %v7215
    %7217 = vmatmul.f32.gmra.mxu0 %v6821
    %v7218 = vpop.f32.mrf.mxu0
    %v7219 = vadd.f32 %v7106, %v7218
    %7220 = vmatmul.f32.gmra.mxu0 %v6823
    %v7221 = vpop.f32.mrf.mxu0
    %v7222 = vadd.f32 %v7109, %v7221
    %7223 = vmatmul.f32.gmra.mxu0 %v6826
    %v7224 = vpop.f32.mrf.mxu0
    %v7225 = vadd.f32 %v7112, %v7224
    %7226 = vmatmul.f32.gmra.mxu0 %v6828
    %v7227 = vpop.f32.mrf.mxu0
    %v7228 = vadd.f32 %v7115, %v7227
    %7229 = vmatmul.f32.gmra.mxu0 %v6831
    %v7230 = vpop.f32.mrf.mxu0
    %v7231 = vadd.f32 %v7118, %v7230
    %7232 = vmatmul.f32.gmra.mxu0 %v6833
    %v7233 = vpop.f32.mrf.mxu0
    %v7234 = vadd.f32 %v7121, %v7233
    %7235 = vmatmul.f32.gmra.mxu0 %v6836
    %v7236 = vpop.f32.mrf.mxu0
    %v7237 = vadd.f32 %v7124, %v7236
    %7238 = vmatmul.f32.gmra.mxu0 %v6838
    %v7239 = vpop.f32.mrf.mxu0
    %v7240 = vadd.f32 %v7127, %v7239
    %7241 = vmatmul.f32.gmra.mxu0 %v6841
    %v7242 = vpop.f32.mrf.mxu0
    %v7243 = vadd.f32 %v7130, %v7242
    %7244 = vmatmul.f32.gmra.mxu0 %v6843
    %v7245 = vpop.f32.mrf.mxu0
    %v7246 = vadd.f32 %v7133, %v7245
    %7247 = vmatmul.f32.gmra.mxu0 %v6846
    %v7248 = vpop.f32.mrf.mxu0
    %v7249 = vadd.f32 %v7136, %v7248
    %7250 = vmatmul.f32.gmra.mxu0 %v6848
    %v7251 = vpop.f32.mrf.mxu0
    %v7252 = vadd.f32 %v7139, %v7251
    %7253 = vdwg.mxu0
    %7254 = vmatpush.msra.mxu0 %v544
    %7255 = vmatpush.msra.mxu0 %v543
    %7256 = vmatpush.msra.mxu0 %v542
    %7257 = vmatpush.msra.mxu0 %v541
    %7258 = vmatpush.msra.mxu0 %v540
    %7259 = vmatpush.msra.mxu0 %v539
    %7260 = vmatpush.msra.mxu0 %v538
    %7261 = vmatpush.msra.mxu0 %v537
    %7262 = vmatpush.msra.mxu0 %v536
    %7263 = vmatpush.msra.mxu0 %v535
    %7264 = vmatpush.msra.mxu0 %v534
    %7265 = vmatpush.msra.mxu0 %v533
    %7266 = vmatpush.msra.mxu0 %v532
    %7267 = vmatpush.msra.mxu0 %v531
    %7268 = vmatpush.msra.mxu0 %v530
    %7269 = vmatpush.msra.mxu0 %v529
    %7270 = vmatmul.f32.gmra.mxu0 %v6457
    %v7271 = vpop.f32.mrf.mxu0
    %v7272 = vadd.f32 %v7159, %v7271
    %7273 = vmatmul.f32.gmra.mxu0 %v6460
    %v7274 = vpop.f32.mrf.mxu0
    %v7275 = vadd.f32 %v7162, %v7274
    %7276 = vmatmul.f32.gmra.mxu0 %v6466
    %v7277 = vpop.f32.mrf.mxu0
    %v7278 = vadd.f32 %v7165, %v7277
    %7279 = vmatmul.f32.gmra.mxu0 %v6469
    %v7280 = vpop.f32.mrf.mxu0
    %v7281 = vadd.f32 %v7168, %v7280
    %7282 = vmatmul.f32.gmra.mxu0 %v6475
    %v7283 = vpop.f32.mrf.mxu0
    %v7284 = vadd.f32 %v7171, %v7283
    %7285 = vmatmul.f32.gmra.mxu0 %v6478
    %v7286 = vpop.f32.mrf.mxu0
    %v7287 = vadd.f32 %v7174, %v7286
    %7288 = vmatmul.f32.gmra.mxu0 %v6484
    %v7289 = vpop.f32.mrf.mxu0
    %v7290 = vadd.f32 %v7177, %v7289
    %7291 = vmatmul.f32.gmra.mxu0 %v6487
    %v7292 = vpop.f32.mrf.mxu0
    %v7293 = vadd.f32 %v7180, %v7292
    %7294 = vmatmul.f32.gmra.mxu0 %v6493
    %v7295 = vpop.f32.mrf.mxu0
    %v7296 = vadd.f32 %v7183, %v7295
    %7297 = vmatmul.f32.gmra.mxu0 %v6496
    %v7298 = vpop.f32.mrf.mxu0
    %v7299 = vadd.f32 %v7186, %v7298
    %7300 = vmatmul.f32.gmra.mxu0 %v6502
    %v7301 = vpop.f32.mrf.mxu0
    %v7302 = vadd.f32 %v7189, %v7301
    %7303 = vmatmul.f32.gmra.mxu0 %v6505
    %v7304 = vpop.f32.mrf.mxu0
    %v7305 = vadd.f32 %v7192, %v7304
    %7306 = vmatmul.f32.gmra.mxu0 %v6511
    %v7307 = vpop.f32.mrf.mxu0
    %v7308 = vadd.f32 %v7195, %v7307
    %7309 = vmatmul.f32.gmra.mxu0 %v6514
    %v7310 = vpop.f32.mrf.mxu0
    %v7311 = vadd.f32 %v7198, %v7310
    %7312 = vmatmul.f32.gmra.mxu0 %v6520
    %v7313 = vpop.f32.mrf.mxu0
    %v7314 = vadd.f32 %v7201, %v7313
    %7315 = vmatmul.f32.gmra.mxu0 %v6523
    %v7316 = vpop.f32.mrf.mxu0
    %v7317 = vadd.f32 %v7204, %v7316
    %7318 = vmatmul.f32.gmra.mxu0 %v6529
    %v7319 = vpop.f32.mrf.mxu0
    %v7320 = vadd.f32 %v7207, %v7319
    %7321 = vmatmul.f32.gmra.mxu0 %v6532
    %v7322 = vpop.f32.mrf.mxu0
    %v7323 = vadd.f32 %v7210, %v7322
    %7324 = vmatmul.f32.gmra.mxu0 %v6538
    %v7325 = vpop.f32.mrf.mxu0
    %v7326 = vadd.f32 %v7213, %v7325
    %7327 = vmatmul.f32.gmra.mxu0 %v6541
    %v7328 = vpop.f32.mrf.mxu0
    %v7329 = vadd.f32 %v7216, %v7328
    %7330 = vmatmul.f32.gmra.mxu0 %v6547
    %v7331 = vpop.f32.mrf.mxu0
    %v7332 = vadd.f32 %v7219, %v7331
    %7333 = vmatmul.f32.gmra.mxu0 %v6550
    %v7334 = vpop.f32.mrf.mxu0
    %v7335 = vadd.f32 %v7222, %v7334
    %7336 = vmatmul.f32.gmra.mxu0 %v6556
    %v7337 = vpop.f32.mrf.mxu0
    %v7338 = vadd.f32 %v7225, %v7337
    %7339 = vmatmul.f32.gmra.mxu0 %v6559
    %v7340 = vpop.f32.mrf.mxu0
    %v7341 = vadd.f32 %v7228, %v7340
    %7342 = vmatmul.f32.gmra.mxu0 %v6565
    %v7343 = vpop.f32.mrf.mxu0
    %v7344 = vadd.f32 %v7231, %v7343
    %7345 = vmatmul.f32.gmra.mxu0 %v6568
    %v7346 = vpop.f32.mrf.mxu0
    %v7347 = vadd.f32 %v7234, %v7346
    %7348 = vmatmul.f32.gmra.mxu0 %v6574
    %v7349 = vpop.f32.mrf.mxu0
    %v7350 = vadd.f32 %v7237, %v7349
    %7351 = vmatmul.f32.gmra.mxu0 %v6577
    %v7352 = vpop.f32.mrf.mxu0
    %v7353 = vadd.f32 %v7240, %v7352
    %7354 = vmatmul.f32.gmra.mxu0 %v6583
    %v7355 = vpop.f32.mrf.mxu0
    %v7356 = vadd.f32 %v7243, %v7355
    %7357 = vmatmul.f32.gmra.mxu0 %v6586
    %v7358 = vpop.f32.mrf.mxu0
    %v7359 = vadd.f32 %v7246, %v7358
    %7360 = vmatmul.f32.gmra.mxu0 %v6592
    %v7361 = vpop.f32.mrf.mxu0
    %v7362 = vadd.f32 %v7249, %v7361
    %7363 = vmatmul.f32.gmra.mxu0 %v6595
    %v7364 = vpop.f32.mrf.mxu0
    %v7365 = vadd.f32 %v7252, %v7364
    %7366 = vdwg.mxu0
    %7367 = vmatpush.msra.mxu0 %v560
    %7368 = vmatpush.msra.mxu0 %v559
    %7369 = vmatpush.msra.mxu0 %v558
    %7370 = vmatpush.msra.mxu0 %v557
    %7371 = vmatpush.msra.mxu0 %v556
    %7372 = vmatpush.msra.mxu0 %v555
    %7373 = vmatpush.msra.mxu0 %v554
    %7374 = vmatpush.msra.mxu0 %v553
    %7375 = vmatpush.msra.mxu0 %v552
    %7376 = vmatpush.msra.mxu0 %v551
    %7377 = vmatpush.msra.mxu0 %v550
    %7378 = vmatpush.msra.mxu0 %v549
    %7379 = vmatpush.msra.mxu0 %v548
    %7380 = vmatpush.msra.mxu0 %v547
    %7381 = vmatpush.msra.mxu0 %v546
    %7382 = vmatpush.msra.mxu0 %v545
    %7383 = vmatmul.f32.gmra.mxu0 %v6664
    %v7384 = vpop.f32.mrf.mxu0
    %v7385 = vadd.f32 %v7272, %v7384
    %7386 = vmatmul.f32.gmra.mxu0 %v6666
    %v7387 = vpop.f32.mrf.mxu0
    %v7388 = vadd.f32 %v7275, %v7387
    %7389 = vmatmul.f32.gmra.mxu0 %v6669
    %v7390 = vpop.f32.mrf.mxu0
    %v7391 = vadd.f32 %v7278, %v7390
    %7392 = vmatmul.f32.gmra.mxu0 %v6671
    %v7393 = vpop.f32.mrf.mxu0
    %v7394 = vadd.f32 %v7281, %v7393
    %7395 = vmatmul.f32.gmra.mxu0 %v6674
    %v7396 = vpop.f32.mrf.mxu0
    %v7397 = vadd.f32 %v7284, %v7396
    %7398 = vmatmul.f32.gmra.mxu0 %v6676
    %v7399 = vpop.f32.mrf.mxu0
    %v7400 = vadd.f32 %v7287, %v7399
    %7401 = vmatmul.f32.gmra.mxu0 %v6679
    %v7402 = vpop.f32.mrf.mxu0
    %v7403 = vadd.f32 %v7290, %v7402
    %7404 = vmatmul.f32.gmra.mxu0 %v6681
    %v7405 = vpop.f32.mrf.mxu0
    %v7406 = vadd.f32 %v7293, %v7405
    %7407 = vmatmul.f32.gmra.mxu0 %v6684
    %v7408 = vpop.f32.mrf.mxu0
    %v7409 = vadd.f32 %v7296, %v7408
    %7410 = vmatmul.f32.gmra.mxu0 %v6686
    %v7411 = vpop.f32.mrf.mxu0
    %v7412 = vadd.f32 %v7299, %v7411
    %7413 = vmatmul.f32.gmra.mxu0 %v6689
    %v7414 = vpop.f32.mrf.mxu0
    %v7415 = vadd.f32 %v7302, %v7414
    %7416 = vmatmul.f32.gmra.mxu0 %v6691
    %v7417 = vpop.f32.mrf.mxu0
    %v7418 = vadd.f32 %v7305, %v7417
    %7419 = vmatmul.f32.gmra.mxu0 %v6694
    %v7420 = vpop.f32.mrf.mxu0
    %v7421 = vadd.f32 %v7308, %v7420
    %7422 = vmatmul.f32.gmra.mxu0 %v6696
    %v7423 = vpop.f32.mrf.mxu0
    %v7424 = vadd.f32 %v7311, %v7423
    %7425 = vmatmul.f32.gmra.mxu0 %v6699
    %v7426 = vpop.f32.mrf.mxu0
    %v7427 = vadd.f32 %v7314, %v7426
    %7428 = vmatmul.f32.gmra.mxu0 %v6701
    %v7429 = vpop.f32.mrf.mxu0
    %v7430 = vadd.f32 %v7317, %v7429
    %7431 = vmatmul.f32.gmra.mxu0 %v6704
    %v7432 = vpop.f32.mrf.mxu0
    %v7433 = vadd.f32 %v7320, %v7432
    %7434 = vmatmul.f32.gmra.mxu0 %v6706
    %v7435 = vpop.f32.mrf.mxu0
    %v7436 = vadd.f32 %v7323, %v7435
    %7437 = vmatmul.f32.gmra.mxu0 %v6709
    %v7438 = vpop.f32.mrf.mxu0
    %v7439 = vadd.f32 %v7326, %v7438
    %7440 = vmatmul.f32.gmra.mxu0 %v6711
    %v7441 = vpop.f32.mrf.mxu0
    %v7442 = vadd.f32 %v7329, %v7441
    %7443 = vmatmul.f32.gmra.mxu0 %v6714
    %v7444 = vpop.f32.mrf.mxu0
    %v7445 = vadd.f32 %v7332, %v7444
    %7446 = vmatmul.f32.gmra.mxu0 %v6716
    %v7447 = vpop.f32.mrf.mxu0
    %v7448 = vadd.f32 %v7335, %v7447
    %7449 = vmatmul.f32.gmra.mxu0 %v6719
    %v7450 = vpop.f32.mrf.mxu0
    %v7451 = vadd.f32 %v7338, %v7450
    %7452 = vmatmul.f32.gmra.mxu0 %v6721
    %v7453 = vpop.f32.mrf.mxu0
    %v7454 = vadd.f32 %v7341, %v7453
    %7455 = vmatmul.f32.gmra.mxu0 %v6724
    %v7456 = vpop.f32.mrf.mxu0
    %v7457 = vadd.f32 %v7344, %v7456
    %7458 = vmatmul.f32.gmra.mxu0 %v6726
    %v7459 = vpop.f32.mrf.mxu0
    %v7460 = vadd.f32 %v7347, %v7459
    %7461 = vmatmul.f32.gmra.mxu0 %v6729
    %v7462 = vpop.f32.mrf.mxu0
    %v7463 = vadd.f32 %v7350, %v7462
    %7464 = vmatmul.f32.gmra.mxu0 %v6731
    %v7465 = vpop.f32.mrf.mxu0
    %v7466 = vadd.f32 %v7353, %v7465
    %7467 = vmatmul.f32.gmra.mxu0 %v6734
    %v7468 = vpop.f32.mrf.mxu0
    %v7469 = vadd.f32 %v7356, %v7468
    %7470 = vmatmul.f32.gmra.mxu0 %v6736
    %v7471 = vpop.f32.mrf.mxu0
    %v7472 = vadd.f32 %v7359, %v7471
    %7473 = vmatmul.f32.gmra.mxu0 %v6886
    %v7474 = vpop.f32.mrf.mxu0
    %v7475 = vadd.f32 %v7362, %v7474
    %7476 = vmatmul.f32.gmra.mxu0 %v6888
    %v7477 = vpop.f32.mrf.mxu0
    %v7478 = vadd.f32 %v7365, %v7477
    %7479 = vdwg.mxu0
    %7480 = vmatpush.msra.mxu0 %v576
    %7481 = vmatpush.msra.mxu0 %v575
    %7482 = vmatpush.msra.mxu0 %v574
    %7483 = vmatpush.msra.mxu0 %v573
    %7484 = vmatpush.msra.mxu0 %v572
    %7485 = vmatpush.msra.mxu0 %v571
    %7486 = vmatpush.msra.mxu0 %v570
    %7487 = vmatpush.msra.mxu0 %v569
    %7488 = vmatpush.msra.mxu0 %v568
    %7489 = vmatpush.msra.mxu0 %v567
    %7490 = vmatpush.msra.mxu0 %v566
    %7491 = vmatpush.msra.mxu0 %v565
    %7492 = vmatpush.msra.mxu0 %v564
    %7493 = vmatpush.msra.mxu0 %v563
    %7494 = vmatpush.msra.mxu0 %v562
    %7495 = vmatpush.msra.mxu0 %v561
    %7496 = vmatmul.f32.gmra.mxu0 %v6776
    %v7497 = vpop.f32.mrf.mxu0
    %v7498 = vadd.f32 %v7385, %v7497
    %7499 = vmatmul.f32.gmra.mxu0 %v6778
    %v7500 = vpop.f32.mrf.mxu0
    %v7501 = vadd.f32 %v7388, %v7500
    %7502 = vmatmul.f32.gmra.mxu0 %v6781
    %v7503 = vpop.f32.mrf.mxu0
    %v7504 = vadd.f32 %v7391, %v7503
    %7505 = vmatmul.f32.gmra.mxu0 %v6783
    %v7506 = vpop.f32.mrf.mxu0
    %v7507 = vadd.f32 %v7394, %v7506
    %7508 = vmatmul.f32.gmra.mxu0 %v6786
    %v7509 = vpop.f32.mrf.mxu0
    %v7510 = vadd.f32 %v7397, %v7509
    %7511 = vmatmul.f32.gmra.mxu0 %v6788
    %v7512 = vpop.f32.mrf.mxu0
    %v7513 = vadd.f32 %v7400, %v7512
    %7514 = vmatmul.f32.gmra.mxu0 %v6791
    %v7515 = vpop.f32.mrf.mxu0
    %v7516 = vadd.f32 %v7403, %v7515
    %7517 = vmatmul.f32.gmra.mxu0 %v6793
    %v7518 = vpop.f32.mrf.mxu0
    %v7519 = vadd.f32 %v7406, %v7518
    %7520 = vmatmul.f32.gmra.mxu0 %v6796
    %v7521 = vpop.f32.mrf.mxu0
    %v7522 = vadd.f32 %v7409, %v7521
    %7523 = vmatmul.f32.gmra.mxu0 %v6798
    %v7524 = vpop.f32.mrf.mxu0
    %v7525 = vadd.f32 %v7412, %v7524
    %7526 = vmatmul.f32.gmra.mxu0 %v6801
    %v7527 = vpop.f32.mrf.mxu0
    %v7528 = vadd.f32 %v7415, %v7527
    %7529 = vmatmul.f32.gmra.mxu0 %v6803
    %v7530 = vpop.f32.mrf.mxu0
    %v7531 = vadd.f32 %v7418, %v7530
    %7532 = vmatmul.f32.gmra.mxu0 %v6806
    %v7533 = vpop.f32.mrf.mxu0
    %v7534 = vadd.f32 %v7421, %v7533
    %7535 = vmatmul.f32.gmra.mxu0 %v6808
    %v7536 = vpop.f32.mrf.mxu0
    %v7537 = vadd.f32 %v7424, %v7536
    %7538 = vmatmul.f32.gmra.mxu0 %v6811
    %v7539 = vpop.f32.mrf.mxu0
    %v7540 = vadd.f32 %v7427, %v7539
    %7541 = vmatmul.f32.gmra.mxu0 %v6813
    %v7542 = vpop.f32.mrf.mxu0
    %v7543 = vadd.f32 %v7430, %v7542
    %7544 = vmatmul.f32.gmra.mxu0 %v6816
    %v7545 = vpop.f32.mrf.mxu0
    %v7546 = vadd.f32 %v7433, %v7545
    %7547 = vmatmul.f32.gmra.mxu0 %v6818
    %v7548 = vpop.f32.mrf.mxu0
    %v7549 = vadd.f32 %v7436, %v7548
    %7550 = vmatmul.f32.gmra.mxu0 %v6821
    %v7551 = vpop.f32.mrf.mxu0
    %v7552 = vadd.f32 %v7439, %v7551
    %7553 = vmatmul.f32.gmra.mxu0 %v6823
    %v7554 = vpop.f32.mrf.mxu0
    %v7555 = vadd.f32 %v7442, %v7554
    %7556 = vmatmul.f32.gmra.mxu0 %v6826
    %v7557 = vpop.f32.mrf.mxu0
    %v7558 = vadd.f32 %v7445, %v7557
    %7559 = vmatmul.f32.gmra.mxu0 %v6828
    %v7560 = vpop.f32.mrf.mxu0
    %v7561 = vadd.f32 %v7448, %v7560
    %7562 = vmatmul.f32.gmra.mxu0 %v6831
    %v7563 = vpop.f32.mrf.mxu0
    %v7564 = vadd.f32 %v7451, %v7563
    %7565 = vmatmul.f32.gmra.mxu0 %v6833
    %v7566 = vpop.f32.mrf.mxu0
    %v7567 = vadd.f32 %v7454, %v7566
    %7568 = vmatmul.f32.gmra.mxu0 %v6836
    %v7569 = vpop.f32.mrf.mxu0
    %v7570 = vadd.f32 %v7457, %v7569
    %7571 = vmatmul.f32.gmra.mxu0 %v6838
    %v7572 = vpop.f32.mrf.mxu0
    %v7573 = vadd.f32 %v7460, %v7572
    %7574 = vmatmul.f32.gmra.mxu0 %v6841
    %v7575 = vpop.f32.mrf.mxu0
    %v7576 = vadd.f32 %v7463, %v7575
    %7577 = vmatmul.f32.gmra.mxu0 %v6843
    %v7578 = vpop.f32.mrf.mxu0
    %v7579 = vadd.f32 %v7466, %v7578
    %7580 = vmatmul.f32.gmra.mxu0 %v6846
    %v7581 = vpop.f32.mrf.mxu0
    %v7582 = vadd.f32 %v7469, %v7581
    %7583 = vmatmul.f32.gmra.mxu0 %v6848
    %v7584 = vpop.f32.mrf.mxu0
    %v7585 = vadd.f32 %v7472, %v7584
    %7586 = vmatmul.f32.gmra.mxu0 %v6893
    %v7587 = vpop.f32.mrf.mxu0
    %v7588 = vadd.f32 %v7475, %v7587
    %7589 = vmatmul.f32.gmra.mxu0 %v6895
    %v7590 = vpop.f32.mrf.mxu0
    %v7591 = vadd.f32 %v7478, %v7590
    %7592 = vdwg.mxu0
    %7593 = vmatpush.msra.mxu0 %v592
    %7594 = vmatpush.msra.mxu0 %v591
    %7595 = vmatpush.msra.mxu0 %v590
    %7596 = vmatpush.msra.mxu0 %v589
    %7597 = vmatpush.msra.mxu0 %v588
    %7598 = vmatpush.msra.mxu0 %v587
    %7599 = vmatpush.msra.mxu0 %v586
    %7600 = vmatpush.msra.mxu0 %v585
    %7601 = vmatpush.msra.mxu0 %v584
    %7602 = vmatpush.msra.mxu0 %v583
    %7603 = vmatpush.msra.mxu0 %v582
    %7604 = vmatpush.msra.mxu0 %v581
    %7605 = vmatpush.msra.mxu0 %v580
    %7606 = vmatpush.msra.mxu0 %v579
    %7607 = vmatpush.msra.mxu0 %v578
    %7608 = vmatpush.msra.mxu0 %v577
    %7609 = vmatmul.f32.gmra.mxu0 %v6466
    %v7610 = vpop.f32.mrf.mxu0
    %v7611 = vadd.f32 %v7498, %v7610
    %7612 = vmatmul.f32.gmra.mxu0 %v6469
    %v7613 = vpop.f32.mrf.mxu0
    %v7614 = vadd.f32 %v7501, %v7613
    %7615 = vmatmul.f32.gmra.mxu0 %v6475
    %v7616 = vpop.f32.mrf.mxu0
    %v7617 = vadd.f32 %v7504, %v7616
    %7618 = vmatmul.f32.gmra.mxu0 %v6478
    %v7619 = vpop.f32.mrf.mxu0
    %v7620 = vadd.f32 %v7507, %v7619
    %7621 = vmatmul.f32.gmra.mxu0 %v6484
    %v7622 = vpop.f32.mrf.mxu0
    %v7623 = vadd.f32 %v7510, %v7622
    %7624 = vmatmul.f32.gmra.mxu0 %v6487
    %v7625 = vpop.f32.mrf.mxu0
    %v7626 = vadd.f32 %v7513, %v7625
    %7627 = vmatmul.f32.gmra.mxu0 %v6493
    %v7628 = vpop.f32.mrf.mxu0
    %v7629 = vadd.f32 %v7516, %v7628
    %7630 = vmatmul.f32.gmra.mxu0 %v6496
    %v7631 = vpop.f32.mrf.mxu0
    %v7632 = vadd.f32 %v7519, %v7631
    %7633 = vmatmul.f32.gmra.mxu0 %v6502
    %v7634 = vpop.f32.mrf.mxu0
    %v7635 = vadd.f32 %v7522, %v7634
    %7636 = vmatmul.f32.gmra.mxu0 %v6505
    %v7637 = vpop.f32.mrf.mxu0
    %v7638 = vadd.f32 %v7525, %v7637
    %7639 = vmatmul.f32.gmra.mxu0 %v6511
    %v7640 = vpop.f32.mrf.mxu0
    %v7641 = vadd.f32 %v7528, %v7640
    %7642 = vmatmul.f32.gmra.mxu0 %v6514
    %v7643 = vpop.f32.mrf.mxu0
    %v7644 = vadd.f32 %v7531, %v7643
    %7645 = vmatmul.f32.gmra.mxu0 %v6520
    %v7646 = vpop.f32.mrf.mxu0
    %v7647 = vadd.f32 %v7534, %v7646
    %7648 = vmatmul.f32.gmra.mxu0 %v6523
    %v7649 = vpop.f32.mrf.mxu0
    %v7650 = vadd.f32 %v7537, %v7649
    %7651 = vmatmul.f32.gmra.mxu0 %v6529
    %v7652 = vpop.f32.mrf.mxu0
    %v7653 = vadd.f32 %v7540, %v7652
    %7654 = vmatmul.f32.gmra.mxu0 %v6532
    %v7655 = vpop.f32.mrf.mxu0
    %v7656 = vadd.f32 %v7543, %v7655
    %7657 = vmatmul.f32.gmra.mxu0 %v6538
    %v7658 = vpop.f32.mrf.mxu0
    %v7659 = vadd.f32 %v7546, %v7658
    %7660 = vmatmul.f32.gmra.mxu0 %v6541
    %v7661 = vpop.f32.mrf.mxu0
    %v7662 = vadd.f32 %v7549, %v7661
    %7663 = vmatmul.f32.gmra.mxu0 %v6547
    %v7664 = vpop.f32.mrf.mxu0
    %v7665 = vadd.f32 %v7552, %v7664
    %7666 = vmatmul.f32.gmra.mxu0 %v6550
    %v7667 = vpop.f32.mrf.mxu0
    %v7668 = vadd.f32 %v7555, %v7667
    %7669 = vmatmul.f32.gmra.mxu0 %v6556
    %v7670 = vpop.f32.mrf.mxu0
    %v7671 = vadd.f32 %v7558, %v7670
    %7672 = vmatmul.f32.gmra.mxu0 %v6559
    %v7673 = vpop.f32.mrf.mxu0
    %v7674 = vadd.f32 %v7561, %v7673
    %7675 = vmatmul.f32.gmra.mxu0 %v6565
    %v7676 = vpop.f32.mrf.mxu0
    %v7677 = vadd.f32 %v7564, %v7676
    %7678 = vmatmul.f32.gmra.mxu0 %v6568
    %v7679 = vpop.f32.mrf.mxu0
    %v7680 = vadd.f32 %v7567, %v7679
    %7681 = vmatmul.f32.gmra.mxu0 %v6574
    %v7682 = vpop.f32.mrf.mxu0
    %v7683 = vadd.f32 %v7570, %v7682
    %7684 = vmatmul.f32.gmra.mxu0 %v6577
    %v7685 = vpop.f32.mrf.mxu0
    %v7686 = vadd.f32 %v7573, %v7685
    %7687 = vmatmul.f32.gmra.mxu0 %v6583
    %v7688 = vpop.f32.mrf.mxu0
    %v7689 = vadd.f32 %v7576, %v7688
    %7690 = vmatmul.f32.gmra.mxu0 %v6586
    %v7691 = vpop.f32.mrf.mxu0
    %v7692 = vadd.f32 %v7579, %v7691
    %7693 = vmatmul.f32.gmra.mxu0 %v6592
    %v7694 = vpop.f32.mrf.mxu0
    %v7695 = vadd.f32 %v7582, %v7694
    %7696 = vmatmul.f32.gmra.mxu0 %v6595
    %v7697 = vpop.f32.mrf.mxu0
    %v7698 = vadd.f32 %v7585, %v7697
    %7699 = vmatmul.f32.gmra.mxu0 %v6601
    %v7700 = vpop.f32.mrf.mxu0
    %v7701 = vadd.f32 %v7588, %v7700
    %7702 = vmatmul.f32.gmra.mxu0 %v6604
    %v7703 = vpop.f32.mrf.mxu0
    %v7704 = vadd.f32 %v7591, %v7703
    %7705 = vdwg.mxu0
    %7706 = vmatpush.msra.mxu0 %v608
    %7707 = vmatpush.msra.mxu0 %v607
    %7708 = vmatpush.msra.mxu0 %v606
    %7709 = vmatpush.msra.mxu0 %v605
    %7710 = vmatpush.msra.mxu0 %v604
    %7711 = vmatpush.msra.mxu0 %v603
    %7712 = vmatpush.msra.mxu0 %v602
    %7713 = vmatpush.msra.mxu0 %v601
    %7714 = vmatpush.msra.mxu0 %v600
    %7715 = vmatpush.msra.mxu0 %v599
    %7716 = vmatpush.msra.mxu0 %v598
    %7717 = vmatpush.msra.mxu0 %v597
    %7718 = vmatpush.msra.mxu0 %v596
    %7719 = vmatpush.msra.mxu0 %v595
    %7720 = vmatpush.msra.mxu0 %v594
    %7721 = vmatpush.msra.mxu0 %v593
    %7722 = vmatmul.f32.gmra.mxu0 %v6669
    %v7723 = vpop.f32.mrf.mxu0
    %v7724 = vadd.f32 %v7611, %v7723
    %7725 = vmatmul.f32.gmra.mxu0 %v6671
    %v7726 = vpop.f32.mrf.mxu0
    %v7727 = vadd.f32 %v7614, %v7726
    %7728 = vmatmul.f32.gmra.mxu0 %v6674
    %v7729 = vpop.f32.mrf.mxu0
    %v7730 = vadd.f32 %v7617, %v7729
    %7731 = vmatmul.f32.gmra.mxu0 %v6676
    %v7732 = vpop.f32.mrf.mxu0
    %v7733 = vadd.f32 %v7620, %v7732
    %7734 = vmatmul.f32.gmra.mxu0 %v6679
    %v7735 = vpop.f32.mrf.mxu0
    %v7736 = vadd.f32 %v7623, %v7735
    %7737 = vmatmul.f32.gmra.mxu0 %v6681
    %v7738 = vpop.f32.mrf.mxu0
    %v7739 = vadd.f32 %v7626, %v7738
    %7740 = vmatmul.f32.gmra.mxu0 %v6684
    %v7741 = vpop.f32.mrf.mxu0
    %v7742 = vadd.f32 %v7629, %v7741
    %7743 = vmatmul.f32.gmra.mxu0 %v6686
    %v7744 = vpop.f32.mrf.mxu0
    %v7745 = vadd.f32 %v7632, %v7744
    %7746 = vmatmul.f32.gmra.mxu0 %v6689
    %v7747 = vpop.f32.mrf.mxu0
    %v7748 = vadd.f32 %v7635, %v7747
    %7749 = vmatmul.f32.gmra.mxu0 %v6691
    %v7750 = vpop.f32.mrf.mxu0
    %v7751 = vadd.f32 %v7638, %v7750
    %7752 = vmatmul.f32.gmra.mxu0 %v6694
    %v7753 = vpop.f32.mrf.mxu0
    %v7754 = vadd.f32 %v7641, %v7753
    %7755 = vmatmul.f32.gmra.mxu0 %v6696
    %v7756 = vpop.f32.mrf.mxu0
    %v7757 = vadd.f32 %v7644, %v7756
    %7758 = vmatmul.f32.gmra.mxu0 %v6699
    %v7759 = vpop.f32.mrf.mxu0
    %v7760 = vadd.f32 %v7647, %v7759
    %7761 = vmatmul.f32.gmra.mxu0 %v6701
    %v7762 = vpop.f32.mrf.mxu0
    %v7763 = vadd.f32 %v7650, %v7762
    %7764 = vmatmul.f32.gmra.mxu0 %v6704
    %v7765 = vpop.f32.mrf.mxu0
    %v7766 = vadd.f32 %v7653, %v7765
    %7767 = vmatmul.f32.gmra.mxu0 %v6706
    %v7768 = vpop.f32.mrf.mxu0
    %v7769 = vadd.f32 %v7656, %v7768
    %7770 = vmatmul.f32.gmra.mxu0 %v6709
    %v7771 = vpop.f32.mrf.mxu0
    %v7772 = vadd.f32 %v7659, %v7771
    %7773 = vmatmul.f32.gmra.mxu0 %v6711
    %v7774 = vpop.f32.mrf.mxu0
    %v7775 = vadd.f32 %v7662, %v7774
    %7776 = vmatmul.f32.gmra.mxu0 %v6714
    %v7777 = vpop.f32.mrf.mxu0
    %v7778 = vadd.f32 %v7665, %v7777
    %7779 = vmatmul.f32.gmra.mxu0 %v6716
    %v7780 = vpop.f32.mrf.mxu0
    %v7781 = vadd.f32 %v7668, %v7780
    %7782 = vmatmul.f32.gmra.mxu0 %v6719
    %v7783 = vpop.f32.mrf.mxu0
    %v7784 = vadd.f32 %v7671, %v7783
    %7785 = vmatmul.f32.gmra.mxu0 %v6721
    %v7786 = vpop.f32.mrf.mxu0
    %v7787 = vadd.f32 %v7674, %v7786
    %7788 = vmatmul.f32.gmra.mxu0 %v6724
    %v7789 = vpop.f32.mrf.mxu0
    %v7790 = vadd.f32 %v7677, %v7789
    %7791 = vmatmul.f32.gmra.mxu0 %v6726
    %v7792 = vpop.f32.mrf.mxu0
    %v7793 = vadd.f32 %v7680, %v7792
    %7794 = vmatmul.f32.gmra.mxu0 %v6729
    %v7795 = vpop.f32.mrf.mxu0
    %v7796 = vadd.f32 %v7683, %v7795
    %7797 = vmatmul.f32.gmra.mxu0 %v6731
    %v7798 = vpop.f32.mrf.mxu0
    %v7799 = vadd.f32 %v7686, %v7798
    %7800 = vmatmul.f32.gmra.mxu0 %v6734
    %v7801 = vpop.f32.mrf.mxu0
    %v7802 = vadd.f32 %v7689, %v7801
    %7803 = vmatmul.f32.gmra.mxu0 %v6736
    %v7804 = vpop.f32.mrf.mxu0
    %v7805 = vadd.f32 %v7692, %v7804
    %7806 = vmatmul.f32.gmra.mxu0 %v6886
    %v7807 = vpop.f32.mrf.mxu0
    %v7808 = vadd.f32 %v7695, %v7807
    %7809 = vmatmul.f32.gmra.mxu0 %v6888
    %v7810 = vpop.f32.mrf.mxu0
    %v7811 = vadd.f32 %v7698, %v7810
    %7812 = vmatmul.f32.gmra.mxu0 %v6903
    %v7813 = vpop.f32.mrf.mxu0
    %v7814 = vadd.f32 %v7701, %v7813
    %7815 = vmatmul.f32.gmra.mxu0 %v6905
    %v7816 = vpop.f32.mrf.mxu0
    %v7817 = vadd.f32 %v7704, %v7816
    %7818 = vdwg.mxu0
    %7819 = vmatpush.msra.mxu0 %v624
    %7820 = vmatpush.msra.mxu0 %v623
    %7821 = vmatpush.msra.mxu0 %v622
    %7822 = vmatpush.msra.mxu0 %v621
    %7823 = vmatpush.msra.mxu0 %v620
    %7824 = vmatpush.msra.mxu0 %v619
    %7825 = vmatpush.msra.mxu0 %v618
    %7826 = vmatpush.msra.mxu0 %v617
    %7827 = vmatpush.msra.mxu0 %v616
    %7828 = vmatpush.msra.mxu0 %v615
    %7829 = vmatpush.msra.mxu0 %v614
    %7830 = vmatpush.msra.mxu0 %v613
    %7831 = vmatpush.msra.mxu0 %v612
    %7832 = vmatpush.msra.mxu0 %v611
    %7833 = vmatpush.msra.mxu0 %v610
    %7834 = vmatpush.msra.mxu0 %v609
    %7835 = vmatmul.f32.gmra.mxu0 %v6781
    %v7836 = vpop.f32.mrf.mxu0
    %v7837 = vadd.f32 %v7724, %v7836
    %7838 = vmatmul.f32.gmra.mxu0 %v6783
    %v7839 = vpop.f32.mrf.mxu0
    %v7840 = vadd.f32 %v7727, %v7839
    %7841 = vmatmul.f32.gmra.mxu0 %v6786
    %v7842 = vpop.f32.mrf.mxu0
    %v7843 = vadd.f32 %v7730, %v7842
    %7844 = vmatmul.f32.gmra.mxu0 %v6788
    %v7845 = vpop.f32.mrf.mxu0
    %v7846 = vadd.f32 %v7733, %v7845
    %7847 = vmatmul.f32.gmra.mxu0 %v6791
    %v7848 = vpop.f32.mrf.mxu0
    %v7849 = vadd.f32 %v7736, %v7848
    %7850 = vmatmul.f32.gmra.mxu0 %v6793
    %v7851 = vpop.f32.mrf.mxu0
    %v7852 = vadd.f32 %v7739, %v7851
    %7853 = vmatmul.f32.gmra.mxu0 %v6796
    %v7854 = vpop.f32.mrf.mxu0
    %v7855 = vadd.f32 %v7742, %v7854
    %7856 = vmatmul.f32.gmra.mxu0 %v6798
    %v7857 = vpop.f32.mrf.mxu0
    %v7858 = vadd.f32 %v7745, %v7857
    %7859 = vmatmul.f32.gmra.mxu0 %v6801
    %v7860 = vpop.f32.mrf.mxu0
    %v7861 = vadd.f32 %v7748, %v7860
    %7862 = vmatmul.f32.gmra.mxu0 %v6803
    %v7863 = vpop.f32.mrf.mxu0
    %v7864 = vadd.f32 %v7751, %v7863
    %7865 = vmatmul.f32.gmra.mxu0 %v6806
    %v7866 = vpop.f32.mrf.mxu0
    %v7867 = vadd.f32 %v7754, %v7866
    %7868 = vmatmul.f32.gmra.mxu0 %v6808
    %v7869 = vpop.f32.mrf.mxu0
    %v7870 = vadd.f32 %v7757, %v7869
    %7871 = vmatmul.f32.gmra.mxu0 %v6811
    %v7872 = vpop.f32.mrf.mxu0
    %v7873 = vadd.f32 %v7760, %v7872
    %7874 = vmatmul.f32.gmra.mxu0 %v6813
    %v7875 = vpop.f32.mrf.mxu0
    %v7876 = vadd.f32 %v7763, %v7875
    %7877 = vmatmul.f32.gmra.mxu0 %v6816
    %v7878 = vpop.f32.mrf.mxu0
    %v7879 = vadd.f32 %v7766, %v7878
    %7880 = vmatmul.f32.gmra.mxu0 %v6818
    %v7881 = vpop.f32.mrf.mxu0
    %v7882 = vadd.f32 %v7769, %v7881
    %7883 = vmatmul.f32.gmra.mxu0 %v6821
    %v7884 = vpop.f32.mrf.mxu0
    %v7885 = vadd.f32 %v7772, %v7884
    %7886 = vmatmul.f32.gmra.mxu0 %v6823
    %v7887 = vpop.f32.mrf.mxu0
    %v7888 = vadd.f32 %v7775, %v7887
    %7889 = vmatmul.f32.gmra.mxu0 %v6826
    %v7890 = vpop.f32.mrf.mxu0
    %v7891 = vadd.f32 %v7778, %v7890
    %7892 = vmatmul.f32.gmra.mxu0 %v6828
    %v7893 = vpop.f32.mrf.mxu0
    %v7894 = vadd.f32 %v7781, %v7893
    %7895 = vmatmul.f32.gmra.mxu0 %v6831
    %v7896 = vpop.f32.mrf.mxu0
    %v7897 = vadd.f32 %v7784, %v7896
    %7898 = vmatmul.f32.gmra.mxu0 %v6833
    %v7899 = vpop.f32.mrf.mxu0
    %v7900 = vadd.f32 %v7787, %v7899
    %7901 = vmatmul.f32.gmra.mxu0 %v6836
    %v7902 = vpop.f32.mrf.mxu0
    %v7903 = vadd.f32 %v7790, %v7902
    %7904 = vmatmul.f32.gmra.mxu0 %v6838
    %v7905 = vpop.f32.mrf.mxu0
    %v7906 = vadd.f32 %v7793, %v7905
    %7907 = vmatmul.f32.gmra.mxu0 %v6841
    %v7908 = vpop.f32.mrf.mxu0
    %v7909 = vadd.f32 %v7796, %v7908
    %7910 = vmatmul.f32.gmra.mxu0 %v6843
    %v7911 = vpop.f32.mrf.mxu0
    %v7912 = vadd.f32 %v7799, %v7911
    %7913 = vmatmul.f32.gmra.mxu0 %v6846
    %v7914 = vpop.f32.mrf.mxu0
    %v7915 = vadd.f32 %v7802, %v7914
    %7916 = vmatmul.f32.gmra.mxu0 %v6848
    %v7917 = vpop.f32.mrf.mxu0
    %v7918 = vadd.f32 %v7805, %v7917
    %7919 = vmatmul.f32.gmra.mxu0 %v6893
    %v7920 = vpop.f32.mrf.mxu0
    %v7921 = vadd.f32 %v7808, %v7920
    %7922 = vmatmul.f32.gmra.mxu0 %v6895
    %v7923 = vpop.f32.mrf.mxu0
    %v7924 = vadd.f32 %v7811, %v7923
    %7925 = vmatmul.f32.gmra.mxu0 %v6910
    %v7926 = vpop.f32.mrf.mxu0
    %v7927 = vadd.f32 %v7814, %v7926
    %7928 = vmatmul.f32.gmra.mxu0 %v6912
    %v7929 = vpop.f32.mrf.mxu0
    %v7930 = vadd.f32 %v7817, %v7929
    %7931 = vdwg.mxu0
    %7932 = vmatpush.msra.mxu0 0.0
    %7933 = vmatpush.msra.mxu0 0.0
    %7934 = vmatpush.msra.mxu0 0.0
    %7935 = vmatpush.msra.mxu0 0.0
    %7936 = vmatpush.msra.mxu0 0.0
    %7937 = vmatpush.msra.mxu0 0.0
    %7938 = vmatpush.msra.mxu0 0.0
    %7939 = vmatpush.msra.mxu0 0.0
    %7940 = vmatpush.msra.mxu0 %v57
    %7941 = vmatpush.msra.mxu0 %v56
    %7942 = vmatpush.msra.mxu0 %v55
    %7943 = vmatpush.msra.mxu0 %v54
    %7944 = vmatpush.msra.mxu0 %v53
    %7945 = vmatpush.msra.mxu0 %v52
    %7946 = vmatpush.msra.mxu0 %v51
    %7947 = vmatpush.msra.mxu0 %v50
    %7948 = vmatmul.f32.gmra.mxu0 %v5883
    %v7949 = vpop.f32.mrf.mxu0
    %v7950 = vadd.f32 0.0, %v7949
    %7951 = vmatmul.f32.gmra.mxu0 %v5886
    %v7952 = vpop.f32.mrf.mxu0
    %v7953 = vadd.f32 0.0, %v7952
    %7954 = vmatmul.f32.gmra.mxu0 %v5889
    %v7955 = vpop.f32.mrf.mxu0
    %v7956 = vadd.f32 0.0, %v7955
    %7957 = vmatmul.f32.gmra.mxu0 %v5892
    %v7958 = vpop.f32.mrf.mxu0
    %v7959 = vadd.f32 0.0, %v7958
    %7960 = vmatmul.f32.gmra.mxu0 %v5895
    %v7961 = vpop.f32.mrf.mxu0
    %v7962 = vadd.f32 0.0, %v7961
    %7963 = vmatmul.f32.gmra.mxu0 %v5898
    %v7964 = vpop.f32.mrf.mxu0
    %v7965 = vadd.f32 0.0, %v7964
    %7966 = vmatmul.f32.gmra.mxu0 %v5901
    %v7967 = vpop.f32.mrf.mxu0
    %v7968 = vadd.f32 0.0, %v7967
    %7969 = vmatmul.f32.gmra.mxu0 %v5904
    %v7970 = vpop.f32.mrf.mxu0
    %v7971 = vadd.f32 0.0, %v7970
    %7972 = vmatmul.f32.gmra.mxu0 %v5907
    %v7973 = vpop.f32.mrf.mxu0
    %v7974 = vadd.f32 0.0, %v7973
    %7975 = vmatmul.f32.gmra.mxu0 %v5910
    %v7976 = vpop.f32.mrf.mxu0
    %v7977 = vadd.f32 0.0, %v7976
    %7978 = vmatmul.f32.gmra.mxu0 %v5913
    %v7979 = vpop.f32.mrf.mxu0
    %v7980 = vadd.f32 0.0, %v7979
    %7981 = vmatmul.f32.gmra.mxu0 %v5916
    %v7982 = vpop.f32.mrf.mxu0
    %v7983 = vadd.f32 0.0, %v7982
    %7984 = vmatmul.f32.gmra.mxu0 %v5919
    %v7985 = vpop.f32.mrf.mxu0
    %v7986 = vadd.f32 0.0, %v7985
    %7987 = vmatmul.f32.gmra.mxu0 %v5922
    %v7988 = vpop.f32.mrf.mxu0
    %v7989 = vadd.f32 0.0, %v7988
    %7990 = vmatmul.f32.gmra.mxu0 %v5925
    %v7991 = vpop.f32.mrf.mxu0
    %v7992 = vadd.f32 0.0, %v7991
    %7993 = vmatmul.f32.gmra.mxu0 %v5928
    %v7994 = vpop.f32.mrf.mxu0
    %v7995 = vadd.f32 0.0, %v7994
    %7996 = vmatmul.f32.gmra.mxu0 %v5931
    %v7997 = vpop.f32.mrf.mxu0
    %v7998 = vadd.f32 0.0, %v7997
    %7999 = vmatmul.f32.gmra.mxu0 %v5934
    %v8000 = vpop.f32.mrf.mxu0
    %v8001 = vadd.f32 0.0, %v8000
    %8002 = vmatmul.f32.gmra.mxu0 %v5937
    %v8003 = vpop.f32.mrf.mxu0
    %v8004 = vadd.f32 0.0, %v8003
    %8005 = vmatmul.f32.gmra.mxu0 %v5940
    %v8006 = vpop.f32.mrf.mxu0
    %v8007 = vadd.f32 0.0, %v8006
    %8008 = vmatmul.f32.gmra.mxu0 %v5943
    %v8009 = vpop.f32.mrf.mxu0
    %v8010 = vadd.f32 0.0, %v8009
    %8011 = vmatmul.f32.gmra.mxu0 %v5946
    %v8012 = vpop.f32.mrf.mxu0
    %v8013 = vadd.f32 0.0, %v8012
    %8014 = vmatmul.f32.gmra.mxu0 %v5949
    %v8015 = vpop.f32.mrf.mxu0
    %v8016 = vadd.f32 0.0, %v8015
    %8017 = vmatmul.f32.gmra.mxu0 %v5952
    %v8018 = vpop.f32.mrf.mxu0
    %v8019 = vadd.f32 0.0, %v8018
    %8020 = vmatmul.f32.gmra.mxu0 %v5955
    %v8021 = vpop.f32.mrf.mxu0
    %v8022 = vadd.f32 0.0, %v8021
    %8023 = vmatmul.f32.gmra.mxu0 %v5958
    %v8024 = vpop.f32.mrf.mxu0
    %v8025 = vadd.f32 0.0, %v8024
    %8026 = vmatmul.f32.gmra.mxu0 %v5961
    %v8027 = vpop.f32.mrf.mxu0
    %v8028 = vadd.f32 0.0, %v8027
    %8029 = vmatmul.f32.gmra.mxu0 %v5964
    %v8030 = vpop.f32.mrf.mxu0
    %v8031 = vadd.f32 0.0, %v8030
    %8032 = vmatmul.f32.gmra.mxu0 %v5967
    %v8033 = vpop.f32.mrf.mxu0
    %v8034 = vadd.f32 0.0, %v8033
    %8035 = vmatmul.f32.gmra.mxu0 %v5970
    %v8036 = vpop.f32.mrf.mxu0
    %v8037 = vadd.f32 0.0, %v8036
    %8038 = vmatmul.f32.gmra.mxu0 %v5973
    %v8039 = vpop.f32.mrf.mxu0
    %v8040 = vadd.f32 0.0, %v8039
    %8041 = vmatmul.f32.gmra.mxu0 %v5976
    %v8042 = vpop.f32.mrf.mxu0
    %v8043 = vadd.f32 0.0, %v8042
    %8044 = vdwg.mxu0
    %v8045 = vadd.f32 %v7837, %v7950
    %v8046 = vadd.f32 %v7840, %v7953
    %v8047 = vadd.f32 %v7843, %v7956
    %v8048 = vadd.f32 %v7846, %v7959
    %v8049 = vadd.f32 %v7849, %v7962
    %v8050 = vadd.f32 %v7852, %v7965
    %v8051 = vadd.f32 %v7855, %v7968
    %v8052 = vadd.f32 %v7858, %v7971
    %v8053 = vadd.f32 %v7861, %v7974
    %v8054 = vadd.f32 %v7864, %v7977
    %v8055 = vadd.f32 %v7867, %v7980
    %v8056 = vadd.f32 %v7870, %v7983
    %v8057 = vadd.f32 %v7873, %v7986
    %v8058 = vadd.f32 %v7876, %v7989
    %v8059 = vadd.f32 %v7879, %v7992
    %v8060 = vadd.f32 %v7882, %v7995
    %v8061 = vadd.f32 %v7885, %v7998
    %v8062 = vadd.f32 %v7888, %v8001
    %v8063 = vadd.f32 %v7891, %v8004
    %v8064 = vadd.f32 %v7894, %v8007
    %v8065 = vadd.f32 %v7897, %v8010
    %v8066 = vadd.f32 %v7900, %v8013
    %v8067 = vadd.f32 %v7903, %v8016
    %v8068 = vadd.f32 %v7906, %v8019
    %v8069 = vadd.f32 %v7909, %v8022
    %v8070 = vadd.f32 %v7912, %v8025
    %v8071 = vadd.f32 %v7915, %v8028
    %v8072 = vadd.f32 %v7918, %v8031
    %v8073 = vadd.f32 %v7921, %v8034
    %v8074 = vadd.f32 %v7924, %v8037
    %v8075 = vadd.f32 %v7927, %v8040
    %v8076 = vadd.f32 %v7930, %v8043
    %s8077 = scalar_lea.vmem [#allocation2], 256
    %8078 = vst [vmem:[%s8077] sm:$0xff] %v8045
    %8079 = vst [vmem:[%s8077 + $0x8] sm:$0xff] %v8046
    %8080 = vst [vmem:[%s8077 + $0x10] sm:$0xff] %v8047
    %8081 = vst [vmem:[%s8077 + $0x18] sm:$0xff] %v8048
    %8082 = vst [vmem:[%s8077 + $0x20] sm:$0xff] %v8049
    %8083 = vst [vmem:[%s8077 + $0x28] sm:$0xff] %v8050
    %8084 = vst [vmem:[%s8077 + $0x30] sm:$0xff] %v8051
    %8085 = vst [vmem:[%s8077 + $0x38] sm:$0xff] %v8052
    %8086 = vst [vmem:[%s8077 + $0x40] sm:$0xff] %v8053
    %8087 = vst [vmem:[%s8077 + $0x48] sm:$0xff] %v8054
    %8088 = vst [vmem:[%s8077 + $0x50] sm:$0xff] %v8055
    %8089 = vst [vmem:[%s8077 + $0x58] sm:$0xff] %v8056
    %8090 = vst [vmem:[%s8077 + $0x60] sm:$0xff] %v8057
    %8091 = vst [vmem:[%s8077 + $0x68] sm:$0xff] %v8058
    %8092 = vst [vmem:[%s8077 + $0x70] sm:$0xff] %v8059
    %8093 = vst [vmem:[%s8077 + $0x78] sm:$0xff] %v8060
    %8094 = vst [vmem:[%s8077 + $0x80] sm:$0xff] %v8061
    %8095 = vst [vmem:[%s8077 + $0x88] sm:$0xff] %v8062
    %8096 = vst [vmem:[%s8077 + $0x90] sm:$0xff] %v8063
    %8097 = vst [vmem:[%s8077 + $0x98] sm:$0xff] %v8064
    %8098 = vst [vmem:[%s8077 + $0xa0] sm:$0xff] %v8065
    %8099 = vst [vmem:[%s8077 + $0xa8] sm:$0xff] %v8066
    %8100 = vst [vmem:[%s8077 + $0xb0] sm:$0xff] %v8067
    %8101 = vst [vmem:[%s8077 + $0xb8] sm:$0xff] %v8068
    %8102 = vst [vmem:[%s8077 + $0xc0] sm:$0xff] %v8069
    %8103 = vst [vmem:[%s8077 + $0xc8] sm:$0xff] %v8070
    %8104 = vst [vmem:[%s8077 + $0xd0] sm:$0xff] %v8071
    %8105 = vst [vmem:[%s8077 + $0xd8] sm:$0xff] %v8072
    %8106 = vst [vmem:[%s8077 + $0xe0] sm:$0xff] %v8073
    %8107 = vst [vmem:[%s8077 + $0xe8] sm:$0xff] %v8074
    %8108 = vst [vmem:[%s8077 + $0xf0] sm:$0xff] %v8075
    %8109 = vst [vmem:[%s8077 + $0xf8] sm:$0xff] %v8076
    // Predicated region
    $region50: #{resblock_generator_forward.1} parent=1 // pred_check
      _
    $region51: #{resblock_generator_forward.1} parent=1 // pred_check_branch
      %8111 = sbr.rel (0) target = $region53
    $region52: #{resblock_generator_forward.1} parent=1 // pred_region
      %8113 = vsyncadd [#allocation3], 0
      %s8114 = sshll.u32 [#allocation2], 4
      %s8115 = int_to_ptr.vmem [resolvable:$true] %s8114
      %s8116 = sshll.u32 %s12, 4
      %s8117 = int_to_ptr.hbm [resolvable:$true] %s8116
      %8122 = dma.vmem_to_hbm [thread:$0]  %s8115, 8192, %s8117, [#allocation3], 128, 128, 8
    $region53: #{resblock_generator_forward.1} parent=1 // pred_fallthru
      _
    // Predicated region
    $region54: #{resblock_generator_forward.1} parent=1 // pred_check
      _
    $region55: #{resblock_generator_forward.1} parent=1 // pred_check_branch
      %8124 = sbr.rel (0) target = $region57
    $region56: #{resblock_generator_forward.1} parent=1 // pred_region
      %8126 = dma.done [#allocation3], 8192
    $region57: #{resblock_generator_forward.1} parent=1 // pred_fallthru
      _
    %8127 = vsyncpa [#allocation3], 1

</llo_original>
